<compile_context>
chip_gen: v5e
topology: v5e:2x2
jax: 0.10.0
libtpu: 0.0.40
codegen_flags: <defaults>
</compile_context>

<pallas_src>
import functools

import numpy as np

import jax
import jax.numpy as jnp
from jax.experimental import pallas as pl
from jax.experimental.pallas import tpu as pltpu

EPS = 1e-5
LANE = 128
STORE_DTYPE = jnp.bfloat16

CFG = dict(
    in_channels=3,
    in_size=112,
    init_block_channels=8,
    channels=[[24, 24], [48, 48]],
    groups=2,
    num_classes=10,
)


def _mpad(m):
    return ((m + LANE - 1) // LANE) * LANE


# -----------------------------------------------------------------------------
# Pallas kernels
# -----------------------------------------------------------------------------


def _init_block_kernel(cols_ref, w_ref, b_ref, m_ref, o_ref, *, c0):
    """Fused init block: 3x3/2 conv (+BN+ReLU) and 3x3/2 maxpool.

    cols: (49*cin, Mp) stride-4 7x7 im2col of the input (lane-dense)
    w:    (9*c0, 49*cin) -- for each maxpool tap, the conv 3x3x3 window
          embedded at the right columns (BN scale folded)
    b:    (9*c0, 1) BN bias per tap block
    m:    (9, Mp) maxpool tap validity (and pos<M) mask
    o:    (c0, Mp) pooled output slab at 28x28 geometry
    """
    y = jnp.dot(w_ref[...], cols_ref[...], preferred_element_type=jnp.float32)
    y = jnp.maximum(y + b_ref[...], 0.0)          # conv + BN + ReLU (>= 0)
    mask = m_ref[...]
    out = None
    for t in range(9):
        # values are >= 0, so masking excluded taps to 0 never changes the max
        blk = y[t * c0:(t + 1) * c0, :] * mask[t:t + 1, :]
        out = blk if out is None else jnp.maximum(out, blk)
    o_ref[...] = out.astype(o_ref.dtype)


def _dw_taps(buf_ref, mask, pad, w_sp, mpad, wdw=None):
    """9-tap 3x3 accumulation on the flat (C, Mpad) layout.

    buf_ref holds the activation zero-padded by `pad` lanes on each side; each
    tap is a shifted VMEM read, multiplied by the per-position validity mask
    (zero padding / image boundaries) and, for the depthwise conv, by the
    per-channel tap weight.
    """
    acc = None
    t = 0
    for ky in range(3):
        for kx in range(3):
            s = (ky - 1) * w_sp + (kx - 1)
            tap = buf_ref[:, pad + s: pad + s + mpad] * mask[t:t + 1, :]
            if wdw is not None:
                tap = tap * wdw[:, t:t + 1]
            acc = tap if acc is None else acc + tap
            t += 1
    return acc


def _unit_s1_kernel(x_ref, w1_ref, b1_ref, wdw_ref, b2_ref, w3_ref, b3_ref,
                    m_ref, o_ref, ybuf, *, w_sp, mpad, pad):
    """Fused stride-1 ShuffleUnit: compress -> dw3x3 -> expand -> +x -> ReLU.

    Group structure, channel shuffle and BN are folded into w1/wdw/w3 on host.
    """
    x = x_ref[...]
    y = jnp.dot(w1_ref[...], x, preferred_element_type=jnp.float32) + b1_ref[...]
    y = jnp.maximum(y, 0.0)
    ybuf[...] = jnp.zeros_like(ybuf)
    ybuf[:, pad:pad + mpad] = y
    d = _dw_taps(ybuf, m_ref[...], pad, w_sp, mpad, wdw=wdw_ref[...]) + b2_ref[...]
    z = jnp.dot(w3_ref[...], d.astype(w3_ref.dtype),
                preferred_element_type=jnp.float32) + b3_ref[...]
    o_ref[...] = jnp.maximum(z + x.astype(jnp.float32), 0.0).astype(o_ref.dtype)


def _unit_s2_kernel(x_ref, w1_ref, b1_ref, wdw_ref, b2_ref, w3_ref, b3_ref,
                    m_ref, s_ref, o_ref, ybuf, xbuf,
                    *, w_sp, mpad_in, pad, out_eff, cin):
    """Fused downsample ShuffleUnit: compress -> dw3x3/2 -> expand -> ReLU,
    concatenated with the 3x3/2 avg-pooled identity (ReLU fused).

    Stride 2 is realised as: stride-1 result on the flat layout, then a matmul
    with a 0/1 selection matrix `sel` picking the even (y, x) positions.
    """
    x = x_ref[...]
    mask = m_ref[...]
    sel = s_ref[...]
    # main branch
    y = jnp.dot(w1_ref[...], x, preferred_element_type=jnp.float32) + b1_ref[...]
    y = jnp.maximum(y, 0.0)
    ybuf[...] = jnp.zeros_like(ybuf)
    ybuf[:, pad:pad + mpad_in] = y
    full = _dw_taps(ybuf, mask, pad, w_sp, mpad_in, wdw=wdw_ref[...])
    d = jnp.dot(full.astype(sel.dtype), sel,
                preferred_element_type=jnp.float32) + b2_ref[...]
    z = jnp.dot(w3_ref[...], d.astype(w3_ref.dtype),
                preferred_element_type=jnp.float32) + b3_ref[...]
    o_ref[0:out_eff, :] = jnp.maximum(z, 0.0).astype(o_ref.dtype)
    # identity branch: 3x3/2 avg pool (count_include_pad=True) + ReLU, concat
    xbuf[...] = jnp.zeros_like(xbuf)
    xbuf[:, pad:pad + mpad_in] = x.astype(jnp.float32)
    pooled = _dw_taps(xbuf, mask, pad, w_sp, mpad_in) * (1.0 / 9.0)
    idp = jnp.dot(pooled.astype(sel.dtype), sel, preferred_element_type=jnp.float32)
    o_ref[out_eff:out_eff + cin, :] = jnp.maximum(idp, 0.0).astype(o_ref.dtype)


# -----------------------------------------------------------------------------
# pallas_call wrappers (single-step grids, full-array blocks)
# -----------------------------------------------------------------------------


def _full_spec(shape):
    return pl.BlockSpec(shape, lambda i: (0,) * len(shape))


_CP = pltpu.CompilerParams(dimension_semantics=("arbitrary",))


def init_block_call(cols, ip, *, c0, mpad):
    kern = functools.partial(_init_block_kernel, c0=c0)
    return pl.pallas_call(
        kern,
        out_shape=jax.ShapeDtypeStruct((c0, mpad), STORE_DTYPE),
        grid=(1,),
        in_specs=[_full_spec(cols.shape), _full_spec(ip["w"].shape),
                  _full_spec(ip["b"].shape), _full_spec(ip["mask"].shape)],
        out_specs=_full_spec((c0, mpad)),
        compiler_params=_CP,
    )(cols, ip["w"], ip["b"], ip["mask"])


def unit_s1_call(x, u, *, w_sp):
    cin, mpad = x.shape
    mid = u["w1"].shape[0]
    cout = u["w3"].shape[0]
    pad = w_sp + 1
    kern = functools.partial(_unit_s1_kernel, w_sp=w_sp, mpad=mpad, pad=pad)
    return pl.pallas_call(
        kern,
        out_shape=jax.ShapeDtypeStruct((cout, mpad), STORE_DTYPE),
        grid=(1,),
        in_specs=[_full_spec(x.shape), _full_spec(u["w1"].shape),
                  _full_spec(u["b1"].shape), _full_spec(u["wdw"].shape),
                  _full_spec(u["b2"].shape), _full_spec(u["w3"].shape),
                  _full_spec(u["b3"].shape), _full_spec(u["mask"].shape)],
        out_specs=_full_spec((cout, mpad)),
        scratch_shapes=[pltpu.VMEM((mid, mpad + 2 * pad), jnp.float32)],
        compiler_params=_CP,
    )(x, u["w1"], u["b1"], u["wdw"], u["b2"], u["w3"], u["b3"], u["mask"])


def unit_s2_call(x, u, *, w_sp, mpad_out):
    cin, mpad_in = x.shape
    mid = u["w1"].shape[0]
    out_eff = u["w3"].shape[0]
    cout = out_eff + cin
    pad = w_sp + 1
    kern = functools.partial(_unit_s2_kernel, w_sp=w_sp, mpad_in=mpad_in,
                             pad=pad, out_eff=out_eff, cin=cin)
    return pl.pallas_call(
        kern,
        out_shape=jax.ShapeDtypeStruct((cout, mpad_out), STORE_DTYPE),
        grid=(1,),
        in_specs=[_full_spec(x.shape), _full_spec(u["w1"].shape),
                  _full_spec(u["b1"].shape), _full_spec(u["wdw"].shape),
                  _full_spec(u["b2"].shape), _full_spec(u["w3"].shape),
                  _full_spec(u["b3"].shape), _full_spec(u["mask"].shape),
                  _full_spec(u["sel"].shape)],
        out_specs=_full_spec((cout, mpad_out)),
        scratch_shapes=[pltpu.VMEM((mid, mpad_in + 2 * pad), jnp.float32),
                        pltpu.VMEM((cin, mpad_in + 2 * pad), jnp.float32)],
        compiler_params=_CP,
    )(x, u["w1"], u["b1"], u["wdw"], u["b2"], u["w3"], u["b3"],
      u["mask"], u["sel"])


# -----------------------------------------------------------------------------
# Raw parameters (PyTorch-style init)
# -----------------------------------------------------------------------------


def _bn_scale(c):
    # gamma=1, beta=0, running_mean=0, running_var=1 (inference-mode BN)
    return jnp.full((c,), 1.0 / (1.0 + EPS) ** 0.5, jnp.float32)


def _kaiming_uniform(key, shape, fan_in):
    bound = (6.0 / fan_in) ** 0.5
    return jax.random.uniform(key, shape, jnp.float32, -bound, bound)


def make_params(key, cfg):
    keys = iter(jax.random.split(key, 64))
    params = {}
    cin = cfg["in_channels"]
    c0 = cfg["init_block_channels"]
    params["init"] = dict(
        w=_kaiming_uniform(next(keys), (c0, cin, 3, 3), cin * 9),
        bn_s=_bn_scale(c0), bn_b=jnp.zeros((c0,), jnp.float32))
    g = cfg["groups"]
    in_ch = c0
    stages = []
    for i, stage_channels in enumerate(cfg["channels"]):
        stage = []
        for j, out_ch in enumerate(stage_channels):
            downsample = j == 0
            ignore_group = i == 0 and j == 0
            g1 = 1 if ignore_group else g
            mid = out_ch // 4
            out_eff = out_ch - in_ch if downsample else out_ch
            unit = dict(
                w1=_kaiming_uniform(next(keys), (mid, in_ch // g1, 1, 1), in_ch // g1),
                bn1_s=_bn_scale(mid), bn1_b=jnp.zeros((mid,), jnp.float32),
                w2=_kaiming_uniform(next(keys), (mid, 1, 3, 3), 9),
                bn2_s=_bn_scale(mid), bn2_b=jnp.zeros((mid,), jnp.float32),
                w3=_kaiming_uniform(next(keys), (out_eff, mid // g, 1, 1), mid // g),
                bn3_s=_bn_scale(out_eff), bn3_b=jnp.zeros((out_eff,), jnp.float32))
            stage.append(unit)
            in_ch = out_ch
        stages.append(stage)
    params["stages"] = stages
    bound = 1.0 / (in_ch ** 0.5)
    params["fc_w"] = jax.random.uniform(next(keys), (cfg["num_classes"], in_ch),
                                        jnp.float32, -bound, bound)
    params["fc_b"] = jax.random.uniform(next(keys), (cfg["num_classes"],),
                                        jnp.float32, -bound, bound)
    return params


# -----------------------------------------------------------------------------
# One-time host-side folding (hoisted out of the jitted graph)
# -----------------------------------------------------------------------------


def _np_block_diag(blocks):
    rows = sum(b.shape[0] for b in blocks)
    cols = sum(b.shape[1] for b in blocks)
    out = np.zeros((rows, cols), np.float32)
    r = c = 0
    for b in blocks:
        out[r:r + b.shape[0], c:c + b.shape[1]] = b
        r += b.shape[0]
        c += b.shape[1]
    return out


def _tap_mask(n, h, w, mpad):
    """(9, mpad) mask: 1 iff flat position i is real and tap (ky,kx) reads an
    in-image source (implements the conv/pool zero padding on the flat axis)."""
    m = n * h * w
    pos = np.arange(m)
    y = (pos % (h * w)) // w
    x = pos % w
    mask = np.zeros((9, mpad), np.float32)
    t = 0
    for ky in range(3):
        for kx in range(3):
            dy, dx = ky - 1, kx - 1
            ok = (y + dy >= 0) & (y + dy < h) & (x + dx >= 0) & (x + dx < w)
            mask[t, :m] = ok.astype(np.float32)
            t += 1
    return mask


def _decim_matrix(n, h, w, mpad_in, mpad_out):
    """0/1 matrix selecting the even (y, x) positions of the flat (n,h,w) grid."""
    ho, wo = h // 2, w // 2
    s = np.zeros((mpad_in, mpad_out), np.float32)
    for nn in range(n):
        for yo in range(ho):
            for xo in range(wo):
                s[nn * h * w + 2 * yo * w + 2 * xo,
                  nn * ho * wo + yo * wo + xo] = 1.0
    return s


def prepare_params(params, cfg, batch):
    """Fold BN, group block-diagonal structure, the channel-shuffle permutation,
    tap masks and stride-2 selection matrices into dense per-kernel constants.
    Runs once on the host in numpy; nothing here appears in the jitted graph."""
    g = cfg["groups"]
    cin0 = cfg["in_channels"]
    c0 = cfg["init_block_channels"]
    fp = {}

    # ---- init block: fold conv+BN and the 9 maxpool taps into one matmul ----
    w = np.asarray(params["init"]["w"], np.float32)
    s = np.asarray(params["init"]["bn_s"], np.float32)
    b = np.asarray(params["init"]["bn_b"], np.float32)
    wf = w * s[:, None, None, None]
    h0 = cfg["in_size"] // 4
    m0 = batch * h0 * h0
    mp0 = _mpad(m0)
    wbig = np.zeros((9 * c0, 49 * cin0), np.float32)
    bbig = np.zeros((9 * c0, 1), np.float32)
    pool_taps = [(dy, dx) for dy in (-1, 0, 1) for dx in (-1, 0, 1)]
    for t, (dy, dx) in enumerate(pool_taps):
        for ky in range(3):
            for kx in range(3):
                uu = 2 * dy + ky + 2          # offset in the 7x7 window
                vv = 2 * dx + kx + 2
                col = (uu * 7 + vv) * cin0
                wbig[t * c0:(t + 1) * c0, col:col + cin0] = wf[:, :, ky, kx]
        bbig[t * c0:(t + 1) * c0, 0] = b
    pos = np.arange(m0)
    ym = (pos % (h0 * h0)) // h0
    xm = pos % h0
    pmask = np.zeros((9, mp0), np.float32)
    for t, (dy, dx) in enumerate(pool_taps):
        ok = np.ones(m0, bool)
        if dy < 0:
            ok &= ym >= 1                     # 2*ym-1 >= 0 ; 2*ym+1 < 56 always
        if dx < 0:
            ok &= xm >= 1
        pmask[t, :m0] = ok.astype(np.float32)
    fp["init"] = dict(w=jnp.asarray(wbig, STORE_DTYPE),
                      b=jnp.asarray(bbig, jnp.float32),
                      mask=jnp.asarray(pmask, jnp.float32))

    # ---- shuffle units ----
    units = []
    in_ch = c0
    h = h0
    for i, stage_channels in enumerate(cfg["channels"]):
        for j, out_ch in enumerate(stage_channels):
            p = params["stages"][i][j]
            downsample = j == 0
            ignore_group = i == 0 and j == 0
            g1 = 1 if ignore_group else g
            mid = out_ch // 4
            out_eff = out_ch - in_ch if downsample else out_ch

            # compress 1x1 (grouped) + bn1 -> block-diagonal dense weight
            w1 = np.asarray(p["w1"], np.float32).reshape(mid, in_ch // g1)
            w1d = _np_block_diag(np.split(w1, g1, axis=0))
            w1d = w1d * np.asarray(p["bn1_s"], np.float32)[:, None]
            b1 = np.asarray(p["bn1_b"], np.float32).reshape(mid, 1)

            # channel shuffle: shuffled[k] = y[perm[k]]; keep activations in
            # conv1 (un-shuffled) channel order and re-index weights instead.
            perm = np.arange(mid).reshape(g, mid // g).T.reshape(-1)
            perm_inv = np.argsort(perm)

            # depthwise 3x3 + bn2, rows re-indexed to conv1 channel order
            w2 = np.asarray(p["w2"], np.float32).reshape(mid, 9)
            wdw = w2[perm_inv] * np.asarray(p["bn2_s"], np.float32)[perm_inv][:, None]
            b2 = np.asarray(p["bn2_b"], np.float32)[perm_inv].reshape(mid, 1)

            # expand 1x1 (grouped, on shuffled channels) + bn3:
            # block-diagonal in shuffled order, columns mapped back via perm_inv
            w3 = np.asarray(p["w3"], np.float32).reshape(out_eff, mid // g)
            w3d = _np_block_diag(np.split(w3, g, axis=0))[:, perm_inv]
            w3d = w3d * np.asarray(p["bn3_s"], np.float32)[:, None]
            b3 = np.asarray(p["bn3_b"], np.float32).reshape(out_eff, 1)

            mp_in = _mpad(batch * h * h)
            unit = dict(w1=jnp.asarray(w1d, STORE_DTYPE),
                        b1=jnp.asarray(b1, jnp.float32),
                        wdw=jnp.asarray(wdw, jnp.float32),
                        b2=jnp.asarray(b2, jnp.float32),
                        w3=jnp.asarray(w3d, STORE_DTYPE),
                        b3=jnp.asarray(b3, jnp.float32),
                        mask=jnp.asarray(_tap_mask(batch, h, h, mp_in),
                                         jnp.float32))
            if downsample:
                mp_out = _mpad(batch * (h // 2) * (h // 2))
                unit["sel"] = jnp.asarray(
                    _decim_matrix(batch, h, h, mp_in, mp_out), STORE_DTYPE)
                h //= 2
            units.append(unit)
            in_ch = out_ch
    fp["units"] = units
    fp["fc_w"] = params["fc_w"]
    fp["fc_b"] = params["fc_b"]
    return fp


# -----------------------------------------------------------------------------
# Forward
# -----------------------------------------------------------------------------


def _build_init_cols(pixel_values, cfg):
    """Stride-4 7x7 im2col of the raw input, flattened lane-dense: (49*cin, Mp)."""
    cin = cfg["in_channels"]
    n = pixel_values.shape[0]
    h_out = cfg["in_size"] // 4
    m = n * h_out * h_out
    mp = _mpad(m)
    x = jnp.transpose(pixel_values, (1, 0, 2, 3))            # (cin, N, H, W)
    xpad = jnp.pad(x, ((0, 0), (0, 0), (3, 3), (3, 3)))
    span = 4 * (h_out - 1) + 1
    planes = [xpad[:, :, uu:uu + span:4, vv:vv + span:4]
              for uu in range(7) for vv in range(7)]          # (cin, N, h, h) each
    cols = jnp.stack(planes, axis=0).reshape(49 * cin, m)
    cols = jnp.pad(cols, ((0, 0), (0, mp - m)))
    return cols.astype(STORE_DTYPE)


def shufflenet_forward(fp, pixel_values, cfg=CFG):
    n = pixel_values.shape[0]
    h = cfg["in_size"] // 4
    cols = _build_init_cols(pixel_values, cfg)
    x = init_block_call(cols, fp["init"], c0=cfg["init_block_channels"],
                        mpad=_mpad(n * h * h))
    in_ch = cfg["init_block_channels"]
    k = 0
    for i, stage_channels in enumerate(cfg["channels"]):
        for j, out_ch in enumerate(stage_channels):
            u = fp["units"][k]
            k += 1
            if j == 0:                                        # downsample unit
                x = unit_s2_call(x, u, w_sp=h,
                                 mpad_out=_mpad(n * (h // 2) * (h // 2)))
                h //= 2
            else:                                             # residual unit
                x = unit_s1_call(x, u, w_sp=h)
            in_ch = out_ch
    # AvgPool2d(7, stride=1) on a 7x7 map == global mean; GAP + Linear kept in
    # plain XLA (lane widths of 1-2, per the perf review).
    m = n * h * h
    feat = x[:, :m].astype(jnp.float32).reshape(in_ch, n, h * h).mean(axis=-1).T
    logits = feat @ fp["fc_w"].T + fp["fc_b"]
    # labels=None path of the reference forward -> (loss=None, logits)
    return None, logits


if __name__ == "__main__":
    key = jax.random.PRNGKey(0)
    pkey, xkey = jax.random.split(key)
    raw_params = make_params(pkey, CFG)
    pixel_values = jax.random.normal(
        xkey, (2, CFG["in_channels"], CFG["in_size"], CFG["in_size"]),
        dtype=jnp.float32)
    folded = prepare_params(raw_params, CFG, batch=pixel_values.shape[0])

    fwd = jax.jit(lambda fp, x: shufflenet_forward(fp, x)[1])
    logits = fwd(folded, pixel_values)
    jax.block_until_ready(logits)
    assert logits.shape == (2, CFG["num_classes"])
    assert bool(jnp.all(jnp.isfinite(logits)))
    print("KERNEL_OK")
</pallas_src>

<mosaic_0001>
module attributes {stable_mosaic.version = 11 : i64} {
  func.func @_init_block_kernel(%arg0: i32, %arg1: memref<147x1664xbf16, #tpu.memory_space<vmem>>, %arg2: memref<72x147xbf16, #tpu.memory_space<vmem>>, %arg3: memref<72x1xf32, #tpu.memory_space<vmem>>, %arg4: memref<9x1664xf32, #tpu.memory_space<vmem>>, %arg5: memref<8x1664xbf16, #tpu.memory_space<vmem>>) attributes {dimension_semantics = [#tpu.dimension_semantics<arbitrary>], iteration_bounds = array<i64: 1>, scalar_prefetch = 0 : i64, scratch_operands = 0 : i64, tpu.core_type = #tpu.core_type<tc>, window_params = [{pipeline_mode = #tpu.pipeline_mode<synchronous>, transform_indices = @transform_0, window_bounds = array<i64: 147, 1664>}, {pipeline_mode = #tpu.pipeline_mode<synchronous>, transform_indices = @transform_1, window_bounds = array<i64: 72, 147>}, {pipeline_mode = #tpu.pipeline_mode<synchronous>, transform_indices = @transform_2, window_bounds = array<i64: 72, 1>}, {pipeline_mode = #tpu.pipeline_mode<synchronous>, transform_indices = @transform_3, window_bounds = array<i64: 9, 1664>}, {pipeline_mode = #tpu.pipeline_mode<synchronous>, transform_indices = @transform_4, window_bounds = array<i64: 8, 1664>}]} {
    %c0 = arith.constant 0 : index
    %c0_0 = arith.constant 0 : index
    %0 = vector.load %arg2[%c0, %c0_0] : memref<72x147xbf16, #tpu.memory_space<vmem>>, vector<72x147xbf16>
    %c0_1 = arith.constant 0 : index
    %c0_2 = arith.constant 0 : index
    %1 = vector.load %arg1[%c0_1, %c0_2] : memref<147x1664xbf16, #tpu.memory_space<vmem>>, vector<147x1664xbf16>
    %cst = arith.constant dense<0.000000e+00> : vector<72x1664xf32>
    %2 = tpu.matmul %0, %1, %cst {dimension_numbers = #tpu.dot_dimension_numbers<[1], [0], [0], [1], [0, 0, 1, 1], [], []>} : vector<72x147xbf16>, vector<147x1664xbf16>, vector<72x1664xf32> -> vector<72x1664xf32>
    %c0_3 = arith.constant 0 : index
    %c0_4 = arith.constant 0 : index
    %3 = vector.load %arg3[%c0_3, %c0_4] : memref<72x1xf32, #tpu.memory_space<vmem>>, vector<72x1xf32>
    %4 = vector.broadcast %3 : vector<72x1xf32> to vector<72x1664xf32>
    %5 = arith.addf %2, %4 : vector<72x1664xf32>
    %cst_5 = arith.constant 0.000000e+00 : f32
    %6 = vector.broadcast %cst_5 : f32 to vector<72x1664xf32>
    %7 = arith.maximumf %5, %6 : vector<72x1664xf32>
    %c0_6 = arith.constant 0 : index
    %c0_7 = arith.constant 0 : index
    %8 = vector.load %arg4[%c0_6, %c0_7] : memref<9x1664xf32, #tpu.memory_space<vmem>>, vector<9x1664xf32>
    %9 = vector.extract_strided_slice %7 {offsets = [0, 0], sizes = [8, 1664], strides = [1, 1]} : vector<72x1664xf32> to vector<8x1664xf32>
    %10 = vector.extract_strided_slice %8 {offsets = [0, 0], sizes = [1, 1664], strides = [1, 1]} : vector<9x1664xf32> to vector<1x1664xf32>
    %11 = vector.broadcast %10 : vector<1x1664xf32> to vector<8x1664xf32>
    %12 = arith.mulf %9, %11 : vector<8x1664xf32>
    %13 = vector.extract_strided_slice %7 {offsets = [8, 0], sizes = [8, 1664], strides = [1, 1]} : vector<72x1664xf32> to vector<8x1664xf32>
    %14 = vector.extract_strided_slice %8 {offsets = [1, 0], sizes = [1, 1664], strides = [1, 1]} : vector<9x1664xf32> to vector<1x1664xf32>
    %15 = vector.broadcast %14 : vector<1x1664xf32> to vector<8x1664xf32>
    %16 = arith.mulf %13, %15 : vector<8x1664xf32>
    %17 = arith.maximumf %12, %16 : vector<8x1664xf32>
    %18 = vector.extract_strided_slice %7 {offsets = [16, 0], sizes = [8, 1664], strides = [1, 1]} : vector<72x1664xf32> to vector<8x1664xf32>
    %19 = vector.extract_strided_slice %8 {offsets = [2, 0], sizes = [1, 1664], strides = [1, 1]} : vector<9x1664xf32> to vector<1x1664xf32>
    %20 = vector.broadcast %19 : vector<1x1664xf32> to vector<8x1664xf32>
    %21 = arith.mulf %18, %20 : vector<8x1664xf32>
    %22 = arith.maximumf %17, %21 : vector<8x1664xf32>
    %23 = vector.extract_strided_slice %7 {offsets = [24, 0], sizes = [8, 1664], strides = [1, 1]} : vector<72x1664xf32> to vector<8x1664xf32>
    %24 = vector.extract_strided_slice %8 {offsets = [3, 0], sizes = [1, 1664], strides = [1, 1]} : vector<9x1664xf32> to vector<1x1664xf32>
    %25 = vector.broadcast %24 : vector<1x1664xf32> to vector<8x1664xf32>
    %26 = arith.mulf %23, %25 : vector<8x1664xf32>
    %27 = arith.maximumf %22, %26 : vector<8x1664xf32>
    %28 = vector.extract_strided_slice %7 {offsets = [32, 0], sizes = [8, 1664], strides = [1, 1]} : vector<72x1664xf32> to vector<8x1664xf32>
    %29 = vector.extract_strided_slice %8 {offsets = [4, 0], sizes = [1, 1664], strides = [1, 1]} : vector<9x1664xf32> to vector<1x1664xf32>
    %30 = vector.broadcast %29 : vector<1x1664xf32> to vector<8x1664xf32>
    %31 = arith.mulf %28, %30 : vector<8x1664xf32>
    %32 = arith.maximumf %27, %31 : vector<8x1664xf32>
    %33 = vector.extract_strided_slice %7 {offsets = [40, 0], sizes = [8, 1664], strides = [1, 1]} : vector<72x1664xf32> to vector<8x1664xf32>
    %34 = vector.extract_strided_slice %8 {offsets = [5, 0], sizes = [1, 1664], strides = [1, 1]} : vector<9x1664xf32> to vector<1x1664xf32>
    %35 = vector.broadcast %34 : vector<1x1664xf32> to vector<8x1664xf32>
    %36 = arith.mulf %33, %35 : vector<8x1664xf32>
    %37 = arith.maximumf %32, %36 : vector<8x1664xf32>
    %38 = vector.extract_strided_slice %7 {offsets = [48, 0], sizes = [8, 1664], strides = [1, 1]} : vector<72x1664xf32> to vector<8x1664xf32>
    %39 = vector.extract_strided_slice %8 {offsets = [6, 0], sizes = [1, 1664], strides = [1, 1]} : vector<9x1664xf32> to vector<1x1664xf32>
    %40 = vector.broadcast %39 : vector<1x1664xf32> to vector<8x1664xf32>
    %41 = arith.mulf %38, %40 : vector<8x1664xf32>
    %42 = arith.maximumf %37, %41 : vector<8x1664xf32>
    %43 = vector.extract_strided_slice %7 {offsets = [56, 0], sizes = [8, 1664], strides = [1, 1]} : vector<72x1664xf32> to vector<8x1664xf32>
    %44 = vector.extract_strided_slice %8 {offsets = [7, 0], sizes = [1, 1664], strides = [1, 1]} : vector<9x1664xf32> to vector<1x1664xf32>
    %45 = vector.broadcast %44 : vector<1x1664xf32> to vector<8x1664xf32>
    %46 = arith.mulf %43, %45 : vector<8x1664xf32>
    %47 = arith.maximumf %42, %46 : vector<8x1664xf32>
    %48 = vector.extract_strided_slice %7 {offsets = [64, 0], sizes = [8, 1664], strides = [1, 1]} : vector<72x1664xf32> to vector<8x1664xf32>
    %49 = vector.extract_strided_slice %8 {offsets = [8, 0], sizes = [1, 1664], strides = [1, 1]} : vector<9x1664xf32> to vector<1x1664xf32>
    %50 = vector.broadcast %49 : vector<1x1664xf32> to vector<8x1664xf32>
    %51 = arith.mulf %48, %50 : vector<8x1664xf32>
    %52 = arith.maximumf %47, %51 : vector<8x1664xf32>
    %53 = arith.truncf %52 : vector<8x1664xf32> to vector<8x1664xbf16>
    %c0_8 = arith.constant 0 : index
    %c0_9 = arith.constant 0 : index
    %54 = vector.load %arg5[%c0_8, %c0_9] : memref<8x1664xbf16, #tpu.memory_space<vmem>>, vector<8x1664xbf16>
    tpu.vector_store %arg5[%c0_8, %c0_9], %53 {strides = array<i32>} : memref<8x1664xbf16, #tpu.memory_space<vmem>>, vector<8x1664xbf16>,
    return
  }
  func.func @transform_0(%arg0: i32) -> (i32, i32) {
    %c0_i32 = arith.constant 0 : i32
    %c0_i32_0 = arith.constant 0 : i32
    %c0_i32_1 = arith.constant 0 : i32
    return %c0_i32, %c0_i32_0 : i32, i32
  }
  func.func @transform_1(%arg0: i32) -> (i32, i32) {
    %c0_i32 = arith.constant 0 : i32
    %c0_i32_0 = arith.constant 0 : i32
    %c0_i32_1 = arith.constant 0 : i32
    return %c0_i32, %c0_i32_0 : i32, i32
  }
  func.func @transform_2(%arg0: i32) -> (i32, i32) {
    %c0_i32 = arith.constant 0 : i32
    %c0_i32_0 = arith.constant 0 : i32
    %c0_i32_1 = arith.constant 0 : i32
    return %c0_i32, %c0_i32_0 : i32, i32
  }
  func.func @transform_3(%arg0: i32) -> (i32, i32) {
    %c0_i32 = arith.constant 0 : i32
    %c0_i32_0 = arith.constant 0 : i32
    %c0_i32_1 = arith.constant 0 : i32
    return %c0_i32, %c0_i32_0 : i32, i32
  }
  func.func @transform_4(%arg0: i32) -> (i32, i32) {
    %c0_i32 = arith.constant 0 : i32
    %c0_i32_0 = arith.constant 0 : i32
    %c0_i32_1 = arith.constant 0 : i32
    return %c0_i32, %c0_i32_0 : i32, i32
  }
}

module attributes {stable_mosaic.version = 11 : i64} {
  func.func @_unit_s2_kernel(%arg0: i32, %arg1: memref<8x1664xbf16, #tpu.memory_space<vmem>>, %arg2: memref<6x8xbf16, #tpu.memory_space<vmem>>, %arg3: memref<6x1xf32, #tpu.memory_space<vmem>>, %arg4: memref<6x9xf32, #tpu.memory_space<vmem>>, %arg5: memref<6x1xf32, #tpu.memory_space<vmem>>, %arg6: memref<16x6xbf16, #tpu.memory_space<vmem>>, %arg7: memref<16x1xf32, #tpu.memory_space<vmem>>, %arg8: memref<9x1664xf32, #tpu.memory_space<vmem>>, %arg9: memref<1664x512xbf16, #tpu.memory_space<vmem>>, %arg10: memref<24x512xbf16, #tpu.memory_space<vmem>>, %arg11: memref<6x1722xf32, #tpu.memory_space<vmem>>, %arg12: memref<8x1722xf32, #tpu.memory_space<vmem>>) attributes {dimension_semantics = [#tpu.dimension_semantics<arbitrary>], iteration_bounds = array<i64: 1>, scalar_prefetch = 0 : i64, scratch_operands = 2 : i64, tpu.core_type = #tpu.core_type<tc>, window_params = [{pipeline_mode = #tpu.pipeline_mode<synchronous>, transform_indices = @transform_0, window_bounds = array<i64: 8, 1664>}, {pipeline_mode = #tpu.pipeline_mode<synchronous>, transform_indices = @transform_1, window_bounds = array<i64: 6, 8>}, {pipeline_mode = #tpu.pipeline_mode<synchronous>, transform_indices = @transform_2, window_bounds = array<i64: 6, 1>}, {pipeline_mode = #tpu.pipeline_mode<synchronous>, transform_indices = @transform_3, window_bounds = array<i64: 6, 9>}, {pipeline_mode = #tpu.pipeline_mode<synchronous>, transform_indices = @transform_4, window_bounds = array<i64: 6, 1>}, {pipeline_mode = #tpu.pipeline_mode<synchronous>, transform_indices = @transform_5, window_bounds = array<i64: 16, 6>}, {pipeline_mode = #tpu.pipeline_mode<synchronous>, transform_indices = @transform_6, window_bounds = array<i64: 16, 1>}, {pipeline_mode = #tpu.pipeline_mode<synchronous>, transform_indices = @transform_7, window_bounds = array<i64: 9, 1664>}, {pipeline_mode = #tpu.pipeline_mode<synchronous>, transform_indices = @transform_8, window_bounds = array<i64: 1664, 512>}, {pipeline_mode = #tpu.pipeline_mode<synchronous>, transform_indices = @transform_9, window_bounds = array<i64: 24, 512>}]} {
    %c0 = arith.constant 0 : index
    %c0_0 = arith.constant 0 : index
    %0 = vector.load %arg1[%c0, %c0_0] : memref<8x1664xbf16, #tpu.memory_space<vmem>>, vector<8x1664xbf16>
    %c0_1 = arith.constant 0 : index
    %c0_2 = arith.constant 0 : index
    %1 = vector.load %arg8[%c0_1, %c0_2] : memref<9x1664xf32, #tpu.memory_space<vmem>>, vector<9x1664xf32>
    %c0_3 = arith.constant 0 : index
    %c0_4 = arith.constant 0 : index
    %2 = vector.load %arg9[%c0_3, %c0_4] : memref<1664x512xbf16, #tpu.memory_space<vmem>>, vector<1664x512xbf16>
    %c0_5 = arith.constant 0 : index
    %c0_6 = arith.constant 0 : index
    %3 = vector.load %arg2[%c0_5, %c0_6] : memref<6x8xbf16, #tpu.memory_space<vmem>>, vector<6x8xbf16>
    %cst = arith.constant dense<0.000000e+00> : vector<6x1664xf32>
    %4 = tpu.matmul %3, %0, %cst {dimension_numbers = #tpu.dot_dimension_numbers<[1], [0], [0], [1], [0, 0, 1, 1], [], []>} : vector<6x8xbf16>, vector<8x1664xbf16>, vector<6x1664xf32> -> vector<6x1664xf32>
    %c0_7 = arith.constant 0 : index
    %c0_8 = arith.constant 0 : index
    %5 = vector.load %arg3[%c0_7, %c0_8] : memref<6x1xf32, #tpu.memory_space<vmem>>, vector<6x1xf32>
    %6 = vector.broadcast %5 : vector<6x1xf32> to vector<6x1664xf32>
    %7 = arith.addf %4, %6 : vector<6x1664xf32>
    %cst_9 = arith.constant 0.000000e+00 : f32
    %8 = vector.broadcast %cst_9 : f32 to vector<6x1664xf32>
    %9 = arith.maximumf %7, %8 : vector<6x1664xf32>
    %cst_10 = arith.constant 0.000000e+00 : f32
    %10 = vector.broadcast %cst_10 : f32 to vector<6x1722xf32>
    %c0_11 = arith.constant 0 : index
    %c0_12 = arith.constant 0 : index
    %11 = vector.load %arg11[%c0_11, %c0_12] : memref<6x1722xf32, #tpu.memory_space<vmem>>, vector<6x1722xf32>
    tpu.vector_store %arg11[%c0_11, %c0_12], %10 {strides = array<i32>} : memref<6x1722xf32, #tpu.memory_space<vmem>>, vector<6x1722xf32>,
    %c0_13 = arith.constant 0 : index
    %c29 = arith.constant 29 : index
    %12 = vector.load %arg11[%c0_13, %c29] : memref<6x1722xf32, #tpu.memory_space<vmem>>, vector<6x1664xf32>
    tpu.vector_store %arg11[%c0_13, %c29], %9 {strides = array<i32>} : memref<6x1722xf32, #tpu.memory_space<vmem>>, vector<6x1664xf32>,
    %c0_14 = arith.constant 0 : index
    %c0_15 = arith.constant 0 : index
    %13 = vector.load %arg4[%c0_14, %c0_15] : memref<6x9xf32, #tpu.memory_space<vmem>>, vector<6x9xf32>
    %c0_16 = arith.constant 0 : index
    %c0_17 = arith.constant 0 : index
    %14 = vector.load %arg11[%c0_16, %c0_17] : memref<6x1722xf32, #tpu.memory_space<vmem>>, vector<6x1664xf32>
    %15 = vector.extract_strided_slice %1 {offsets = [0, 0], sizes = [1, 1664], strides = [1, 1]} : vector<9x1664xf32> to vector<1x1664xf32>
    %16 = vector.broadcast %15 : vector<1x1664xf32> to vector<6x1664xf32>
    %17 = arith.mulf %14, %16 : vector<6x1664xf32>
    %18 = vector.extract_strided_slice %13 {offsets = [0, 0], sizes = [6, 1], strides = [1, 1]} : vector<6x9xf32> to vector<6x1xf32>
    %19 = vector.broadcast %18 : vector<6x1xf32> to vector<6x1664xf32>
    %20 = arith.mulf %17, %19 : vector<6x1664xf32>
    %c0_18 = arith.constant 0 : index
    %c1 = arith.constant 1 : index
    %21 = vector.load %arg11[%c0_18, %c1] : memref<6x1722xf32, #tpu.memory_space<vmem>>, vector<6x1664xf32>
    %22 = vector.extract_strided_slice %1 {offsets = [1, 0], sizes = [1, 1664], strides = [1, 1]} : vector<9x1664xf32> to vector<1x1664xf32>
    %23 = vector.broadcast %22 : vector<1x1664xf32> to vector<6x1664xf32>
    %24 = arith.mulf %21, %23 : vector<6x1664xf32>
    %25 = vector.extract_strided_slice %13 {offsets = [0, 1], sizes = [6, 1], strides = [1, 1]} : vector<6x9xf32> to vector<6x1xf32>
    %26 = vector.broadcast %25 : vector<6x1xf32> to vector<6x1664xf32>
    %27 = arith.mulf %24, %26 : vector<6x1664xf32>
    %28 = arith.addf %20, %27 : vector<6x1664xf32>
    %c0_19 = arith.constant 0 : index
    %c2 = arith.constant 2 : index
    %29 = vector.load %arg11[%c0_19, %c2] : memref<6x1722xf32, #tpu.memory_space<vmem>>, vector<6x1664xf32>
    %30 = vector.extract_strided_slice %1 {offsets = [2, 0], sizes = [1, 1664], strides = [1, 1]} : vector<9x1664xf32> to vector<1x1664xf32>
    %31 = vector.broadcast %30 : vector<1x1664xf32> to vector<6x1664xf32>
    %32 = arith.mulf %29, %31 : vector<6x1664xf32>
    %33 = vector.extract_strided_slice %13 {offsets = [0, 2], sizes = [6, 1], strides = [1, 1]} : vector<6x9xf32> to vector<6x1xf32>
    %34 = vector.broadcast %33 : vector<6x1xf32> to vector<6x1664xf32>
    %35 = arith.mulf %32, %34 : vector<6x1664xf32>
    %36 = arith.addf %28, %35 : vector<6x1664xf32>
    %c0_20 = arith.constant 0 : index
    %c28 = arith.constant 28 : index
    %37 = vector.load %arg11[%c0_20, %c28] : memref<6x1722xf32, #tpu.memory_space<vmem>>, vector<6x1664xf32>
    %38 = vector.extract_strided_slice %1 {offsets = [3, 0], sizes = [1, 1664], strides = [1, 1]} : vector<9x1664xf32> to vector<1x1664xf32>
    %39 = vector.broadcast %38 : vector<1x1664xf32> to vector<6x1664xf32>
    %40 = arith.mulf %37, %39 : vector<6x1664xf32>
    %41 = vector.extract_strided_slice %13 {offsets = [0, 3], sizes = [6, 1], strides = [1, 1]} : vector<6x9xf32> to vector<6x1xf32>
    %42 = vector.broadcast %41 : vector<6x1xf32> to vector<6x1664xf32>
    %43 = arith.mulf %40, %42 : vector<6x1664xf32>
    %44 = arith.addf %36, %43 : vector<6x1664xf32>
    %c0_21 = arith.constant 0 : index
    %c29_22 = arith.constant 29 : index
    %45 = vector.load %arg11[%c0_21, %c29_22] : memref<6x1722xf32, #tpu.memory_space<vmem>>, vector<6x1664xf32>
    %46 = vector.extract_strided_slice %1 {offsets = [4, 0], sizes = [1, 1664], strides = [1, 1]} : vector<9x1664xf32> to vector<1x1664xf32>
    %47 = vector.broadcast %46 : vector<1x1664xf32> to vector<6x1664xf32>
    %48 = arith.mulf %45, %47 : vector<6x1664xf32>
    %49 = vector.extract_strided_slice %13 {offsets = [0, 4], sizes = [6, 1], strides = [1, 1]} : vector<6x9xf32> to vector<6x1xf32>
    %50 = vector.broadcast %49 : vector<6x1xf32> to vector<6x1664xf32>
    %51 = arith.mulf %48, %50 : vector<6x1664xf32>
    %52 = arith.addf %44, %51 : vector<6x1664xf32>
    %c0_23 = arith.constant 0 : index
    %c30 = arith.constant 30 : index
    %53 = vector.load %arg11[%c0_23, %c30] : memref<6x1722xf32, #tpu.memory_space<vmem>>, vector<6x1664xf32>
    %54 = vector.extract_strided_slice %1 {offsets = [5, 0], sizes = [1, 1664], strides = [1, 1]} : vector<9x1664xf32> to vector<1x1664xf32>
    %55 = vector.broadcast %54 : vector<1x1664xf32> to vector<6x1664xf32>
    %56 = arith.mulf %53, %55 : vector<6x1664xf32>
    %57 = vector.extract_strided_slice %13 {offsets = [0, 5], sizes = [6, 1], strides = [1, 1]} : vector<6x9xf32> to vector<6x1xf32>
    %58 = vector.broadcast %57 : vector<6x1xf32> to vector<6x1664xf32>
    %59 = arith.mulf %56, %58 : vector<6x1664xf32>
    %60 = arith.addf %52, %59 : vector<6x1664xf32>
    %c0_24 = arith.constant 0 : index
    %c56 = arith.constant 56 : index
    %61 = vector.load %arg11[%c0_24, %c56] : memref<6x1722xf32, #tpu.memory_space<vmem>>, vector<6x1664xf32>
    %62 = vector.extract_strided_slice %1 {offsets = [6, 0], sizes = [1, 1664], strides = [1, 1]} : vector<9x1664xf32> to vector<1x1664xf32>
    %63 = vector.broadcast %62 : vector<1x1664xf32> to vector<6x1664xf32>
    %64 = arith.mulf %61, %63 : vector<6x1664xf32>
    %65 = vector.extract_strided_slice %13 {offsets = [0, 6], sizes = [6, 1], strides = [1, 1]} : vector<6x9xf32> to vector<6x1xf32>
    %66 = vector.broadcast %65 : vector<6x1xf32> to vector<6x1664xf32>
    %67 = arith.mulf %64, %66 : vector<6x1664xf32>
    %68 = arith.addf %60, %67 : vector<6x1664xf32>
    %c0_25 = arith.constant 0 : index
    %c57 = arith.constant 57 : index
    %69 = vector.load %arg11[%c0_25, %c57] : memref<6x1722xf32, #tpu.memory_space<vmem>>, vector<6x1664xf32>
    %70 = vector.extract_strided_slice %1 {offsets = [7, 0], sizes = [1, 1664], strides = [1, 1]} : vector<9x1664xf32> to vector<1x1664xf32>
    %71 = vector.broadcast %70 : vector<1x1664xf32> to vector<6x1664xf32>
    %72 = arith.mulf %69, %71 : vector<6x1664xf32>
    %73 = vector.extract_strided_slice %13 {offsets = [0, 7], sizes = [6, 1], strides = [1, 1]} : vector<6x9xf32> to vector<6x1xf32>
    %74 = vector.broadcast %73 : vector<6x1xf32> to vector<6x1664xf32>
    %75 = arith.mulf %72, %74 : vector<6x1664xf32>
    %76 = arith.addf %68, %75 : vector<6x1664xf32>
    %c0_26 = arith.constant 0 : index
    %c58 = arith.constant 58 : index
    %77 = vector.load %arg11[%c0_26, %c58] : memref<6x1722xf32, #tpu.memory_space<vmem>>, vector<6x1664xf32>
    %78 = vector.extract_strided_slice %1 {offsets = [8, 0], sizes = [1, 1664], strides = [1, 1]} : vector<9x1664xf32> to vector<1x1664xf32>
    %79 = vector.broadcast %78 : vector<1x1664xf32> to vector<6x1664xf32>
    %80 = arith.mulf %77, %79 : vector<6x1664xf32>
    %81 = vector.extract_strided_slice %13 {offsets = [0, 8], sizes = [6, 1], strides = [1, 1]} : vector<6x9xf32> to vector<6x1xf32>
    %82 = vector.broadcast %81 : vector<6x1xf32> to vector<6x1664xf32>
    %83 = arith.mulf %80, %82 : vector<6x1664xf32>
    %84 = arith.addf %76, %83 : vector<6x1664xf32>
    %85 = arith.truncf %84 : vector<6x1664xf32> to vector<6x1664xbf16>
    %cst_27 = arith.constant dense<0.000000e+00> : vector<6x512xf32>
    %86 = tpu.matmul %85, %2, %cst_27 {dimension_numbers = #tpu.dot_dimension_numbers<[1], [0], [0], [1], [0, 0, 1, 1], [], []>} : vector<6x1664xbf16>, vector<1664x512xbf16>, vector<6x512xf32> -> vector<6x512xf32>
    %c0_28 = arith.constant 0 : index
    %c0_29 = arith.constant 0 : index
    %87 = vector.load %arg5[%c0_28, %c0_29] : memref<6x1xf32, #tpu.memory_space<vmem>>, vector<6x1xf32>
    %88 = vector.broadcast %87 : vector<6x1xf32> to vector<6x512xf32>
    %89 = arith.addf %86, %88 : vector<6x512xf32>
    %c0_30 = arith.constant 0 : index
    %c0_31 = arith.constant 0 : index
    %90 = vector.load %arg6[%c0_30, %c0_31] : memref<16x6xbf16, #tpu.memory_space<vmem>>, vector<16x6xbf16>
    %91 = arith.truncf %89 : vector<6x512xf32> to vector<6x512xbf16>
    %cst_32 = arith.constant dense<0.000000e+00> : vector<16x512xf32>
    %92 = tpu.matmul %90, %91, %cst_32 {dimension_numbers = #tpu.dot_dimension_numbers<[1], [0], [0], [1], [0, 0, 1, 1], [], []>} : vector<16x6xbf16>, vector<6x512xbf16>, vector<16x512xf32> -> vector<16x512xf32>
    %c0_33 = arith.constant 0 : index
    %c0_34 = arith.constant 0 : index
    %93 = vector.load %arg7[%c0_33, %c0_34] : memref<16x1xf32, #tpu.memory_space<vmem>>, vector<16x1xf32>
    %94 = vector.broadcast %93 : vector<16x1xf32> to vector<16x512xf32>
    %95 = arith.addf %92, %94 : vector<16x512xf32>
    %cst_35 = arith.constant 0.000000e+00 : f32
    %96 = vector.broadcast %cst_35 : f32 to vector<16x512xf32>
    %97 = arith.maximumf %95, %96 : vector<16x512xf32>
    %98 = arith.truncf %97 : vector<16x512xf32> to vector<16x512xbf16>
    %c0_36 = arith.constant 0 : index
    %c0_37 = arith.constant 0 : index
    %99 = vector.load %arg10[%c0_36, %c0_37] : memref<24x512xbf16, #tpu.memory_space<vmem>>, vector<16x512xbf16>
    tpu.vector_store %arg10[%c0_36, %c0_37], %98 {strides = array<i32>} : memref<24x512xbf16, #tpu.memory_space<vmem>>, vector<16x512xbf16>,
    %cst_38 = arith.constant 0.000000e+00 : f32
    %100 = vector.broadcast %cst_38 : f32 to vector<8x1722xf32>
    %c0_39 = arith.constant 0 : index
    %c0_40 = arith.constant 0 : index
    %101 = vector.load %arg12[%c0_39, %c0_40] : memref<8x1722xf32, #tpu.memory_space<vmem>>, vector<8x1722xf32>
    tpu.vector_store %arg12[%c0_39, %c0_40], %100 {strides = array<i32>} : memref<8x1722xf32, #tpu.memory_space<vmem>>, vector<8x1722xf32>,
    %102 = arith.extf %0 : vector<8x1664xbf16> to vector<8x1664xf32>
    %c0_41 = arith.constant 0 : index
    %c29_42 = arith.constant 29 : index
    %103 = vector.load %arg12[%c0_41, %c29_42] : memref<8x1722xf32, #tpu.memory_space<vmem>>, vector<8x1664xf32>
    tpu.vector_store %arg12[%c0_41, %c29_42], %102 {strides = array<i32>} : memref<8x1722xf32, #tpu.memory_space<vmem>>, vector<8x1664xf32>,
    %c0_43 = arith.constant 0 : index
    %c0_44 = arith.constant 0 : index
    %104 = vector.load %arg12[%c0_43, %c0_44] : memref<8x1722xf32, #tpu.memory_space<vmem>>, vector<8x1664xf32>
    %105 = vector.extract_strided_slice %1 {offsets = [0, 0], sizes = [1, 1664], strides = [1, 1]} : vector<9x1664xf32> to vector<1x1664xf32>
    %106 = vector.broadcast %105 : vector<1x1664xf32> to vector<8x1664xf32>
    %107 = arith.mulf %104, %106 : vector<8x1664xf32>
    %c0_45 = arith.constant 0 : index
    %c1_46 = arith.constant 1 : index
    %108 = vector.load %arg12[%c0_45, %c1_46] : memref<8x1722xf32, #tpu.memory_space<vmem>>, vector<8x1664xf32>
    %109 = vector.extract_strided_slice %1 {offsets = [1, 0], sizes = [1, 1664], strides = [1, 1]} : vector<9x1664xf32> to vector<1x1664xf32>
    %110 = vector.broadcast %109 : vector<1x1664xf32> to vector<8x1664xf32>
    %111 = arith.mulf %108, %110 : vector<8x1664xf32>
    %112 = arith.addf %107, %111 : vector<8x1664xf32>
    %c0_47 = arith.constant 0 : index
    %c2_48 = arith.constant 2 : index
    %113 = vector.load %arg12[%c0_47, %c2_48] : memref<8x1722xf32, #tpu.memory_space<vmem>>, vector<8x1664xf32>
    %114 = vector.extract_strided_slice %1 {offsets = [2, 0], sizes = [1, 1664], strides = [1, 1]} : vector<9x1664xf32> to vector<1x1664xf32>
    %115 = vector.broadcast %114 : vector<1x1664xf32> to vector<8x1664xf32>
    %116 = arith.mulf %113, %115 : vector<8x1664xf32>
    %117 = arith.addf %112, %116 : vector<8x1664xf32>
    %c0_49 = arith.constant 0 : index
    %c28_50 = arith.constant 28 : index
    %118 = vector.load %arg12[%c0_49, %c28_50] : memref<8x1722xf32, #tpu.memory_space<vmem>>, vector<8x1664xf32>
    %119 = vector.extract_strided_slice %1 {offsets = [3, 0], sizes = [1, 1664], strides = [1, 1]} : vector<9x1664xf32> to vector<1x1664xf32>
    %120 = vector.broadcast %119 : vector<1x1664xf32> to vector<8x1664xf32>
    %121 = arith.mulf %118, %120 : vector<8x1664xf32>
    %122 = arith.addf %117, %121 : vector<8x1664xf32>
    %c0_51 = arith.constant 0 : index
    %c29_52 = arith.constant 29 : index
    %123 = vector.load %arg12[%c0_51, %c29_52] : memref<8x1722xf32, #tpu.memory_space<vmem>>, vector<8x1664xf32>
    %124 = vector.extract_strided_slice %1 {offsets = [4, 0], sizes = [1, 1664], strides = [1, 1]} : vector<9x1664xf32> to vector<1x1664xf32>
    %125 = vector.broadcast %124 : vector<1x1664xf32> to vector<8x1664xf32>
    %126 = arith.mulf %123, %125 : vector<8x1664xf32>
    %127 = arith.addf %122, %126 : vector<8x1664xf32>
    %c0_53 = arith.constant 0 : index
    %c30_54 = arith.constant 30 : index
    %128 = vector.load %arg12[%c0_53, %c30_54] : memref<8x1722xf32, #tpu.memory_space<vmem>>, vector<8x1664xf32>
    %129 = vector.extract_strided_slice %1 {offsets = [5, 0], sizes = [1, 1664], strides = [1, 1]} : vector<9x1664xf32> to vector<1x1664xf32>
    %130 = vector.broadcast %129 : vector<1x1664xf32> to vector<8x1664xf32>
    %131 = arith.mulf %128, %130 : vector<8x1664xf32>
    %132 = arith.addf %127, %131 : vector<8x1664xf32>
    %c0_55 = arith.constant 0 : index
    %c56_56 = arith.constant 56 : index
    %133 = vector.load %arg12[%c0_55, %c56_56] : memref<8x1722xf32, #tpu.memory_space<vmem>>, vector<8x1664xf32>
    %134 = vector.extract_strided_slice %1 {offsets = [6, 0], sizes = [1, 1664], strides = [1, 1]} : vector<9x1664xf32> to vector<1x1664xf32>
    %135 = vector.broadcast %134 : vector<1x1664xf32> to vector<8x1664xf32>
    %136 = arith.mulf %133, %135 : vector<8x1664xf32>
    %137 = arith.addf %132, %136 : vector<8x1664xf32>
    %c0_57 = arith.constant 0 : index
    %c57_58 = arith.constant 57 : index
    %138 = vector.load %arg12[%c0_57, %c57_58] : memref<8x1722xf32, #tpu.memory_space<vmem>>, vector<8x1664xf32>
    %139 = vector.extract_strided_slice %1 {offsets = [7, 0], sizes = [1, 1664], strides = [1, 1]} : vector<9x1664xf32> to vector<1x1664xf32>
    %140 = vector.broadcast %139 : vector<1x1664xf32> to vector<8x1664xf32>
    %141 = arith.mulf %138, %140 : vector<8x1664xf32>
    %142 = arith.addf %137, %141 : vector<8x1664xf32>
    %c0_59 = arith.constant 0 : index
    %c58_60 = arith.constant 58 : index
    %143 = vector.load %arg12[%c0_59, %c58_60] : memref<8x1722xf32, #tpu.memory_space<vmem>>, vector<8x1664xf32>
    %144 = vector.extract_strided_slice %1 {offsets = [8, 0], sizes = [1, 1664], strides = [1, 1]} : vector<9x1664xf32> to vector<1x1664xf32>
    %145 = vector.broadcast %144 : vector<1x1664xf32> to vector<8x1664xf32>
    %146 = arith.mulf %143, %145 : vector<8x1664xf32>
    %147 = arith.addf %142, %146 : vector<8x1664xf32>
    %cst_61 = arith.constant 0.111111112 : f32
    %148 = vector.broadcast %cst_61 : f32 to vector<8x1664xf32>
    %149 = arith.mulf %147, %148 : vector<8x1664xf32>
    %150 = arith.truncf %149 : vector<8x1664xf32> to vector<8x1664xbf16>
    %cst_62 = arith.constant dense<0.000000e+00> : vector<8x512xf32>
    %151 = tpu.matmul %150, %2, %cst_62 {dimension_numbers = #tpu.dot_dimension_numbers<[1], [0], [0], [1], [0, 0, 1, 1], [], []>} : vector<8x1664xbf16>, vector<1664x512xbf16>, vector<8x512xf32> -> vector<8x512xf32>
    %cst_63 = arith.constant 0.000000e+00 : f32
    %152 = vector.broadcast %cst_63 : f32 to vector<8x512xf32>
    %153 = arith.maximumf %151, %152 : vector<8x512xf32>
    %154 = arith.truncf %153 : vector<8x512xf32> to vector<8x512xbf16>
    %c16 = arith.constant 16 : index
    %c0_64 = arith.constant 0 : index
    %155 = vector.load %arg10[%c16, %c0_64] : memref<24x512xbf16, #tpu.memory_space<vmem>>, vector<8x512xbf16>
    tpu.vector_store %arg10[%c16, %c0_64], %154 {strides = array<i32>} : memref<24x512xbf16, #tpu.memory_space<vmem>>, vector<8x512xbf16>,
    return
  }
  func.func @transform_0(%arg0: i32) -> (i32, i32) {
    %c0_i32 = arith.constant 0 : i32
    %c0_i32_0 = arith.constant 0 : i32
    %c0_i32_1 = arith.constant 0 : i32
    return %c0_i32, %c0_i32_0 : i32, i32
  }
  func.func @transform_1(%arg0: i32) -> (i32, i32) {
    %c0_i32 = arith.constant 0 : i32
    %c0_i32_0 = arith.constant 0 : i32
    %c0_i32_1 = arith.constant 0 : i32
    return %c0_i32, %c0_i32_0 : i32, i32
  }
  func.func @transform_2(%arg0: i32) -> (i32, i32) {
    %c0_i32 = arith.constant 0 : i32
    %c0_i32_0 = arith.constant 0 : i32
    %c0_i32_1 = arith.constant 0 : i32
    return %c0_i32, %c0_i32_0 : i32, i32
  }
  func.func @transform_3(%arg0: i32) -> (i32, i32) {
    %c0_i32 = arith.constant 0 : i32
    %c0_i32_0 = arith.constant 0 : i32
    %c0_i32_1 = arith.constant 0 : i32
    return %c0_i32, %c0_i32_0 : i32, i32
  }
  func.func @transform_4(%arg0: i32) -> (i32, i32) {
    %c0_i32 = arith.constant 0 : i32
    %c0_i32_0 = arith.constant 0 : i32
    %c0_i32_1 = arith.constant 0 : i32
    return %c0_i32, %c0_i32_0 : i32, i32
  }
  func.func @transform_5(%arg0: i32) -> (i32, i32) {
    %c0_i32 = arith.constant 0 : i32
    %c0_i32_0 = arith.constant 0 : i32
    %c0_i32_1 = arith.constant 0 : i32
    return %c0_i32, %c0_i32_0 : i32, i32
  }
  func.func @transform_6(%arg0: i32) -> (i32, i32) {
    %c0_i32 = arith.constant 0 : i32
    %c0_i32_0 = arith.constant 0 : i32
    %c0_i32_1 = arith.constant 0 : i32
    return %c0_i32, %c0_i32_0 : i32, i32
  }
  func.func @transform_7(%arg0: i32) -> (i32, i32) {
    %c0_i32 = arith.constant 0 : i32
    %c0_i32_0 = arith.constant 0 : i32
    %c0_i32_1 = arith.constant 0 : i32
    return %c0_i32, %c0_i32_0 : i32, i32
  }
  func.func @transform_8(%arg0: i32) -> (i32, i32) {
    %c0_i32 = arith.constant 0 : i32
    %c0_i32_0 = arith.constant 0 : i32
    %c0_i32_1 = arith.constant 0 : i32
    return %c0_i32, %c0_i32_0 : i32, i32
  }
  func.func @transform_9(%arg0: i32) -> (i32, i32) {
    %c0_i32 = arith.constant 0 : i32
    %c0_i32_0 = arith.constant 0 : i32
    %c0_i32_1 = arith.constant 0 : i32
    return %c0_i32, %c0_i32_0 : i32, i32
  }
}

module attributes {stable_mosaic.version = 11 : i64} {
  func.func @_unit_s1_kernel(%arg0: i32, %arg1: memref<24x512xbf16, #tpu.memory_space<vmem>>, %arg2: memref<6x24xbf16, #tpu.memory_space<vmem>>, %arg3: memref<6x1xf32, #tpu.memory_space<vmem>>, %arg4: memref<6x9xf32, #tpu.memory_space<vmem>>, %arg5: memref<6x1xf32, #tpu.memory_space<vmem>>, %arg6: memref<24x6xbf16, #tpu.memory_space<vmem>>, %arg7: memref<24x1xf32, #tpu.memory_space<vmem>>, %arg8: memref<9x512xf32, #tpu.memory_space<vmem>>, %arg9: memref<24x512xbf16, #tpu.memory_space<vmem>>, %arg10: memref<6x542xf32, #tpu.memory_space<vmem>>) attributes {dimension_semantics = [#tpu.dimension_semantics<arbitrary>], iteration_bounds = array<i64: 1>, scalar_prefetch = 0 : i64, scratch_operands = 1 : i64, tpu.core_type = #tpu.core_type<tc>, window_params = [{pipeline_mode = #tpu.pipeline_mode<synchronous>, transform_indices = @transform_0, window_bounds = array<i64: 24, 512>}, {pipeline_mode = #tpu.pipeline_mode<synchronous>, transform_indices = @transform_1, window_bounds = array<i64: 6, 24>}, {pipeline_mode = #tpu.pipeline_mode<synchronous>, transform_indices = @transform_2, window_bounds = array<i64: 6, 1>}, {pipeline_mode = #tpu.pipeline_mode<synchronous>, transform_indices = @transform_3, window_bounds = array<i64: 6, 9>}, {pipeline_mode = #tpu.pipeline_mode<synchronous>, transform_indices = @transform_4, window_bounds = array<i64: 6, 1>}, {pipeline_mode = #tpu.pipeline_mode<synchronous>, transform_indices = @transform_5, window_bounds = array<i64: 24, 6>}, {pipeline_mode = #tpu.pipeline_mode<synchronous>, transform_indices = @transform_6, window_bounds = array<i64: 24, 1>}, {pipeline_mode = #tpu.pipeline_mode<synchronous>, transform_indices = @transform_7, window_bounds = array<i64: 9, 512>}, {pipeline_mode = #tpu.pipeline_mode<synchronous>, transform_indices = @transform_8, window_bounds = array<i64: 24, 512>}]} {
    %c0 = arith.constant 0 : index
    %c0_0 = arith.constant 0 : index
    %0 = vector.load %arg1[%c0, %c0_0] : memref<24x512xbf16, #tpu.memory_space<vmem>>, vector<24x512xbf16>
    %c0_1 = arith.constant 0 : index
    %c0_2 = arith.constant 0 : index
    %1 = vector.load %arg2[%c0_1, %c0_2] : memref<6x24xbf16, #tpu.memory_space<vmem>>, vector<6x24xbf16>
    %cst = arith.constant dense<0.000000e+00> : vector<6x512xf32>
    %2 = tpu.matmul %1, %0, %cst {dimension_numbers = #tpu.dot_dimension_numbers<[1], [0], [0], [1], [0, 0, 1, 1], [], []>} : vector<6x24xbf16>, vector<24x512xbf16>, vector<6x512xf32> -> vector<6x512xf32>
    %c0_3 = arith.constant 0 : index
    %c0_4 = arith.constant 0 : index
    %3 = vector.load %arg3[%c0_3, %c0_4] : memref<6x1xf32, #tpu.memory_space<vmem>>, vector<6x1xf32>
    %4 = vector.broadcast %3 : vector<6x1xf32> to vector<6x512xf32>
    %5 = arith.addf %2, %4 : vector<6x512xf32>
    %cst_5 = arith.constant 0.000000e+00 : f32
    %6 = vector.broadcast %cst_5 : f32 to vector<6x512xf32>
    %7 = arith.maximumf %5, %6 : vector<6x512xf32>
    %cst_6 = arith.constant 0.000000e+00 : f32
    %8 = vector.broadcast %cst_6 : f32 to vector<6x542xf32>
    %c0_7 = arith.constant 0 : index
    %c0_8 = arith.constant 0 : index
    %9 = vector.load %arg10[%c0_7, %c0_8] : memref<6x542xf32, #tpu.memory_space<vmem>>, vector<6x542xf32>
    tpu.vector_store %arg10[%c0_7, %c0_8], %8 {strides = array<i32>} : memref<6x542xf32, #tpu.memory_space<vmem>>, vector<6x542xf32>,
    %c0_9 = arith.constant 0 : index
    %c15 = arith.constant 15 : index
    %10 = vector.load %arg10[%c0_9, %c15] : memref<6x542xf32, #tpu.memory_space<vmem>>, vector<6x512xf32>
    tpu.vector_store %arg10[%c0_9, %c15], %7 {strides = array<i32>} : memref<6x542xf32, #tpu.memory_space<vmem>>, vector<6x512xf32>,
    %c0_10 = arith.constant 0 : index
    %c0_11 = arith.constant 0 : index
    %11 = vector.load %arg8[%c0_10, %c0_11] : memref<9x512xf32, #tpu.memory_space<vmem>>, vector<9x512xf32>
    %c0_12 = arith.constant 0 : index
    %c0_13 = arith.constant 0 : index
    %12 = vector.load %arg4[%c0_12, %c0_13] : memref<6x9xf32, #tpu.memory_space<vmem>>, vector<6x9xf32>
    %c0_14 = arith.constant 0 : index
    %c0_15 = arith.constant 0 : index
    %13 = vector.load %arg10[%c0_14, %c0_15] : memref<6x542xf32, #tpu.memory_space<vmem>>, vector<6x512xf32>
    %14 = vector.extract_strided_slice %11 {offsets = [0, 0], sizes = [1, 512], strides = [1, 1]} : vector<9x512xf32> to vector<1x512xf32>
    %15 = vector.broadcast %14 : vector<1x512xf32> to vector<6x512xf32>
    %16 = arith.mulf %13, %15 : vector<6x512xf32>
    %17 = vector.extract_strided_slice %12 {offsets = [0, 0], sizes = [6, 1], strides = [1, 1]} : vector<6x9xf32> to vector<6x1xf32>
    %18 = vector.broadcast %17 : vector<6x1xf32> to vector<6x512xf32>
    %19 = arith.mulf %16, %18 : vector<6x512xf32>
    %c0_16 = arith.constant 0 : index
    %c1 = arith.constant 1 : index
    %20 = vector.load %arg10[%c0_16, %c1] : memref<6x542xf32, #tpu.memory_space<vmem>>, vector<6x512xf32>
    %21 = vector.extract_strided_slice %11 {offsets = [1, 0], sizes = [1, 512], strides = [1, 1]} : vector<9x512xf32> to vector<1x512xf32>
    %22 = vector.broadcast %21 : vector<1x512xf32> to vector<6x512xf32>
    %23 = arith.mulf %20, %22 : vector<6x512xf32>
    %24 = vector.extract_strided_slice %12 {offsets = [0, 1], sizes = [6, 1], strides = [1, 1]} : vector<6x9xf32> to vector<6x1xf32>
    %25 = vector.broadcast %24 : vector<6x1xf32> to vector<6x512xf32>
    %26 = arith.mulf %23, %25 : vector<6x512xf32>
    %27 = arith.addf %19, %26 : vector<6x512xf32>
    %c0_17 = arith.constant 0 : index
    %c2 = arith.constant 2 : index
    %28 = vector.load %arg10[%c0_17, %c2] : memref<6x542xf32, #tpu.memory_space<vmem>>, vector<6x512xf32>
    %29 = vector.extract_strided_slice %11 {offsets = [2, 0], sizes = [1, 512], strides = [1, 1]} : vector<9x512xf32> to vector<1x512xf32>
    %30 = vector.broadcast %29 : vector<1x512xf32> to vector<6x512xf32>
    %31 = arith.mulf %28, %30 : vector<6x512xf32>
    %32 = vector.extract_strided_slice %12 {offsets = [0, 2], sizes = [6, 1], strides = [1, 1]} : vector<6x9xf32> to vector<6x1xf32>
    %33 = vector.broadcast %32 : vector<6x1xf32> to vector<6x512xf32>
    %34 = arith.mulf %31, %33 : vector<6x512xf32>
    %35 = arith.addf %27, %34 : vector<6x512xf32>
    %c0_18 = arith.constant 0 : index
    %c14 = arith.constant 14 : index
    %36 = vector.load %arg10[%c0_18, %c14] : memref<6x542xf32, #tpu.memory_space<vmem>>, vector<6x512xf32>
    %37 = vector.extract_strided_slice %11 {offsets = [3, 0], sizes = [1, 512], strides = [1, 1]} : vector<9x512xf32> to vector<1x512xf32>
    %38 = vector.broadcast %37 : vector<1x512xf32> to vector<6x512xf32>
    %39 = arith.mulf %36, %38 : vector<6x512xf32>
    %40 = vector.extract_strided_slice %12 {offsets = [0, 3], sizes = [6, 1], strides = [1, 1]} : vector<6x9xf32> to vector<6x1xf32>
    %41 = vector.broadcast %40 : vector<6x1xf32> to vector<6x512xf32>
    %42 = arith.mulf %39, %41 : vector<6x512xf32>
    %43 = arith.addf %35, %42 : vector<6x512xf32>
    %c0_19 = arith.constant 0 : index
    %c15_20 = arith.constant 15 : index
    %44 = vector.load %arg10[%c0_19, %c15_20] : memref<6x542xf32, #tpu.memory_space<vmem>>, vector<6x512xf32>
    %45 = vector.extract_strided_slice %11 {offsets = [4, 0], sizes = [1, 512], strides = [1, 1]} : vector<9x512xf32> to vector<1x512xf32>
    %46 = vector.broadcast %45 : vector<1x512xf32> to vector<6x512xf32>
    %47 = arith.mulf %44, %46 : vector<6x512xf32>
    %48 = vector.extract_strided_slice %12 {offsets = [0, 4], sizes = [6, 1], strides = [1, 1]} : vector<6x9xf32> to vector<6x1xf32>
    %49 = vector.broadcast %48 : vector<6x1xf32> to vector<6x512xf32>
    %50 = arith.mulf %47, %49 : vector<6x512xf32>
    %51 = arith.addf %43, %50 : vector<6x512xf32>
    %c0_21 = arith.constant 0 : index
    %c16 = arith.constant 16 : index
    %52 = vector.load %arg10[%c0_21, %c16] : memref<6x542xf32, #tpu.memory_space<vmem>>, vector<6x512xf32>
    %53 = vector.extract_strided_slice %11 {offsets = [5, 0], sizes = [1, 512], strides = [1, 1]} : vector<9x512xf32> to vector<1x512xf32>
    %54 = vector.broadcast %53 : vector<1x512xf32> to vector<6x512xf32>
    %55 = arith.mulf %52, %54 : vector<6x512xf32>
    %56 = vector.extract_strided_slice %12 {offsets = [0, 5], sizes = [6, 1], strides = [1, 1]} : vector<6x9xf32> to vector<6x1xf32>
    %57 = vector.broadcast %56 : vector<6x1xf32> to vector<6x512xf32>
    %58 = arith.mulf %55, %57 : vector<6x512xf32>
    %59 = arith.addf %51, %58 : vector<6x512xf32>
    %c0_22 = arith.constant 0 : index
    %c28 = arith.constant 28 : index
    %60 = vector.load %arg10[%c0_22, %c28] : memref<6x542xf32, #tpu.memory_space<vmem>>, vector<6x512xf32>
    %61 = vector.extract_strided_slice %11 {offsets = [6, 0], sizes = [1, 512], strides = [1, 1]} : vector<9x512xf32> to vector<1x512xf32>
    %62 = vector.broadcast %61 : vector<1x512xf32> to vector<6x512xf32>
    %63 = arith.mulf %60, %62 : vector<6x512xf32>
    %64 = vector.extract_strided_slice %12 {offsets = [0, 6], sizes = [6, 1], strides = [1, 1]} : vector<6x9xf32> to vector<6x1xf32>
    %65 = vector.broadcast %64 : vector<6x1xf32> to vector<6x512xf32>
    %66 = arith.mulf %63, %65 : vector<6x512xf32>
    %67 = arith.addf %59, %66 : vector<6x512xf32>
    %c0_23 = arith.constant 0 : index
    %c29 = arith.constant 29 : index
    %68 = vector.load %arg10[%c0_23, %c29] : memref<6x542xf32, #tpu.memory_space<vmem>>, vector<6x512xf32>
    %69 = vector.extract_strided_slice %11 {offsets = [7, 0], sizes = [1, 512], strides = [1, 1]} : vector<9x512xf32> to vector<1x512xf32>
    %70 = vector.broadcast %69 : vector<1x512xf32> to vector<6x512xf32>
    %71 = arith.mulf %68, %70 : vector<6x512xf32>
    %72 = vector.extract_strided_slice %12 {offsets = [0, 7], sizes = [6, 1], strides = [1, 1]} : vector<6x9xf32> to vector<6x1xf32>
    %73 = vector.broadcast %72 : vector<6x1xf32> to vector<6x512xf32>
    %74 = arith.mulf %71, %73 : vector<6x512xf32>
    %75 = arith.addf %67, %74 : vector<6x512xf32>
    %c0_24 = arith.constant 0 : index
    %c30 = arith.constant 30 : index
    %76 = vector.load %arg10[%c0_24, %c30] : memref<6x542xf32, #tpu.memory_space<vmem>>, vector<6x512xf32>
    %77 = vector.extract_strided_slice %11 {offsets = [8, 0], sizes = [1, 512], strides = [1, 1]} : vector<9x512xf32> to vector<1x512xf32>
    %78 = vector.broadcast %77 : vector<1x512xf32> to vector<6x512xf32>
    %79 = arith.mulf %76, %78 : vector<6x512xf32>
    %80 = vector.extract_strided_slice %12 {offsets = [0, 8], sizes = [6, 1], strides = [1, 1]} : vector<6x9xf32> to vector<6x1xf32>
    %81 = vector.broadcast %80 : vector<6x1xf32> to vector<6x512xf32>
    %82 = arith.mulf %79, %81 : vector<6x512xf32>
    %83 = arith.addf %75, %82 : vector<6x512xf32>
    %c0_25 = arith.constant 0 : index
    %c0_26 = arith.constant 0 : index
    %84 = vector.load %arg5[%c0_25, %c0_26] : memref<6x1xf32, #tpu.memory_space<vmem>>, vector<6x1xf32>
    %85 = vector.broadcast %84 : vector<6x1xf32> to vector<6x512xf32>
    %86 = arith.addf %83, %85 : vector<6x512xf32>
    %c0_27 = arith.constant 0 : index
    %c0_28 = arith.constant 0 : index
    %87 = vector.load %arg6[%c0_27, %c0_28] : memref<24x6xbf16, #tpu.memory_space<vmem>>, vector<24x6xbf16>
    %88 = arith.truncf %86 : vector<6x512xf32> to vector<6x512xbf16>
    %cst_29 = arith.constant dense<0.000000e+00> : vector<24x512xf32>
    %89 = tpu.matmul %87, %88, %cst_29 {dimension_numbers = #tpu.dot_dimension_numbers<[1], [0], [0], [1], [0, 0, 1, 1], [], []>} : vector<24x6xbf16>, vector<6x512xbf16>, vector<24x512xf32> -> vector<24x512xf32>
    %c0_30 = arith.constant 0 : index
    %c0_31 = arith.constant 0 : index
    %90 = vector.load %arg7[%c0_30, %c0_31] : memref<24x1xf32, #tpu.memory_space<vmem>>, vector<24x1xf32>
    %91 = vector.broadcast %90 : vector<24x1xf32> to vector<24x512xf32>
    %92 = arith.addf %89, %91 : vector<24x512xf32>
    %93 = arith.extf %0 : vector<24x512xbf16> to vector<24x512xf32>
    %94 = arith.addf %92, %93 : vector<24x512xf32>
    %cst_32 = arith.constant 0.000000e+00 : f32
    %95 = vector.broadcast %cst_32 : f32 to vector<24x512xf32>
    %96 = arith.maximumf %94, %95 : vector<24x512xf32>
    %97 = arith.truncf %96 : vector<24x512xf32> to vector<24x512xbf16>
    %c0_33 = arith.constant 0 : index
    %c0_34 = arith.constant 0 : index
    %98 = vector.load %arg9[%c0_33, %c0_34] : memref<24x512xbf16, #tpu.memory_space<vmem>>, vector<24x512xbf16>
    tpu.vector_store %arg9[%c0_33, %c0_34], %97 {strides = array<i32>} : memref<24x512xbf16, #tpu.memory_space<vmem>>, vector<24x512xbf16>,
    return
  }
  func.func @transform_0(%arg0: i32) -> (i32, i32) {
    %c0_i32 = arith.constant 0 : i32
    %c0_i32_0 = arith.constant 0 : i32
    %c0_i32_1 = arith.constant 0 : i32
    return %c0_i32, %c0_i32_0 : i32, i32
  }
  func.func @transform_1(%arg0: i32) -> (i32, i32) {
    %c0_i32 = arith.constant 0 : i32
    %c0_i32_0 = arith.constant 0 : i32
    %c0_i32_1 = arith.constant 0 : i32
    return %c0_i32, %c0_i32_0 : i32, i32
  }
  func.func @transform_2(%arg0: i32) -> (i32, i32) {
    %c0_i32 = arith.constant 0 : i32
    %c0_i32_0 = arith.constant 0 : i32
    %c0_i32_1 = arith.constant 0 : i32
    return %c0_i32, %c0_i32_0 : i32, i32
  }
  func.func @transform_3(%arg0: i32) -> (i32, i32) {
    %c0_i32 = arith.constant 0 : i32
    %c0_i32_0 = arith.constant 0 : i32
    %c0_i32_1 = arith.constant 0 : i32
    return %c0_i32, %c0_i32_0 : i32, i32
  }
  func.func @transform_4(%arg0: i32) -> (i32, i32) {
    %c0_i32 = arith.constant 0 : i32
    %c0_i32_0 = arith.constant 0 : i32
    %c0_i32_1 = arith.constant 0 : i32
    return %c0_i32, %c0_i32_0 : i32, i32
  }
  func.func @transform_5(%arg0: i32) -> (i32, i32) {
    %c0_i32 = arith.constant 0 : i32
    %c0_i32_0 = arith.constant 0 : i32
    %c0_i32_1 = arith.constant 0 : i32
    return %c0_i32, %c0_i32_0 : i32, i32
  }
  func.func @transform_6(%arg0: i32) -> (i32, i32) {
    %c0_i32 = arith.constant 0 : i32
    %c0_i32_0 = arith.constant 0 : i32
    %c0_i32_1 = arith.constant 0 : i32
    return %c0_i32, %c0_i32_0 : i32, i32
  }
  func.func @transform_7(%arg0: i32) -> (i32, i32) {
    %c0_i32 = arith.constant 0 : i32
    %c0_i32_0 = arith.constant 0 : i32
    %c0_i32_1 = arith.constant 0 : i32
    return %c0_i32, %c0_i32_0 : i32, i32
  }
  func.func @transform_8(%arg0: i32) -> (i32, i32) {
    %c0_i32 = arith.constant 0 : i32
    %c0_i32_0 = arith.constant 0 : i32
    %c0_i32_1 = arith.constant 0 : i32
    return %c0_i32, %c0_i32_0 : i32, i32
  }
}

module attributes {stable_mosaic.version = 11 : i64} {
  func.func @_unit_s2_kernel(%arg0: i32, %arg1: memref<24x512xbf16, #tpu.memory_space<vmem>>, %arg2: memref<12x24xbf16, #tpu.memory_space<vmem>>, %arg3: memref<12x1xf32, #tpu.memory_space<vmem>>, %arg4: memref<12x9xf32, #tpu.memory_space<vmem>>, %arg5: memref<12x1xf32, #tpu.memory_space<vmem>>, %arg6: memref<24x12xbf16, #tpu.memory_space<vmem>>, %arg7: memref<24x1xf32, #tpu.memory_space<vmem>>, %arg8: memref<9x512xf32, #tpu.memory_space<vmem>>, %arg9: memref<512x128xbf16, #tpu.memory_space<vmem>>, %arg10: memref<48x128xbf16, #tpu.memory_space<vmem>>, %arg11: memref<12x542xf32, #tpu.memory_space<vmem>>, %arg12: memref<24x542xf32, #tpu.memory_space<vmem>>) attributes {dimension_semantics = [#tpu.dimension_semantics<arbitrary>], iteration_bounds = array<i64: 1>, scalar_prefetch = 0 : i64, scratch_operands = 2 : i64, tpu.core_type = #tpu.core_type<tc>, window_params = [{pipeline_mode = #tpu.pipeline_mode<synchronous>, transform_indices = @transform_0, window_bounds = array<i64: 24, 512>}, {pipeline_mode = #tpu.pipeline_mode<synchronous>, transform_indices = @transform_1, window_bounds = array<i64: 12, 24>}, {pipeline_mode = #tpu.pipeline_mode<synchronous>, transform_indices = @transform_2, window_bounds = array<i64: 12, 1>}, {pipeline_mode = #tpu.pipeline_mode<synchronous>, transform_indices = @transform_3, window_bounds = array<i64: 12, 9>}, {pipeline_mode = #tpu.pipeline_mode<synchronous>, transform_indices = @transform_4, window_bounds = array<i64: 12, 1>}, {pipeline_mode = #tpu.pipeline_mode<synchronous>, transform_indices = @transform_5, window_bounds = array<i64: 24, 12>}, {pipeline_mode = #tpu.pipeline_mode<synchronous>, transform_indices = @transform_6, window_bounds = array<i64: 24, 1>}, {pipeline_mode = #tpu.pipeline_mode<synchronous>, transform_indices = @transform_7, window_bounds = array<i64: 9, 512>}, {pipeline_mode = #tpu.pipeline_mode<synchronous>, transform_indices = @transform_8, window_bounds = array<i64: 512, 128>}, {pipeline_mode = #tpu.pipeline_mode<synchronous>, transform_indices = @transform_9, window_bounds = array<i64: 48, 128>}]} {
    %c0 = arith.constant 0 : index
    %c0_0 = arith.constant 0 : index
    %0 = vector.load %arg1[%c0, %c0_0] : memref<24x512xbf16, #tpu.memory_space<vmem>>, vector<24x512xbf16>
    %c0_1 = arith.constant 0 : index
    %c0_2 = arith.constant 0 : index
    %1 = vector.load %arg8[%c0_1, %c0_2] : memref<9x512xf32, #tpu.memory_space<vmem>>, vector<9x512xf32>
    %c0_3 = arith.constant 0 : index
    %c0_4 = arith.constant 0 : index
    %2 = vector.load %arg9[%c0_3, %c0_4] : memref<512x128xbf16, #tpu.memory_space<vmem>>, vector<512x128xbf16>
    %c0_5 = arith.constant 0 : index
    %c0_6 = arith.constant 0 : index
    %3 = vector.load %arg2[%c0_5, %c0_6] : memref<12x24xbf16, #tpu.memory_space<vmem>>, vector<12x24xbf16>
    %cst = arith.constant dense<0.000000e+00> : vector<12x512xf32>
    %4 = tpu.matmul %3, %0, %cst {dimension_numbers = #tpu.dot_dimension_numbers<[1], [0], [0], [1], [0, 0, 1, 1], [], []>} : vector<12x24xbf16>, vector<24x512xbf16>, vector<12x512xf32> -> vector<12x512xf32>
    %c0_7 = arith.constant 0 : index
    %c0_8 = arith.constant 0 : index
    %5 = vector.load %arg3[%c0_7, %c0_8] : memref<12x1xf32, #tpu.memory_space<vmem>>, vector<12x1xf32>
    %6 = vector.broadcast %5 : vector<12x1xf32> to vector<12x512xf32>
    %7 = arith.addf %4, %6 : vector<12x512xf32>
    %cst_9 = arith.constant 0.000000e+00 : f32
    %8 = vector.broadcast %cst_9 : f32 to vector<12x512xf32>
    %9 = arith.maximumf %7, %8 : vector<12x512xf32>
    %cst_10 = arith.constant 0.000000e+00 : f32
    %10 = vector.broadcast %cst_10 : f32 to vector<12x542xf32>
    %c0_11 = arith.constant 0 : index
    %c0_12 = arith.constant 0 : index
    %11 = vector.load %arg11[%c0_11, %c0_12] : memref<12x542xf32, #tpu.memory_space<vmem>>, vector<12x542xf32>
    tpu.vector_store %arg11[%c0_11, %c0_12], %10 {strides = array<i32>} : memref<12x542xf32, #tpu.memory_space<vmem>>, vector<12x542xf32>,
    %c0_13 = arith.constant 0 : index
    %c15 = arith.constant 15 : index
    %12 = vector.load %arg11[%c0_13, %c15] : memref<12x542xf32, #tpu.memory_space<vmem>>, vector<12x512xf32>
    tpu.vector_store %arg11[%c0_13, %c15], %9 {strides = array<i32>} : memref<12x542xf32, #tpu.memory_space<vmem>>, vector<12x512xf32>,
    %c0_14 = arith.constant 0 : index
    %c0_15 = arith.constant 0 : index
    %13 = vector.load %arg4[%c0_14, %c0_15] : memref<12x9xf32, #tpu.memory_space<vmem>>, vector<12x9xf32>
    %c0_16 = arith.constant 0 : index
    %c0_17 = arith.constant 0 : index
    %14 = vector.load %arg11[%c0_16, %c0_17] : memref<12x542xf32, #tpu.memory_space<vmem>>, vector<12x512xf32>
    %15 = vector.extract_strided_slice %1 {offsets = [0, 0], sizes = [1, 512], strides = [1, 1]} : vector<9x512xf32> to vector<1x512xf32>
    %16 = vector.broadcast %15 : vector<1x512xf32> to vector<12x512xf32>
    %17 = arith.mulf %14, %16 : vector<12x512xf32>
    %18 = vector.extract_strided_slice %13 {offsets = [0, 0], sizes = [12, 1], strides = [1, 1]} : vector<12x9xf32> to vector<12x1xf32>
    %19 = vector.broadcast %18 : vector<12x1xf32> to vector<12x512xf32>
    %20 = arith.mulf %17, %19 : vector<12x512xf32>
    %c0_18 = arith.constant 0 : index
    %c1 = arith.constant 1 : index
    %21 = vector.load %arg11[%c0_18, %c1] : memref<12x542xf32, #tpu.memory_space<vmem>>, vector<12x512xf32>
    %22 = vector.extract_strided_slice %1 {offsets = [1, 0], sizes = [1, 512], strides = [1, 1]} : vector<9x512xf32> to vector<1x512xf32>
    %23 = vector.broadcast %22 : vector<1x512xf32> to vector<12x512xf32>
    %24 = arith.mulf %21, %23 : vector<12x512xf32>
    %25 = vector.extract_strided_slice %13 {offsets = [0, 1], sizes = [12, 1], strides = [1, 1]} : vector<12x9xf32> to vector<12x1xf32>
    %26 = vector.broadcast %25 : vector<12x1xf32> to vector<12x512xf32>
    %27 = arith.mulf %24, %26 : vector<12x512xf32>
    %28 = arith.addf %20, %27 : vector<12x512xf32>
    %c0_19 = arith.constant 0 : index
    %c2 = arith.constant 2 : index
    %29 = vector.load %arg11[%c0_19, %c2] : memref<12x542xf32, #tpu.memory_space<vmem>>, vector<12x512xf32>
    %30 = vector.extract_strided_slice %1 {offsets = [2, 0], sizes = [1, 512], strides = [1, 1]} : vector<9x512xf32> to vector<1x512xf32>
    %31 = vector.broadcast %30 : vector<1x512xf32> to vector<12x512xf32>
    %32 = arith.mulf %29, %31 : vector<12x512xf32>
    %33 = vector.extract_strided_slice %13 {offsets = [0, 2], sizes = [12, 1], strides = [1, 1]} : vector<12x9xf32> to vector<12x1xf32>
    %34 = vector.broadcast %33 : vector<12x1xf32> to vector<12x512xf32>
    %35 = arith.mulf %32, %34 : vector<12x512xf32>
    %36 = arith.addf %28, %35 : vector<12x512xf32>
    %c0_20 = arith.constant 0 : index
    %c14 = arith.constant 14 : index
    %37 = vector.load %arg11[%c0_20, %c14] : memref<12x542xf32, #tpu.memory_space<vmem>>, vector<12x512xf32>
    %38 = vector.extract_strided_slice %1 {offsets = [3, 0], sizes = [1, 512], strides = [1, 1]} : vector<9x512xf32> to vector<1x512xf32>
    %39 = vector.broadcast %38 : vector<1x512xf32> to vector<12x512xf32>
    %40 = arith.mulf %37, %39 : vector<12x512xf32>
    %41 = vector.extract_strided_slice %13 {offsets = [0, 3], sizes = [12, 1], strides = [1, 1]} : vector<12x9xf32> to vector<12x1xf32>
    %42 = vector.broadcast %41 : vector<12x1xf32> to vector<12x512xf32>
    %43 = arith.mulf %40, %42 : vector<12x512xf32>
    %44 = arith.addf %36, %43 : vector<12x512xf32>
    %c0_21 = arith.constant 0 : index
    %c15_22 = arith.constant 15 : index
    %45 = vector.load %arg11[%c0_21, %c15_22] : memref<12x542xf32, #tpu.memory_space<vmem>>, vector<12x512xf32>
    %46 = vector.extract_strided_slice %1 {offsets = [4, 0], sizes = [1, 512], strides = [1, 1]} : vector<9x512xf32> to vector<1x512xf32>
    %47 = vector.broadcast %46 : vector<1x512xf32> to vector<12x512xf32>
    %48 = arith.mulf %45, %47 : vector<12x512xf32>
    %49 = vector.extract_strided_slice %13 {offsets = [0, 4], sizes = [12, 1], strides = [1, 1]} : vector<12x9xf32> to vector<12x1xf32>
    %50 = vector.broadcast %49 : vector<12x1xf32> to vector<12x512xf32>
    %51 = arith.mulf %48, %50 : vector<12x512xf32>
    %52 = arith.addf %44, %51 : vector<12x512xf32>
    %c0_23 = arith.constant 0 : index
    %c16 = arith.constant 16 : index
    %53 = vector.load %arg11[%c0_23, %c16] : memref<12x542xf32, #tpu.memory_space<vmem>>, vector<12x512xf32>
    %54 = vector.extract_strided_slice %1 {offsets = [5, 0], sizes = [1, 512], strides = [1, 1]} : vector<9x512xf32> to vector<1x512xf32>
    %55 = vector.broadcast %54 : vector<1x512xf32> to vector<12x512xf32>
    %56 = arith.mulf %53, %55 : vector<12x512xf32>
    %57 = vector.extract_strided_slice %13 {offsets = [0, 5], sizes = [12, 1], strides = [1, 1]} : vector<12x9xf32> to vector<12x1xf32>
    %58 = vector.broadcast %57 : vector<12x1xf32> to vector<12x512xf32>
    %59 = arith.mulf %56, %58 : vector<12x512xf32>
    %60 = arith.addf %52, %59 : vector<12x512xf32>
    %c0_24 = arith.constant 0 : index
    %c28 = arith.constant 28 : index
    %61 = vector.load %arg11[%c0_24, %c28] : memref<12x542xf32, #tpu.memory_space<vmem>>, vector<12x512xf32>
    %62 = vector.extract_strided_slice %1 {offsets = [6, 0], sizes = [1, 512], strides = [1, 1]} : vector<9x512xf32> to vector<1x512xf32>
    %63 = vector.broadcast %62 : vector<1x512xf32> to vector<12x512xf32>
    %64 = arith.mulf %61, %63 : vector<12x512xf32>
    %65 = vector.extract_strided_slice %13 {offsets = [0, 6], sizes = [12, 1], strides = [1, 1]} : vector<12x9xf32> to vector<12x1xf32>
    %66 = vector.broadcast %65 : vector<12x1xf32> to vector<12x512xf32>
    %67 = arith.mulf %64, %66 : vector<12x512xf32>
    %68 = arith.addf %60, %67 : vector<12x512xf32>
    %c0_25 = arith.constant 0 : index
    %c29 = arith.constant 29 : index
    %69 = vector.load %arg11[%c0_25, %c29] : memref<12x542xf32, #tpu.memory_space<vmem>>, vector<12x512xf32>
    %70 = vector.extract_strided_slice %1 {offsets = [7, 0], sizes = [1, 512], strides = [1, 1]} : vector<9x512xf32> to vector<1x512xf32>
    %71 = vector.broadcast %70 : vector<1x512xf32> to vector<12x512xf32>
    %72 = arith.mulf %69, %71 : vector<12x512xf32>
    %73 = vector.extract_strided_slice %13 {offsets = [0, 7], sizes = [12, 1], strides = [1, 1]} : vector<12x9xf32> to vector<12x1xf32>
    %74 = vector.broadcast %73 : vector<12x1xf32> to vector<12x512xf32>
    %75 = arith.mulf %72, %74 : vector<12x512xf32>
    %76 = arith.addf %68, %75 : vector<12x512xf32>
    %c0_26 = arith.constant 0 : index
    %c30 = arith.constant 30 : index
    %77 = vector.load %arg11[%c0_26, %c30] : memref<12x542xf32, #tpu.memory_space<vmem>>, vector<12x512xf32>
    %78 = vector.extract_strided_slice %1 {offsets = [8, 0], sizes = [1, 512], strides = [1, 1]} : vector<9x512xf32> to vector<1x512xf32>
    %79 = vector.broadcast %78 : vector<1x512xf32> to vector<12x512xf32>
    %80 = arith.mulf %77, %79 : vector<12x512xf32>
    %81 = vector.extract_strided_slice %13 {offsets = [0, 8], sizes = [12, 1], strides = [1, 1]} : vector<12x9xf32> to vector<12x1xf32>
    %82 = vector.broadcast %81 : vector<12x1xf32> to vector<12x512xf32>
    %83 = arith.mulf %80, %82 : vector<12x512xf32>
    %84 = arith.addf %76, %83 : vector<12x512xf32>
    %85 = arith.truncf %84 : vector<12x512xf32> to vector<12x512xbf16>
    %cst_27 = arith.constant dense<0.000000e+00> : vector<12x128xf32>
    %86 = tpu.matmul %85, %2, %cst_27 {dimension_numbers = #tpu.dot_dimension_numbers<[1], [0], [0], [1], [0, 0, 1, 1], [], []>} : vector<12x512xbf16>, vector<512x128xbf16>, vector<12x128xf32> -> vector<12x128xf32>
    %c0_28 = arith.constant 0 : index
    %c0_29 = arith.constant 0 : index
    %87 = vector.load %arg5[%c0_28, %c0_29] : memref<12x1xf32, #tpu.memory_space<vmem>>, vector<12x1xf32>
    %88 = vector.broadcast %87 : vector<12x1xf32> to vector<12x128xf32>
    %89 = arith.addf %86, %88 : vector<12x128xf32>
    %c0_30 = arith.constant 0 : index
    %c0_31 = arith.constant 0 : index
    %90 = vector.load %arg6[%c0_30, %c0_31] : memref<24x12xbf16, #tpu.memory_space<vmem>>, vector<24x12xbf16>
    %91 = arith.truncf %89 : vector<12x128xf32> to vector<12x128xbf16>
    %cst_32 = arith.constant dense<0.000000e+00> : vector<24x128xf32>
    %92 = tpu.matmul %90, %91, %cst_32 {dimension_numbers = #tpu.dot_dimension_numbers<[1], [0], [0], [1], [0, 0, 1, 1], [], []>} : vector<24x12xbf16>, vector<12x128xbf16>, vector<24x128xf32> -> vector<24x128xf32>
    %c0_33 = arith.constant 0 : index
    %c0_34 = arith.constant 0 : index
    %93 = vector.load %arg7[%c0_33, %c0_34] : memref<24x1xf32, #tpu.memory_space<vmem>>, vector<24x1xf32>
    %94 = vector.broadcast %93 : vector<24x1xf32> to vector<24x128xf32>
    %95 = arith.addf %92, %94 : vector<24x128xf32>
    %cst_35 = arith.constant 0.000000e+00 : f32
    %96 = vector.broadcast %cst_35 : f32 to vector<24x128xf32>
    %97 = arith.maximumf %95, %96 : vector<24x128xf32>
    %98 = arith.truncf %97 : vector<24x128xf32> to vector<24x128xbf16>
    %c0_36 = arith.constant 0 : index
    %c0_37 = arith.constant 0 : index
    %99 = vector.load %arg10[%c0_36, %c0_37] : memref<48x128xbf16, #tpu.memory_space<vmem>>, vector<24x128xbf16>
    tpu.vector_store %arg10[%c0_36, %c0_37], %98 {strides = array<i32>} : memref<48x128xbf16, #tpu.memory_space<vmem>>, vector<24x128xbf16>,
    %cst_38 = arith.constant 0.000000e+00 : f32
    %100 = vector.broadcast %cst_38 : f32 to vector<24x542xf32>
    %c0_39 = arith.constant 0 : index
    %c0_40 = arith.constant 0 : index
    %101 = vector.load %arg12[%c0_39, %c0_40] : memref<24x542xf32, #tpu.memory_space<vmem>>, vector<24x542xf32>
    tpu.vector_store %arg12[%c0_39, %c0_40], %100 {strides = array<i32>} : memref<24x542xf32, #tpu.memory_space<vmem>>, vector<24x542xf32>,
    %102 = arith.extf %0 : vector<24x512xbf16> to vector<24x512xf32>
    %c0_41 = arith.constant 0 : index
    %c15_42 = arith.constant 15 : index
    %103 = vector.load %arg12[%c0_41, %c15_42] : memref<24x542xf32, #tpu.memory_space<vmem>>, vector<24x512xf32>
    tpu.vector_store %arg12[%c0_41, %c15_42], %102 {strides = array<i32>} : memref<24x542xf32, #tpu.memory_space<vmem>>, vector<24x512xf32>,
    %c0_43 = arith.constant 0 : index
    %c0_44 = arith.constant 0 : index
    %104 = vector.load %arg12[%c0_43, %c0_44] : memref<24x542xf32, #tpu.memory_space<vmem>>, vector<24x512xf32>
    %105 = vector.extract_strided_slice %1 {offsets = [0, 0], sizes = [1, 512], strides = [1, 1]} : vector<9x512xf32> to vector<1x512xf32>
    %106 = vector.broadcast %105 : vector<1x512xf32> to vector<24x512xf32>
    %107 = arith.mulf %104, %106 : vector<24x512xf32>
    %c0_45 = arith.constant 0 : index
    %c1_46 = arith.constant 1 : index
    %108 = vector.load %arg12[%c0_45, %c1_46] : memref<24x542xf32, #tpu.memory_space<vmem>>, vector<24x512xf32>
    %109 = vector.extract_strided_slice %1 {offsets = [1, 0], sizes = [1, 512], strides = [1, 1]} : vector<9x512xf32> to vector<1x512xf32>
    %110 = vector.broadcast %109 : vector<1x512xf32> to vector<24x512xf32>
    %111 = arith.mulf %108, %110 : vector<24x512xf32>
    %112 = arith.addf %107, %111 : vector<24x512xf32>
    %c0_47 = arith.constant 0 : index
    %c2_48 = arith.constant 2 : index
    %113 = vector.load %arg12[%c0_47, %c2_48] : memref<24x542xf32, #tpu.memory_space<vmem>>, vector<24x512xf32>
    %114 = vector.extract_strided_slice %1 {offsets = [2, 0], sizes = [1, 512], strides = [1, 1]} : vector<9x512xf32> to vector<1x512xf32>
    %115 = vector.broadcast %114 : vector<1x512xf32> to vector<24x512xf32>
    %116 = arith.mulf %113, %115 : vector<24x512xf32>
    %117 = arith.addf %112, %116 : vector<24x512xf32>
    %c0_49 = arith.constant 0 : index
    %c14_50 = arith.constant 14 : index
    %118 = vector.load %arg12[%c0_49, %c14_50] : memref<24x542xf32, #tpu.memory_space<vmem>>, vector<24x512xf32>
    %119 = vector.extract_strided_slice %1 {offsets = [3, 0], sizes = [1, 512], strides = [1, 1]} : vector<9x512xf32> to vector<1x512xf32>
    %120 = vector.broadcast %119 : vector<1x512xf32> to vector<24x512xf32>
    %121 = arith.mulf %118, %120 : vector<24x512xf32>
    %122 = arith.addf %117, %121 : vector<24x512xf32>
    %c0_51 = arith.constant 0 : index
    %c15_52 = arith.constant 15 : index
    %123 = vector.load %arg12[%c0_51, %c15_52] : memref<24x542xf32, #tpu.memory_space<vmem>>, vector<24x512xf32>
    %124 = vector.extract_strided_slice %1 {offsets = [4, 0], sizes = [1, 512], strides = [1, 1]} : vector<9x512xf32> to vector<1x512xf32>
    %125 = vector.broadcast %124 : vector<1x512xf32> to vector<24x512xf32>
    %126 = arith.mulf %123, %125 : vector<24x512xf32>
    %127 = arith.addf %122, %126 : vector<24x512xf32>
    %c0_53 = arith.constant 0 : index
    %c16_54 = arith.constant 16 : index
    %128 = vector.load %arg12[%c0_53, %c16_54] : memref<24x542xf32, #tpu.memory_space<vmem>>, vector<24x512xf32>
    %129 = vector.extract_strided_slice %1 {offsets = [5, 0], sizes = [1, 512], strides = [1, 1]} : vector<9x512xf32> to vector<1x512xf32>
    %130 = vector.broadcast %129 : vector<1x512xf32> to vector<24x512xf32>
    %131 = arith.mulf %128, %130 : vector<24x512xf32>
    %132 = arith.addf %127, %131 : vector<24x512xf32>
    %c0_55 = arith.constant 0 : index
    %c28_56 = arith.constant 28 : index
    %133 = vector.load %arg12[%c0_55, %c28_56] : memref<24x542xf32, #tpu.memory_space<vmem>>, vector<24x512xf32>
    %134 = vector.extract_strided_slice %1 {offsets = [6, 0], sizes = [1, 512], strides = [1, 1]} : vector<9x512xf32> to vector<1x512xf32>
    %135 = vector.broadcast %134 : vector<1x512xf32> to vector<24x512xf32>
    %136 = arith.mulf %133, %135 : vector<24x512xf32>
    %137 = arith.addf %132, %136 : vector<24x512xf32>
    %c0_57 = arith.constant 0 : index
    %c29_58 = arith.constant 29 : index
    %138 = vector.load %arg12[%c0_57, %c29_58] : memref<24x542xf32, #tpu.memory_space<vmem>>, vector<24x512xf32>
    %139 = vector.extract_strided_slice %1 {offsets = [7, 0], sizes = [1, 512], strides = [1, 1]} : vector<9x512xf32> to vector<1x512xf32>
    %140 = vector.broadcast %139 : vector<1x512xf32> to vector<24x512xf32>
    %141 = arith.mulf %138, %140 : vector<24x512xf32>
    %142 = arith.addf %137, %141 : vector<24x512xf32>
    %c0_59 = arith.constant 0 : index
    %c30_60 = arith.constant 30 : index
    %143 = vector.load %arg12[%c0_59, %c30_60] : memref<24x542xf32, #tpu.memory_space<vmem>>, vector<24x512xf32>
    %144 = vector.extract_strided_slice %1 {offsets = [8, 0], sizes = [1, 512], strides = [1, 1]} : vector<9x512xf32> to vector<1x512xf32>
    %145 = vector.broadcast %144 : vector<1x512xf32> to vector<24x512xf32>
    %146 = arith.mulf %143, %145 : vector<24x512xf32>
    %147 = arith.addf %142, %146 : vector<24x512xf32>
    %cst_61 = arith.constant 0.111111112 : f32
    %148 = vector.broadcast %cst_61 : f32 to vector<24x512xf32>
    %149 = arith.mulf %147, %148 : vector<24x512xf32>
    %150 = arith.truncf %149 : vector<24x512xf32> to vector<24x512xbf16>
    %cst_62 = arith.constant dense<0.000000e+00> : vector<24x128xf32>
    %151 = tpu.matmul %150, %2, %cst_62 {dimension_numbers = #tpu.dot_dimension_numbers<[1], [0], [0], [1], [0, 0, 1, 1], [], []>} : vector<24x512xbf16>, vector<512x128xbf16>, vector<24x128xf32> -> vector<24x128xf32>
    %cst_63 = arith.constant 0.000000e+00 : f32
    %152 = vector.broadcast %cst_63 : f32 to vector<24x128xf32>
    %153 = arith.maximumf %151, %152 : vector<24x128xf32>
    %154 = arith.truncf %153 : vector<24x128xf32> to vector<24x128xbf16>
    %c24 = arith.constant 24 : index
    %c0_64 = arith.constant 0 : index
    %155 = vector.load %arg10[%c24, %c0_64] : memref<48x128xbf16, #tpu.memory_space<vmem>>, vector<24x128xbf16>
    tpu.vector_store %arg10[%c24, %c0_64], %154 {strides = array<i32>} : memref<48x128xbf16, #tpu.memory_space<vmem>>, vector<24x128xbf16>,
    return
  }
  func.func @transform_0(%arg0: i32) -> (i32, i32) {
    %c0_i32 = arith.constant 0 : i32
    %c0_i32_0 = arith.constant 0 : i32
    %c0_i32_1 = arith.constant 0 : i32
    return %c0_i32, %c0_i32_0 : i32, i32
  }
  func.func @transform_1(%arg0: i32) -> (i32, i32) {
    %c0_i32 = arith.constant 0 : i32
    %c0_i32_0 = arith.constant 0 : i32
    %c0_i32_1 = arith.constant 0 : i32
    return %c0_i32, %c0_i32_0 : i32, i32
  }
  func.func @transform_2(%arg0: i32) -> (i32, i32) {
    %c0_i32 = arith.constant 0 : i32
    %c0_i32_0 = arith.constant 0 : i32
    %c0_i32_1 = arith.constant 0 : i32
    return %c0_i32, %c0_i32_0 : i32, i32
  }
  func.func @transform_3(%arg0: i32) -> (i32, i32) {
    %c0_i32 = arith.constant 0 : i32
    %c0_i32_0 = arith.constant 0 : i32
    %c0_i32_1 = arith.constant 0 : i32
    return %c0_i32, %c0_i32_0 : i32, i32
  }
  func.func @transform_4(%arg0: i32) -> (i32, i32) {
    %c0_i32 = arith.constant 0 : i32
    %c0_i32_0 = arith.constant 0 : i32
    %c0_i32_1 = arith.constant 0 : i32
    return %c0_i32, %c0_i32_0 : i32, i32
  }
  func.func @transform_5(%arg0: i32) -> (i32, i32) {
    %c0_i32 = arith.constant 0 : i32
    %c0_i32_0 = arith.constant 0 : i32
    %c0_i32_1 = arith.constant 0 : i32
    return %c0_i32, %c0_i32_0 : i32, i32
  }
  func.func @transform_6(%arg0: i32) -> (i32, i32) {
    %c0_i32 = arith.constant 0 : i32
    %c0_i32_0 = arith.constant 0 : i32
    %c0_i32_1 = arith.constant 0 : i32
    return %c0_i32, %c0_i32_0 : i32, i32
  }
  func.func @transform_7(%arg0: i32) -> (i32, i32) {
    %c0_i32 = arith.constant 0 : i32
    %c0_i32_0 = arith.constant 0 : i32
    %c0_i32_1 = arith.constant 0 : i32
    return %c0_i32, %c0_i32_0 : i32, i32
  }
  func.func @transform_8(%arg0: i32) -> (i32, i32) {
    %c0_i32 = arith.constant 0 : i32
    %c0_i32_0 = arith.constant 0 : i32
    %c0_i32_1 = arith.constant 0 : i32
    return %c0_i32, %c0_i32_0 : i32, i32
  }
  func.func @transform_9(%arg0: i32) -> (i32, i32) {
    %c0_i32 = arith.constant 0 : i32
    %c0_i32_0 = arith.constant 0 : i32
    %c0_i32_1 = arith.constant 0 : i32
    return %c0_i32, %c0_i32_0 : i32, i32
  }
}

module attributes {stable_mosaic.version = 11 : i64} {
  func.func @_unit_s1_kernel(%arg0: i32, %arg1: memref<48x128xbf16, #tpu.memory_space<vmem>>, %arg2: memref<12x48xbf16, #tpu.memory_space<vmem>>, %arg3: memref<12x1xf32, #tpu.memory_space<vmem>>, %arg4: memref<12x9xf32, #tpu.memory_space<vmem>>, %arg5: memref<12x1xf32, #tpu.memory_space<vmem>>, %arg6: memref<48x12xbf16, #tpu.memory_space<vmem>>, %arg7: memref<48x1xf32, #tpu.memory_space<vmem>>, %arg8: memref<9x128xf32, #tpu.memory_space<vmem>>, %arg9: memref<48x128xbf16, #tpu.memory_space<vmem>>, %arg10: memref<12x144xf32, #tpu.memory_space<vmem>>) attributes {dimension_semantics = [#tpu.dimension_semantics<arbitrary>], iteration_bounds = array<i64: 1>, scalar_prefetch = 0 : i64, scratch_operands = 1 : i64, tpu.core_type = #tpu.core_type<tc>, window_params = [{pipeline_mode = #tpu.pipeline_mode<synchronous>, transform_indices = @transform_0, window_bounds = array<i64: 48, 128>}, {pipeline_mode = #tpu.pipeline_mode<synchronous>, transform_indices = @transform_1, window_bounds = array<i64: 12, 48>}, {pipeline_mode = #tpu.pipeline_mode<synchronous>, transform_indices = @transform_2, window_bounds = array<i64: 12, 1>}, {pipeline_mode = #tpu.pipeline_mode<synchronous>, transform_indices = @transform_3, window_bounds = array<i64: 12, 9>}, {pipeline_mode = #tpu.pipeline_mode<synchronous>, transform_indices = @transform_4, window_bounds = array<i64: 12, 1>}, {pipeline_mode = #tpu.pipeline_mode<synchronous>, transform_indices = @transform_5, window_bounds = array<i64: 48, 12>}, {pipeline_mode = #tpu.pipeline_mode<synchronous>, transform_indices = @transform_6, window_bounds = array<i64: 48, 1>}, {pipeline_mode = #tpu.pipeline_mode<synchronous>, transform_indices = @transform_7, window_bounds = array<i64: 9, 128>}, {pipeline_mode = #tpu.pipeline_mode<synchronous>, transform_indices = @transform_8, window_bounds = array<i64: 48, 128>}]} {
    %c0 = arith.constant 0 : index
    %c0_0 = arith.constant 0 : index
    %0 = vector.load %arg1[%c0, %c0_0] : memref<48x128xbf16, #tpu.memory_space<vmem>>, vector<48x128xbf16>
    %c0_1 = arith.constant 0 : index
    %c0_2 = arith.constant 0 : index
    %1 = vector.load %arg2[%c0_1, %c0_2] : memref<12x48xbf16, #tpu.memory_space<vmem>>, vector<12x48xbf16>
    %cst = arith.constant dense<0.000000e+00> : vector<12x128xf32>
    %2 = tpu.matmul %1, %0, %cst {dimension_numbers = #tpu.dot_dimension_numbers<[1], [0], [0], [1], [0, 0, 1, 1], [], []>} : vector<12x48xbf16>, vector<48x128xbf16>, vector<12x128xf32> -> vector<12x128xf32>
    %c0_3 = arith.constant 0 : index
    %c0_4 = arith.constant 0 : index
    %3 = vector.load %arg3[%c0_3, %c0_4] : memref<12x1xf32, #tpu.memory_space<vmem>>, vector<12x1xf32>
    %4 = vector.broadcast %3 : vector<12x1xf32> to vector<12x128xf32>
    %5 = arith.addf %2, %4 : vector<12x128xf32>
    %cst_5 = arith.constant 0.000000e+00 : f32
    %6 = vector.broadcast %cst_5 : f32 to vector<12x128xf32>
    %7 = arith.maximumf %5, %6 : vector<12x128xf32>
    %cst_6 = arith.constant 0.000000e+00 : f32
    %8 = vector.broadcast %cst_6 : f32 to vector<12x144xf32>
    %c0_7 = arith.constant 0 : index
    %c0_8 = arith.constant 0 : index
    %9 = vector.load %arg10[%c0_7, %c0_8] : memref<12x144xf32, #tpu.memory_space<vmem>>, vector<12x144xf32>
    tpu.vector_store %arg10[%c0_7, %c0_8], %8 {strides = array<i32>} : memref<12x144xf32, #tpu.memory_space<vmem>>, vector<12x144xf32>,
    %c0_9 = arith.constant 0 : index
    %c8 = arith.constant 8 : index
    %10 = vector.load %arg10[%c0_9, %c8] : memref<12x144xf32, #tpu.memory_space<vmem>>, vector<12x128xf32>
    tpu.vector_store %arg10[%c0_9, %c8], %7 {strides = array<i32>} : memref<12x144xf32, #tpu.memory_space<vmem>>, vector<12x128xf32>,
    %c0_10 = arith.constant 0 : index
    %c0_11 = arith.constant 0 : index
    %11 = vector.load %arg8[%c0_10, %c0_11] : memref<9x128xf32, #tpu.memory_space<vmem>>, vector<9x128xf32>
    %c0_12 = arith.constant 0 : index
    %c0_13 = arith.constant 0 : index
    %12 = vector.load %arg4[%c0_12, %c0_13] : memref<12x9xf32, #tpu.memory_space<vmem>>, vector<12x9xf32>
    %c0_14 = arith.constant 0 : index
    %c0_15 = arith.constant 0 : index
    %13 = vector.load %arg10[%c0_14, %c0_15] : memref<12x144xf32, #tpu.memory_space<vmem>>, vector<12x128xf32>
    %14 = vector.extract_strided_slice %11 {offsets = [0, 0], sizes = [1, 128], strides = [1, 1]} : vector<9x128xf32> to vector<1x128xf32>
    %15 = vector.broadcast %14 : vector<1x128xf32> to vector<12x128xf32>
    %16 = arith.mulf %13, %15 : vector<12x128xf32>
    %17 = vector.extract_strided_slice %12 {offsets = [0, 0], sizes = [12, 1], strides = [1, 1]} : vector<12x9xf32> to vector<12x1xf32>
    %18 = vector.broadcast %17 : vector<12x1xf32> to vector<12x128xf32>
    %19 = arith.mulf %16, %18 : vector<12x128xf32>
    %c0_16 = arith.constant 0 : index
    %c1 = arith.constant 1 : index
    %20 = vector.load %arg10[%c0_16, %c1] : memref<12x144xf32, #tpu.memory_space<vmem>>, vector<12x128xf32>
    %21 = vector.extract_strided_slice %11 {offsets = [1, 0], sizes = [1, 128], strides = [1, 1]} : vector<9x128xf32> to vector<1x128xf32>
    %22 = vector.broadcast %21 : vector<1x128xf32> to vector<12x128xf32>
    %23 = arith.mulf %20, %22 : vector<12x128xf32>
    %24 = vector.extract_strided_slice %12 {offsets = [0, 1], sizes = [12, 1], strides = [1, 1]} : vector<12x9xf32> to vector<12x1xf32>
    %25 = vector.broadcast %24 : vector<12x1xf32> to vector<12x128xf32>
    %26 = arith.mulf %23, %25 : vector<12x128xf32>
    %27 = arith.addf %19, %26 : vector<12x128xf32>
    %c0_17 = arith.constant 0 : index
    %c2 = arith.constant 2 : index
    %28 = vector.load %arg10[%c0_17, %c2] : memref<12x144xf32, #tpu.memory_space<vmem>>, vector<12x128xf32>
    %29 = vector.extract_strided_slice %11 {offsets = [2, 0], sizes = [1, 128], strides = [1, 1]} : vector<9x128xf32> to vector<1x128xf32>
    %30 = vector.broadcast %29 : vector<1x128xf32> to vector<12x128xf32>
    %31 = arith.mulf %28, %30 : vector<12x128xf32>
    %32 = vector.extract_strided_slice %12 {offsets = [0, 2], sizes = [12, 1], strides = [1, 1]} : vector<12x9xf32> to vector<12x1xf32>
    %33 = vector.broadcast %32 : vector<12x1xf32> to vector<12x128xf32>
    %34 = arith.mulf %31, %33 : vector<12x128xf32>
    %35 = arith.addf %27, %34 : vector<12x128xf32>
    %c0_18 = arith.constant 0 : index
    %c7 = arith.constant 7 : index
    %36 = vector.load %arg10[%c0_18, %c7] : memref<12x144xf32, #tpu.memory_space<vmem>>, vector<12x128xf32>
    %37 = vector.extract_strided_slice %11 {offsets = [3, 0], sizes = [1, 128], strides = [1, 1]} : vector<9x128xf32> to vector<1x128xf32>
    %38 = vector.broadcast %37 : vector<1x128xf32> to vector<12x128xf32>
    %39 = arith.mulf %36, %38 : vector<12x128xf32>
    %40 = vector.extract_strided_slice %12 {offsets = [0, 3], sizes = [12, 1], strides = [1, 1]} : vector<12x9xf32> to vector<12x1xf32>
    %41 = vector.broadcast %40 : vector<12x1xf32> to vector<12x128xf32>
    %42 = arith.mulf %39, %41 : vector<12x128xf32>
    %43 = arith.addf %35, %42 : vector<12x128xf32>
    %c0_19 = arith.constant 0 : index
    %c8_20 = arith.constant 8 : index
    %44 = vector.load %arg10[%c0_19, %c8_20] : memref<12x144xf32, #tpu.memory_space<vmem>>, vector<12x128xf32>
    %45 = vector.extract_strided_slice %11 {offsets = [4, 0], sizes = [1, 128], strides = [1, 1]} : vector<9x128xf32> to vector<1x128xf32>
    %46 = vector.broadcast %45 : vector<1x128xf32> to vector<12x128xf32>
    %47 = arith.mulf %44, %46 : vector<12x128xf32>
    %48 = vector.extract_strided_slice %12 {offsets = [0, 4], sizes = [12, 1], strides = [1, 1]} : vector<12x9xf32> to vector<12x1xf32>
    %49 = vector.broadcast %48 : vector<12x1xf32> to vector<12x128xf32>
    %50 = arith.mulf %47, %49 : vector<12x128xf32>
    %51 = arith.addf %43, %50 : vector<12x128xf32>
    %c0_21 = arith.constant 0 : index
    %c9 = arith.constant 9 : index
    %52 = vector.load %arg10[%c0_21, %c9] : memref<12x144xf32, #tpu.memory_space<vmem>>, vector<12x128xf32>
    %53 = vector.extract_strided_slice %11 {offsets = [5, 0], sizes = [1, 128], strides = [1, 1]} : vector<9x128xf32> to vector<1x128xf32>
    %54 = vector.broadcast %53 : vector<1x128xf32> to vector<12x128xf32>
    %55 = arith.mulf %52, %54 : vector<12x128xf32>
    %56 = vector.extract_strided_slice %12 {offsets = [0, 5], sizes = [12, 1], strides = [1, 1]} : vector<12x9xf32> to vector<12x1xf32>
    %57 = vector.broadcast %56 : vector<12x1xf32> to vector<12x128xf32>
    %58 = arith.mulf %55, %57 : vector<12x128xf32>
    %59 = arith.addf %51, %58 : vector<12x128xf32>
    %c0_22 = arith.constant 0 : index
    %c14 = arith.constant 14 : index
    %60 = vector.load %arg10[%c0_22, %c14] : memref<12x144xf32, #tpu.memory_space<vmem>>, vector<12x128xf32>
    %61 = vector.extract_strided_slice %11 {offsets = [6, 0], sizes = [1, 128], strides = [1, 1]} : vector<9x128xf32> to vector<1x128xf32>
    %62 = vector.broadcast %61 : vector<1x128xf32> to vector<12x128xf32>
    %63 = arith.mulf %60, %62 : vector<12x128xf32>
    %64 = vector.extract_strided_slice %12 {offsets = [0, 6], sizes = [12, 1], strides = [1, 1]} : vector<12x9xf32> to vector<12x1xf32>
    %65 = vector.broadcast %64 : vector<12x1xf32> to vector<12x128xf32>
    %66 = arith.mulf %63, %65 : vector<12x128xf32>
    %67 = arith.addf %59, %66 : vector<12x128xf32>
    %c0_23 = arith.constant 0 : index
    %c15 = arith.constant 15 : index
    %68 = vector.load %arg10[%c0_23, %c15] : memref<12x144xf32, #tpu.memory_space<vmem>>, vector<12x128xf32>
    %69 = vector.extract_strided_slice %11 {offsets = [7, 0], sizes = [1, 128], strides = [1, 1]} : vector<9x128xf32> to vector<1x128xf32>
    %70 = vector.broadcast %69 : vector<1x128xf32> to vector<12x128xf32>
    %71 = arith.mulf %68, %70 : vector<12x128xf32>
    %72 = vector.extract_strided_slice %12 {offsets = [0, 7], sizes = [12, 1], strides = [1, 1]} : vector<12x9xf32> to vector<12x1xf32>
    %73 = vector.broadcast %72 : vector<12x1xf32> to vector<12x128xf32>
    %74 = arith.mulf %71, %73 : vector<12x128xf32>
    %75 = arith.addf %67, %74 : vector<12x128xf32>
    %c0_24 = arith.constant 0 : index
    %c16 = arith.constant 16 : index
    %76 = vector.load %arg10[%c0_24, %c16] : memref<12x144xf32, #tpu.memory_space<vmem>>, vector<12x128xf32>
    %77 = vector.extract_strided_slice %11 {offsets = [8, 0], sizes = [1, 128], strides = [1, 1]} : vector<9x128xf32> to vector<1x128xf32>
    %78 = vector.broadcast %77 : vector<1x128xf32> to vector<12x128xf32>
    %79 = arith.mulf %76, %78 : vector<12x128xf32>
    %80 = vector.extract_strided_slice %12 {offsets = [0, 8], sizes = [12, 1], strides = [1, 1]} : vector<12x9xf32> to vector<12x1xf32>
    %81 = vector.broadcast %80 : vector<12x1xf32> to vector<12x128xf32>
    %82 = arith.mulf %79, %81 : vector<12x128xf32>
    %83 = arith.addf %75, %82 : vector<12x128xf32>
    %c0_25 = arith.constant 0 : index
    %c0_26 = arith.constant 0 : index
    %84 = vector.load %arg5[%c0_25, %c0_26] : memref<12x1xf32, #tpu.memory_space<vmem>>, vector<12x1xf32>
    %85 = vector.broadcast %84 : vector<12x1xf32> to vector<12x128xf32>
    %86 = arith.addf %83, %85 : vector<12x128xf32>
    %c0_27 = arith.constant 0 : index
    %c0_28 = arith.constant 0 : index
    %87 = vector.load %arg6[%c0_27, %c0_28] : memref<48x12xbf16, #tpu.memory_space<vmem>>, vector<48x12xbf16>
    %88 = arith.truncf %86 : vector<12x128xf32> to vector<12x128xbf16>
    %cst_29 = arith.constant dense<0.000000e+00> : vector<48x128xf32>
    %89 = tpu.matmul %87, %88, %cst_29 {dimension_numbers = #tpu.dot_dimension_numbers<[1], [0], [0], [1], [0, 0, 1, 1], [], []>} : vector<48x12xbf16>, vector<12x128xbf16>, vector<48x128xf32> -> vector<48x128xf32>
    %c0_30 = arith.constant 0 : index
    %c0_31 = arith.constant 0 : index
    %90 = vector.load %arg7[%c0_30, %c0_31] : memref<48x1xf32, #tpu.memory_space<vmem>>, vector<48x1xf32>
    %91 = vector.broadcast %90 : vector<48x1xf32> to vector<48x128xf32>
    %92 = arith.addf %89, %91 : vector<48x128xf32>
    %93 = arith.extf %0 : vector<48x128xbf16> to vector<48x128xf32>
    %94 = arith.addf %92, %93 : vector<48x128xf32>
    %cst_32 = arith.constant 0.000000e+00 : f32
    %95 = vector.broadcast %cst_32 : f32 to vector<48x128xf32>
    %96 = arith.maximumf %94, %95 : vector<48x128xf32>
    %97 = arith.truncf %96 : vector<48x128xf32> to vector<48x128xbf16>
    %c0_33 = arith.constant 0 : index
    %c0_34 = arith.constant 0 : index
    %98 = vector.load %arg9[%c0_33, %c0_34] : memref<48x128xbf16, #tpu.memory_space<vmem>>, vector<48x128xbf16>
    tpu.vector_store %arg9[%c0_33, %c0_34], %97 {strides = array<i32>} : memref<48x128xbf16, #tpu.memory_space<vmem>>, vector<48x128xbf16>,
    return
  }
  func.func @transform_0(%arg0: i32) -> (i32, i32) {
    %c0_i32 = arith.constant 0 : i32
    %c0_i32_0 = arith.constant 0 : i32
    %c0_i32_1 = arith.constant 0 : i32
    return %c0_i32, %c0_i32_0 : i32, i32
  }
  func.func @transform_1(%arg0: i32) -> (i32, i32) {
    %c0_i32 = arith.constant 0 : i32
    %c0_i32_0 = arith.constant 0 : i32
    %c0_i32_1 = arith.constant 0 : i32
    return %c0_i32, %c0_i32_0 : i32, i32
  }
  func.func @transform_2(%arg0: i32) -> (i32, i32) {
    %c0_i32 = arith.constant 0 : i32
    %c0_i32_0 = arith.constant 0 : i32
    %c0_i32_1 = arith.constant 0 : i32
    return %c0_i32, %c0_i32_0 : i32, i32
  }
  func.func @transform_3(%arg0: i32) -> (i32, i32) {
    %c0_i32 = arith.constant 0 : i32
    %c0_i32_0 = arith.constant 0 : i32
    %c0_i32_1 = arith.constant 0 : i32
    return %c0_i32, %c0_i32_0 : i32, i32
  }
  func.func @transform_4(%arg0: i32) -> (i32, i32) {
    %c0_i32 = arith.constant 0 : i32
    %c0_i32_0 = arith.constant 0 : i32
    %c0_i32_1 = arith.constant 0 : i32
    return %c0_i32, %c0_i32_0 : i32, i32
  }
  func.func @transform_5(%arg0: i32) -> (i32, i32) {
    %c0_i32 = arith.constant 0 : i32
    %c0_i32_0 = arith.constant 0 : i32
    %c0_i32_1 = arith.constant 0 : i32
    return %c0_i32, %c0_i32_0 : i32, i32
  }
  func.func @transform_6(%arg0: i32) -> (i32, i32) {
    %c0_i32 = arith.constant 0 : i32
    %c0_i32_0 = arith.constant 0 : i32
    %c0_i32_1 = arith.constant 0 : i32
    return %c0_i32, %c0_i32_0 : i32, i32
  }
  func.func @transform_7(%arg0: i32) -> (i32, i32) {
    %c0_i32 = arith.constant 0 : i32
    %c0_i32_0 = arith.constant 0 : i32
    %c0_i32_1 = arith.constant 0 : i32
    return %c0_i32, %c0_i32_0 : i32, i32
  }
  func.func @transform_8(%arg0: i32) -> (i32, i32) {
    %c0_i32 = arith.constant 0 : i32
    %c0_i32_0 = arith.constant 0 : i32
    %c0_i32_1 = arith.constant 0 : i32
    return %c0_i32, %c0_i32_0 : i32, i32
  }
}

</mosaic_0001>

<llo_original>
// kernel: _lambda_.5
$region0: #{_lambda_.5}
  #allocation0 [shape = 'u32[]', space=smem, size = 0x4, offset = 0x4, fixed_abs, tag = 'smem constant byte address 0x4 - core index']
  #allocation1 [shape = 'u32[72,128]{1,0:T(1,128)}', space=vmem, size = 0x9000, scoped, tag = 'internal scratch']
  %s0 = inlined_call_operand.vmem [shape: bf16[147,1664], index: 0, kind: input, shape index: {}]
  %s1 = inlined_call_operand.vmem [shape: bf16[72,147], index: 1, kind: input, shape index: {}]
  %s2 = inlined_call_operand.vmem [shape: f32[72,1], index: 2, kind: input, shape index: {}]
  %s3 = inlined_call_operand.vmem [shape: f32[9,1664], index: 3, kind: input, shape index: {}]
  %s4 = inlined_call_operand.vmem [shape: bf16[8,1664], index: 4, kind: output, shape index: {}]
  %s5 = sld [smem:[#allocation0]]
  $region26: #{_lambda_.5} parent=0
    _
  %s7 = ssub.s32 1, %s5
  %s8 = scalar_select 0, %s7, %s5
  // Predicated region
  $region2: #{_lambda_.5} parent=0 // pred_check
    _
  $region3: #{_lambda_.5} parent=0 // pred_check_branch
    %10 = sbr.rel (0) target = $region5
  $region4: #{_lambda_.5} parent=0 // pred_region
    _
  $region5: #{_lambda_.5} parent=0 // pred_fallthru
    _
  // Predicated region
  $region6: #{_lambda_.5} parent=0 // pred_check
    _
  $region7: #{_lambda_.5} parent=0 // pred_check_branch
    %12 = sbr.rel (0) target = $region9
  $region8: #{_lambda_.5} parent=0 // pred_region
    _
  $region9: #{_lambda_.5} parent=0 // pred_fallthru
    _
  // Predicated region
  $region10: #{_lambda_.5} parent=0 // pred_check
    _
  $region11: #{_lambda_.5} parent=0 // pred_check_branch
    %14 = sbr.rel (0) target = $region13
  $region12: #{_lambda_.5} parent=0 // pred_region
    _
  $region13: #{_lambda_.5} parent=0 // pred_fallthru
    _
  // Predicated region
  $region14: #{_lambda_.5} parent=0 // pred_check
    _
  $region15: #{_lambda_.5} parent=0 // pred_check_branch
    %16 = sbr.rel (0) target = $region17
  $region16: #{_lambda_.5} parent=0 // pred_region
    _
  $region17: #{_lambda_.5} parent=0 // pred_fallthru
    _
  %v18 = vld [vmem:[%s1] sm:$0xff]
  %v19 = vld [vmem:[%s1 + $0x8] sm:$0xff]
  %v20 = vld [vmem:[%s1 + $0x10] sm:$0xff]
  %v21 = vld [vmem:[%s1 + $0x18] sm:$0xff]
  %v22 = vld [vmem:[%s1 + $0x20] sm:$0xff]
  %v23 = vld [vmem:[%s1 + $0x28] sm:$0xff]
  %v24 = vld [vmem:[%s1 + $0x30] sm:$0xff]
  %v25 = vld [vmem:[%s1 + $0x38] sm:$0xff]
  %v26 = vld [vmem:[%s1 + $0x40] sm:$0xff]
  %v27 = vld [vmem:[%s0] sm:$0xff]
  %v28 = vld [vmem:[%s0 + $0x8] sm:$0xff]
  %v29 = vld [vmem:[%s0 + $0x10] sm:$0xff]
  %v30 = vld [vmem:[%s0 + $0x18] sm:$0xff]
  %v31 = vld [vmem:[%s0 + $0x20] sm:$0xff]
  %v32 = vld [vmem:[%s0 + $0x28] sm:$0xff]
  %v33 = vld [vmem:[%s0 + $0x30] sm:$0xf]
  %v34 = vld [vmem:[%s0 + $0x34] sm:$0xff]
  %v35 = vld [vmem:[%s0 + $0x3c] sm:$0xff]
  %v36 = vld [vmem:[%s0 + $0x44] sm:$0xff]
  %v37 = vld [vmem:[%s0 + $0x4c] sm:$0xff]
  %v38 = vld [vmem:[%s0 + $0x54] sm:$0xff]
  %v39 = vld [vmem:[%s0 + $0x5c] sm:$0xff]
  %v40 = vld [vmem:[%s0 + $0x64] sm:$0xf]
  %v41 = vld [vmem:[%s0 + $0x68] sm:$0xff]
  %v42 = vld [vmem:[%s0 + $0x70] sm:$0xff]
  %v43 = vld [vmem:[%s0 + $0x78] sm:$0xff]
  %v44 = vld [vmem:[%s0 + $0x80] sm:$0xff]
  %v45 = vld [vmem:[%s0 + $0x88] sm:$0xff]
  %v46 = vld [vmem:[%s0 + $0x90] sm:$0xff]
  %v47 = vld [vmem:[%s0 + $0x98] sm:$0xf]
  %v48 = vld [vmem:[%s0 + $0x9c] sm:$0xff]
  %v49 = vld [vmem:[%s0 + $0xa4] sm:$0xff]
  %v50 = vld [vmem:[%s0 + $0xac] sm:$0xff]
  %v51 = vld [vmem:[%s0 + $0xb4] sm:$0xff]
  %v52 = vld [vmem:[%s0 + $0xbc] sm:$0xff]
  %v53 = vld [vmem:[%s0 + $0xc4] sm:$0xff]
  %v54 = vld [vmem:[%s0 + $0xcc] sm:$0xf]
  %v55 = vld [vmem:[%s0 + $0xd0] sm:$0xff]
  %v56 = vld [vmem:[%s0 + $0xd8] sm:$0xff]
  %v57 = vld [vmem:[%s0 + $0xe0] sm:$0xff]
  %v58 = vld [vmem:[%s0 + $0xe8] sm:$0xff]
  %v59 = vld [vmem:[%s0 + $0xf0] sm:$0xff]
  %v60 = vld [vmem:[%s0 + $0xf8] sm:$0xff]
  %v61 = vld [vmem:[%s0 + $0x100] sm:$0xf]
  %v62 = vld [vmem:[%s0 + $0x104] sm:$0xff]
  %v63 = vld [vmem:[%s0 + $0x10c] sm:$0xff]
  %v64 = vld [vmem:[%s0 + $0x114] sm:$0xff]
  %v65 = vld [vmem:[%s0 + $0x11c] sm:$0xff]
  %v66 = vld [vmem:[%s0 + $0x124] sm:$0xff]
  %v67 = vld [vmem:[%s0 + $0x12c] sm:$0xff]
  %v68 = vld [vmem:[%s0 + $0x134] sm:$0xf]
  %v69 = vld [vmem:[%s0 + $0x138] sm:$0xff]
  %v70 = vld [vmem:[%s0 + $0x140] sm:$0xff]
  %v71 = vld [vmem:[%s0 + $0x148] sm:$0xff]
  %v72 = vld [vmem:[%s0 + $0x150] sm:$0xff]
  %v73 = vld [vmem:[%s0 + $0x158] sm:$0xff]
  %v74 = vld [vmem:[%s0 + $0x160] sm:$0xff]
  %v75 = vld [vmem:[%s0 + $0x168] sm:$0xf]
  %v76 = vld [vmem:[%s0 + $0x16c] sm:$0xff]
  %v77 = vld [vmem:[%s0 + $0x174] sm:$0xff]
  %v78 = vld [vmem:[%s0 + $0x17c] sm:$0xff]
  %v79 = vld [vmem:[%s0 + $0x184] sm:$0xff]
  %v80 = vld [vmem:[%s0 + $0x18c] sm:$0xff]
  %v81 = vld [vmem:[%s0 + $0x194] sm:$0xff]
  %v82 = vld [vmem:[%s0 + $0x19c] sm:$0xf]
  %v83 = vld [vmem:[%s0 + $0x1a0] sm:$0xff]
  %v84 = vld [vmem:[%s0 + $0x1a8] sm:$0xff]
  %v85 = vld [vmem:[%s0 + $0x1b0] sm:$0xff]
  %v86 = vld [vmem:[%s0 + $0x1b8] sm:$0xff]
  %v87 = vld [vmem:[%s0 + $0x1c0] sm:$0xff]
  %v88 = vld [vmem:[%s0 + $0x1c8] sm:$0xff]
  %v89 = vld [vmem:[%s0 + $0x1d0] sm:$0xf]
  %v90 = vld [vmem:[%s0 + $0x1d4] sm:$0xff]
  %v91 = vld [vmem:[%s0 + $0x1dc] sm:$0xff]
  %v92 = vld [vmem:[%s0 + $0x1e4] sm:$0xff]
  %v93 = vld [vmem:[%s0 + $0x1ec] sm:$0xff]
  %v94 = vld [vmem:[%s0 + $0x1f4] sm:$0xff]
  %v95 = vld [vmem:[%s0 + $0x1fc] sm:$0xff]
  %v96 = vld [vmem:[%s0 + $0x204] sm:$0xf]
  %v97 = vld [vmem:[%s0 + $0x208] sm:$0xff]
  %v98 = vld [vmem:[%s0 + $0x210] sm:$0xff]
  %v99 = vld [vmem:[%s0 + $0x218] sm:$0xff]
  %v100 = vld [vmem:[%s0 + $0x220] sm:$0xff]
  %v101 = vld [vmem:[%s0 + $0x228] sm:$0xff]
  %v102 = vld [vmem:[%s0 + $0x230] sm:$0xff]
  %v103 = vld [vmem:[%s0 + $0x238] sm:$0xf]
  %v104 = vld [vmem:[%s0 + $0x23c] sm:$0xff]
  %v105 = vld [vmem:[%s0 + $0x244] sm:$0xff]
  %v106 = vld [vmem:[%s0 + $0x24c] sm:$0xff]
  %v107 = vld [vmem:[%s0 + $0x254] sm:$0xff]
  %v108 = vld [vmem:[%s0 + $0x25c] sm:$0xff]
  %v109 = vld [vmem:[%s0 + $0x264] sm:$0xff]
  %v110 = vld [vmem:[%s0 + $0x26c] sm:$0xf]
  %v111 = vld [vmem:[%s0 + $0x270] sm:$0xff]
  %v112 = vld [vmem:[%s0 + $0x278] sm:$0xff]
  %v113 = vld [vmem:[%s0 + $0x280] sm:$0xff]
  %v114 = vld [vmem:[%s0 + $0x288] sm:$0xff]
  %v115 = vld [vmem:[%s0 + $0x290] sm:$0xff]
  %v116 = vld [vmem:[%s0 + $0x298] sm:$0xff]
  %v117 = vld [vmem:[%s0 + $0x2a0] sm:$0xf]
  %v118 = vld [vmem:[%s0 + $0x2a4] sm:$0xff]
  %v119 = vld [vmem:[%s0 + $0x2ac] sm:$0xff]
  %v120 = vld [vmem:[%s0 + $0x2b4] sm:$0xff]
  %v121 = vld [vmem:[%s0 + $0x2bc] sm:$0xff]
  %v122 = vld [vmem:[%s0 + $0x2c4] sm:$0xff]
  %v123 = vld [vmem:[%s0 + $0x2cc] sm:$0xff]
  %v124 = vld [vmem:[%s0 + $0x2d4] sm:$0xf]
  %v125 = vld [vmem:[%s0 + $0x2d8] sm:$0xff]
  %v126 = vld [vmem:[%s0 + $0x2e0] sm:$0xff]
  %v127 = vld [vmem:[%s0 + $0x2e8] sm:$0xff]
  %v128 = vld [vmem:[%s0 + $0x2f0] sm:$0xff]
  %v129 = vld [vmem:[%s0 + $0x2f8] sm:$0xff]
  %v130 = vld [vmem:[%s0 + $0x300] sm:$0xff]
  %v131 = vld [vmem:[%s0 + $0x308] sm:$0xf]
  %v132 = vld [vmem:[%s0 + $0x30c] sm:$0xff]
  %v133 = vld [vmem:[%s0 + $0x314] sm:$0xff]
  %v134 = vld [vmem:[%s0 + $0x31c] sm:$0xff]
  %v135 = vld [vmem:[%s0 + $0x324] sm:$0xff]
  %v136 = vld [vmem:[%s0 + $0x32c] sm:$0xff]
  %v137 = vld [vmem:[%s0 + $0x334] sm:$0xff]
  %v138 = vld [vmem:[%s0 + $0x33c] sm:$0xf]
  %v139 = vld [vmem:[%s0 + $0x340] sm:$0xff]
  %v140 = vld [vmem:[%s0 + $0x348] sm:$0xff]
  %v141 = vld [vmem:[%s0 + $0x350] sm:$0xff]
  %v142 = vld [vmem:[%s0 + $0x358] sm:$0xff]
  %v143 = vld [vmem:[%s0 + $0x360] sm:$0xff]
  %v144 = vld [vmem:[%s0 + $0x368] sm:$0xff]
  %v145 = vld [vmem:[%s0 + $0x370] sm:$0xf]
  %v146 = vld [vmem:[%s0 + $0x374] sm:$0xff]
  %v147 = vld [vmem:[%s0 + $0x37c] sm:$0xff]
  %v148 = vld [vmem:[%s0 + $0x384] sm:$0xff]
  %v149 = vld [vmem:[%s0 + $0x38c] sm:$0xff]
  %v150 = vld [vmem:[%s0 + $0x394] sm:$0xff]
  %v151 = vld [vmem:[%s0 + $0x39c] sm:$0xff]
  %v152 = vld [vmem:[%s0 + $0x3a4] sm:$0xf]
  %v153 = vld [vmem:[%s0 + $0x3a8] sm:$0x33]
  %v154 = vld [vmem:[%s0 + $0x3b0] sm:$0x33]
  %v155 = vld [vmem:[%s0 + $0x3b8] sm:$0x33]
  %v156 = vld [vmem:[%s0 + $0x3c0] sm:$0x33]
  %v157 = vld [vmem:[%s0 + $0x3c8] sm:$0x33]
  %v158 = vld [vmem:[%s0 + $0x3d0] sm:$0x33]
  %v159 = vld [vmem:[%s0 + $0x3d8] sm:$0x3]
  %v160 = vld [vmem:[%s2] sm:$0xff]
  %v161 = vld [vmem:[%s2 + $0x8] sm:$0xff]
  %v162 = vld [vmem:[%s2 + $0x10] sm:$0xff]
  %v163 = vld [vmem:[%s2 + $0x18] sm:$0xff]
  %v164 = vld [vmem:[%s2 + $0x20] sm:$0xff]
  %v165 = vld [vmem:[%s2 + $0x28] sm:$0xff]
  %v166 = vld [vmem:[%s2 + $0x30] sm:$0xff]
  %v167 = vld [vmem:[%s2 + $0x38] sm:$0xff]
  %v168 = vld [vmem:[%s2 + $0x40] sm:$0xff]
  %170 = vset.pattern.permute.xlu0 0
  %171 = vperm.xlu0 %170, %v160
  %v172 = vpop.permute.xlu0 %171
  %175 = vset.pattern.permute.xlu0 0
  %176 = vperm.xlu0 %175, %v161
  %v177 = vpop.permute.xlu0 %176
  %180 = vset.pattern.permute.xlu0 0
  %181 = vperm.xlu0 %180, %v162
  %v182 = vpop.permute.xlu0 %181
  %185 = vset.pattern.permute.xlu0 0
  %186 = vperm.xlu0 %185, %v163
  %v187 = vpop.permute.xlu0 %186
  %190 = vset.pattern.permute.xlu0 0
  %191 = vperm.xlu0 %190, %v164
  %v192 = vpop.permute.xlu0 %191
  %195 = vset.pattern.permute.xlu0 0
  %196 = vperm.xlu0 %195, %v165
  %v197 = vpop.permute.xlu0 %196
  %200 = vset.pattern.permute.xlu0 0
  %201 = vperm.xlu0 %200, %v166
  %v202 = vpop.permute.xlu0 %201
  %205 = vset.pattern.permute.xlu0 0
  %206 = vperm.xlu0 %205, %v167
  %v207 = vpop.permute.xlu0 %206
  %210 = vset.pattern.permute.xlu0 0
  %211 = vperm.xlu0 %210, %v168
  %v212 = vpop.permute.xlu0 %211
  %v223 = vunpack.c.l.b16 %v18
  %v224 = vunpack.c.h.b16 %v18
  %v225 = vunpack.c.l.b16 %v19
  %v226 = vunpack.c.h.b16 %v19
  %v227 = vunpack.c.l.b16 %v20
  %v228 = vunpack.c.h.b16 %v20
  %v229 = vunpack.c.l.b16 %v21
  %v230 = vunpack.c.h.b16 %v21
  %v231 = vunpack.c.l.b16 %v22
  %v232 = vunpack.c.h.b16 %v22
  %v233 = vunpack.c.l.b16 %v23
  %v234 = vunpack.c.h.b16 %v23
  %v235 = vunpack.c.l.b16 %v24
  %v236 = vunpack.c.h.b16 %v24
  %v237 = vunpack.c.l.b16 %v25
  %v238 = vunpack.c.h.b16 %v25
  %v239 = vunpack.c.l.b16 %v26
  %v240 = vunpack.c.h.b16 %v26
  %v241 = vpack.c.b16 %v225, %v223
  %v242 = vpack.c.b16 %v226, %v224
  %v243 = vpack.c.b16 %v229, %v227
  %v244 = vpack.c.b16 %v230, %v228
  %v245 = vpack.c.b16 %v233, %v231
  %v246 = vpack.c.b16 %v234, %v232
  %v247 = vpack.c.b16 %v237, %v235
  %v248 = vpack.c.b16 %v238, %v236
  %v249 = vpack.c.b16 %v239, %v239
  %v250 = vpack.c.b16 %v240, %v240
  %v389 = vunpack.c.l.b16 %v27
  %v390 = vunpack.c.h.b16 %v27
  %v391 = vunpack.c.l.b16 %v28
  %v392 = vunpack.c.h.b16 %v28
  %v393 = vunpack.c.l.b16 %v29
  %v394 = vunpack.c.h.b16 %v29
  %v395 = vunpack.c.l.b16 %v30
  %v396 = vunpack.c.h.b16 %v30
  %v397 = vunpack.c.l.b16 %v31
  %v398 = vunpack.c.h.b16 %v31
  %v399 = vunpack.c.l.b16 %v32
  %v400 = vunpack.c.h.b16 %v32
  %v401 = vunpack.c.l.b16 %v33
  %v402 = vunpack.c.l.b16 %v34
  %v403 = vunpack.c.h.b16 %v34
  %v404 = vunpack.c.l.b16 %v35
  %v405 = vunpack.c.h.b16 %v35
  %v406 = vunpack.c.l.b16 %v36
  %v407 = vunpack.c.h.b16 %v36
  %v408 = vunpack.c.l.b16 %v37
  %v409 = vunpack.c.h.b16 %v37
  %v410 = vunpack.c.l.b16 %v38
  %v411 = vunpack.c.h.b16 %v38
  %v412 = vunpack.c.l.b16 %v39
  %v413 = vunpack.c.h.b16 %v39
  %v414 = vunpack.c.l.b16 %v40
  %v415 = vunpack.c.l.b16 %v41
  %v416 = vunpack.c.h.b16 %v41
  %v417 = vunpack.c.l.b16 %v42
  %v418 = vunpack.c.h.b16 %v42
  %v419 = vunpack.c.l.b16 %v43
  %v420 = vunpack.c.h.b16 %v43
  %v421 = vunpack.c.l.b16 %v44
  %v422 = vunpack.c.h.b16 %v44
  %v423 = vunpack.c.l.b16 %v45
  %v424 = vunpack.c.h.b16 %v45
  %v425 = vunpack.c.l.b16 %v46
  %v426 = vunpack.c.h.b16 %v46
  %v427 = vunpack.c.l.b16 %v47
  %v428 = vunpack.c.l.b16 %v48
  %v429 = vunpack.c.h.b16 %v48
  %v430 = vunpack.c.l.b16 %v49
  %v431 = vunpack.c.h.b16 %v49
  %v432 = vunpack.c.l.b16 %v50
  %v433 = vunpack.c.h.b16 %v50
  %v434 = vunpack.c.l.b16 %v51
  %v435 = vunpack.c.h.b16 %v51
  %v436 = vunpack.c.l.b16 %v52
  %v437 = vunpack.c.h.b16 %v52
  %v438 = vunpack.c.l.b16 %v53
  %v439 = vunpack.c.h.b16 %v53
  %v440 = vunpack.c.l.b16 %v54
  %v441 = vunpack.c.l.b16 %v55
  %v442 = vunpack.c.h.b16 %v55
  %v443 = vunpack.c.l.b16 %v56
  %v444 = vunpack.c.h.b16 %v56
  %v445 = vunpack.c.l.b16 %v57
  %v446 = vunpack.c.h.b16 %v57
  %v447 = vunpack.c.l.b16 %v58
  %v448 = vunpack.c.h.b16 %v58
  %v449 = vunpack.c.l.b16 %v59
  %v450 = vunpack.c.h.b16 %v59
  %v451 = vunpack.c.l.b16 %v60
  %v452 = vunpack.c.h.b16 %v60
  %v453 = vunpack.c.l.b16 %v61
  %v454 = vunpack.c.l.b16 %v62
  %v455 = vunpack.c.h.b16 %v62
  %v456 = vunpack.c.l.b16 %v63
  %v457 = vunpack.c.h.b16 %v63
  %v458 = vunpack.c.l.b16 %v64
  %v459 = vunpack.c.h.b16 %v64
  %v460 = vunpack.c.l.b16 %v65
  %v461 = vunpack.c.h.b16 %v65
  %v462 = vunpack.c.l.b16 %v66
  %v463 = vunpack.c.h.b16 %v66
  %v464 = vunpack.c.l.b16 %v67
  %v465 = vunpack.c.h.b16 %v67
  %v466 = vunpack.c.l.b16 %v68
  %v467 = vunpack.c.l.b16 %v69
  %v468 = vunpack.c.h.b16 %v69
  %v469 = vunpack.c.l.b16 %v70
  %v470 = vunpack.c.h.b16 %v70
  %v471 = vunpack.c.l.b16 %v71
  %v472 = vunpack.c.h.b16 %v71
  %v473 = vunpack.c.l.b16 %v72
  %v474 = vunpack.c.h.b16 %v72
  %v475 = vunpack.c.l.b16 %v73
  %v476 = vunpack.c.h.b16 %v73
  %v477 = vunpack.c.l.b16 %v74
  %v478 = vunpack.c.h.b16 %v74
  %v479 = vunpack.c.l.b16 %v75
  %v480 = vunpack.c.l.b16 %v76
  %v481 = vunpack.c.h.b16 %v76
  %v482 = vunpack.c.l.b16 %v77
  %v483 = vunpack.c.h.b16 %v77
  %v484 = vunpack.c.l.b16 %v78
  %v485 = vunpack.c.h.b16 %v78
  %v486 = vunpack.c.l.b16 %v79
  %v487 = vunpack.c.h.b16 %v79
  %v488 = vunpack.c.l.b16 %v80
  %v489 = vunpack.c.h.b16 %v80
  %v490 = vunpack.c.l.b16 %v81
  %v491 = vunpack.c.h.b16 %v81
  %v492 = vunpack.c.l.b16 %v82
  %v493 = vunpack.c.l.b16 %v83
  %v494 = vunpack.c.h.b16 %v83
  %v495 = vunpack.c.l.b16 %v84
  %v496 = vunpack.c.h.b16 %v84
  %v497 = vunpack.c.l.b16 %v85
  %v498 = vunpack.c.h.b16 %v85
  %v499 = vunpack.c.l.b16 %v86
  %v500 = vunpack.c.h.b16 %v86
  %v501 = vunpack.c.l.b16 %v87
  %v502 = vunpack.c.h.b16 %v87
  %v503 = vunpack.c.l.b16 %v88
  %v504 = vunpack.c.h.b16 %v88
  %v505 = vunpack.c.l.b16 %v89
  %v506 = vunpack.c.l.b16 %v90
  %v507 = vunpack.c.h.b16 %v90
  %v508 = vunpack.c.l.b16 %v91
  %v509 = vunpack.c.h.b16 %v91
  %v510 = vunpack.c.l.b16 %v92
  %v511 = vunpack.c.h.b16 %v92
  %v512 = vunpack.c.l.b16 %v93
  %v513 = vunpack.c.h.b16 %v93
  %v514 = vunpack.c.l.b16 %v94
  %v515 = vunpack.c.h.b16 %v94
  %v516 = vunpack.c.l.b16 %v95
  %v517 = vunpack.c.h.b16 %v95
  %v518 = vunpack.c.l.b16 %v96
  %v519 = vunpack.c.l.b16 %v97
  %v520 = vunpack.c.h.b16 %v97
  %v521 = vunpack.c.l.b16 %v98
  %v522 = vunpack.c.h.b16 %v98
  %v523 = vunpack.c.l.b16 %v99
  %v524 = vunpack.c.h.b16 %v99
  %v525 = vunpack.c.l.b16 %v100
  %v526 = vunpack.c.h.b16 %v100
  %v527 = vunpack.c.l.b16 %v101
  %v528 = vunpack.c.h.b16 %v101
  %v529 = vunpack.c.l.b16 %v102
  %v530 = vunpack.c.h.b16 %v102
  %v531 = vunpack.c.l.b16 %v103
  %v532 = vunpack.c.l.b16 %v104
  %v533 = vunpack.c.h.b16 %v104
  %v534 = vunpack.c.l.b16 %v105
  %v535 = vunpack.c.h.b16 %v105
  %v536 = vunpack.c.l.b16 %v106
  %v537 = vunpack.c.h.b16 %v106
  %v538 = vunpack.c.l.b16 %v107
  %v539 = vunpack.c.h.b16 %v107
  %v540 = vunpack.c.l.b16 %v108
  %v541 = vunpack.c.h.b16 %v108
  %v542 = vunpack.c.l.b16 %v109
  %v543 = vunpack.c.h.b16 %v109
  %v544 = vunpack.c.l.b16 %v110
  %v545 = vunpack.c.l.b16 %v111
  %v546 = vunpack.c.h.b16 %v111
  %v547 = vunpack.c.l.b16 %v112
  %v548 = vunpack.c.h.b16 %v112
  %v549 = vunpack.c.l.b16 %v113
  %v550 = vunpack.c.h.b16 %v113
  %v551 = vunpack.c.l.b16 %v114
  %v552 = vunpack.c.h.b16 %v114
  %v553 = vunpack.c.l.b16 %v115
  %v554 = vunpack.c.h.b16 %v115
  %v555 = vunpack.c.l.b16 %v116
  %v556 = vunpack.c.h.b16 %v116
  %v557 = vunpack.c.l.b16 %v117
  %v558 = vunpack.c.l.b16 %v118
  %v559 = vunpack.c.h.b16 %v118
  %v560 = vunpack.c.l.b16 %v119
  %v561 = vunpack.c.h.b16 %v119
  %v562 = vunpack.c.l.b16 %v120
  %v563 = vunpack.c.h.b16 %v120
  %v564 = vunpack.c.l.b16 %v121
  %v565 = vunpack.c.h.b16 %v121
  %v566 = vunpack.c.l.b16 %v122
  %v567 = vunpack.c.h.b16 %v122
  %v568 = vunpack.c.l.b16 %v123
  %v569 = vunpack.c.h.b16 %v123
  %v570 = vunpack.c.l.b16 %v124
  %v571 = vunpack.c.l.b16 %v125
  %v572 = vunpack.c.h.b16 %v125
  %v573 = vunpack.c.l.b16 %v126
  %v574 = vunpack.c.h.b16 %v126
  %v575 = vunpack.c.l.b16 %v127
  %v576 = vunpack.c.h.b16 %v127
  %v577 = vunpack.c.l.b16 %v128
  %v578 = vunpack.c.h.b16 %v128
  %v579 = vunpack.c.l.b16 %v129
  %v580 = vunpack.c.h.b16 %v129
  %v581 = vunpack.c.l.b16 %v130
  %v582 = vunpack.c.h.b16 %v130
  %v583 = vunpack.c.l.b16 %v131
  %v584 = vunpack.c.l.b16 %v132
  %v585 = vunpack.c.h.b16 %v132
  %v586 = vunpack.c.l.b16 %v133
  %v587 = vunpack.c.h.b16 %v133
  %v588 = vunpack.c.l.b16 %v134
  %v589 = vunpack.c.h.b16 %v134
  %v590 = vunpack.c.l.b16 %v135
  %v591 = vunpack.c.h.b16 %v135
  %v592 = vunpack.c.l.b16 %v136
  %v593 = vunpack.c.h.b16 %v136
  %v594 = vunpack.c.l.b16 %v137
  %v595 = vunpack.c.h.b16 %v137
  %v596 = vunpack.c.l.b16 %v138
  %v597 = vunpack.c.l.b16 %v139
  %v598 = vunpack.c.h.b16 %v139
  %v599 = vunpack.c.l.b16 %v140
  %v600 = vunpack.c.h.b16 %v140
  %v601 = vunpack.c.l.b16 %v141
  %v602 = vunpack.c.h.b16 %v141
  %v603 = vunpack.c.l.b16 %v142
  %v604 = vunpack.c.h.b16 %v142
  %v605 = vunpack.c.l.b16 %v143
  %v606 = vunpack.c.h.b16 %v143
  %v607 = vunpack.c.l.b16 %v144
  %v608 = vunpack.c.h.b16 %v144
  %v609 = vunpack.c.l.b16 %v145
  %v610 = vunpack.c.l.b16 %v146
  %v611 = vunpack.c.h.b16 %v146
  %v612 = vunpack.c.l.b16 %v147
  %v613 = vunpack.c.h.b16 %v147
  %v614 = vunpack.c.l.b16 %v148
  %v615 = vunpack.c.h.b16 %v148
  %v616 = vunpack.c.l.b16 %v149
  %v617 = vunpack.c.h.b16 %v149
  %v618 = vunpack.c.l.b16 %v150
  %v619 = vunpack.c.h.b16 %v150
  %v620 = vunpack.c.l.b16 %v151
  %v621 = vunpack.c.h.b16 %v151
  %v622 = vunpack.c.l.b16 %v152
  %v623 = vunpack.c.l.b16 %v153
  %v624 = vunpack.c.h.b16 %v153
  %v625 = vunpack.c.l.b16 %v154
  %v626 = vunpack.c.h.b16 %v154
  %v627 = vunpack.c.l.b16 %v155
  %v628 = vunpack.c.h.b16 %v155
  %v629 = vunpack.c.l.b16 %v156
  %v630 = vunpack.c.h.b16 %v156
  %v631 = vunpack.c.l.b16 %v157
  %v632 = vunpack.c.h.b16 %v157
  %v633 = vunpack.c.l.b16 %v158
  %v634 = vunpack.c.h.b16 %v158
  %v635 = vunpack.c.l.b16 %v159
  %v636 = vpack.c.b16 %v402, %v389
  %v637 = vpack.c.b16 %v403, %v390
  %v638 = vpack.c.b16 %v404, %v391
  %v639 = vpack.c.b16 %v405, %v392
  %v640 = vpack.c.b16 %v406, %v393
  %v641 = vpack.c.b16 %v407, %v394
  %v642 = vpack.c.b16 %v408, %v395
  %v643 = vpack.c.b16 %v409, %v396
  %v644 = vpack.c.b16 %v410, %v397
  %v645 = vpack.c.b16 %v411, %v398
  %v646 = vpack.c.b16 %v412, %v399
  %v647 = vpack.c.b16 %v413, %v400
  %v648 = vpack.c.b16 %v414, %v401
  %v649 = vpack.c.b16 %v428, %v415
  %v650 = vpack.c.b16 %v429, %v416
  %v651 = vpack.c.b16 %v430, %v417
  %v652 = vpack.c.b16 %v431, %v418
  %v653 = vpack.c.b16 %v432, %v419
  %v654 = vpack.c.b16 %v433, %v420
  %v655 = vpack.c.b16 %v434, %v421
  %v656 = vpack.c.b16 %v435, %v422
  %v657 = vpack.c.b16 %v436, %v423
  %v658 = vpack.c.b16 %v437, %v424
  %v659 = vpack.c.b16 %v438, %v425
  %v660 = vpack.c.b16 %v439, %v426
  %v661 = vpack.c.b16 %v440, %v427
  %v662 = vpack.c.b16 %v454, %v441
  %v663 = vpack.c.b16 %v455, %v442
  %v664 = vpack.c.b16 %v456, %v443
  %v665 = vpack.c.b16 %v457, %v444
  %v666 = vpack.c.b16 %v458, %v445
  %v667 = vpack.c.b16 %v459, %v446
  %v668 = vpack.c.b16 %v460, %v447
  %v669 = vpack.c.b16 %v461, %v448
  %v670 = vpack.c.b16 %v462, %v449
  %v671 = vpack.c.b16 %v463, %v450
  %v672 = vpack.c.b16 %v464, %v451
  %v673 = vpack.c.b16 %v465, %v452
  %v674 = vpack.c.b16 %v466, %v453
  %v675 = vpack.c.b16 %v480, %v467
  %v676 = vpack.c.b16 %v481, %v468
  %v677 = vpack.c.b16 %v482, %v469
  %v678 = vpack.c.b16 %v483, %v470
  %v679 = vpack.c.b16 %v484, %v471
  %v680 = vpack.c.b16 %v485, %v472
  %v681 = vpack.c.b16 %v486, %v473
  %v682 = vpack.c.b16 %v487, %v474
  %v683 = vpack.c.b16 %v488, %v475
  %v684 = vpack.c.b16 %v489, %v476
  %v685 = vpack.c.b16 %v490, %v477
  %v686 = vpack.c.b16 %v491, %v478
  %v687 = vpack.c.b16 %v492, %v479
  %v688 = vpack.c.b16 %v506, %v493
  %v689 = vpack.c.b16 %v507, %v494
  %v690 = vpack.c.b16 %v508, %v495
  %v691 = vpack.c.b16 %v509, %v496
  %v692 = vpack.c.b16 %v510, %v497
  %v693 = vpack.c.b16 %v511, %v498
  %v694 = vpack.c.b16 %v512, %v499
  %v695 = vpack.c.b16 %v513, %v500
  %v696 = vpack.c.b16 %v514, %v501
  %v697 = vpack.c.b16 %v515, %v502
  %v698 = vpack.c.b16 %v516, %v503
  %v699 = vpack.c.b16 %v517, %v504
  %v700 = vpack.c.b16 %v518, %v505
  %v701 = vpack.c.b16 %v532, %v519
  %v702 = vpack.c.b16 %v533, %v520
  %v703 = vpack.c.b16 %v534, %v521
  %v704 = vpack.c.b16 %v535, %v522
  %v705 = vpack.c.b16 %v536, %v523
  %v706 = vpack.c.b16 %v537, %v524
  %v707 = vpack.c.b16 %v538, %v525
  %v708 = vpack.c.b16 %v539, %v526
  %v709 = vpack.c.b16 %v540, %v527
  %v710 = vpack.c.b16 %v541, %v528
  %v711 = vpack.c.b16 %v542, %v529
  %v712 = vpack.c.b16 %v543, %v530
  %v713 = vpack.c.b16 %v544, %v531
  %v714 = vpack.c.b16 %v558, %v545
  %v715 = vpack.c.b16 %v559, %v546
  %v716 = vpack.c.b16 %v560, %v547
  %v717 = vpack.c.b16 %v561, %v548
  %v718 = vpack.c.b16 %v562, %v549
  %v719 = vpack.c.b16 %v563, %v550
  %v720 = vpack.c.b16 %v564, %v551
  %v721 = vpack.c.b16 %v565, %v552
  %v722 = vpack.c.b16 %v566, %v553
  %v723 = vpack.c.b16 %v567, %v554
  %v724 = vpack.c.b16 %v568, %v555
  %v725 = vpack.c.b16 %v569, %v556
  %v726 = vpack.c.b16 %v570, %v557
  %v727 = vpack.c.b16 %v584, %v571
  %v728 = vpack.c.b16 %v585, %v572
  %v729 = vpack.c.b16 %v586, %v573
  %v730 = vpack.c.b16 %v587, %v574
  %v731 = vpack.c.b16 %v588, %v575
  %v732 = vpack.c.b16 %v589, %v576
  %v733 = vpack.c.b16 %v590, %v577
  %v734 = vpack.c.b16 %v591, %v578
  %v735 = vpack.c.b16 %v592, %v579
  %v736 = vpack.c.b16 %v593, %v580
  %v737 = vpack.c.b16 %v594, %v581
  %v738 = vpack.c.b16 %v595, %v582
  %v739 = vpack.c.b16 %v596, %v583
  %v740 = vpack.c.b16 %v610, %v597
  %v741 = vpack.c.b16 %v611, %v598
  %v742 = vpack.c.b16 %v612, %v599
  %v743 = vpack.c.b16 %v613, %v600
  %v744 = vpack.c.b16 %v614, %v601
  %v745 = vpack.c.b16 %v615, %v602
  %v746 = vpack.c.b16 %v616, %v603
  %v747 = vpack.c.b16 %v617, %v604
  %v748 = vpack.c.b16 %v618, %v605
  %v749 = vpack.c.b16 %v619, %v606
  %v750 = vpack.c.b16 %v620, %v607
  %v751 = vpack.c.b16 %v621, %v608
  %v752 = vpack.c.b16 %v622, %v609
  %v753 = vpack.c.b16 %v623, %v623
  %v754 = vpack.c.b16 %v624, %v624
  %v755 = vpack.c.b16 %v625, %v625
  %v756 = vpack.c.b16 %v626, %v626
  %v757 = vpack.c.b16 %v627, %v627
  %v758 = vpack.c.b16 %v628, %v628
  %v759 = vpack.c.b16 %v629, %v629
  %v760 = vpack.c.b16 %v630, %v630
  %v761 = vpack.c.b16 %v631, %v631
  %v762 = vpack.c.b16 %v632, %v632
  %v763 = vpack.c.b16 %v633, %v633
  %v764 = vpack.c.b16 %v634, %v634
  %v765 = vpack.c.b16 %v635, %v635
  %vm883 = vcmask 154624
  %v885 = vsel %vm883, %v242, 0
  %v888 = vsel %vm883, %v244, 0
  %v891 = vsel %vm883, %v246, 0
  %v894 = vsel %vm883, %v248, 0
  %v897 = vsel %vm883, %v250, 0
  %vm899 = vcmask 1040384
  %vm900 = vcmask 1041408
  %v901 = vsel %vm899, 4294967295, 65535
  %v902 = vsel %vm900, %v901, 0
  %v904 = vand.u32 %v753, %v902
  %v907 = vand.u32 %v754, %v902
  %v910 = vand.u32 %v755, %v902
  %v913 = vand.u32 %v756, %v902
  %v916 = vand.u32 %v757, %v902
  %v919 = vand.u32 %v758, %v902
  %v922 = vand.u32 %v759, %v902
  %v925 = vand.u32 %v760, %v902
  %v928 = vand.u32 %v761, %v902
  %v931 = vand.u32 %v762, %v902
  %v934 = vand.u32 %v763, %v902
  %v937 = vand.u32 %v764, %v902
  %v940 = vand.u32 %v765, %v902
  %942 = vmatpush.bf16.msra.mxu0 %v727
  %943 = vmatpush.bf16.msra.mxu0 %v714
  %944 = vmatpush.bf16.msra.mxu0 %v701
  %945 = vmatpush.bf16.msra.mxu0 %v688
  %946 = vmatpush.bf16.msra.mxu0 %v675
  %947 = vmatpush.bf16.msra.mxu0 %v662
  %948 = vmatpush.bf16.msra.mxu0 %v649
  %949 = vmatpush.bf16.msra.mxu0 %v636
  %950 = vmatmul.bf16.gmra.mxu0 %v241
  %v951 = vpop.f32.mrf.mxu0
  %v952 = vadd.f32 %v172, %v951
  %v953 = vpop.f32.mrf.mxu0
  %v954 = vadd.f32 %v177, %v953
  %955 = vmatmul.bf16.gmra.mxu0 %v243
  %v956 = vpop.f32.mrf.mxu0
  %v957 = vadd.f32 %v182, %v956
  %v958 = vpop.f32.mrf.mxu0
  %v959 = vadd.f32 %v187, %v958
  %960 = vmatmul.bf16.gmra.mxu0 %v245
  %v961 = vpop.f32.mrf.mxu0
  %v962 = vadd.f32 %v192, %v961
  %v963 = vpop.f32.mrf.mxu0
  %v964 = vadd.f32 %v197, %v963
  %965 = vmatmul.bf16.gmra.mxu0 %v247
  %v966 = vpop.f32.mrf.mxu0
  %v967 = vadd.f32 %v202, %v966
  %v968 = vpop.f32.mrf.mxu0
  %v969 = vadd.f32 %v207, %v968
  %970 = vmatmul.bf16.gmra.mxu0 %v249
  %v971 = vpop.f32.mrf.mxu0
  %v972 = vadd.f32 %v212, %v971
  %v973 = vpop.f32.mrf.mxu0
  %974 = vdwg.mxu0
  %975 = vmatpush.bf16.msra.mxu0 0
  %976 = vmatpush.bf16.msra.mxu0 0
  %977 = vmatpush.bf16.msra.mxu0 0
  %978 = vmatpush.bf16.msra.mxu0 0
  %979 = vmatpush.bf16.msra.mxu0 0
  %980 = vmatpush.bf16.msra.mxu0 0
  %981 = vmatpush.bf16.msra.mxu0 %v904
  %982 = vmatpush.bf16.msra.mxu0 %v740
  %983 = vmatmul.bf16.gmra.mxu0 %v885
  %v984 = vpop.f32.mrf.mxu0
  %v985 = vadd.f32 %v952, %v984
  %v986 = vpop.f32.mrf.mxu0
  %v987 = vadd.f32 %v954, %v986
  %988 = vmatmul.bf16.gmra.mxu0 %v888
  %v989 = vpop.f32.mrf.mxu0
  %v990 = vadd.f32 %v957, %v989
  %v991 = vpop.f32.mrf.mxu0
  %v992 = vadd.f32 %v959, %v991
  %993 = vmatmul.bf16.gmra.mxu0 %v891
  %v994 = vpop.f32.mrf.mxu0
  %v995 = vadd.f32 %v962, %v994
  %v996 = vpop.f32.mrf.mxu0
  %v997 = vadd.f32 %v964, %v996
  %998 = vmatmul.bf16.gmra.mxu0 %v894
  %v999 = vpop.f32.mrf.mxu0
  %v1000 = vadd.f32 %v967, %v999
  %v1001 = vpop.f32.mrf.mxu0
  %v1002 = vadd.f32 %v969, %v1001
  %1003 = vmatmul.bf16.gmra.mxu0 %v897
  %v1004 = vpop.f32.mrf.mxu0
  %v1005 = vadd.f32 %v972, %v1004
  %v1006 = vpop.f32.mrf.mxu0
  %1007 = vdwg.mxu0
  %1008 = vmatpush.bf16.msra.mxu0 %v728
  %1009 = vmatpush.bf16.msra.mxu0 %v715
  %1010 = vmatpush.bf16.msra.mxu0 %v702
  %1011 = vmatpush.bf16.msra.mxu0 %v689
  %1012 = vmatpush.bf16.msra.mxu0 %v676
  %1013 = vmatpush.bf16.msra.mxu0 %v663
  %1014 = vmatpush.bf16.msra.mxu0 %v650
  %1015 = vmatpush.bf16.msra.mxu0 %v637
  %1016 = vmatmul.bf16.gmra.mxu0 %v241
  %v1017 = vpop.f32.mrf.mxu0
  %v1018 = vadd.f32 %v172, %v1017
  %v1019 = vpop.f32.mrf.mxu0
  %v1020 = vadd.f32 %v177, %v1019
  %1021 = vmatmul.bf16.gmra.mxu0 %v243
  %v1022 = vpop.f32.mrf.mxu0
  %v1023 = vadd.f32 %v182, %v1022
  %v1024 = vpop.f32.mrf.mxu0
  %v1025 = vadd.f32 %v187, %v1024
  %1026 = vmatmul.bf16.gmra.mxu0 %v245
  %v1027 = vpop.f32.mrf.mxu0
  %v1028 = vadd.f32 %v192, %v1027
  %v1029 = vpop.f32.mrf.mxu0
  %v1030 = vadd.f32 %v197, %v1029
  %1031 = vmatmul.bf16.gmra.mxu0 %v247
  %v1032 = vpop.f32.mrf.mxu0
  %v1033 = vadd.f32 %v202, %v1032
  %v1034 = vpop.f32.mrf.mxu0
  %v1035 = vadd.f32 %v207, %v1034
  %1036 = vmatmul.bf16.gmra.mxu0 %v249
  %v1037 = vpop.f32.mrf.mxu0
  %v1038 = vadd.f32 %v212, %v1037
  %v1039 = vpop.f32.mrf.mxu0
  %1040 = vdwg.mxu0
  %1041 = vmatpush.bf16.msra.mxu0 0
  %1042 = vmatpush.bf16.msra.mxu0 0
  %1043 = vmatpush.bf16.msra.mxu0 0
  %1044 = vmatpush.bf16.msra.mxu0 0
  %1045 = vmatpush.bf16.msra.mxu0 0
  %1046 = vmatpush.bf16.msra.mxu0 0
  %1047 = vmatpush.bf16.msra.mxu0 %v907
  %1048 = vmatpush.bf16.msra.mxu0 %v741
  %1049 = vmatmul.bf16.gmra.mxu0 %v885
  %v1050 = vpop.f32.mrf.mxu0
  %v1051 = vadd.f32 %v1018, %v1050
  %v1052 = vpop.f32.mrf.mxu0
  %v1053 = vadd.f32 %v1020, %v1052
  %1054 = vmatmul.bf16.gmra.mxu0 %v888
  %v1055 = vpop.f32.mrf.mxu0
  %v1056 = vadd.f32 %v1023, %v1055
  %v1057 = vpop.f32.mrf.mxu0
  %v1058 = vadd.f32 %v1025, %v1057
  %1059 = vmatmul.bf16.gmra.mxu0 %v891
  %v1060 = vpop.f32.mrf.mxu0
  %v1061 = vadd.f32 %v1028, %v1060
  %v1062 = vpop.f32.mrf.mxu0
  %v1063 = vadd.f32 %v1030, %v1062
  %1064 = vmatmul.bf16.gmra.mxu0 %v894
  %v1065 = vpop.f32.mrf.mxu0
  %v1066 = vadd.f32 %v1033, %v1065
  %v1067 = vpop.f32.mrf.mxu0
  %v1068 = vadd.f32 %v1035, %v1067
  %1069 = vmatmul.bf16.gmra.mxu0 %v897
  %v1070 = vpop.f32.mrf.mxu0
  %v1071 = vadd.f32 %v1038, %v1070
  %v1072 = vpop.f32.mrf.mxu0
  %1073 = vdwg.mxu0
  %1074 = vmatpush.bf16.msra.mxu0 %v729
  %1075 = vmatpush.bf16.msra.mxu0 %v716
  %1076 = vmatpush.bf16.msra.mxu0 %v703
  %1077 = vmatpush.bf16.msra.mxu0 %v690
  %1078 = vmatpush.bf16.msra.mxu0 %v677
  %1079 = vmatpush.bf16.msra.mxu0 %v664
  %1080 = vmatpush.bf16.msra.mxu0 %v651
  %1081 = vmatpush.bf16.msra.mxu0 %v638
  %1082 = vmatmul.bf16.gmra.mxu0 %v241
  %v1083 = vpop.f32.mrf.mxu0
  %v1084 = vadd.f32 %v172, %v1083
  %v1085 = vpop.f32.mrf.mxu0
  %v1086 = vadd.f32 %v177, %v1085
  %1087 = vmatmul.bf16.gmra.mxu0 %v243
  %v1088 = vpop.f32.mrf.mxu0
  %v1089 = vadd.f32 %v182, %v1088
  %v1090 = vpop.f32.mrf.mxu0
  %v1091 = vadd.f32 %v187, %v1090
  %1092 = vmatmul.bf16.gmra.mxu0 %v245
  %v1093 = vpop.f32.mrf.mxu0
  %v1094 = vadd.f32 %v192, %v1093
  %v1095 = vpop.f32.mrf.mxu0
  %v1096 = vadd.f32 %v197, %v1095
  %1097 = vmatmul.bf16.gmra.mxu0 %v247
  %v1098 = vpop.f32.mrf.mxu0
  %v1099 = vadd.f32 %v202, %v1098
  %v1100 = vpop.f32.mrf.mxu0
  %v1101 = vadd.f32 %v207, %v1100
  %1102 = vmatmul.bf16.gmra.mxu0 %v249
  %v1103 = vpop.f32.mrf.mxu0
  %v1104 = vadd.f32 %v212, %v1103
  %v1105 = vpop.f32.mrf.mxu0
  %1106 = vdwg.mxu0
  %1107 = vmatpush.bf16.msra.mxu0 0
  %1108 = vmatpush.bf16.msra.mxu0 0
  %1109 = vmatpush.bf16.msra.mxu0 0
  %1110 = vmatpush.bf16.msra.mxu0 0
  %1111 = vmatpush.bf16.msra.mxu0 0
  %1112 = vmatpush.bf16.msra.mxu0 0
  %1113 = vmatpush.bf16.msra.mxu0 %v910
  %1114 = vmatpush.bf16.msra.mxu0 %v742
  %1115 = vmatmul.bf16.gmra.mxu0 %v885
  %v1116 = vpop.f32.mrf.mxu0
  %v1117 = vadd.f32 %v1084, %v1116
  %v1118 = vpop.f32.mrf.mxu0
  %v1119 = vadd.f32 %v1086, %v1118
  %1120 = vmatmul.bf16.gmra.mxu0 %v888
  %v1121 = vpop.f32.mrf.mxu0
  %v1122 = vadd.f32 %v1089, %v1121
  %v1123 = vpop.f32.mrf.mxu0
  %v1124 = vadd.f32 %v1091, %v1123
  %1125 = vmatmul.bf16.gmra.mxu0 %v891
  %v1126 = vpop.f32.mrf.mxu0
  %v1127 = vadd.f32 %v1094, %v1126
  %v1128 = vpop.f32.mrf.mxu0
  %v1129 = vadd.f32 %v1096, %v1128
  %1130 = vmatmul.bf16.gmra.mxu0 %v894
  %v1131 = vpop.f32.mrf.mxu0
  %v1132 = vadd.f32 %v1099, %v1131
  %v1133 = vpop.f32.mrf.mxu0
  %v1134 = vadd.f32 %v1101, %v1133
  %1135 = vmatmul.bf16.gmra.mxu0 %v897
  %v1136 = vpop.f32.mrf.mxu0
  %v1137 = vadd.f32 %v1104, %v1136
  %v1138 = vpop.f32.mrf.mxu0
  %1139 = vdwg.mxu0
  %1140 = vmatpush.bf16.msra.mxu0 %v730
  %1141 = vmatpush.bf16.msra.mxu0 %v717
  %1142 = vmatpush.bf16.msra.mxu0 %v704
  %1143 = vmatpush.bf16.msra.mxu0 %v691
  %1144 = vmatpush.bf16.msra.mxu0 %v678
  %1145 = vmatpush.bf16.msra.mxu0 %v665
  %1146 = vmatpush.bf16.msra.mxu0 %v652
  %1147 = vmatpush.bf16.msra.mxu0 %v639
  %1148 = vmatmul.bf16.gmra.mxu0 %v241
  %v1149 = vpop.f32.mrf.mxu0
  %v1150 = vadd.f32 %v172, %v1149
  %v1151 = vpop.f32.mrf.mxu0
  %v1152 = vadd.f32 %v177, %v1151
  %1153 = vmatmul.bf16.gmra.mxu0 %v243
  %v1154 = vpop.f32.mrf.mxu0
  %v1155 = vadd.f32 %v182, %v1154
  %v1156 = vpop.f32.mrf.mxu0
  %v1157 = vadd.f32 %v187, %v1156
  %1158 = vmatmul.bf16.gmra.mxu0 %v245
  %v1159 = vpop.f32.mrf.mxu0
  %v1160 = vadd.f32 %v192, %v1159
  %v1161 = vpop.f32.mrf.mxu0
  %v1162 = vadd.f32 %v197, %v1161
  %1163 = vmatmul.bf16.gmra.mxu0 %v247
  %v1164 = vpop.f32.mrf.mxu0
  %v1165 = vadd.f32 %v202, %v1164
  %v1166 = vpop.f32.mrf.mxu0
  %v1167 = vadd.f32 %v207, %v1166
  %1168 = vmatmul.bf16.gmra.mxu0 %v249
  %v1169 = vpop.f32.mrf.mxu0
  %v1170 = vadd.f32 %v212, %v1169
  %v1171 = vpop.f32.mrf.mxu0
  %1172 = vdwg.mxu0
  %1173 = vmatpush.bf16.msra.mxu0 0
  %1174 = vmatpush.bf16.msra.mxu0 0
  %1175 = vmatpush.bf16.msra.mxu0 0
  %1176 = vmatpush.bf16.msra.mxu0 0
  %1177 = vmatpush.bf16.msra.mxu0 0
  %1178 = vmatpush.bf16.msra.mxu0 0
  %1179 = vmatpush.bf16.msra.mxu0 %v913
  %1180 = vmatpush.bf16.msra.mxu0 %v743
  %1181 = vmatmul.bf16.gmra.mxu0 %v885
  %v1182 = vpop.f32.mrf.mxu0
  %v1183 = vadd.f32 %v1150, %v1182
  %v1184 = vpop.f32.mrf.mxu0
  %v1185 = vadd.f32 %v1152, %v1184
  %1186 = vmatmul.bf16.gmra.mxu0 %v888
  %v1187 = vpop.f32.mrf.mxu0
  %v1188 = vadd.f32 %v1155, %v1187
  %v1189 = vpop.f32.mrf.mxu0
  %v1190 = vadd.f32 %v1157, %v1189
  %1191 = vmatmul.bf16.gmra.mxu0 %v891
  %v1192 = vpop.f32.mrf.mxu0
  %v1193 = vadd.f32 %v1160, %v1192
  %v1194 = vpop.f32.mrf.mxu0
  %v1195 = vadd.f32 %v1162, %v1194
  %1196 = vmatmul.bf16.gmra.mxu0 %v894
  %v1197 = vpop.f32.mrf.mxu0
  %v1198 = vadd.f32 %v1165, %v1197
  %v1199 = vpop.f32.mrf.mxu0
  %v1200 = vadd.f32 %v1167, %v1199
  %1201 = vmatmul.bf16.gmra.mxu0 %v897
  %v1202 = vpop.f32.mrf.mxu0
  %v1203 = vadd.f32 %v1170, %v1202
  %v1204 = vpop.f32.mrf.mxu0
  %1205 = vdwg.mxu0
  %1206 = vmatpush.bf16.msra.mxu0 %v731
  %1207 = vmatpush.bf16.msra.mxu0 %v718
  %1208 = vmatpush.bf16.msra.mxu0 %v705
  %1209 = vmatpush.bf16.msra.mxu0 %v692
  %1210 = vmatpush.bf16.msra.mxu0 %v679
  %1211 = vmatpush.bf16.msra.mxu0 %v666
  %1212 = vmatpush.bf16.msra.mxu0 %v653
  %1213 = vmatpush.bf16.msra.mxu0 %v640
  %1214 = vmatmul.bf16.gmra.mxu0 %v241
  %v1215 = vpop.f32.mrf.mxu0
  %v1216 = vadd.f32 %v172, %v1215
  %v1217 = vpop.f32.mrf.mxu0
  %v1218 = vadd.f32 %v177, %v1217
  %1219 = vmatmul.bf16.gmra.mxu0 %v243
  %v1220 = vpop.f32.mrf.mxu0
  %v1221 = vadd.f32 %v182, %v1220
  %v1222 = vpop.f32.mrf.mxu0
  %v1223 = vadd.f32 %v187, %v1222
  %1224 = vmatmul.bf16.gmra.mxu0 %v245
  %v1225 = vpop.f32.mrf.mxu0
  %v1226 = vadd.f32 %v192, %v1225
  %v1227 = vpop.f32.mrf.mxu0
  %v1228 = vadd.f32 %v197, %v1227
  %1229 = vmatmul.bf16.gmra.mxu0 %v247
  %v1230 = vpop.f32.mrf.mxu0
  %v1231 = vadd.f32 %v202, %v1230
  %v1232 = vpop.f32.mrf.mxu0
  %v1233 = vadd.f32 %v207, %v1232
  %1234 = vmatmul.bf16.gmra.mxu0 %v249
  %v1235 = vpop.f32.mrf.mxu0
  %v1236 = vadd.f32 %v212, %v1235
  %v1237 = vpop.f32.mrf.mxu0
  %1238 = vdwg.mxu0
  %1239 = vmatpush.bf16.msra.mxu0 0
  %1240 = vmatpush.bf16.msra.mxu0 0
  %1241 = vmatpush.bf16.msra.mxu0 0
  %1242 = vmatpush.bf16.msra.mxu0 0
  %1243 = vmatpush.bf16.msra.mxu0 0
  %1244 = vmatpush.bf16.msra.mxu0 0
  %1245 = vmatpush.bf16.msra.mxu0 %v916
  %1246 = vmatpush.bf16.msra.mxu0 %v744
  %1247 = vmatmul.bf16.gmra.mxu0 %v885
  %v1248 = vpop.f32.mrf.mxu0
  %v1249 = vadd.f32 %v1216, %v1248
  %v1250 = vpop.f32.mrf.mxu0
  %v1251 = vadd.f32 %v1218, %v1250
  %1252 = vmatmul.bf16.gmra.mxu0 %v888
  %v1253 = vpop.f32.mrf.mxu0
  %v1254 = vadd.f32 %v1221, %v1253
  %v1255 = vpop.f32.mrf.mxu0
  %v1256 = vadd.f32 %v1223, %v1255
  %1257 = vmatmul.bf16.gmra.mxu0 %v891
  %v1258 = vpop.f32.mrf.mxu0
  %v1259 = vadd.f32 %v1226, %v1258
  %v1260 = vpop.f32.mrf.mxu0
  %v1261 = vadd.f32 %v1228, %v1260
  %1262 = vmatmul.bf16.gmra.mxu0 %v894
  %v1263 = vpop.f32.mrf.mxu0
  %v1264 = vadd.f32 %v1231, %v1263
  %v1265 = vpop.f32.mrf.mxu0
  %v1266 = vadd.f32 %v1233, %v1265
  %1267 = vmatmul.bf16.gmra.mxu0 %v897
  %v1268 = vpop.f32.mrf.mxu0
  %v1269 = vadd.f32 %v1236, %v1268
  %v1270 = vpop.f32.mrf.mxu0
  %1271 = vdwg.mxu0
  %1272 = vmatpush.bf16.msra.mxu0 %v732
  %1273 = vmatpush.bf16.msra.mxu0 %v719
  %1274 = vmatpush.bf16.msra.mxu0 %v706
  %1275 = vmatpush.bf16.msra.mxu0 %v693
  %1276 = vmatpush.bf16.msra.mxu0 %v680
  %1277 = vmatpush.bf16.msra.mxu0 %v667
  %1278 = vmatpush.bf16.msra.mxu0 %v654
  %1279 = vmatpush.bf16.msra.mxu0 %v641
  %1280 = vmatmul.bf16.gmra.mxu0 %v241
  %v1281 = vpop.f32.mrf.mxu0
  %v1282 = vadd.f32 %v172, %v1281
  %v1283 = vpop.f32.mrf.mxu0
  %v1284 = vadd.f32 %v177, %v1283
  %1285 = vmatmul.bf16.gmra.mxu0 %v243
  %v1286 = vpop.f32.mrf.mxu0
  %v1287 = vadd.f32 %v182, %v1286
  %v1288 = vpop.f32.mrf.mxu0
  %v1289 = vadd.f32 %v187, %v1288
  %1290 = vmatmul.bf16.gmra.mxu0 %v245
  %v1291 = vpop.f32.mrf.mxu0
  %v1292 = vadd.f32 %v192, %v1291
  %v1293 = vpop.f32.mrf.mxu0
  %v1294 = vadd.f32 %v197, %v1293
  %1295 = vmatmul.bf16.gmra.mxu0 %v247
  %v1296 = vpop.f32.mrf.mxu0
  %v1297 = vadd.f32 %v202, %v1296
  %v1298 = vpop.f32.mrf.mxu0
  %v1299 = vadd.f32 %v207, %v1298
  %1300 = vmatmul.bf16.gmra.mxu0 %v249
  %v1301 = vpop.f32.mrf.mxu0
  %v1302 = vadd.f32 %v212, %v1301
  %v1303 = vpop.f32.mrf.mxu0
  %1304 = vdwg.mxu0
  %1305 = vmatpush.bf16.msra.mxu0 0
  %1306 = vmatpush.bf16.msra.mxu0 0
  %1307 = vmatpush.bf16.msra.mxu0 0
  %1308 = vmatpush.bf16.msra.mxu0 0
  %1309 = vmatpush.bf16.msra.mxu0 0
  %1310 = vmatpush.bf16.msra.mxu0 0
  %1311 = vmatpush.bf16.msra.mxu0 %v919
  %1312 = vmatpush.bf16.msra.mxu0 %v745
  %1313 = vmatmul.bf16.gmra.mxu0 %v885
  %v1314 = vpop.f32.mrf.mxu0
  %v1315 = vadd.f32 %v1282, %v1314
  %v1316 = vpop.f32.mrf.mxu0
  %v1317 = vadd.f32 %v1284, %v1316
  %1318 = vmatmul.bf16.gmra.mxu0 %v888
  %v1319 = vpop.f32.mrf.mxu0
  %v1320 = vadd.f32 %v1287, %v1319
  %v1321 = vpop.f32.mrf.mxu0
  %v1322 = vadd.f32 %v1289, %v1321
  %1323 = vmatmul.bf16.gmra.mxu0 %v891
  %v1324 = vpop.f32.mrf.mxu0
  %v1325 = vadd.f32 %v1292, %v1324
  %v1326 = vpop.f32.mrf.mxu0
  %v1327 = vadd.f32 %v1294, %v1326
  %1328 = vmatmul.bf16.gmra.mxu0 %v894
  %v1329 = vpop.f32.mrf.mxu0
  %v1330 = vadd.f32 %v1297, %v1329
  %v1331 = vpop.f32.mrf.mxu0
  %v1332 = vadd.f32 %v1299, %v1331
  %1333 = vmatmul.bf16.gmra.mxu0 %v897
  %v1334 = vpop.f32.mrf.mxu0
  %v1335 = vadd.f32 %v1302, %v1334
  %v1336 = vpop.f32.mrf.mxu0
  %1337 = vdwg.mxu0
  %1338 = vmatpush.bf16.msra.mxu0 %v733
  %1339 = vmatpush.bf16.msra.mxu0 %v720
  %1340 = vmatpush.bf16.msra.mxu0 %v707
  %1341 = vmatpush.bf16.msra.mxu0 %v694
  %1342 = vmatpush.bf16.msra.mxu0 %v681
  %1343 = vmatpush.bf16.msra.mxu0 %v668
  %1344 = vmatpush.bf16.msra.mxu0 %v655
  %1345 = vmatpush.bf16.msra.mxu0 %v642
  %1346 = vmatmul.bf16.gmra.mxu0 %v241
  %v1347 = vpop.f32.mrf.mxu0
  %v1348 = vadd.f32 %v172, %v1347
  %v1349 = vpop.f32.mrf.mxu0
  %v1350 = vadd.f32 %v177, %v1349
  %1351 = vmatmul.bf16.gmra.mxu0 %v243
  %v1352 = vpop.f32.mrf.mxu0
  %v1353 = vadd.f32 %v182, %v1352
  %v1354 = vpop.f32.mrf.mxu0
  %v1355 = vadd.f32 %v187, %v1354
  %1356 = vmatmul.bf16.gmra.mxu0 %v245
  %v1357 = vpop.f32.mrf.mxu0
  %v1358 = vadd.f32 %v192, %v1357
  %v1359 = vpop.f32.mrf.mxu0
  %v1360 = vadd.f32 %v197, %v1359
  %1361 = vmatmul.bf16.gmra.mxu0 %v247
  %v1362 = vpop.f32.mrf.mxu0
  %v1363 = vadd.f32 %v202, %v1362
  %v1364 = vpop.f32.mrf.mxu0
  %v1365 = vadd.f32 %v207, %v1364
  %1366 = vmatmul.bf16.gmra.mxu0 %v249
  %v1367 = vpop.f32.mrf.mxu0
  %v1368 = vadd.f32 %v212, %v1367
  %v1369 = vpop.f32.mrf.mxu0
  %1370 = vdwg.mxu0
  %1371 = vmatpush.bf16.msra.mxu0 0
  %1372 = vmatpush.bf16.msra.mxu0 0
  %1373 = vmatpush.bf16.msra.mxu0 0
  %1374 = vmatpush.bf16.msra.mxu0 0
  %1375 = vmatpush.bf16.msra.mxu0 0
  %1376 = vmatpush.bf16.msra.mxu0 0
  %1377 = vmatpush.bf16.msra.mxu0 %v922
  %1378 = vmatpush.bf16.msra.mxu0 %v746
  %1379 = vmatmul.bf16.gmra.mxu0 %v885
  %v1380 = vpop.f32.mrf.mxu0
  %v1381 = vadd.f32 %v1348, %v1380
  %v1382 = vpop.f32.mrf.mxu0
  %v1383 = vadd.f32 %v1350, %v1382
  %1384 = vmatmul.bf16.gmra.mxu0 %v888
  %v1385 = vpop.f32.mrf.mxu0
  %v1386 = vadd.f32 %v1353, %v1385
  %v1387 = vpop.f32.mrf.mxu0
  %v1388 = vadd.f32 %v1355, %v1387
  %1389 = vmatmul.bf16.gmra.mxu0 %v891
  %v1390 = vpop.f32.mrf.mxu0
  %v1391 = vadd.f32 %v1358, %v1390
  %v1392 = vpop.f32.mrf.mxu0
  %v1393 = vadd.f32 %v1360, %v1392
  %1394 = vmatmul.bf16.gmra.mxu0 %v894
  %v1395 = vpop.f32.mrf.mxu0
  %v1396 = vadd.f32 %v1363, %v1395
  %v1397 = vpop.f32.mrf.mxu0
  %v1398 = vadd.f32 %v1365, %v1397
  %1399 = vmatmul.bf16.gmra.mxu0 %v897
  %v1400 = vpop.f32.mrf.mxu0
  %v1401 = vadd.f32 %v1368, %v1400
  %v1402 = vpop.f32.mrf.mxu0
  %1403 = vdwg.mxu0
  %1404 = vmatpush.bf16.msra.mxu0 %v734
  %1405 = vmatpush.bf16.msra.mxu0 %v721
  %1406 = vmatpush.bf16.msra.mxu0 %v708
  %1407 = vmatpush.bf16.msra.mxu0 %v695
  %1408 = vmatpush.bf16.msra.mxu0 %v682
  %1409 = vmatpush.bf16.msra.mxu0 %v669
  %1410 = vmatpush.bf16.msra.mxu0 %v656
  %1411 = vmatpush.bf16.msra.mxu0 %v643
  %1412 = vmatmul.bf16.gmra.mxu0 %v241
  %v1413 = vpop.f32.mrf.mxu0
  %v1414 = vadd.f32 %v172, %v1413
  %v1415 = vpop.f32.mrf.mxu0
  %v1416 = vadd.f32 %v177, %v1415
  %1417 = vmatmul.bf16.gmra.mxu0 %v243
  %v1418 = vpop.f32.mrf.mxu0
  %v1419 = vadd.f32 %v182, %v1418
  %v1420 = vpop.f32.mrf.mxu0
  %v1421 = vadd.f32 %v187, %v1420
  %1422 = vmatmul.bf16.gmra.mxu0 %v245
  %v1423 = vpop.f32.mrf.mxu0
  %v1424 = vadd.f32 %v192, %v1423
  %v1425 = vpop.f32.mrf.mxu0
  %v1426 = vadd.f32 %v197, %v1425
  %1427 = vmatmul.bf16.gmra.mxu0 %v247
  %v1428 = vpop.f32.mrf.mxu0
  %v1429 = vadd.f32 %v202, %v1428
  %v1430 = vpop.f32.mrf.mxu0
  %v1431 = vadd.f32 %v207, %v1430
  %1432 = vmatmul.bf16.gmra.mxu0 %v249
  %v1433 = vpop.f32.mrf.mxu0
  %v1434 = vadd.f32 %v212, %v1433
  %v1435 = vpop.f32.mrf.mxu0
  %1436 = vdwg.mxu0
  %1437 = vmatpush.bf16.msra.mxu0 0
  %1438 = vmatpush.bf16.msra.mxu0 0
  %1439 = vmatpush.bf16.msra.mxu0 0
  %1440 = vmatpush.bf16.msra.mxu0 0
  %1441 = vmatpush.bf16.msra.mxu0 0
  %1442 = vmatpush.bf16.msra.mxu0 0
  %1443 = vmatpush.bf16.msra.mxu0 %v925
  %1444 = vmatpush.bf16.msra.mxu0 %v747
  %1445 = vmatmul.bf16.gmra.mxu0 %v885
  %v1446 = vpop.f32.mrf.mxu0
  %v1447 = vadd.f32 %v1414, %v1446
  %v1448 = vpop.f32.mrf.mxu0
  %v1449 = vadd.f32 %v1416, %v1448
  %1450 = vmatmul.bf16.gmra.mxu0 %v888
  %v1451 = vpop.f32.mrf.mxu0
  %v1452 = vadd.f32 %v1419, %v1451
  %v1453 = vpop.f32.mrf.mxu0
  %v1454 = vadd.f32 %v1421, %v1453
  %1455 = vmatmul.bf16.gmra.mxu0 %v891
  %v1456 = vpop.f32.mrf.mxu0
  %v1457 = vadd.f32 %v1424, %v1456
  %v1458 = vpop.f32.mrf.mxu0
  %v1459 = vadd.f32 %v1426, %v1458
  %1460 = vmatmul.bf16.gmra.mxu0 %v894
  %v1461 = vpop.f32.mrf.mxu0
  %v1462 = vadd.f32 %v1429, %v1461
  %v1463 = vpop.f32.mrf.mxu0
  %v1464 = vadd.f32 %v1431, %v1463
  %1465 = vmatmul.bf16.gmra.mxu0 %v897
  %v1466 = vpop.f32.mrf.mxu0
  %v1467 = vadd.f32 %v1434, %v1466
  %v1468 = vpop.f32.mrf.mxu0
  %1469 = vdwg.mxu0
  %1470 = vmatpush.bf16.msra.mxu0 %v735
  %1471 = vmatpush.bf16.msra.mxu0 %v722
  %1472 = vmatpush.bf16.msra.mxu0 %v709
  %1473 = vmatpush.bf16.msra.mxu0 %v696
  %1474 = vmatpush.bf16.msra.mxu0 %v683
  %1475 = vmatpush.bf16.msra.mxu0 %v670
  %1476 = vmatpush.bf16.msra.mxu0 %v657
  %1477 = vmatpush.bf16.msra.mxu0 %v644
  %1478 = vmatmul.bf16.gmra.mxu0 %v241
  %v1479 = vpop.f32.mrf.mxu0
  %v1480 = vadd.f32 %v172, %v1479
  %v1481 = vpop.f32.mrf.mxu0
  %v1482 = vadd.f32 %v177, %v1481
  %1483 = vmatmul.bf16.gmra.mxu0 %v243
  %v1484 = vpop.f32.mrf.mxu0
  %v1485 = vadd.f32 %v182, %v1484
  %v1486 = vpop.f32.mrf.mxu0
  %v1487 = vadd.f32 %v187, %v1486
  %1488 = vmatmul.bf16.gmra.mxu0 %v245
  %v1489 = vpop.f32.mrf.mxu0
  %v1490 = vadd.f32 %v192, %v1489
  %v1491 = vpop.f32.mrf.mxu0
  %v1492 = vadd.f32 %v197, %v1491
  %1493 = vmatmul.bf16.gmra.mxu0 %v247
  %v1494 = vpop.f32.mrf.mxu0
  %v1495 = vadd.f32 %v202, %v1494
  %v1496 = vpop.f32.mrf.mxu0
  %v1497 = vadd.f32 %v207, %v1496
  %1498 = vmatmul.bf16.gmra.mxu0 %v249
  %v1499 = vpop.f32.mrf.mxu0
  %v1500 = vadd.f32 %v212, %v1499
  %v1501 = vpop.f32.mrf.mxu0
  %1502 = vdwg.mxu0
  %1503 = vmatpush.bf16.msra.mxu0 0
  %1504 = vmatpush.bf16.msra.mxu0 0
  %1505 = vmatpush.bf16.msra.mxu0 0
  %1506 = vmatpush.bf16.msra.mxu0 0
  %1507 = vmatpush.bf16.msra.mxu0 0
  %1508 = vmatpush.bf16.msra.mxu0 0
  %1509 = vmatpush.bf16.msra.mxu0 %v928
  %1510 = vmatpush.bf16.msra.mxu0 %v748
  %1511 = vmatmul.bf16.gmra.mxu0 %v885
  %v1512 = vpop.f32.mrf.mxu0
  %v1513 = vadd.f32 %v1480, %v1512
  %v1514 = vpop.f32.mrf.mxu0
  %v1515 = vadd.f32 %v1482, %v1514
  %1516 = vmatmul.bf16.gmra.mxu0 %v888
  %v1517 = vpop.f32.mrf.mxu0
  %v1518 = vadd.f32 %v1485, %v1517
  %v1519 = vpop.f32.mrf.mxu0
  %v1520 = vadd.f32 %v1487, %v1519
  %1521 = vmatmul.bf16.gmra.mxu0 %v891
  %v1522 = vpop.f32.mrf.mxu0
  %v1523 = vadd.f32 %v1490, %v1522
  %v1524 = vpop.f32.mrf.mxu0
  %v1525 = vadd.f32 %v1492, %v1524
  %1526 = vmatmul.bf16.gmra.mxu0 %v894
  %v1527 = vpop.f32.mrf.mxu0
  %v1528 = vadd.f32 %v1495, %v1527
  %v1529 = vpop.f32.mrf.mxu0
  %v1530 = vadd.f32 %v1497, %v1529
  %1531 = vmatmul.bf16.gmra.mxu0 %v897
  %v1532 = vpop.f32.mrf.mxu0
  %v1533 = vadd.f32 %v1500, %v1532
  %v1534 = vpop.f32.mrf.mxu0
  %1535 = vdwg.mxu0
  %1536 = vmatpush.bf16.msra.mxu0 %v736
  %1537 = vmatpush.bf16.msra.mxu0 %v723
  %1538 = vmatpush.bf16.msra.mxu0 %v710
  %1539 = vmatpush.bf16.msra.mxu0 %v697
  %1540 = vmatpush.bf16.msra.mxu0 %v684
  %1541 = vmatpush.bf16.msra.mxu0 %v671
  %1542 = vmatpush.bf16.msra.mxu0 %v658
  %1543 = vmatpush.bf16.msra.mxu0 %v645
  %1544 = vmatmul.bf16.gmra.mxu0 %v241
  %v1545 = vpop.f32.mrf.mxu0
  %v1546 = vadd.f32 %v172, %v1545
  %v1547 = vpop.f32.mrf.mxu0
  %v1548 = vadd.f32 %v177, %v1547
  %1549 = vmatmul.bf16.gmra.mxu0 %v243
  %v1550 = vpop.f32.mrf.mxu0
  %v1551 = vadd.f32 %v182, %v1550
  %v1552 = vpop.f32.mrf.mxu0
  %v1553 = vadd.f32 %v187, %v1552
  %1554 = vmatmul.bf16.gmra.mxu0 %v245
  %v1555 = vpop.f32.mrf.mxu0
  %v1556 = vadd.f32 %v192, %v1555
  %v1557 = vpop.f32.mrf.mxu0
  %v1558 = vadd.f32 %v197, %v1557
  %1559 = vmatmul.bf16.gmra.mxu0 %v247
  %v1560 = vpop.f32.mrf.mxu0
  %v1561 = vadd.f32 %v202, %v1560
  %v1562 = vpop.f32.mrf.mxu0
  %v1563 = vadd.f32 %v207, %v1562
  %1564 = vmatmul.bf16.gmra.mxu0 %v249
  %v1565 = vpop.f32.mrf.mxu0
  %v1566 = vadd.f32 %v212, %v1565
  %v1567 = vpop.f32.mrf.mxu0
  %1568 = vdwg.mxu0
  %1569 = vmatpush.bf16.msra.mxu0 0
  %1570 = vmatpush.bf16.msra.mxu0 0
  %1571 = vmatpush.bf16.msra.mxu0 0
  %1572 = vmatpush.bf16.msra.mxu0 0
  %1573 = vmatpush.bf16.msra.mxu0 0
  %1574 = vmatpush.bf16.msra.mxu0 0
  %1575 = vmatpush.bf16.msra.mxu0 %v931
  %1576 = vmatpush.bf16.msra.mxu0 %v749
  %1577 = vmatmul.bf16.gmra.mxu0 %v885
  %v1578 = vpop.f32.mrf.mxu0
  %v1579 = vadd.f32 %v1546, %v1578
  %v1580 = vpop.f32.mrf.mxu0
  %v1581 = vadd.f32 %v1548, %v1580
  %1582 = vmatmul.bf16.gmra.mxu0 %v888
  %v1583 = vpop.f32.mrf.mxu0
  %v1584 = vadd.f32 %v1551, %v1583
  %v1585 = vpop.f32.mrf.mxu0
  %v1586 = vadd.f32 %v1553, %v1585
  %1587 = vmatmul.bf16.gmra.mxu0 %v891
  %v1588 = vpop.f32.mrf.mxu0
  %v1589 = vadd.f32 %v1556, %v1588
  %v1590 = vpop.f32.mrf.mxu0
  %v1591 = vadd.f32 %v1558, %v1590
  %1592 = vmatmul.bf16.gmra.mxu0 %v894
  %v1593 = vpop.f32.mrf.mxu0
  %v1594 = vadd.f32 %v1561, %v1593
  %v1595 = vpop.f32.mrf.mxu0
  %v1596 = vadd.f32 %v1563, %v1595
  %1597 = vmatmul.bf16.gmra.mxu0 %v897
  %v1598 = vpop.f32.mrf.mxu0
  %v1599 = vadd.f32 %v1566, %v1598
  %v1600 = vpop.f32.mrf.mxu0
  %1601 = vdwg.mxu0
  %1602 = vmatpush.bf16.msra.mxu0 %v737
  %1603 = vmatpush.bf16.msra.mxu0 %v724
  %1604 = vmatpush.bf16.msra.mxu0 %v711
  %1605 = vmatpush.bf16.msra.mxu0 %v698
  %1606 = vmatpush.bf16.msra.mxu0 %v685
  %1607 = vmatpush.bf16.msra.mxu0 %v672
  %1608 = vmatpush.bf16.msra.mxu0 %v659
  %1609 = vmatpush.bf16.msra.mxu0 %v646
  %1610 = vmatmul.bf16.gmra.mxu0 %v241
  %v1611 = vpop.f32.mrf.mxu0
  %v1612 = vadd.f32 %v172, %v1611
  %v1613 = vpop.f32.mrf.mxu0
  %v1614 = vadd.f32 %v177, %v1613
  %1615 = vmatmul.bf16.gmra.mxu0 %v243
  %v1616 = vpop.f32.mrf.mxu0
  %v1617 = vadd.f32 %v182, %v1616
  %v1618 = vpop.f32.mrf.mxu0
  %v1619 = vadd.f32 %v187, %v1618
  %1620 = vmatmul.bf16.gmra.mxu0 %v245
  %v1621 = vpop.f32.mrf.mxu0
  %v1622 = vadd.f32 %v192, %v1621
  %v1623 = vpop.f32.mrf.mxu0
  %v1624 = vadd.f32 %v197, %v1623
  %1625 = vmatmul.bf16.gmra.mxu0 %v247
  %v1626 = vpop.f32.mrf.mxu0
  %v1627 = vadd.f32 %v202, %v1626
  %v1628 = vpop.f32.mrf.mxu0
  %v1629 = vadd.f32 %v207, %v1628
  %1630 = vmatmul.bf16.gmra.mxu0 %v249
  %v1631 = vpop.f32.mrf.mxu0
  %v1632 = vadd.f32 %v212, %v1631
  %v1633 = vpop.f32.mrf.mxu0
  %1634 = vdwg.mxu0
  %1635 = vmatpush.bf16.msra.mxu0 0
  %1636 = vmatpush.bf16.msra.mxu0 0
  %1637 = vmatpush.bf16.msra.mxu0 0
  %1638 = vmatpush.bf16.msra.mxu0 0
  %1639 = vmatpush.bf16.msra.mxu0 0
  %1640 = vmatpush.bf16.msra.mxu0 0
  %1641 = vmatpush.bf16.msra.mxu0 %v934
  %1642 = vmatpush.bf16.msra.mxu0 %v750
  %1643 = vmatmul.bf16.gmra.mxu0 %v885
  %v1644 = vpop.f32.mrf.mxu0
  %v1645 = vadd.f32 %v1612, %v1644
  %v1646 = vpop.f32.mrf.mxu0
  %v1647 = vadd.f32 %v1614, %v1646
  %1648 = vmatmul.bf16.gmra.mxu0 %v888
  %v1649 = vpop.f32.mrf.mxu0
  %v1650 = vadd.f32 %v1617, %v1649
  %v1651 = vpop.f32.mrf.mxu0
  %v1652 = vadd.f32 %v1619, %v1651
  %1653 = vmatmul.bf16.gmra.mxu0 %v891
  %v1654 = vpop.f32.mrf.mxu0
  %v1655 = vadd.f32 %v1622, %v1654
  %v1656 = vpop.f32.mrf.mxu0
  %v1657 = vadd.f32 %v1624, %v1656
  %1658 = vmatmul.bf16.gmra.mxu0 %v894
  %v1659 = vpop.f32.mrf.mxu0
  %v1660 = vadd.f32 %v1627, %v1659
  %v1661 = vpop.f32.mrf.mxu0
  %v1662 = vadd.f32 %v1629, %v1661
  %1663 = vmatmul.bf16.gmra.mxu0 %v897
  %v1664 = vpop.f32.mrf.mxu0
  %v1665 = vadd.f32 %v1632, %v1664
  %v1666 = vpop.f32.mrf.mxu0
  %1667 = vdwg.mxu0
  %1668 = vmatpush.bf16.msra.mxu0 %v738
  %1669 = vmatpush.bf16.msra.mxu0 %v725
  %1670 = vmatpush.bf16.msra.mxu0 %v712
  %1671 = vmatpush.bf16.msra.mxu0 %v699
  %1672 = vmatpush.bf16.msra.mxu0 %v686
  %1673 = vmatpush.bf16.msra.mxu0 %v673
  %1674 = vmatpush.bf16.msra.mxu0 %v660
  %1675 = vmatpush.bf16.msra.mxu0 %v647
  %1676 = vmatmul.bf16.gmra.mxu0 %v241
  %v1677 = vpop.f32.mrf.mxu0
  %v1678 = vadd.f32 %v172, %v1677
  %v1679 = vpop.f32.mrf.mxu0
  %v1680 = vadd.f32 %v177, %v1679
  %1681 = vmatmul.bf16.gmra.mxu0 %v243
  %v1682 = vpop.f32.mrf.mxu0
  %v1683 = vadd.f32 %v182, %v1682
  %v1684 = vpop.f32.mrf.mxu0
  %v1685 = vadd.f32 %v187, %v1684
  %1686 = vmatmul.bf16.gmra.mxu0 %v245
  %v1687 = vpop.f32.mrf.mxu0
  %v1688 = vadd.f32 %v192, %v1687
  %v1689 = vpop.f32.mrf.mxu0
  %v1690 = vadd.f32 %v197, %v1689
  %1691 = vmatmul.bf16.gmra.mxu0 %v247
  %v1692 = vpop.f32.mrf.mxu0
  %v1693 = vadd.f32 %v202, %v1692
  %v1694 = vpop.f32.mrf.mxu0
  %v1695 = vadd.f32 %v207, %v1694
  %1696 = vmatmul.bf16.gmra.mxu0 %v249
  %v1697 = vpop.f32.mrf.mxu0
  %v1698 = vadd.f32 %v212, %v1697
  %v1699 = vpop.f32.mrf.mxu0
  %1700 = vdwg.mxu0
  %1701 = vmatpush.bf16.msra.mxu0 0
  %1702 = vmatpush.bf16.msra.mxu0 0
  %1703 = vmatpush.bf16.msra.mxu0 0
  %1704 = vmatpush.bf16.msra.mxu0 0
  %1705 = vmatpush.bf16.msra.mxu0 0
  %1706 = vmatpush.bf16.msra.mxu0 0
  %1707 = vmatpush.bf16.msra.mxu0 %v937
  %1708 = vmatpush.bf16.msra.mxu0 %v751
  %1709 = vmatmul.bf16.gmra.mxu0 %v885
  %v1710 = vpop.f32.mrf.mxu0
  %v1711 = vadd.f32 %v1678, %v1710
  %v1712 = vpop.f32.mrf.mxu0
  %v1713 = vadd.f32 %v1680, %v1712
  %1714 = vmatmul.bf16.gmra.mxu0 %v888
  %v1715 = vpop.f32.mrf.mxu0
  %v1716 = vadd.f32 %v1683, %v1715
  %v1717 = vpop.f32.mrf.mxu0
  %v1718 = vadd.f32 %v1685, %v1717
  %1719 = vmatmul.bf16.gmra.mxu0 %v891
  %v1720 = vpop.f32.mrf.mxu0
  %v1721 = vadd.f32 %v1688, %v1720
  %v1722 = vpop.f32.mrf.mxu0
  %v1723 = vadd.f32 %v1690, %v1722
  %1724 = vmatmul.bf16.gmra.mxu0 %v894
  %v1725 = vpop.f32.mrf.mxu0
  %v1726 = vadd.f32 %v1693, %v1725
  %v1727 = vpop.f32.mrf.mxu0
  %v1728 = vadd.f32 %v1695, %v1727
  %1729 = vmatmul.bf16.gmra.mxu0 %v897
  %v1730 = vpop.f32.mrf.mxu0
  %v1731 = vadd.f32 %v1698, %v1730
  %v1732 = vpop.f32.mrf.mxu0
  %1733 = vdwg.mxu0
  %1734 = vmatpush.bf16.msra.mxu0 %v739
  %1735 = vmatpush.bf16.msra.mxu0 %v726
  %1736 = vmatpush.bf16.msra.mxu0 %v713
  %1737 = vmatpush.bf16.msra.mxu0 %v700
  %1738 = vmatpush.bf16.msra.mxu0 %v687
  %1739 = vmatpush.bf16.msra.mxu0 %v674
  %1740 = vmatpush.bf16.msra.mxu0 %v661
  %1741 = vmatpush.bf16.msra.mxu0 %v648
  %1742 = vmatmul.bf16.gmra.mxu0 %v241
  %v1743 = vpop.f32.mrf.mxu0
  %v1744 = vadd.f32 %v172, %v1743
  %v1745 = vpop.f32.mrf.mxu0
  %v1746 = vadd.f32 %v177, %v1745
  %1747 = vmatmul.bf16.gmra.mxu0 %v243
  %v1748 = vpop.f32.mrf.mxu0
  %v1749 = vadd.f32 %v182, %v1748
  %v1750 = vpop.f32.mrf.mxu0
  %v1751 = vadd.f32 %v187, %v1750
  %1752 = vmatmul.bf16.gmra.mxu0 %v245
  %v1753 = vpop.f32.mrf.mxu0
  %v1754 = vadd.f32 %v192, %v1753
  %v1755 = vpop.f32.mrf.mxu0
  %v1756 = vadd.f32 %v197, %v1755
  %1757 = vmatmul.bf16.gmra.mxu0 %v247
  %v1758 = vpop.f32.mrf.mxu0
  %v1759 = vadd.f32 %v202, %v1758
  %v1760 = vpop.f32.mrf.mxu0
  %v1761 = vadd.f32 %v207, %v1760
  %1762 = vmatmul.bf16.gmra.mxu0 %v249
  %v1763 = vpop.f32.mrf.mxu0
  %v1764 = vadd.f32 %v212, %v1763
  %v1765 = vpop.f32.mrf.mxu0
  %1766 = vdwg.mxu0
  %1767 = vmatpush.bf16.msra.mxu0 0
  %1768 = vmatpush.bf16.msra.mxu0 0
  %1769 = vmatpush.bf16.msra.mxu0 0
  %1770 = vmatpush.bf16.msra.mxu0 0
  %1771 = vmatpush.bf16.msra.mxu0 0
  %1772 = vmatpush.bf16.msra.mxu0 0
  %1773 = vmatpush.bf16.msra.mxu0 %v940
  %1774 = vmatpush.bf16.msra.mxu0 %v752
  %1775 = vmatmul.bf16.gmra.mxu0 %v885
  %v1776 = vpop.f32.mrf.mxu0
  %v1777 = vadd.f32 %v1744, %v1776
  %v1778 = vpop.f32.mrf.mxu0
  %v1779 = vadd.f32 %v1746, %v1778
  %1780 = vmatmul.bf16.gmra.mxu0 %v888
  %v1781 = vpop.f32.mrf.mxu0
  %v1782 = vadd.f32 %v1749, %v1781
  %v1783 = vpop.f32.mrf.mxu0
  %v1784 = vadd.f32 %v1751, %v1783
  %1785 = vmatmul.bf16.gmra.mxu0 %v891
  %v1786 = vpop.f32.mrf.mxu0
  %v1787 = vadd.f32 %v1754, %v1786
  %v1788 = vpop.f32.mrf.mxu0
  %v1789 = vadd.f32 %v1756, %v1788
  %1790 = vmatmul.bf16.gmra.mxu0 %v894
  %v1791 = vpop.f32.mrf.mxu0
  %v1792 = vadd.f32 %v1759, %v1791
  %v1793 = vpop.f32.mrf.mxu0
  %v1794 = vadd.f32 %v1761, %v1793
  %1795 = vmatmul.bf16.gmra.mxu0 %v897
  %v1796 = vpop.f32.mrf.mxu0
  %v1797 = vadd.f32 %v1764, %v1796
  %v1798 = vpop.f32.mrf.mxu0
  %1799 = vdwg.mxu0
  %v1800 = vmax.f32 %v985, 0.0
  %v1801 = vmax.f32 %v1051, 0.0
  %v1802 = vmax.f32 %v1117, 0.0
  %v1803 = vmax.f32 %v1183, 0.0
  %v1804 = vmax.f32 %v1249, 0.0
  %v1805 = vmax.f32 %v1315, 0.0
  %v1806 = vmax.f32 %v1381, 0.0
  %v1807 = vmax.f32 %v1447, 0.0
  %v1808 = vmax.f32 %v1513, 0.0
  %v1809 = vmax.f32 %v1579, 0.0
  %v1810 = vmax.f32 %v1645, 0.0
  %v1811 = vmax.f32 %v1711, 0.0
  %v1812 = vmax.f32 %v1777, 0.0
  %v1813 = vmax.f32 %v987, 0.0
  %v1814 = vmax.f32 %v1053, 0.0
  %v1815 = vmax.f32 %v1119, 0.0
  %v1816 = vmax.f32 %v1185, 0.0
  %v1817 = vmax.f32 %v1251, 0.0
  %v1818 = vmax.f32 %v1317, 0.0
  %v1819 = vmax.f32 %v1383, 0.0
  %v1820 = vmax.f32 %v1449, 0.0
  %v1821 = vmax.f32 %v1515, 0.0
  %v1822 = vmax.f32 %v1581, 0.0
  %v1823 = vmax.f32 %v1647, 0.0
  %v1824 = vmax.f32 %v1713, 0.0
  %v1825 = vmax.f32 %v1779, 0.0
  %v1826 = vmax.f32 %v990, 0.0
  %v1827 = vmax.f32 %v1056, 0.0
  %v1828 = vmax.f32 %v1122, 0.0
  %v1829 = vmax.f32 %v1188, 0.0
  %v1830 = vmax.f32 %v1254, 0.0
  %v1831 = vmax.f32 %v1320, 0.0
  %v1832 = vmax.f32 %v1386, 0.0
  %v1833 = vmax.f32 %v1452, 0.0
  %v1834 = vmax.f32 %v1518, 0.0
  %v1835 = vmax.f32 %v1584, 0.0
  %v1836 = vmax.f32 %v1650, 0.0
  %v1837 = vmax.f32 %v1716, 0.0
  %v1838 = vmax.f32 %v1782, 0.0
  %v1839 = vmax.f32 %v992, 0.0
  %v1840 = vmax.f32 %v1058, 0.0
  %v1841 = vmax.f32 %v1124, 0.0
  %v1842 = vmax.f32 %v1190, 0.0
  %v1843 = vmax.f32 %v1256, 0.0
  %v1844 = vmax.f32 %v1322, 0.0
  %v1845 = vmax.f32 %v1388, 0.0
  %v1846 = vmax.f32 %v1454, 0.0
  %v1847 = vmax.f32 %v1520, 0.0
  %v1848 = vmax.f32 %v1586, 0.0
  %v1849 = vmax.f32 %v1652, 0.0
  %v1850 = vmax.f32 %v1718, 0.0
  %v1851 = vmax.f32 %v1784, 0.0
  %v1852 = vmax.f32 %v995, 0.0
  %v1853 = vmax.f32 %v1061, 0.0
  %v1854 = vmax.f32 %v1127, 0.0
  %v1855 = vmax.f32 %v1193, 0.0
  %v1856 = vmax.f32 %v1259, 0.0
  %v1857 = vmax.f32 %v1325, 0.0
  %v1858 = vmax.f32 %v1391, 0.0
  %v1859 = vmax.f32 %v1457, 0.0
  %v1860 = vmax.f32 %v1523, 0.0
  %v1861 = vmax.f32 %v1589, 0.0
  %v1862 = vmax.f32 %v1655, 0.0
  %v1863 = vmax.f32 %v1721, 0.0
  %v1864 = vmax.f32 %v1787, 0.0
  %v1865 = vmax.f32 %v997, 0.0
  %v1866 = vmax.f32 %v1063, 0.0
  %v1867 = vmax.f32 %v1129, 0.0
  %v1868 = vmax.f32 %v1195, 0.0
  %v1869 = vmax.f32 %v1261, 0.0
  %v1870 = vmax.f32 %v1327, 0.0
  %v1871 = vmax.f32 %v1393, 0.0
  %v1872 = vmax.f32 %v1459, 0.0
  %v1873 = vmax.f32 %v1525, 0.0
  %v1874 = vmax.f32 %v1591, 0.0
  %v1875 = vmax.f32 %v1657, 0.0
  %v1876 = vmax.f32 %v1723, 0.0
  %v1877 = vmax.f32 %v1789, 0.0
  %v1878 = vmax.f32 %v1000, 0.0
  %v1879 = vmax.f32 %v1066, 0.0
  %v1880 = vmax.f32 %v1132, 0.0
  %v1881 = vmax.f32 %v1198, 0.0
  %v1882 = vmax.f32 %v1264, 0.0
  %v1883 = vmax.f32 %v1330, 0.0
  %v1884 = vmax.f32 %v1396, 0.0
  %v1885 = vmax.f32 %v1462, 0.0
  %v1886 = vmax.f32 %v1528, 0.0
  %v1887 = vmax.f32 %v1594, 0.0
  %v1888 = vmax.f32 %v1660, 0.0
  %v1889 = vmax.f32 %v1726, 0.0
  %v1890 = vmax.f32 %v1792, 0.0
  %v1891 = vmax.f32 %v1002, 0.0
  %v1892 = vmax.f32 %v1068, 0.0
  %v1893 = vmax.f32 %v1134, 0.0
  %v1894 = vmax.f32 %v1200, 0.0
  %v1895 = vmax.f32 %v1266, 0.0
  %v1896 = vmax.f32 %v1332, 0.0
  %v1897 = vmax.f32 %v1398, 0.0
  %v1898 = vmax.f32 %v1464, 0.0
  %v1899 = vmax.f32 %v1530, 0.0
  %v1900 = vmax.f32 %v1596, 0.0
  %v1901 = vmax.f32 %v1662, 0.0
  %v1902 = vmax.f32 %v1728, 0.0
  %v1903 = vmax.f32 %v1794, 0.0
  %v1904 = vmax.f32 %v1005, 0.0
  %v1905 = vmax.f32 %v1071, 0.0
  %v1906 = vmax.f32 %v1137, 0.0
  %v1907 = vmax.f32 %v1203, 0.0
  %v1908 = vmax.f32 %v1269, 0.0
  %v1909 = vmax.f32 %v1335, 0.0
  %v1910 = vmax.f32 %v1401, 0.0
  %v1911 = vmax.f32 %v1467, 0.0
  %v1912 = vmax.f32 %v1533, 0.0
  %v1913 = vmax.f32 %v1599, 0.0
  %v1914 = vmax.f32 %v1665, 0.0
  %v1915 = vmax.f32 %v1731, 0.0
  %v1916 = vmax.f32 %v1797, 0.0
  %v1917 = vld [vmem:[%s3] sm:$0xff]
  %v1918 = vld [vmem:[%s3 + $0x8] sm:$0xff]
  %v1919 = vld [vmem:[%s3 + $0x10] sm:$0xff]
  %v1920 = vld [vmem:[%s3 + $0x18] sm:$0xff]
  %v1921 = vld [vmem:[%s3 + $0x20] sm:$0xff]
  %v1922 = vld [vmem:[%s3 + $0x28] sm:$0xff]
  %v1923 = vld [vmem:[%s3 + $0x30] sm:$0xff]
  %v1924 = vld [vmem:[%s3 + $0x38] sm:$0xff]
  %v1925 = vld [vmem:[%s3 + $0x40] sm:$0xff]
  %v1926 = vld [vmem:[%s3 + $0x48] sm:$0xff]
  %v1927 = vld [vmem:[%s3 + $0x50] sm:$0xff]
  %v1928 = vld [vmem:[%s3 + $0x58] sm:$0xff]
  %v1929 = vld [vmem:[%s3 + $0x60] sm:$0xff]
  %v1930 = vld [vmem:[%s3 + $0x68] sm:$0x1]
  %v1931 = vld [vmem:[%s3 + $0x70] sm:$0x1]
  %v1932 = vld [vmem:[%s3 + $0x78] sm:$0x1]
  %v1933 = vld [vmem:[%s3 + $0x80] sm:$0x1]
  %v1934 = vld [vmem:[%s3 + $0x88] sm:$0x1]
  %v1935 = vld [vmem:[%s3 + $0x90] sm:$0x1]
  %v1936 = vld [vmem:[%s3 + $0x98] sm:$0x1]
  %v1937 = vld [vmem:[%s3 + $0xa0] sm:$0x1]
  %v1938 = vld [vmem:[%s3 + $0xa8] sm:$0x1]
  %v1939 = vld [vmem:[%s3 + $0xb0] sm:$0x1]
  %v1940 = vld [vmem:[%s3 + $0xb8] sm:$0x1]
  %v1941 = vld [vmem:[%s3 + $0xc0] sm:$0x1]
  %v1942 = vld [vmem:[%s3 + $0xc8] sm:$0x1]
  %v1943 = vperm.slane %v1917, 0
  %v1944 = vperm.slane %v1918, 0
  %v1945 = vperm.slane %v1919, 0
  %v1946 = vperm.slane %v1920, 0
  %v1947 = vperm.slane %v1921, 0
  %v1948 = vperm.slane %v1922, 0
  %v1949 = vperm.slane %v1923, 0
  %v1950 = vperm.slane %v1924, 0
  %v1951 = vperm.slane %v1925, 0
  %v1952 = vperm.slane %v1926, 0
  %v1953 = vperm.slane %v1927, 0
  %v1954 = vperm.slane %v1928, 0
  %v1955 = vperm.slane %v1929, 0
  %v1956 = vmul.f32 %v1800, %v1943
  %v1957 = vmul.f32 %v1801, %v1944
  %v1958 = vmul.f32 %v1802, %v1945
  %v1959 = vmul.f32 %v1803, %v1946
  %v1960 = vmul.f32 %v1804, %v1947
  %v1961 = vmul.f32 %v1805, %v1948
  %v1962 = vmul.f32 %v1806, %v1949
  %v1963 = vmul.f32 %v1807, %v1950
  %v1964 = vmul.f32 %v1808, %v1951
  %v1965 = vmul.f32 %v1809, %v1952
  %v1966 = vmul.f32 %v1810, %v1953
  %v1967 = vmul.f32 %v1811, %v1954
  %v1968 = vmul.f32 %v1812, %v1955
  %v1969 = vperm.slane %v1917, 1
  %v1970 = vperm.slane %v1918, 1
  %v1971 = vperm.slane %v1919, 1
  %v1972 = vperm.slane %v1920, 1
  %v1973 = vperm.slane %v1921, 1
  %v1974 = vperm.slane %v1922, 1
  %v1975 = vperm.slane %v1923, 1
  %v1976 = vperm.slane %v1924, 1
  %v1977 = vperm.slane %v1925, 1
  %v1978 = vperm.slane %v1926, 1
  %v1979 = vperm.slane %v1927, 1
  %v1980 = vperm.slane %v1928, 1
  %v1981 = vperm.slane %v1929, 1
  %v1982 = vmul.f32 %v1813, %v1969
  %v1983 = vmul.f32 %v1814, %v1970
  %v1984 = vmul.f32 %v1815, %v1971
  %v1985 = vmul.f32 %v1816, %v1972
  %v1986 = vmul.f32 %v1817, %v1973
  %v1987 = vmul.f32 %v1818, %v1974
  %v1988 = vmul.f32 %v1819, %v1975
  %v1989 = vmul.f32 %v1820, %v1976
  %v1990 = vmul.f32 %v1821, %v1977
  %v1991 = vmul.f32 %v1822, %v1978
  %v1992 = vmul.f32 %v1823, %v1979
  %v1993 = vmul.f32 %v1824, %v1980
  %v1994 = vmul.f32 %v1825, %v1981
  %v1995 = vmax.f32 %v1956, %v1982
  %v1996 = vmax.f32 %v1957, %v1983
  %v1997 = vmax.f32 %v1958, %v1984
  %v1998 = vmax.f32 %v1959, %v1985
  %v1999 = vmax.f32 %v1960, %v1986
  %v2000 = vmax.f32 %v1961, %v1987
  %v2001 = vmax.f32 %v1962, %v1988
  %v2002 = vmax.f32 %v1963, %v1989
  %v2003 = vmax.f32 %v1964, %v1990
  %v2004 = vmax.f32 %v1965, %v1991
  %v2005 = vmax.f32 %v1966, %v1992
  %v2006 = vmax.f32 %v1967, %v1993
  %v2007 = vmax.f32 %v1968, %v1994
  %v2008 = vperm.slane %v1917, 2
  %v2009 = vperm.slane %v1918, 2
  %v2010 = vperm.slane %v1919, 2
  %v2011 = vperm.slane %v1920, 2
  %v2012 = vperm.slane %v1921, 2
  %v2013 = vperm.slane %v1922, 2
  %v2014 = vperm.slane %v1923, 2
  %v2015 = vperm.slane %v1924, 2
  %v2016 = vperm.slane %v1925, 2
  %v2017 = vperm.slane %v1926, 2
  %v2018 = vperm.slane %v1927, 2
  %v2019 = vperm.slane %v1928, 2
  %v2020 = vperm.slane %v1929, 2
  %v2021 = vmul.f32 %v1826, %v2008
  %v2022 = vmul.f32 %v1827, %v2009
  %v2023 = vmul.f32 %v1828, %v2010
  %v2024 = vmul.f32 %v1829, %v2011
  %v2025 = vmul.f32 %v1830, %v2012
  %v2026 = vmul.f32 %v1831, %v2013
  %v2027 = vmul.f32 %v1832, %v2014
  %v2028 = vmul.f32 %v1833, %v2015
  %v2029 = vmul.f32 %v1834, %v2016
  %v2030 = vmul.f32 %v1835, %v2017
  %v2031 = vmul.f32 %v1836, %v2018
  %v2032 = vmul.f32 %v1837, %v2019
  %v2033 = vmul.f32 %v1838, %v2020
  %v2034 = vmax.f32 %v1995, %v2021
  %v2035 = vmax.f32 %v1996, %v2022
  %v2036 = vmax.f32 %v1997, %v2023
  %v2037 = vmax.f32 %v1998, %v2024
  %v2038 = vmax.f32 %v1999, %v2025
  %v2039 = vmax.f32 %v2000, %v2026
  %v2040 = vmax.f32 %v2001, %v2027
  %v2041 = vmax.f32 %v2002, %v2028
  %v2042 = vmax.f32 %v2003, %v2029
  %v2043 = vmax.f32 %v2004, %v2030
  %v2044 = vmax.f32 %v2005, %v2031
  %v2045 = vmax.f32 %v2006, %v2032
  %v2046 = vmax.f32 %v2007, %v2033
  %v2047 = vperm.slane %v1917, 3
  %v2048 = vperm.slane %v1918, 3
  %v2049 = vperm.slane %v1919, 3
  %v2050 = vperm.slane %v1920, 3
  %v2051 = vperm.slane %v1921, 3
  %v2052 = vperm.slane %v1922, 3
  %v2053 = vperm.slane %v1923, 3
  %v2054 = vperm.slane %v1924, 3
  %v2055 = vperm.slane %v1925, 3
  %v2056 = vperm.slane %v1926, 3
  %v2057 = vperm.slane %v1927, 3
  %v2058 = vperm.slane %v1928, 3
  %v2059 = vperm.slane %v1929, 3
  %v2060 = vmul.f32 %v1839, %v2047
  %v2061 = vmul.f32 %v1840, %v2048
  %v2062 = vmul.f32 %v1841, %v2049
  %v2063 = vmul.f32 %v1842, %v2050
  %v2064 = vmul.f32 %v1843, %v2051
  %v2065 = vmul.f32 %v1844, %v2052
  %v2066 = vmul.f32 %v1845, %v2053
  %v2067 = vmul.f32 %v1846, %v2054
  %v2068 = vmul.f32 %v1847, %v2055
  %v2069 = vmul.f32 %v1848, %v2056
  %v2070 = vmul.f32 %v1849, %v2057
  %v2071 = vmul.f32 %v1850, %v2058
  %v2072 = vmul.f32 %v1851, %v2059
  %v2073 = vmax.f32 %v2034, %v2060
  %v2074 = vmax.f32 %v2035, %v2061
  %v2075 = vmax.f32 %v2036, %v2062
  %v2076 = vmax.f32 %v2037, %v2063
  %v2077 = vmax.f32 %v2038, %v2064
  %v2078 = vmax.f32 %v2039, %v2065
  %v2079 = vmax.f32 %v2040, %v2066
  %v2080 = vmax.f32 %v2041, %v2067
  %v2081 = vmax.f32 %v2042, %v2068
  %v2082 = vmax.f32 %v2043, %v2069
  %v2083 = vmax.f32 %v2044, %v2070
  %v2084 = vmax.f32 %v2045, %v2071
  %v2085 = vmax.f32 %v2046, %v2072
  %v2086 = vperm.slane %v1917, 4
  %v2087 = vperm.slane %v1918, 4
  %v2088 = vperm.slane %v1919, 4
  %v2089 = vperm.slane %v1920, 4
  %v2090 = vperm.slane %v1921, 4
  %v2091 = vperm.slane %v1922, 4
  %v2092 = vperm.slane %v1923, 4
  %v2093 = vperm.slane %v1924, 4
  %v2094 = vperm.slane %v1925, 4
  %v2095 = vperm.slane %v1926, 4
  %v2096 = vperm.slane %v1927, 4
  %v2097 = vperm.slane %v1928, 4
  %v2098 = vperm.slane %v1929, 4
  %v2099 = vmul.f32 %v1852, %v2086
  %v2100 = vmul.f32 %v1853, %v2087
  %v2101 = vmul.f32 %v1854, %v2088
  %v2102 = vmul.f32 %v1855, %v2089
  %v2103 = vmul.f32 %v1856, %v2090
  %v2104 = vmul.f32 %v1857, %v2091
  %v2105 = vmul.f32 %v1858, %v2092
  %v2106 = vmul.f32 %v1859, %v2093
  %v2107 = vmul.f32 %v1860, %v2094
  %v2108 = vmul.f32 %v1861, %v2095
  %v2109 = vmul.f32 %v1862, %v2096
  %v2110 = vmul.f32 %v1863, %v2097
  %v2111 = vmul.f32 %v1864, %v2098
  %v2112 = vmax.f32 %v2073, %v2099
  %v2113 = vmax.f32 %v2074, %v2100
  %v2114 = vmax.f32 %v2075, %v2101
  %v2115 = vmax.f32 %v2076, %v2102
  %v2116 = vmax.f32 %v2077, %v2103
  %v2117 = vmax.f32 %v2078, %v2104
  %v2118 = vmax.f32 %v2079, %v2105
  %v2119 = vmax.f32 %v2080, %v2106
  %v2120 = vmax.f32 %v2081, %v2107
  %v2121 = vmax.f32 %v2082, %v2108
  %v2122 = vmax.f32 %v2083, %v2109
  %v2123 = vmax.f32 %v2084, %v2110
  %v2124 = vmax.f32 %v2085, %v2111
  %v2125 = vperm.slane %v1917, 5
  %v2126 = vperm.slane %v1918, 5
  %v2127 = vperm.slane %v1919, 5
  %v2128 = vperm.slane %v1920, 5
  %v2129 = vperm.slane %v1921, 5
  %v2130 = vperm.slane %v1922, 5
  %v2131 = vperm.slane %v1923, 5
  %v2132 = vperm.slane %v1924, 5
  %v2133 = vperm.slane %v1925, 5
  %v2134 = vperm.slane %v1926, 5
  %v2135 = vperm.slane %v1927, 5
  %v2136 = vperm.slane %v1928, 5
  %v2137 = vperm.slane %v1929, 5
  %v2138 = vmul.f32 %v1865, %v2125
  %v2139 = vmul.f32 %v1866, %v2126
  %v2140 = vmul.f32 %v1867, %v2127
  %v2141 = vmul.f32 %v1868, %v2128
  %v2142 = vmul.f32 %v1869, %v2129
  %v2143 = vmul.f32 %v1870, %v2130
  %v2144 = vmul.f32 %v1871, %v2131
  %v2145 = vmul.f32 %v1872, %v2132
  %v2146 = vmul.f32 %v1873, %v2133
  %v2147 = vmul.f32 %v1874, %v2134
  %v2148 = vmul.f32 %v1875, %v2135
  %v2149 = vmul.f32 %v1876, %v2136
  %v2150 = vmul.f32 %v1877, %v2137
  %v2151 = vmax.f32 %v2112, %v2138
  %v2152 = vmax.f32 %v2113, %v2139
  %v2153 = vmax.f32 %v2114, %v2140
  %v2154 = vmax.f32 %v2115, %v2141
  %v2155 = vmax.f32 %v2116, %v2142
  %v2156 = vmax.f32 %v2117, %v2143
  %v2157 = vmax.f32 %v2118, %v2144
  %v2158 = vmax.f32 %v2119, %v2145
  %v2159 = vmax.f32 %v2120, %v2146
  %v2160 = vmax.f32 %v2121, %v2147
  %v2161 = vmax.f32 %v2122, %v2148
  %v2162 = vmax.f32 %v2123, %v2149
  %v2163 = vmax.f32 %v2124, %v2150
  %v2164 = vperm.slane %v1917, 6
  %v2165 = vperm.slane %v1918, 6
  %v2166 = vperm.slane %v1919, 6
  %v2167 = vperm.slane %v1920, 6
  %v2168 = vperm.slane %v1921, 6
  %v2169 = vperm.slane %v1922, 6
  %v2170 = vperm.slane %v1923, 6
  %v2171 = vperm.slane %v1924, 6
  %v2172 = vperm.slane %v1925, 6
  %v2173 = vperm.slane %v1926, 6
  %v2174 = vperm.slane %v1927, 6
  %v2175 = vperm.slane %v1928, 6
  %v2176 = vperm.slane %v1929, 6
  %v2177 = vmul.f32 %v1878, %v2164
  %v2178 = vmul.f32 %v1879, %v2165
  %v2179 = vmul.f32 %v1880, %v2166
  %v2180 = vmul.f32 %v1881, %v2167
  %v2181 = vmul.f32 %v1882, %v2168
  %v2182 = vmul.f32 %v1883, %v2169
  %v2183 = vmul.f32 %v1884, %v2170
  %v2184 = vmul.f32 %v1885, %v2171
  %v2185 = vmul.f32 %v1886, %v2172
  %v2186 = vmul.f32 %v1887, %v2173
  %v2187 = vmul.f32 %v1888, %v2174
  %v2188 = vmul.f32 %v1889, %v2175
  %v2189 = vmul.f32 %v1890, %v2176
  %v2190 = vmax.f32 %v2151, %v2177
  %v2191 = vmax.f32 %v2152, %v2178
  %v2192 = vmax.f32 %v2153, %v2179
  %v2193 = vmax.f32 %v2154, %v2180
  %v2194 = vmax.f32 %v2155, %v2181
  %v2195 = vmax.f32 %v2156, %v2182
  %v2196 = vmax.f32 %v2157, %v2183
  %v2197 = vmax.f32 %v2158, %v2184
  %v2198 = vmax.f32 %v2159, %v2185
  %v2199 = vmax.f32 %v2160, %v2186
  %v2200 = vmax.f32 %v2161, %v2187
  %v2201 = vmax.f32 %v2162, %v2188
  %v2202 = vmax.f32 %v2163, %v2189
  %v2203 = vperm.slane %v1917, 7
  %v2204 = vperm.slane %v1918, 7
  %v2205 = vperm.slane %v1919, 7
  %v2206 = vperm.slane %v1920, 7
  %v2207 = vperm.slane %v1921, 7
  %v2208 = vperm.slane %v1922, 7
  %v2209 = vperm.slane %v1923, 7
  %v2210 = vperm.slane %v1924, 7
  %v2211 = vperm.slane %v1925, 7
  %v2212 = vperm.slane %v1926, 7
  %v2213 = vperm.slane %v1927, 7
  %v2214 = vperm.slane %v1928, 7
  %v2215 = vperm.slane %v1929, 7
  %v2216 = vmul.f32 %v1891, %v2203
  %v2217 = vmul.f32 %v1892, %v2204
  %v2218 = vmul.f32 %v1893, %v2205
  %v2219 = vmul.f32 %v1894, %v2206
  %v2220 = vmul.f32 %v1895, %v2207
  %v2221 = vmul.f32 %v1896, %v2208
  %v2222 = vmul.f32 %v1897, %v2209
  %v2223 = vmul.f32 %v1898, %v2210
  %v2224 = vmul.f32 %v1899, %v2211
  %v2225 = vmul.f32 %v1900, %v2212
  %v2226 = vmul.f32 %v1901, %v2213
  %v2227 = vmul.f32 %v1902, %v2214
  %v2228 = vmul.f32 %v1903, %v2215
  %v2229 = vmax.f32 %v2190, %v2216
  %v2230 = vmax.f32 %v2191, %v2217
  %v2231 = vmax.f32 %v2192, %v2218
  %v2232 = vmax.f32 %v2193, %v2219
  %v2233 = vmax.f32 %v2194, %v2220
  %v2234 = vmax.f32 %v2195, %v2221
  %v2235 = vmax.f32 %v2196, %v2222
  %v2236 = vmax.f32 %v2197, %v2223
  %v2237 = vmax.f32 %v2198, %v2224
  %v2238 = vmax.f32 %v2199, %v2225
  %v2239 = vmax.f32 %v2200, %v2226
  %v2240 = vmax.f32 %v2201, %v2227
  %v2241 = vmax.f32 %v2202, %v2228
  %v2242 = vperm.slane %v1930, 0
  %v2243 = vperm.slane %v1931, 0
  %v2244 = vperm.slane %v1932, 0
  %v2245 = vperm.slane %v1933, 0
  %v2246 = vperm.slane %v1934, 0
  %v2247 = vperm.slane %v1935, 0
  %v2248 = vperm.slane %v1936, 0
  %v2249 = vperm.slane %v1937, 0
  %v2250 = vperm.slane %v1938, 0
  %v2251 = vperm.slane %v1939, 0
  %v2252 = vperm.slane %v1940, 0
  %v2253 = vperm.slane %v1941, 0
  %v2254 = vperm.slane %v1942, 0
  %v2255 = vmul.f32 %v1904, %v2242
  %v2256 = vmul.f32 %v1905, %v2243
  %v2257 = vmul.f32 %v1906, %v2244
  %v2258 = vmul.f32 %v1907, %v2245
  %v2259 = vmul.f32 %v1908, %v2246
  %v2260 = vmul.f32 %v1909, %v2247
  %v2261 = vmul.f32 %v1910, %v2248
  %v2262 = vmul.f32 %v1911, %v2249
  %v2263 = vmul.f32 %v1912, %v2250
  %v2264 = vmul.f32 %v1913, %v2251
  %v2265 = vmul.f32 %v1914, %v2252
  %v2266 = vmul.f32 %v1915, %v2253
  %v2267 = vmul.f32 %v1916, %v2254
  %v2268 = vmax.f32 %v2229, %v2255
  %v2269 = vmax.f32 %v2230, %v2256
  %v2270 = vmax.f32 %v2231, %v2257
  %v2271 = vmax.f32 %v2232, %v2258
  %v2272 = vmax.f32 %v2233, %v2259
  %v2273 = vmax.f32 %v2234, %v2260
  %v2274 = vmax.f32 %v2235, %v2261
  %v2275 = vmax.f32 %v2236, %v2262
  %v2276 = vmax.f32 %v2237, %v2263
  %v2277 = vmax.f32 %v2238, %v2264
  %v2278 = vmax.f32 %v2239, %v2265
  %v2279 = vmax.f32 %v2240, %v2266
  %v2280 = vmax.f32 %v2241, %v2267
  %v2281 = vpack.c.bf16 %v2269, %v2268
  %v2282 = vpack.c.bf16 %v2271, %v2270
  %v2283 = vpack.c.bf16 %v2273, %v2272
  %v2284 = vpack.c.bf16 %v2275, %v2274
  %v2285 = vpack.c.bf16 %v2277, %v2276
  %v2286 = vpack.c.bf16 %v2279, %v2278
  %v2287 = vpack.c.bf16 %v2280, %v2280
  %2288 = vst [vmem:[%s4] sm:$0xff] %v2281
  %2289 = vst [vmem:[%s4 + $0x8] sm:$0xff] %v2282
  %2290 = vst [vmem:[%s4 + $0x10] sm:$0xff] %v2283
  %2291 = vst [vmem:[%s4 + $0x18] sm:$0xff] %v2284
  %2292 = vst [vmem:[%s4 + $0x20] sm:$0xff] %v2285
  %2293 = vst [vmem:[%s4 + $0x28] sm:$0xff] %v2286
  %2294 = vst [vmem:[%s4 + $0x30] sm:$0xf] %v2287
  // Predicated region
  $region18: #{_lambda_.5} parent=0 // pred_check
    _
  $region19: #{_lambda_.5} parent=0 // pred_check_branch
    %2296 = sbr.rel (0) target = $region21
  $region20: #{_lambda_.5} parent=0 // pred_region
    _
  $region21: #{_lambda_.5} parent=0 // pred_fallthru
    _
  // Predicated region
  $region22: #{_lambda_.5} parent=0 // pred_check
    _
  $region23: #{_lambda_.5} parent=0 // pred_check_branch
    %2298 = sbr.rel (0) target = $region25
  $region24: #{_lambda_.5} parent=0 // pred_region
    _
  $region25: #{_lambda_.5} parent=0 // pred_fallthru
    _

// kernel: _lambda_.7
$region0: #{_lambda_.7}
  #allocation0 [shape = 'u32[]', space=smem, size = 0x4, offset = 0x4, fixed_abs, tag = 'smem constant byte address 0x4 - core index']
  #allocation1 [shape = 'u32[72,128]{1,0:T(1,128)}', space=vmem, size = 0x9000, scoped, tag = 'internal scratch']
  #allocation2 [shape = 'f32[6,542]{1,0:T(8,128)}', space=vmem, size = 0x5000, scoped, tag = 'scratch operand']
  %s0 = inlined_call_operand.vmem [shape: bf16[24,512], index: 0, kind: input, shape index: {}]
  %s1 = inlined_call_operand.vmem [shape: bf16[6,24], index: 1, kind: input, shape index: {}]
  %s2 = inlined_call_operand.vmem [shape: f32[6,1], index: 2, kind: input, shape index: {}]
  %s3 = inlined_call_operand.vmem [shape: f32[6,9], index: 3, kind: input, shape index: {}]
  %s4 = inlined_call_operand.vmem [shape: f32[6,1], index: 4, kind: input, shape index: {}]
  %s5 = inlined_call_operand.vmem [shape: bf16[24,6], index: 5, kind: input, shape index: {}]
  %s6 = inlined_call_operand.vmem [shape: f32[24,1], index: 6, kind: input, shape index: {}]
  %s7 = inlined_call_operand.vmem [shape: f32[9,512], index: 7, kind: input, shape index: {}]
  %s8 = inlined_call_operand.vmem [shape: bf16[24,512], index: 8, kind: output, shape index: {}]
  %s9 = sld [smem:[#allocation0]]
  $region42: #{_lambda_.7} parent=0
    _
  %s11 = ssub.s32 1, %s9
  %s12 = scalar_select 0, %s11, %s9
  // Predicated region
  $region2: #{_lambda_.7} parent=0 // pred_check
    _
  $region3: #{_lambda_.7} parent=0 // pred_check_branch
    %14 = sbr.rel (0) target = $region5
  $region4: #{_lambda_.7} parent=0 // pred_region
    _
  $region5: #{_lambda_.7} parent=0 // pred_fallthru
    _
  // Predicated region
  $region6: #{_lambda_.7} parent=0 // pred_check
    _
  $region7: #{_lambda_.7} parent=0 // pred_check_branch
    %16 = sbr.rel (0) target = $region9
  $region8: #{_lambda_.7} parent=0 // pred_region
    _
  $region9: #{_lambda_.7} parent=0 // pred_fallthru
    _
  // Predicated region
  $region10: #{_lambda_.7} parent=0 // pred_check
    _
  $region11: #{_lambda_.7} parent=0 // pred_check_branch
    %18 = sbr.rel (0) target = $region13
  $region12: #{_lambda_.7} parent=0 // pred_region
    _
  $region13: #{_lambda_.7} parent=0 // pred_fallthru
    _
  // Predicated region
  $region14: #{_lambda_.7} parent=0 // pred_check
    _
  $region15: #{_lambda_.7} parent=0 // pred_check_branch
    %20 = sbr.rel (0) target = $region17
  $region16: #{_lambda_.7} parent=0 // pred_region
    _
  $region17: #{_lambda_.7} parent=0 // pred_fallthru
    _
  // Predicated region
  $region18: #{_lambda_.7} parent=0 // pred_check
    _
  $region19: #{_lambda_.7} parent=0 // pred_check_branch
    %22 = sbr.rel (0) target = $region21
  $region20: #{_lambda_.7} parent=0 // pred_region
    _
  $region21: #{_lambda_.7} parent=0 // pred_fallthru
    _
  // Predicated region
  $region22: #{_lambda_.7} parent=0 // pred_check
    _
  $region23: #{_lambda_.7} parent=0 // pred_check_branch
    %24 = sbr.rel (0) target = $region25
  $region24: #{_lambda_.7} parent=0 // pred_region
    _
  $region25: #{_lambda_.7} parent=0 // pred_fallthru
    _
  // Predicated region
  $region26: #{_lambda_.7} parent=0 // pred_check
    _
  $region27: #{_lambda_.7} parent=0 // pred_check_branch
    %26 = sbr.rel (0) target = $region29
  $region28: #{_lambda_.7} parent=0 // pred_region
    _
  $region29: #{_lambda_.7} parent=0 // pred_fallthru
    _
  // Predicated region
  $region30: #{_lambda_.7} parent=0 // pred_check
    _
  $region31: #{_lambda_.7} parent=0 // pred_check_branch
    %28 = sbr.rel (0) target = $region33
  $region32: #{_lambda_.7} parent=0 // pred_region
    _
  $region33: #{_lambda_.7} parent=0 // pred_fallthru
    _
  %v30 = vld [vmem:[%s0] sm:$0xff]
  %v31 = vld [vmem:[%s0 + $0x8] sm:$0xff]
  %v32 = vld [vmem:[%s0 + $0x10] sm:$0xff]
  %v33 = vld [vmem:[%s0 + $0x18] sm:$0xff]
  %v34 = vld [vmem:[%s0 + $0x20] sm:$0xff]
  %v35 = vld [vmem:[%s0 + $0x28] sm:$0xff]
  %v36 = vld [vmem:[%s1] sm:$0x7]
  %v37 = vld [vmem:[%s2] sm:$0x3f]
  %39 = vset.pattern.permute.xlu0 0
  %40 = vperm.xlu0 %39, %v37
  %v41 = vpop.permute.xlu0 %40
  %v49 = vunpack.c.l.b16 %v30
  %v50 = vunpack.c.h.b16 %v30
  %v51 = vunpack.c.l.b16 %v31
  %v52 = vunpack.c.h.b16 %v31
  %v53 = vunpack.c.l.b16 %v32
  %v54 = vunpack.c.h.b16 %v32
  %v55 = vunpack.c.l.b16 %v33
  %v56 = vunpack.c.h.b16 %v33
  %v57 = vunpack.c.l.b16 %v34
  %v58 = vunpack.c.h.b16 %v34
  %v59 = vunpack.c.l.b16 %v35
  %v60 = vunpack.c.h.b16 %v35
  %v61 = vpack.c.b16 %v53, %v49
  %v62 = vpack.c.b16 %v54, %v50
  %v63 = vpack.c.b16 %v55, %v51
  %v64 = vpack.c.b16 %v56, %v52
  %v65 = vpack.c.b16 %v57, %v57
  %v66 = vpack.c.b16 %v58, %v58
  %v67 = vpack.c.b16 %v59, %v59
  %v68 = vpack.c.b16 %v60, %v60
  %vm73 = vcmask 195584
  %v75 = vsel %vm73, %v36, 0
  %vm77 = vcmask 1043456
  %v79 = vsel %vm77, %v65, 0
  %v82 = vsel %vm77, %v66, 0
  %v85 = vsel %vm77, %v67, 0
  %v88 = vsel %vm77, %v68, 0
  %90 = vmatpush.bf16.msra.mxu0 0
  %91 = vmatpush.bf16.msra.mxu0 0
  %92 = vmatpush.bf16.msra.mxu0 0
  %93 = vmatpush.bf16.msra.mxu0 0
  %94 = vmatpush.bf16.msra.mxu0 0
  %95 = vmatpush.bf16.msra.mxu0 0
  %96 = vmatpush.bf16.msra.mxu0 %v79
  %97 = vmatpush.bf16.msra.mxu0 %v61
  %98 = vmatmul.bf16.gmra.mxu0 %v75
  %v99 = vpop.f32.mrf.mxu0
  %v100 = vadd.f32 %v41, %v99
  %v101 = vpop.f32.mrf.mxu0
  %102 = vdwg.mxu0
  %103 = vmatpush.bf16.msra.mxu0 0
  %104 = vmatpush.bf16.msra.mxu0 0
  %105 = vmatpush.bf16.msra.mxu0 0
  %106 = vmatpush.bf16.msra.mxu0 0
  %107 = vmatpush.bf16.msra.mxu0 0
  %108 = vmatpush.bf16.msra.mxu0 0
  %109 = vmatpush.bf16.msra.mxu0 %v82
  %110 = vmatpush.bf16.msra.mxu0 %v62
  %111 = vmatmul.bf16.gmra.mxu0 %v75
  %v112 = vpop.f32.mrf.mxu0
  %v113 = vadd.f32 %v41, %v112
  %v114 = vpop.f32.mrf.mxu0
  %115 = vdwg.mxu0
  %116 = vmatpush.bf16.msra.mxu0 0
  %117 = vmatpush.bf16.msra.mxu0 0
  %118 = vmatpush.bf16.msra.mxu0 0
  %119 = vmatpush.bf16.msra.mxu0 0
  %120 = vmatpush.bf16.msra.mxu0 0
  %121 = vmatpush.bf16.msra.mxu0 0
  %122 = vmatpush.bf16.msra.mxu0 %v85
  %123 = vmatpush.bf16.msra.mxu0 %v63
  %124 = vmatmul.bf16.gmra.mxu0 %v75
  %v125 = vpop.f32.mrf.mxu0
  %v126 = vadd.f32 %v41, %v125
  %v127 = vpop.f32.mrf.mxu0
  %128 = vdwg.mxu0
  %129 = vmatpush.bf16.msra.mxu0 0
  %130 = vmatpush.bf16.msra.mxu0 0
  %131 = vmatpush.bf16.msra.mxu0 0
  %132 = vmatpush.bf16.msra.mxu0 0
  %133 = vmatpush.bf16.msra.mxu0 0
  %134 = vmatpush.bf16.msra.mxu0 0
  %135 = vmatpush.bf16.msra.mxu0 %v88
  %136 = vmatpush.bf16.msra.mxu0 %v64
  %137 = vmatmul.bf16.gmra.mxu0 %v75
  %v138 = vpop.f32.mrf.mxu0
  %v139 = vadd.f32 %v41, %v138
  %v140 = vpop.f32.mrf.mxu0
  %141 = vdwg.mxu0
  %v142 = vmax.f32 %v100, 0.0
  %v143 = vmax.f32 %v113, 0.0
  %v144 = vmax.f32 %v126, 0.0
  %v145 = vmax.f32 %v139, 0.0
  %146 = vst [vmem:[#allocation2] sm:$0x3f] 0.0
  %147 = vst [vmem:[#allocation2 + $0x8] sm:$0x3f] 0.0
  %148 = vst [vmem:[#allocation2 + $0x10] sm:$0x3f] 0.0
  %149 = vst [vmem:[#allocation2 + $0x18] sm:$0x3f] 0.0
  %vm150 = vcmask 242688
  %151 = vst.msk [vmem:[#allocation2 + $0x20] sm:$0x3f] %vm150, 0.0
  %156 = vrot.lane.b32.xlu0 %v142, 15
  %v157 = vpop.permute.xlu0 %156
  %158 = vrot.lane.b32.xlu0 %v143, 15
  %v159 = vpop.permute.xlu0 %158
  %160 = vrot.lane.b32.xlu0 %v144, 15
  %v161 = vpop.permute.xlu0 %160
  %162 = vrot.lane.b32.xlu0 %v145, 15
  %v163 = vpop.permute.xlu0 %162
  %vm164 = vcmask 121856
  %v165 = vsel %vm164, %v157, %v159
  %v166 = vsel %vm164, %v159, %v161
  %v167 = vsel %vm164, %v161, %v163
  %vm173 = vcmask 1045624
  %174 = vst.msk [vmem:[#allocation2] sm:$0x3f] %vm173, %v157
  %175 = vst [vmem:[#allocation2 + $0x8] sm:$0x3f] %v165
  %176 = vst [vmem:[#allocation2 + $0x10] sm:$0x3f] %v166
  %177 = vst [vmem:[#allocation2 + $0x18] sm:$0x3f] %v167
  %vm178 = vcmask 119808
  %179 = vst.msk [vmem:[#allocation2 + $0x20] sm:$0x3f] %vm178, %v163
  %v180 = vld [vmem:[%s7] sm:$0xff]
  %v181 = vld [vmem:[%s7 + $0x8] sm:$0xff]
  %v182 = vld [vmem:[%s7 + $0x10] sm:$0xff]
  %v183 = vld [vmem:[%s7 + $0x18] sm:$0xff]
  %v184 = vld [vmem:[%s7 + $0x20] sm:$0x1]
  %v185 = vld [vmem:[%s7 + $0x28] sm:$0x1]
  %v186 = vld [vmem:[%s7 + $0x30] sm:$0x1]
  %v187 = vld [vmem:[%s7 + $0x38] sm:$0x1]
  %v188 = vld [vmem:[%s3] sm:$0x3f]
  %v189 = vld [vmem:[#allocation2] sm:$0x3f]
  %v190 = vld [vmem:[#allocation2 + $0x8] sm:$0x3f]
  %v191 = vld [vmem:[#allocation2 + $0x10] sm:$0x3f]
  %v192 = vld [vmem:[#allocation2 + $0x18] sm:$0x3f]
  %v193 = vperm.slane %v180, 0
  %v194 = vperm.slane %v181, 0
  %v195 = vperm.slane %v182, 0
  %v196 = vperm.slane %v183, 0
  %v197 = vmul.f32 %v189, %v193
  %v198 = vmul.f32 %v190, %v194
  %v199 = vmul.f32 %v191, %v195
  %v200 = vmul.f32 %v192, %v196
  %202 = vset.pattern.permute.xlu0 0
  %203 = vperm.xlu0 %202, %v188
  %v204 = vpop.permute.xlu0 %203
  %v206 = vmul.f32 %v197, %v204
  %v207 = vmul.f32 %v198, %v204
  %v208 = vmul.f32 %v199, %v204
  %v209 = vmul.f32 %v200, %v204
  %v210 = vld [vmem:[#allocation2] sm:$0x3f]
  %v211 = vld [vmem:[#allocation2 + $0x8] sm:$0x3f]
  %v212 = vld [vmem:[#allocation2 + $0x10] sm:$0x3f]
  %v213 = vld [vmem:[#allocation2 + $0x18] sm:$0x3f]
  %v214 = vld [vmem:[#allocation2 + $0x20] sm:$0x3f]
  %v215 = vperm.slane %v180, 1
  %v216 = vperm.slane %v181, 1
  %v217 = vperm.slane %v182, 1
  %v218 = vperm.slane %v183, 1
  %223 = vrot.lane.b32.xlu0 %v215, 1
  %v224 = vpop.permute.xlu0 %223
  %225 = vrot.lane.b32.xlu0 %v216, 1
  %v226 = vpop.permute.xlu0 %225
  %227 = vrot.lane.b32.xlu0 %v217, 1
  %v228 = vpop.permute.xlu0 %227
  %229 = vrot.lane.b32.xlu0 %v218, 1
  %v230 = vpop.permute.xlu0 %229
  %vm231 = vcmask 7168
  %v232 = vsel %vm231, %v224, %v226
  %v233 = vsel %vm231, %v226, %v228
  %v234 = vsel %vm231, %v228, %v230
  %v240 = vmul.f32 %v210, %v224
  %v241 = vmul.f32 %v211, %v232
  %v242 = vmul.f32 %v212, %v233
  %v243 = vmul.f32 %v213, %v234
  %v244 = vmul.f32 %v214, %v230
  %245 = vset.pattern.permute.xlu0 1
  %246 = vperm.xlu0 %245, %v188
  %v247 = vpop.permute.xlu0 %246
  %v249 = vmul.f32 %v240, %v247
  %v250 = vmul.f32 %v241, %v247
  %v251 = vmul.f32 %v242, %v247
  %v252 = vmul.f32 %v243, %v247
  %v253 = vmul.f32 %v244, %v247
  %259 = vrot.lane.b32.xlu0 %v249, 127
  %v260 = vpop.permute.xlu0 %259
  %261 = vrot.lane.b32.xlu0 %v250, 127
  %v262 = vpop.permute.xlu0 %261
  %263 = vrot.lane.b32.xlu0 %v251, 127
  %v264 = vpop.permute.xlu0 %263
  %265 = vrot.lane.b32.xlu0 %v252, 127
  %v266 = vpop.permute.xlu0 %265
  %267 = vrot.lane.b32.xlu0 %v253, 127
  %v268 = vpop.permute.xlu0 %267
  %vm269 = vcmask 1039360
  %v270 = vsel %vm269, %v260, %v262
  %v271 = vsel %vm269, %v262, %v264
  %v272 = vsel %vm269, %v264, %v266
  %v273 = vsel %vm269, %v266, %v268
  %v278 = vadd.f32 %v206, %v270
  %v279 = vadd.f32 %v207, %v271
  %v280 = vadd.f32 %v208, %v272
  %v281 = vadd.f32 %v209, %v273
  %v282 = vperm.slane %v180, 2
  %v283 = vperm.slane %v181, 2
  %v284 = vperm.slane %v182, 2
  %v285 = vperm.slane %v183, 2
  %290 = vrot.lane.b32.xlu0 %v282, 2
  %v291 = vpop.permute.xlu0 %290
  %292 = vrot.lane.b32.xlu0 %v283, 2
  %v293 = vpop.permute.xlu0 %292
  %294 = vrot.lane.b32.xlu0 %v284, 2
  %v295 = vpop.permute.xlu0 %294
  %296 = vrot.lane.b32.xlu0 %v285, 2
  %v297 = vpop.permute.xlu0 %296
  %vm298 = vcmask 15360
  %v299 = vsel %vm298, %v291, %v293
  %v300 = vsel %vm298, %v293, %v295
  %v301 = vsel %vm298, %v295, %v297
  %v307 = vmul.f32 %v210, %v291
  %v308 = vmul.f32 %v211, %v299
  %v309 = vmul.f32 %v212, %v300
  %v310 = vmul.f32 %v213, %v301
  %v311 = vmul.f32 %v214, %v297
  %312 = vset.pattern.permute.xlu0 2
  %313 = vperm.xlu0 %312, %v188
  %v314 = vpop.permute.xlu0 %313
  %v316 = vmul.f32 %v307, %v314
  %v317 = vmul.f32 %v308, %v314
  %v318 = vmul.f32 %v309, %v314
  %v319 = vmul.f32 %v310, %v314
  %v320 = vmul.f32 %v311, %v314
  %326 = vrot.lane.b32.xlu0 %v316, 126
  %v327 = vpop.permute.xlu0 %326
  %328 = vrot.lane.b32.xlu0 %v317, 126
  %v329 = vpop.permute.xlu0 %328
  %330 = vrot.lane.b32.xlu0 %v318, 126
  %v331 = vpop.permute.xlu0 %330
  %332 = vrot.lane.b32.xlu0 %v319, 126
  %v333 = vpop.permute.xlu0 %332
  %334 = vrot.lane.b32.xlu0 %v320, 126
  %v335 = vpop.permute.xlu0 %334
  %vm336 = vcmask 1031168
  %v337 = vsel %vm336, %v327, %v329
  %v338 = vsel %vm336, %v329, %v331
  %v339 = vsel %vm336, %v331, %v333
  %v340 = vsel %vm336, %v333, %v335
  %v345 = vadd.f32 %v278, %v337
  %v346 = vadd.f32 %v279, %v338
  %v347 = vadd.f32 %v280, %v339
  %v348 = vadd.f32 %v281, %v340
  %v349 = vperm.slane %v180, 3
  %v350 = vperm.slane %v181, 3
  %v351 = vperm.slane %v182, 3
  %v352 = vperm.slane %v183, 3
  %357 = vrot.lane.b32.xlu0 %v349, 14
  %v358 = vpop.permute.xlu0 %357
  %359 = vrot.lane.b32.xlu0 %v350, 14
  %v360 = vpop.permute.xlu0 %359
  %361 = vrot.lane.b32.xlu0 %v351, 14
  %v362 = vpop.permute.xlu0 %361
  %363 = vrot.lane.b32.xlu0 %v352, 14
  %v364 = vpop.permute.xlu0 %363
  %vm365 = vcmask 113664
  %v366 = vsel %vm365, %v358, %v360
  %v367 = vsel %vm365, %v360, %v362
  %v368 = vsel %vm365, %v362, %v364
  %v374 = vmul.f32 %v210, %v358
  %v375 = vmul.f32 %v211, %v366
  %v376 = vmul.f32 %v212, %v367
  %v377 = vmul.f32 %v213, %v368
  %v378 = vmul.f32 %v214, %v364
  %379 = vset.pattern.permute.xlu0 3
  %380 = vperm.xlu0 %379, %v188
  %v381 = vpop.permute.xlu0 %380
  %v383 = vmul.f32 %v374, %v381
  %v384 = vmul.f32 %v375, %v381
  %v385 = vmul.f32 %v376, %v381
  %v386 = vmul.f32 %v377, %v381
  %v387 = vmul.f32 %v378, %v381
  %393 = vrot.lane.b32.xlu0 %v383, 114
  %v394 = vpop.permute.xlu0 %393
  %395 = vrot.lane.b32.xlu0 %v384, 114
  %v396 = vpop.permute.xlu0 %395
  %397 = vrot.lane.b32.xlu0 %v385, 114
  %v398 = vpop.permute.xlu0 %397
  %399 = vrot.lane.b32.xlu0 %v386, 114
  %v400 = vpop.permute.xlu0 %399
  %401 = vrot.lane.b32.xlu0 %v387, 114
  %v402 = vpop.permute.xlu0 %401
  %vm403 = vcmask 932864
  %v404 = vsel %vm403, %v394, %v396
  %v405 = vsel %vm403, %v396, %v398
  %v406 = vsel %vm403, %v398, %v400
  %v407 = vsel %vm403, %v400, %v402
  %v412 = vadd.f32 %v345, %v404
  %v413 = vadd.f32 %v346, %v405
  %v414 = vadd.f32 %v347, %v406
  %v415 = vadd.f32 %v348, %v407
  %v416 = vperm.slane %v180, 4
  %v417 = vperm.slane %v181, 4
  %v418 = vperm.slane %v182, 4
  %v419 = vperm.slane %v183, 4
  %424 = vrot.lane.b32.xlu0 %v416, 15
  %v425 = vpop.permute.xlu0 %424
  %426 = vrot.lane.b32.xlu0 %v417, 15
  %v427 = vpop.permute.xlu0 %426
  %428 = vrot.lane.b32.xlu0 %v418, 15
  %v429 = vpop.permute.xlu0 %428
  %430 = vrot.lane.b32.xlu0 %v419, 15
  %v431 = vpop.permute.xlu0 %430
  %v432 = vsel %vm164, %v425, %v427
  %v433 = vsel %vm164, %v427, %v429
  %v434 = vsel %vm164, %v429, %v431
  %v440 = vmul.f32 %v210, %v425
  %v441 = vmul.f32 %v211, %v432
  %v442 = vmul.f32 %v212, %v433
  %v443 = vmul.f32 %v213, %v434
  %v444 = vmul.f32 %v214, %v431
  %445 = vset.pattern.permute.xlu0 4
  %446 = vperm.xlu0 %445, %v188
  %v447 = vpop.permute.xlu0 %446
  %v449 = vmul.f32 %v440, %v447
  %v450 = vmul.f32 %v441, %v447
  %v451 = vmul.f32 %v442, %v447
  %v452 = vmul.f32 %v443, %v447
  %v453 = vmul.f32 %v444, %v447
  %459 = vrot.lane.b32.xlu0 %v449, 113
  %v460 = vpop.permute.xlu0 %459
  %461 = vrot.lane.b32.xlu0 %v450, 113
  %v462 = vpop.permute.xlu0 %461
  %463 = vrot.lane.b32.xlu0 %v451, 113
  %v464 = vpop.permute.xlu0 %463
  %465 = vrot.lane.b32.xlu0 %v452, 113
  %v466 = vpop.permute.xlu0 %465
  %467 = vrot.lane.b32.xlu0 %v453, 113
  %v468 = vpop.permute.xlu0 %467
  %vm469 = vcmask 924672
  %v470 = vsel %vm469, %v460, %v462
  %v471 = vsel %vm469, %v462, %v464
  %v472 = vsel %vm469, %v464, %v466
  %v473 = vsel %vm469, %v466, %v468
  %v478 = vadd.f32 %v412, %v470
  %v479 = vadd.f32 %v413, %v471
  %v480 = vadd.f32 %v414, %v472
  %v481 = vadd.f32 %v415, %v473
  %v482 = vperm.slane %v180, 5
  %v483 = vperm.slane %v181, 5
  %v484 = vperm.slane %v182, 5
  %v485 = vperm.slane %v183, 5
  %490 = vrot.lane.b32.xlu0 %v482, 16
  %v491 = vpop.permute.xlu0 %490
  %492 = vrot.lane.b32.xlu0 %v483, 16
  %v493 = vpop.permute.xlu0 %492
  %494 = vrot.lane.b32.xlu0 %v484, 16
  %v495 = vpop.permute.xlu0 %494
  %496 = vrot.lane.b32.xlu0 %v485, 16
  %v497 = vpop.permute.xlu0 %496
  %vm498 = vcmask 130048
  %v499 = vsel %vm498, %v491, %v493
  %v500 = vsel %vm498, %v493, %v495
  %v501 = vsel %vm498, %v495, %v497
  %v507 = vmul.f32 %v210, %v491
  %v508 = vmul.f32 %v211, %v499
  %v509 = vmul.f32 %v212, %v500
  %v510 = vmul.f32 %v213, %v501
  %v511 = vmul.f32 %v214, %v497
  %512 = vset.pattern.permute.xlu0 5
  %513 = vperm.xlu0 %512, %v188
  %v514 = vpop.permute.xlu0 %513
  %v516 = vmul.f32 %v507, %v514
  %v517 = vmul.f32 %v508, %v514
  %v518 = vmul.f32 %v509, %v514
  %v519 = vmul.f32 %v510, %v514
  %v520 = vmul.f32 %v511, %v514
  %526 = vrot.lane.b32.xlu0 %v516, 112
  %v527 = vpop.permute.xlu0 %526
  %528 = vrot.lane.b32.xlu0 %v517, 112
  %v529 = vpop.permute.xlu0 %528
  %530 = vrot.lane.b32.xlu0 %v518, 112
  %v531 = vpop.permute.xlu0 %530
  %532 = vrot.lane.b32.xlu0 %v519, 112
  %v533 = vpop.permute.xlu0 %532
  %534 = vrot.lane.b32.xlu0 %v520, 112
  %v535 = vpop.permute.xlu0 %534
  %vm536 = vcmask 916480
  %v537 = vsel %vm536, %v527, %v529
  %v538 = vsel %vm536, %v529, %v531
  %v539 = vsel %vm536, %v531, %v533
  %v540 = vsel %vm536, %v533, %v535
  %v545 = vadd.f32 %v478, %v537
  %v546 = vadd.f32 %v479, %v538
  %v547 = vadd.f32 %v480, %v539
  %v548 = vadd.f32 %v481, %v540
  %v549 = vperm.slane %v180, 6
  %v550 = vperm.slane %v181, 6
  %v551 = vperm.slane %v182, 6
  %v552 = vperm.slane %v183, 6
  %557 = vrot.lane.b32.xlu0 %v549, 28
  %v558 = vpop.permute.xlu0 %557
  %559 = vrot.lane.b32.xlu0 %v550, 28
  %v560 = vpop.permute.xlu0 %559
  %561 = vrot.lane.b32.xlu0 %v551, 28
  %v562 = vpop.permute.xlu0 %561
  %563 = vrot.lane.b32.xlu0 %v552, 28
  %v564 = vpop.permute.xlu0 %563
  %vm565 = vcmask 228352
  %v566 = vsel %vm565, %v558, %v560
  %v567 = vsel %vm565, %v560, %v562
  %v568 = vsel %vm565, %v562, %v564
  %v574 = vmul.f32 %v210, %v558
  %v575 = vmul.f32 %v211, %v566
  %v576 = vmul.f32 %v212, %v567
  %v577 = vmul.f32 %v213, %v568
  %v578 = vmul.f32 %v214, %v564
  %579 = vset.pattern.permute.xlu0 6
  %580 = vperm.xlu0 %579, %v188
  %v581 = vpop.permute.xlu0 %580
  %v583 = vmul.f32 %v574, %v581
  %v584 = vmul.f32 %v575, %v581
  %v585 = vmul.f32 %v576, %v581
  %v586 = vmul.f32 %v577, %v581
  %v587 = vmul.f32 %v578, %v581
  %593 = vrot.lane.b32.xlu0 %v583, 100
  %v594 = vpop.permute.xlu0 %593
  %595 = vrot.lane.b32.xlu0 %v584, 100
  %v596 = vpop.permute.xlu0 %595
  %597 = vrot.lane.b32.xlu0 %v585, 100
  %v598 = vpop.permute.xlu0 %597
  %599 = vrot.lane.b32.xlu0 %v586, 100
  %v600 = vpop.permute.xlu0 %599
  %601 = vrot.lane.b32.xlu0 %v587, 100
  %v602 = vpop.permute.xlu0 %601
  %vm603 = vcmask 818176
  %v604 = vsel %vm603, %v594, %v596
  %v605 = vsel %vm603, %v596, %v598
  %v606 = vsel %vm603, %v598, %v600
  %v607 = vsel %vm603, %v600, %v602
  %v612 = vadd.f32 %v545, %v604
  %v613 = vadd.f32 %v546, %v605
  %v614 = vadd.f32 %v547, %v606
  %v615 = vadd.f32 %v548, %v607
  %v616 = vperm.slane %v180, 7
  %v617 = vperm.slane %v181, 7
  %v618 = vperm.slane %v182, 7
  %v619 = vperm.slane %v183, 7
  %624 = vrot.lane.b32.xlu0 %v616, 29
  %v625 = vpop.permute.xlu0 %624
  %626 = vrot.lane.b32.xlu0 %v617, 29
  %v627 = vpop.permute.xlu0 %626
  %628 = vrot.lane.b32.xlu0 %v618, 29
  %v629 = vpop.permute.xlu0 %628
  %630 = vrot.lane.b32.xlu0 %v619, 29
  %v631 = vpop.permute.xlu0 %630
  %vm632 = vcmask 236544
  %v633 = vsel %vm632, %v625, %v627
  %v634 = vsel %vm632, %v627, %v629
  %v635 = vsel %vm632, %v629, %v631
  %v641 = vmul.f32 %v210, %v625
  %v642 = vmul.f32 %v211, %v633
  %v643 = vmul.f32 %v212, %v634
  %v644 = vmul.f32 %v213, %v635
  %v645 = vmul.f32 %v214, %v631
  %646 = vset.pattern.permute.xlu0 7
  %647 = vperm.xlu0 %646, %v188
  %v648 = vpop.permute.xlu0 %647
  %v650 = vmul.f32 %v641, %v648
  %v651 = vmul.f32 %v642, %v648
  %v652 = vmul.f32 %v643, %v648
  %v653 = vmul.f32 %v644, %v648
  %v654 = vmul.f32 %v645, %v648
  %660 = vrot.lane.b32.xlu0 %v650, 99
  %v661 = vpop.permute.xlu0 %660
  %662 = vrot.lane.b32.xlu0 %v651, 99
  %v663 = vpop.permute.xlu0 %662
  %664 = vrot.lane.b32.xlu0 %v652, 99
  %v665 = vpop.permute.xlu0 %664
  %666 = vrot.lane.b32.xlu0 %v653, 99
  %v667 = vpop.permute.xlu0 %666
  %668 = vrot.lane.b32.xlu0 %v654, 99
  %v669 = vpop.permute.xlu0 %668
  %vm670 = vcmask 809984
  %v671 = vsel %vm670, %v661, %v663
  %v672 = vsel %vm670, %v663, %v665
  %v673 = vsel %vm670, %v665, %v667
  %v674 = vsel %vm670, %v667, %v669
  %v679 = vadd.f32 %v612, %v671
  %v680 = vadd.f32 %v613, %v672
  %v681 = vadd.f32 %v614, %v673
  %v682 = vadd.f32 %v615, %v674
  %v683 = vperm.slane %v184, 0
  %v684 = vperm.slane %v185, 0
  %v685 = vperm.slane %v186, 0
  %v686 = vperm.slane %v187, 0
  %691 = vrot.lane.b32.xlu0 %v683, 30
  %v692 = vpop.permute.xlu0 %691
  %693 = vrot.lane.b32.xlu0 %v684, 30
  %v694 = vpop.permute.xlu0 %693
  %695 = vrot.lane.b32.xlu0 %v685, 30
  %v696 = vpop.permute.xlu0 %695
  %697 = vrot.lane.b32.xlu0 %v686, 30
  %v698 = vpop.permute.xlu0 %697
  %vm699 = vcmask 244736
  %v700 = vsel %vm699, %v692, %v694
  %v701 = vsel %vm699, %v694, %v696
  %v702 = vsel %vm699, %v696, %v698
  %v708 = vmul.f32 %v210, %v692
  %v709 = vmul.f32 %v211, %v700
  %v710 = vmul.f32 %v212, %v701
  %v711 = vmul.f32 %v213, %v702
  %v712 = vmul.f32 %v214, %v698
  %713 = vset.pattern.permute.xlu0 8
  %714 = vperm.xlu0 %713, %v188
  %v715 = vpop.permute.xlu0 %714
  %v717 = vmul.f32 %v708, %v715
  %v718 = vmul.f32 %v709, %v715
  %v719 = vmul.f32 %v710, %v715
  %v720 = vmul.f32 %v711, %v715
  %v721 = vmul.f32 %v712, %v715
  %727 = vrot.lane.b32.xlu0 %v717, 98
  %v728 = vpop.permute.xlu0 %727
  %729 = vrot.lane.b32.xlu0 %v718, 98
  %v730 = vpop.permute.xlu0 %729
  %731 = vrot.lane.b32.xlu0 %v719, 98
  %v732 = vpop.permute.xlu0 %731
  %733 = vrot.lane.b32.xlu0 %v720, 98
  %v734 = vpop.permute.xlu0 %733
  %735 = vrot.lane.b32.xlu0 %v721, 98
  %v736 = vpop.permute.xlu0 %735
  %vm737 = vcmask 801792
  %v738 = vsel %vm737, %v728, %v730
  %v739 = vsel %vm737, %v730, %v732
  %v740 = vsel %vm737, %v732, %v734
  %v741 = vsel %vm737, %v734, %v736
  %v746 = vadd.f32 %v679, %v738
  %v747 = vadd.f32 %v680, %v739
  %v748 = vadd.f32 %v681, %v740
  %v749 = vadd.f32 %v682, %v741
  %v750 = vld [vmem:[%s4] sm:$0x3f]
  %752 = vset.pattern.permute.xlu0 0
  %753 = vperm.xlu0 %752, %v750
  %v754 = vpop.permute.xlu0 %753
  %v756 = vadd.f32 %v746, %v754
  %v757 = vadd.f32 %v747, %v754
  %v758 = vadd.f32 %v748, %v754
  %v759 = vadd.f32 %v749, %v754
  %v760 = vld [vmem:[%s5] sm:$0xf]
  %v761 = vld [vmem:[%s5 + $0x4] sm:$0xf]
  %v762 = vld [vmem:[%s5 + $0x8] sm:$0xf]
  %v763 = vpack.c.bf16 %v756, %v756
  %v764 = vpack.c.bf16 %v757, %v757
  %v765 = vpack.c.bf16 %v758, %v758
  %v766 = vpack.c.bf16 %v759, %v759
  %v767 = vld [vmem:[%s6] sm:$0xff]
  %v768 = vld [vmem:[%s6 + $0x8] sm:$0xff]
  %v769 = vld [vmem:[%s6 + $0x10] sm:$0xff]
  %771 = vset.pattern.permute.xlu0 0
  %772 = vperm.xlu0 %771, %v767
  %v773 = vpop.permute.xlu0 %772
  %776 = vset.pattern.permute.xlu0 0
  %777 = vperm.xlu0 %776, %v768
  %v778 = vpop.permute.xlu0 %777
  %781 = vset.pattern.permute.xlu0 0
  %782 = vperm.xlu0 %781, %v769
  %v783 = vpop.permute.xlu0 %782
  %v788 = vunpack.c.l.b16 %v760
  %v789 = vunpack.c.l.b16 %v761
  %v790 = vunpack.c.l.b16 %v762
  %v791 = vpack.c.b16 %v789, %v788
  %v792 = vpack.c.b16 %v790, %v790
  %vm793 = vcmask 48128
  %v795 = vsel %vm793, %v791, 0
  %v798 = vsel %vm793, %v792, 0
  %vm800 = vcmask 1042432
  %v802 = vsel %vm800, %v763, 0
  %v805 = vsel %vm800, %v764, 0
  %v808 = vsel %vm800, %v765, 0
  %v811 = vsel %vm800, %v766, 0
  %813 = vmatpush.bf16.msra.mxu0 0
  %814 = vmatpush.bf16.msra.mxu0 0
  %815 = vmatpush.bf16.msra.mxu0 0
  %816 = vmatpush.bf16.msra.mxu0 0
  %817 = vmatpush.bf16.msra.mxu0 0
  %818 = vmatpush.bf16.msra.mxu0 0
  %819 = vmatpush.bf16.msra.mxu0 0
  %820 = vmatpush.bf16.msra.mxu0 %v802
  %821 = vmatmul.bf16.gmra.mxu0 %v795
  %v822 = vpop.f32.mrf.mxu0
  %v823 = vadd.f32 %v773, %v822
  %v824 = vpop.f32.mrf.mxu0
  %v825 = vadd.f32 %v778, %v824
  %826 = vmatmul.bf16.gmra.mxu0 %v798
  %v827 = vpop.f32.mrf.mxu0
  %v828 = vadd.f32 %v783, %v827
  %v829 = vpop.f32.mrf.mxu0
  %830 = vdwg.mxu0
  %831 = vmatpush.bf16.msra.mxu0 0
  %832 = vmatpush.bf16.msra.mxu0 0
  %833 = vmatpush.bf16.msra.mxu0 0
  %834 = vmatpush.bf16.msra.mxu0 0
  %835 = vmatpush.bf16.msra.mxu0 0
  %836 = vmatpush.bf16.msra.mxu0 0
  %837 = vmatpush.bf16.msra.mxu0 0
  %838 = vmatpush.bf16.msra.mxu0 %v805
  %839 = vmatmul.bf16.gmra.mxu0 %v795
  %v840 = vpop.f32.mrf.mxu0
  %v841 = vadd.f32 %v773, %v840
  %v842 = vpop.f32.mrf.mxu0
  %v843 = vadd.f32 %v778, %v842
  %844 = vmatmul.bf16.gmra.mxu0 %v798
  %v845 = vpop.f32.mrf.mxu0
  %v846 = vadd.f32 %v783, %v845
  %v847 = vpop.f32.mrf.mxu0
  %848 = vdwg.mxu0
  %849 = vmatpush.bf16.msra.mxu0 0
  %850 = vmatpush.bf16.msra.mxu0 0
  %851 = vmatpush.bf16.msra.mxu0 0
  %852 = vmatpush.bf16.msra.mxu0 0
  %853 = vmatpush.bf16.msra.mxu0 0
  %854 = vmatpush.bf16.msra.mxu0 0
  %855 = vmatpush.bf16.msra.mxu0 0
  %856 = vmatpush.bf16.msra.mxu0 %v808
  %857 = vmatmul.bf16.gmra.mxu0 %v795
  %v858 = vpop.f32.mrf.mxu0
  %v859 = vadd.f32 %v773, %v858
  %v860 = vpop.f32.mrf.mxu0
  %v861 = vadd.f32 %v778, %v860
  %862 = vmatmul.bf16.gmra.mxu0 %v798
  %v863 = vpop.f32.mrf.mxu0
  %v864 = vadd.f32 %v783, %v863
  %v865 = vpop.f32.mrf.mxu0
  %866 = vdwg.mxu0
  %867 = vmatpush.bf16.msra.mxu0 0
  %868 = vmatpush.bf16.msra.mxu0 0
  %869 = vmatpush.bf16.msra.mxu0 0
  %870 = vmatpush.bf16.msra.mxu0 0
  %871 = vmatpush.bf16.msra.mxu0 0
  %872 = vmatpush.bf16.msra.mxu0 0
  %873 = vmatpush.bf16.msra.mxu0 0
  %874 = vmatpush.bf16.msra.mxu0 %v811
  %875 = vmatmul.bf16.gmra.mxu0 %v795
  %v876 = vpop.f32.mrf.mxu0
  %v877 = vadd.f32 %v773, %v876
  %v878 = vpop.f32.mrf.mxu0
  %v879 = vadd.f32 %v778, %v878
  %880 = vmatmul.bf16.gmra.mxu0 %v798
  %v881 = vpop.f32.mrf.mxu0
  %v882 = vadd.f32 %v783, %v881
  %v883 = vpop.f32.mrf.mxu0
  %884 = vdwg.mxu0
  %v885 = vunpack.c.l.bf16 %v30
  %v886 = vunpack.c.h.bf16 %v30
  %v887 = vunpack.c.l.bf16 %v31
  %v888 = vunpack.c.h.bf16 %v31
  %v889 = vunpack.c.l.bf16 %v32
  %v890 = vunpack.c.h.bf16 %v32
  %v891 = vunpack.c.l.bf16 %v33
  %v892 = vunpack.c.h.bf16 %v33
  %v893 = vunpack.c.l.bf16 %v34
  %v894 = vunpack.c.h.bf16 %v34
  %v895 = vunpack.c.l.bf16 %v35
  %v896 = vunpack.c.h.bf16 %v35
  %v897 = vadd.f32 %v823, %v885
  %v898 = vadd.f32 %v841, %v886
  %v899 = vadd.f32 %v859, %v887
  %v900 = vadd.f32 %v877, %v888
  %v901 = vadd.f32 %v825, %v889
  %v902 = vadd.f32 %v843, %v890
  %v903 = vadd.f32 %v861, %v891
  %v904 = vadd.f32 %v879, %v892
  %v905 = vadd.f32 %v828, %v893
  %v906 = vadd.f32 %v846, %v894
  %v907 = vadd.f32 %v864, %v895
  %v908 = vadd.f32 %v882, %v896
  %v909 = vmax.f32 %v897, 0.0
  %v910 = vmax.f32 %v898, 0.0
  %v911 = vmax.f32 %v899, 0.0
  %v912 = vmax.f32 %v900, 0.0
  %v913 = vmax.f32 %v901, 0.0
  %v914 = vmax.f32 %v902, 0.0
  %v915 = vmax.f32 %v903, 0.0
  %v916 = vmax.f32 %v904, 0.0
  %v917 = vmax.f32 %v905, 0.0
  %v918 = vmax.f32 %v906, 0.0
  %v919 = vmax.f32 %v907, 0.0
  %v920 = vmax.f32 %v908, 0.0
  %v921 = vpack.c.bf16 %v910, %v909
  %v922 = vpack.c.bf16 %v912, %v911
  %v923 = vpack.c.bf16 %v914, %v913
  %v924 = vpack.c.bf16 %v916, %v915
  %v925 = vpack.c.bf16 %v918, %v917
  %v926 = vpack.c.bf16 %v920, %v919
  %927 = vst [vmem:[%s8] sm:$0xff] %v921
  %928 = vst [vmem:[%s8 + $0x8] sm:$0xff] %v922
  %929 = vst [vmem:[%s8 + $0x10] sm:$0xff] %v923
  %930 = vst [vmem:[%s8 + $0x18] sm:$0xff] %v924
  %931 = vst [vmem:[%s8 + $0x20] sm:$0xff] %v925
  %932 = vst [vmem:[%s8 + $0x28] sm:$0xff] %v926
  // Predicated region
  $region34: #{_lambda_.7} parent=0 // pred_check
    _
  $region35: #{_lambda_.7} parent=0 // pred_check_branch
    %934 = sbr.rel (0) target = $region37
  $region36: #{_lambda_.7} parent=0 // pred_region
    _
  $region37: #{_lambda_.7} parent=0 // pred_fallthru
    _
  // Predicated region
  $region38: #{_lambda_.7} parent=0 // pred_check
    _
  $region39: #{_lambda_.7} parent=0 // pred_check_branch
    %936 = sbr.rel (0) target = $region41
  $region40: #{_lambda_.7} parent=0 // pred_region
    _
  $region41: #{_lambda_.7} parent=0 // pred_fallthru
    _

// kernel: _lambda_.6
$region0: #{_lambda_.6}
  #allocation0 [shape = 'u32[]', space=smem, size = 0x4, offset = 0x4, fixed_abs, tag = 'smem constant byte address 0x4 - core index']
  #allocation1 [shape = 'u32[72,128]{1,0:T(1,128)}', space=vmem, size = 0x9000, scoped, tag = 'internal scratch']
  #allocation2 [shape = 'f32[6,1722]{1,0:T(8,128)}', space=vmem, size = 0xe000, scoped, tag = 'scratch operand']
  #allocation3 [shape = 'f32[8,1722]{1,0:T(8,128)}', space=vmem, size = 0xe000, scoped, tag = 'scratch operand']
  %s0 = inlined_call_operand.vmem [shape: bf16[8,1664], index: 0, kind: input, shape index: {}]
  %s1 = inlined_call_operand.vmem [shape: bf16[6,8], index: 1, kind: input, shape index: {}]
  %s2 = inlined_call_operand.vmem [shape: f32[6,1], index: 2, kind: input, shape index: {}]
  %s3 = inlined_call_operand.vmem [shape: f32[6,9], index: 3, kind: input, shape index: {}]
  %s4 = inlined_call_operand.vmem [shape: f32[6,1], index: 4, kind: input, shape index: {}]
  %s5 = inlined_call_operand.vmem [shape: bf16[16,6], index: 5, kind: input, shape index: {}]
  %s6 = inlined_call_operand.vmem [shape: f32[16,1], index: 6, kind: input, shape index: {}]
  %s7 = inlined_call_operand.vmem [shape: f32[9,1664], index: 7, kind: input, shape index: {}]
  %s8 = inlined_call_operand.vmem [shape: bf16[1664,512], index: 8, kind: input, shape index: {}]
  %s9 = inlined_call_operand.vmem [shape: bf16[24,512], index: 9, kind: output, shape index: {}]
  %s10 = sld [smem:[#allocation0]]
  $region46: #{_lambda_.6} parent=0
    _
  %s12 = ssub.s32 1, %s10
  %s13 = scalar_select 0, %s12, %s10
  // Predicated region
  $region2: #{_lambda_.6} parent=0 // pred_check
    _
  $region3: #{_lambda_.6} parent=0 // pred_check_branch
    %15 = sbr.rel (0) target = $region5
  $region4: #{_lambda_.6} parent=0 // pred_region
    _
  $region5: #{_lambda_.6} parent=0 // pred_fallthru
    _
  // Predicated region
  $region6: #{_lambda_.6} parent=0 // pred_check
    _
  $region7: #{_lambda_.6} parent=0 // pred_check_branch
    %17 = sbr.rel (0) target = $region9
  $region8: #{_lambda_.6} parent=0 // pred_region
    _
  $region9: #{_lambda_.6} parent=0 // pred_fallthru
    _
  // Predicated region
  $region10: #{_lambda_.6} parent=0 // pred_check
    _
  $region11: #{_lambda_.6} parent=0 // pred_check_branch
    %19 = sbr.rel (0) target = $region13
  $region12: #{_lambda_.6} parent=0 // pred_region
    _
  $region13: #{_lambda_.6} parent=0 // pred_fallthru
    _
  // Predicated region
  $region14: #{_lambda_.6} parent=0 // pred_check
    _
  $region15: #{_lambda_.6} parent=0 // pred_check_branch
    %21 = sbr.rel (0) target = $region17
  $region16: #{_lambda_.6} parent=0 // pred_region
    _
  $region17: #{_lambda_.6} parent=0 // pred_fallthru
    _
  // Predicated region
  $region18: #{_lambda_.6} parent=0 // pred_check
    _
  $region19: #{_lambda_.6} parent=0 // pred_check_branch
    %23 = sbr.rel (0) target = $region21
  $region20: #{_lambda_.6} parent=0 // pred_region
    _
  $region21: #{_lambda_.6} parent=0 // pred_fallthru
    _
  // Predicated region
  $region22: #{_lambda_.6} parent=0 // pred_check
    _
  $region23: #{_lambda_.6} parent=0 // pred_check_branch
    %25 = sbr.rel (0) target = $region25
  $region24: #{_lambda_.6} parent=0 // pred_region
    _
  $region25: #{_lambda_.6} parent=0 // pred_fallthru
    _
  // Predicated region
  $region26: #{_lambda_.6} parent=0 // pred_check
    _
  $region27: #{_lambda_.6} parent=0 // pred_check_branch
    %27 = sbr.rel (0) target = $region29
  $region28: #{_lambda_.6} parent=0 // pred_region
    _
  $region29: #{_lambda_.6} parent=0 // pred_fallthru
    _
  // Predicated region
  $region30: #{_lambda_.6} parent=0 // pred_check
    _
  $region31: #{_lambda_.6} parent=0 // pred_check_branch
    %29 = sbr.rel (0) target = $region33
  $region32: #{_lambda_.6} parent=0 // pred_region
    _
  $region33: #{_lambda_.6} parent=0 // pred_fallthru
    _
  // Predicated region
  $region34: #{_lambda_.6} parent=0 // pred_check
    _
  $region35: #{_lambda_.6} parent=0 // pred_check_branch
    %31 = sbr.rel (0) target = $region37
  $region36: #{_lambda_.6} parent=0 // pred_region
    _
  $region37: #{_lambda_.6} parent=0 // pred_fallthru
    _
  %v33 = vld [vmem:[%s0] sm:$0xff]
  %v34 = vld [vmem:[%s0 + $0x8] sm:$0xff]
  %v35 = vld [vmem:[%s0 + $0x10] sm:$0xff]
  %v36 = vld [vmem:[%s0 + $0x18] sm:$0xff]
  %v37 = vld [vmem:[%s0 + $0x20] sm:$0xff]
  %v38 = vld [vmem:[%s0 + $0x28] sm:$0xff]
  %v39 = vld [vmem:[%s0 + $0x30] sm:$0xf]
  %v40 = vld [vmem:[%s7] sm:$0xff]
  %v41 = vld [vmem:[%s7 + $0x8] sm:$0xff]
  %v42 = vld [vmem:[%s7 + $0x10] sm:$0xff]
  %v43 = vld [vmem:[%s7 + $0x18] sm:$0xff]
  %v44 = vld [vmem:[%s7 + $0x20] sm:$0xff]
  %v45 = vld [vmem:[%s7 + $0x28] sm:$0xff]
  %v46 = vld [vmem:[%s7 + $0x30] sm:$0xff]
  %v47 = vld [vmem:[%s7 + $0x38] sm:$0xff]
  %v48 = vld [vmem:[%s7 + $0x40] sm:$0xff]
  %v49 = vld [vmem:[%s7 + $0x48] sm:$0xff]
  %v50 = vld [vmem:[%s7 + $0x50] sm:$0xff]
  %v51 = vld [vmem:[%s7 + $0x58] sm:$0xff]
  %v52 = vld [vmem:[%s7 + $0x60] sm:$0xff]
  %v53 = vld [vmem:[%s7 + $0x68] sm:$0x1]
  %v54 = vld [vmem:[%s7 + $0x70] sm:$0x1]
  %v55 = vld [vmem:[%s7 + $0x78] sm:$0x1]
  %v56 = vld [vmem:[%s7 + $0x80] sm:$0x1]
  %v57 = vld [vmem:[%s7 + $0x88] sm:$0x1]
  %v58 = vld [vmem:[%s7 + $0x90] sm:$0x1]
  %v59 = vld [vmem:[%s7 + $0x98] sm:$0x1]
  %v60 = vld [vmem:[%s7 + $0xa0] sm:$0x1]
  %v61 = vld [vmem:[%s7 + $0xa8] sm:$0x1]
  %v62 = vld [vmem:[%s7 + $0xb0] sm:$0x1]
  %v63 = vld [vmem:[%s7 + $0xb8] sm:$0x1]
  %v64 = vld [vmem:[%s7 + $0xc0] sm:$0x1]
  %v65 = vld [vmem:[%s7 + $0xc8] sm:$0x1]
  %v66 = vld [vmem:[%s8] sm:$0xff]
  %v67 = vld [vmem:[%s8 + $0x8] sm:$0xff]
  %v68 = vld [vmem:[%s8 + $0x10] sm:$0xff]
  %v69 = vld [vmem:[%s8 + $0x18] sm:$0xff]
  %v70 = vld [vmem:[%s8 + $0x20] sm:$0xff]
  %v71 = vld [vmem:[%s8 + $0x28] sm:$0xff]
  %v72 = vld [vmem:[%s8 + $0x30] sm:$0xff]
  %v73 = vld [vmem:[%s8 + $0x38] sm:$0xff]
  %v74 = vld [vmem:[%s8 + $0x40] sm:$0xff]
  %v75 = vld [vmem:[%s8 + $0x48] sm:$0xff]
  %v76 = vld [vmem:[%s8 + $0x50] sm:$0xff]
  %v77 = vld [vmem:[%s8 + $0x58] sm:$0xff]
  %v78 = vld [vmem:[%s8 + $0x60] sm:$0xff]
  %v79 = vld [vmem:[%s8 + $0x68] sm:$0xff]
  %v80 = vld [vmem:[%s8 + $0x70] sm:$0xff]
  %v81 = vld [vmem:[%s8 + $0x78] sm:$0xff]
  %v82 = vld [vmem:[%s8 + $0x80] sm:$0xff]
  %v83 = vld [vmem:[%s8 + $0x88] sm:$0xff]
  %v84 = vld [vmem:[%s8 + $0x90] sm:$0xff]
  %v85 = vld [vmem:[%s8 + $0x98] sm:$0xff]
  %v86 = vld [vmem:[%s8 + $0xa0] sm:$0xff]
  %v87 = vld [vmem:[%s8 + $0xa8] sm:$0xff]
  %v88 = vld [vmem:[%s8 + $0xb0] sm:$0xff]
  %v89 = vld [vmem:[%s8 + $0xb8] sm:$0xff]
  %v90 = vld [vmem:[%s8 + $0xc0] sm:$0xff]
  %v91 = vld [vmem:[%s8 + $0xc8] sm:$0xff]
  %v92 = vld [vmem:[%s8 + $0xd0] sm:$0xff]
  %v93 = vld [vmem:[%s8 + $0xd8] sm:$0xff]
  %v94 = vld [vmem:[%s8 + $0xe0] sm:$0xff]
  %v95 = vld [vmem:[%s8 + $0xe8] sm:$0xff]
  %v96 = vld [vmem:[%s8 + $0xf0] sm:$0xff]
  %v97 = vld [vmem:[%s8 + $0xf8] sm:$0xff]
  %v98 = vld [vmem:[%s8 + $0x100] sm:$0xff]
  %v99 = vld [vmem:[%s8 + $0x108] sm:$0xff]
  %v100 = vld [vmem:[%s8 + $0x110] sm:$0xff]
  %v101 = vld [vmem:[%s8 + $0x118] sm:$0xff]
  %v102 = vld [vmem:[%s8 + $0x120] sm:$0xff]
  %v103 = vld [vmem:[%s8 + $0x128] sm:$0xff]
  %v104 = vld [vmem:[%s8 + $0x130] sm:$0xff]
  %v105 = vld [vmem:[%s8 + $0x138] sm:$0xff]
  %v106 = vld [vmem:[%s8 + $0x140] sm:$0xff]
  %v107 = vld [vmem:[%s8 + $0x148] sm:$0xff]
  %v108 = vld [vmem:[%s8 + $0x150] sm:$0xff]
  %v109 = vld [vmem:[%s8 + $0x158] sm:$0xff]
  %v110 = vld [vmem:[%s8 + $0x160] sm:$0xff]
  %v111 = vld [vmem:[%s8 + $0x168] sm:$0xff]
  %v112 = vld [vmem:[%s8 + $0x170] sm:$0xff]
  %v113 = vld [vmem:[%s8 + $0x178] sm:$0xff]
  %v114 = vld [vmem:[%s8 + $0x180] sm:$0xff]
  %v115 = vld [vmem:[%s8 + $0x188] sm:$0xff]
  %v116 = vld [vmem:[%s8 + $0x190] sm:$0xff]
  %v117 = vld [vmem:[%s8 + $0x198] sm:$0xff]
  %v118 = vld [vmem:[%s8 + $0x1a0] sm:$0xff]
  %v119 = vld [vmem:[%s8 + $0x1a8] sm:$0xff]
  %v120 = vld [vmem:[%s8 + $0x1b0] sm:$0xff]
  %v121 = vld [vmem:[%s8 + $0x1b8] sm:$0xff]
  %v122 = vld [vmem:[%s8 + $0x1c0] sm:$0xff]
  %v123 = vld [vmem:[%s8 + $0x1c8] sm:$0xff]
  %v124 = vld [vmem:[%s8 + $0x1d0] sm:$0xff]
  %v125 = vld [vmem:[%s8 + $0x1d8] sm:$0xff]
  %v126 = vld [vmem:[%s8 + $0x1e0] sm:$0xff]
  %v127 = vld [vmem:[%s8 + $0x1e8] sm:$0xff]
  %v128 = vld [vmem:[%s8 + $0x1f0] sm:$0xff]
  %v129 = vld [vmem:[%s8 + $0x1f8] sm:$0xff]
  %v130 = vld [vmem:[%s8 + $0x200] sm:$0xff]
  %v131 = vld [vmem:[%s8 + $0x208] sm:$0xff]
  %v132 = vld [vmem:[%s8 + $0x210] sm:$0xff]
  %v133 = vld [vmem:[%s8 + $0x218] sm:$0xff]
  %v134 = vld [vmem:[%s8 + $0x220] sm:$0xff]
  %v135 = vld [vmem:[%s8 + $0x228] sm:$0xff]
  %v136 = vld [vmem:[%s8 + $0x230] sm:$0xff]
  %v137 = vld [vmem:[%s8 + $0x238] sm:$0xff]
  %v138 = vld [vmem:[%s8 + $0x240] sm:$0xff]
  %v139 = vld [vmem:[%s8 + $0x248] sm:$0xff]
  %v140 = vld [vmem:[%s8 + $0x250] sm:$0xff]
  %v141 = vld [vmem:[%s8 + $0x258] sm:$0xff]
  %v142 = vld [vmem:[%s8 + $0x260] sm:$0xff]
  %v143 = vld [vmem:[%s8 + $0x268] sm:$0xff]
  %v144 = vld [vmem:[%s8 + $0x270] sm:$0xff]
  %v145 = vld [vmem:[%s8 + $0x278] sm:$0xff]
  %v146 = vld [vmem:[%s8 + $0x280] sm:$0xff]
  %v147 = vld [vmem:[%s8 + $0x288] sm:$0xff]
  %v148 = vld [vmem:[%s8 + $0x290] sm:$0xff]
  %v149 = vld [vmem:[%s8 + $0x298] sm:$0xff]
  %v150 = vld [vmem:[%s8 + $0x2a0] sm:$0xff]
  %v151 = vld [vmem:[%s8 + $0x2a8] sm:$0xff]
  %v152 = vld [vmem:[%s8 + $0x2b0] sm:$0xff]
  %v153 = vld [vmem:[%s8 + $0x2b8] sm:$0xff]
  %v154 = vld [vmem:[%s8 + $0x2c0] sm:$0xff]
  %v155 = vld [vmem:[%s8 + $0x2c8] sm:$0xff]
  %v156 = vld [vmem:[%s8 + $0x2d0] sm:$0xff]
  %v157 = vld [vmem:[%s8 + $0x2d8] sm:$0xff]
  %v158 = vld [vmem:[%s8 + $0x2e0] sm:$0xff]
  %v159 = vld [vmem:[%s8 + $0x2e8] sm:$0xff]
  %v160 = vld [vmem:[%s8 + $0x2f0] sm:$0xff]
  %v161 = vld [vmem:[%s8 + $0x2f8] sm:$0xff]
  %v162 = vld [vmem:[%s8 + $0x300] sm:$0xff]
  %v163 = vld [vmem:[%s8 + $0x308] sm:$0xff]
  %v164 = vld [vmem:[%s8 + $0x310] sm:$0xff]
  %v165 = vld [vmem:[%s8 + $0x318] sm:$0xff]
  %v166 = vld [vmem:[%s8 + $0x320] sm:$0xff]
  %v167 = vld [vmem:[%s8 + $0x328] sm:$0xff]
  %v168 = vld [vmem:[%s8 + $0x330] sm:$0xff]
  %v169 = vld [vmem:[%s8 + $0x338] sm:$0xff]
  %v170 = vld [vmem:[%s8 + $0x340] sm:$0xff]
  %v171 = vld [vmem:[%s8 + $0x348] sm:$0xff]
  %v172 = vld [vmem:[%s8 + $0x350] sm:$0xff]
  %v173 = vld [vmem:[%s8 + $0x358] sm:$0xff]
  %v174 = vld [vmem:[%s8 + $0x360] sm:$0xff]
  %v175 = vld [vmem:[%s8 + $0x368] sm:$0xff]
  %v176 = vld [vmem:[%s8 + $0x370] sm:$0xff]
  %v177 = vld [vmem:[%s8 + $0x378] sm:$0xff]
  %v178 = vld [vmem:[%s8 + $0x380] sm:$0xff]
  %v179 = vld [vmem:[%s8 + $0x388] sm:$0xff]
  %v180 = vld [vmem:[%s8 + $0x390] sm:$0xff]
  %v181 = vld [vmem:[%s8 + $0x398] sm:$0xff]
  %v182 = vld [vmem:[%s8 + $0x3a0] sm:$0xff]
  %v183 = vld [vmem:[%s8 + $0x3a8] sm:$0xff]
  %v184 = vld [vmem:[%s8 + $0x3b0] sm:$0xff]
  %v185 = vld [vmem:[%s8 + $0x3b8] sm:$0xff]
  %v186 = vld [vmem:[%s8 + $0x3c0] sm:$0xff]
  %v187 = vld [vmem:[%s8 + $0x3c8] sm:$0xff]
  %v188 = vld [vmem:[%s8 + $0x3d0] sm:$0xff]
  %v189 = vld [vmem:[%s8 + $0x3d8] sm:$0xff]
  %v190 = vld [vmem:[%s8 + $0x3e0] sm:$0xff]
  %v191 = vld [vmem:[%s8 + $0x3e8] sm:$0xff]
  %v192 = vld [vmem:[%s8 + $0x3f0] sm:$0xff]
  %v193 = vld [vmem:[%s8 + $0x3f8] sm:$0xff]
  %v194 = vld [vmem:[%s8 + $0x400] sm:$0xff]
  %v195 = vld [vmem:[%s8 + $0x408] sm:$0xff]
  %v196 = vld [vmem:[%s8 + $0x410] sm:$0xff]
  %v197 = vld [vmem:[%s8 + $0x418] sm:$0xff]
  %v198 = vld [vmem:[%s8 + $0x420] sm:$0xff]
  %v199 = vld [vmem:[%s8 + $0x428] sm:$0xff]
  %v200 = vld [vmem:[%s8 + $0x430] sm:$0xff]
  %v201 = vld [vmem:[%s8 + $0x438] sm:$0xff]
  %v202 = vld [vmem:[%s8 + $0x440] sm:$0xff]
  %v203 = vld [vmem:[%s8 + $0x448] sm:$0xff]
  %v204 = vld [vmem:[%s8 + $0x450] sm:$0xff]
  %v205 = vld [vmem:[%s8 + $0x458] sm:$0xff]
  %v206 = vld [vmem:[%s8 + $0x460] sm:$0xff]
  %v207 = vld [vmem:[%s8 + $0x468] sm:$0xff]
  %v208 = vld [vmem:[%s8 + $0x470] sm:$0xff]
  %v209 = vld [vmem:[%s8 + $0x478] sm:$0xff]
  %v210 = vld [vmem:[%s8 + $0x480] sm:$0xff]
  %v211 = vld [vmem:[%s8 + $0x488] sm:$0xff]
  %v212 = vld [vmem:[%s8 + $0x490] sm:$0xff]
  %v213 = vld [vmem:[%s8 + $0x498] sm:$0xff]
  %v214 = vld [vmem:[%s8 + $0x4a0] sm:$0xff]
  %v215 = vld [vmem:[%s8 + $0x4a8] sm:$0xff]
  %v216 = vld [vmem:[%s8 + $0x4b0] sm:$0xff]
  %v217 = vld [vmem:[%s8 + $0x4b8] sm:$0xff]
  %v218 = vld [vmem:[%s8 + $0x4c0] sm:$0xff]
  %v219 = vld [vmem:[%s8 + $0x4c8] sm:$0xff]
  %v220 = vld [vmem:[%s8 + $0x4d0] sm:$0xff]
  %v221 = vld [vmem:[%s8 + $0x4d8] sm:$0xff]
  %v222 = vld [vmem:[%s8 + $0x4e0] sm:$0xff]
  %v223 = vld [vmem:[%s8 + $0x4e8] sm:$0xff]
  %v224 = vld [vmem:[%s8 + $0x4f0] sm:$0xff]
  %v225 = vld [vmem:[%s8 + $0x4f8] sm:$0xff]
  %v226 = vld [vmem:[%s8 + $0x500] sm:$0xff]
  %v227 = vld [vmem:[%s8 + $0x508] sm:$0xff]
  %v228 = vld [vmem:[%s8 + $0x510] sm:$0xff]
  %v229 = vld [vmem:[%s8 + $0x518] sm:$0xff]
  %v230 = vld [vmem:[%s8 + $0x520] sm:$0xff]
  %v231 = vld [vmem:[%s8 + $0x528] sm:$0xff]
  %v232 = vld [vmem:[%s8 + $0x530] sm:$0xff]
  %v233 = vld [vmem:[%s8 + $0x538] sm:$0xff]
  %v234 = vld [vmem:[%s8 + $0x540] sm:$0xff]
  %v235 = vld [vmem:[%s8 + $0x548] sm:$0xff]
  %v236 = vld [vmem:[%s8 + $0x550] sm:$0xff]
  %v237 = vld [vmem:[%s8 + $0x558] sm:$0xff]
  %v238 = vld [vmem:[%s8 + $0x560] sm:$0xff]
  %v239 = vld [vmem:[%s8 + $0x568] sm:$0xff]
  %v240 = vld [vmem:[%s8 + $0x570] sm:$0xff]
  %v241 = vld [vmem:[%s8 + $0x578] sm:$0xff]
  %v242 = vld [vmem:[%s8 + $0x580] sm:$0xff]
  %v243 = vld [vmem:[%s8 + $0x588] sm:$0xff]
  %v244 = vld [vmem:[%s8 + $0x590] sm:$0xff]
  %v245 = vld [vmem:[%s8 + $0x598] sm:$0xff]
  %v246 = vld [vmem:[%s8 + $0x5a0] sm:$0xff]
  %v247 = vld [vmem:[%s8 + $0x5a8] sm:$0xff]
  %v248 = vld [vmem:[%s8 + $0x5b0] sm:$0xff]
  %v249 = vld [vmem:[%s8 + $0x5b8] sm:$0xff]
  %v250 = vld [vmem:[%s8 + $0x5c0] sm:$0xff]
  %v251 = vld [vmem:[%s8 + $0x5c8] sm:$0xff]
  %v252 = vld [vmem:[%s8 + $0x5d0] sm:$0xff]
  %v253 = vld [vmem:[%s8 + $0x5d8] sm:$0xff]
  %v254 = vld [vmem:[%s8 + $0x5e0] sm:$0xff]
  %v255 = vld [vmem:[%s8 + $0x5e8] sm:$0xff]
  %v256 = vld [vmem:[%s8 + $0x5f0] sm:$0xff]
  %v257 = vld [vmem:[%s8 + $0x5f8] sm:$0xff]
  %v258 = vld [vmem:[%s8 + $0x600] sm:$0xff]
  %v259 = vld [vmem:[%s8 + $0x608] sm:$0xff]
  %v260 = vld [vmem:[%s8 + $0x610] sm:$0xff]
  %v261 = vld [vmem:[%s8 + $0x618] sm:$0xff]
  %v262 = vld [vmem:[%s8 + $0x620] sm:$0xff]
  %v263 = vld [vmem:[%s8 + $0x628] sm:$0xff]
  %v264 = vld [vmem:[%s8 + $0x630] sm:$0xff]
  %v265 = vld [vmem:[%s8 + $0x638] sm:$0xff]
  %v266 = vld [vmem:[%s8 + $0x640] sm:$0xff]
  %v267 = vld [vmem:[%s8 + $0x648] sm:$0xff]
  %v268 = vld [vmem:[%s8 + $0x650] sm:$0xff]
  %v269 = vld [vmem:[%s8 + $0x658] sm:$0xff]
  %v270 = vld [vmem:[%s8 + $0x660] sm:$0xff]
  %v271 = vld [vmem:[%s8 + $0x668] sm:$0xff]
  %v272 = vld [vmem:[%s8 + $0x670] sm:$0xff]
  %v273 = vld [vmem:[%s8 + $0x678] sm:$0xff]
  %v274 = vld [vmem:[%s8 + $0x680] sm:$0xff]
  %v275 = vld [vmem:[%s8 + $0x688] sm:$0xff]
  %v276 = vld [vmem:[%s8 + $0x690] sm:$0xff]
  %v277 = vld [vmem:[%s8 + $0x698] sm:$0xff]
  %v278 = vld [vmem:[%s8 + $0x6a0] sm:$0xff]
  %v279 = vld [vmem:[%s8 + $0x6a8] sm:$0xff]
  %v280 = vld [vmem:[%s8 + $0x6b0] sm:$0xff]
  %v281 = vld [vmem:[%s8 + $0x6b8] sm:$0xff]
  %v282 = vld [vmem:[%s8 + $0x6c0] sm:$0xff]
  %v283 = vld [vmem:[%s8 + $0x6c8] sm:$0xff]
  %v284 = vld [vmem:[%s8 + $0x6d0] sm:$0xff]
  %v285 = vld [vmem:[%s8 + $0x6d8] sm:$0xff]
  %v286 = vld [vmem:[%s8 + $0x6e0] sm:$0xff]
  %v287 = vld [vmem:[%s8 + $0x6e8] sm:$0xff]
  %v288 = vld [vmem:[%s8 + $0x6f0] sm:$0xff]
  %v289 = vld [vmem:[%s8 + $0x6f8] sm:$0xff]
  %v290 = vld [vmem:[%s8 + $0x700] sm:$0xff]
  %v291 = vld [vmem:[%s8 + $0x708] sm:$0xff]
  %v292 = vld [vmem:[%s8 + $0x710] sm:$0xff]
  %v293 = vld [vmem:[%s8 + $0x718] sm:$0xff]
  %v294 = vld [vmem:[%s8 + $0x720] sm:$0xff]
  %v295 = vld [vmem:[%s8 + $0x728] sm:$0xff]
  %v296 = vld [vmem:[%s8 + $0x730] sm:$0xff]
  %v297 = vld [vmem:[%s8 + $0x738] sm:$0xff]
  %v298 = vld [vmem:[%s8 + $0x740] sm:$0xff]
  %v299 = vld [vmem:[%s8 + $0x748] sm:$0xff]
  %v300 = vld [vmem:[%s8 + $0x750] sm:$0xff]
  %v301 = vld [vmem:[%s8 + $0x758] sm:$0xff]
  %v302 = vld [vmem:[%s8 + $0x760] sm:$0xff]
  %v303 = vld [vmem:[%s8 + $0x768] sm:$0xff]
  %v304 = vld [vmem:[%s8 + $0x770] sm:$0xff]
  %v305 = vld [vmem:[%s8 + $0x778] sm:$0xff]
  %v306 = vld [vmem:[%s8 + $0x780] sm:$0xff]
  %v307 = vld [vmem:[%s8 + $0x788] sm:$0xff]
  %v308 = vld [vmem:[%s8 + $0x790] sm:$0xff]
  %v309 = vld [vmem:[%s8 + $0x798] sm:$0xff]
  %v310 = vld [vmem:[%s8 + $0x7a0] sm:$0xff]
  %v311 = vld [vmem:[%s8 + $0x7a8] sm:$0xff]
  %v312 = vld [vmem:[%s8 + $0x7b0] sm:$0xff]
  %v313 = vld [vmem:[%s8 + $0x7b8] sm:$0xff]
  %v314 = vld [vmem:[%s8 + $0x7c0] sm:$0xff]
  %v315 = vld [vmem:[%s8 + $0x7c8] sm:$0xff]
  %v316 = vld [vmem:[%s8 + $0x7d0] sm:$0xff]
  %v317 = vld [vmem:[%s8 + $0x7d8] sm:$0xff]
  %v318 = vld [vmem:[%s8 + $0x7e0] sm:$0xff]
  %v319 = vld [vmem:[%s8 + $0x7e8] sm:$0xff]
  %v320 = vld [vmem:[%s8 + $0x7f0] sm:$0xff]
  %v321 = vld [vmem:[%s8 + $0x7f8] sm:$0xff]
  %v322 = vld [vmem:[%s8 + $0x800] sm:$0xff]
  %v323 = vld [vmem:[%s8 + $0x808] sm:$0xff]
  %v324 = vld [vmem:[%s8 + $0x810] sm:$0xff]
  %v325 = vld [vmem:[%s8 + $0x818] sm:$0xff]
  %v326 = vld [vmem:[%s8 + $0x820] sm:$0xff]
  %v327 = vld [vmem:[%s8 + $0x828] sm:$0xff]
  %v328 = vld [vmem:[%s8 + $0x830] sm:$0xff]
  %v329 = vld [vmem:[%s8 + $0x838] sm:$0xff]
  %v330 = vld [vmem:[%s8 + $0x840] sm:$0xff]
  %v331 = vld [vmem:[%s8 + $0x848] sm:$0xff]
  %v332 = vld [vmem:[%s8 + $0x850] sm:$0xff]
  %v333 = vld [vmem:[%s8 + $0x858] sm:$0xff]
  %v334 = vld [vmem:[%s8 + $0x860] sm:$0xff]
  %v335 = vld [vmem:[%s8 + $0x868] sm:$0xff]
  %v336 = vld [vmem:[%s8 + $0x870] sm:$0xff]
  %v337 = vld [vmem:[%s8 + $0x878] sm:$0xff]
  %v338 = vld [vmem:[%s8 + $0x880] sm:$0xff]
  %v339 = vld [vmem:[%s8 + $0x888] sm:$0xff]
  %v340 = vld [vmem:[%s8 + $0x890] sm:$0xff]
  %v341 = vld [vmem:[%s8 + $0x898] sm:$0xff]
  %v342 = vld [vmem:[%s8 + $0x8a0] sm:$0xff]
  %v343 = vld [vmem:[%s8 + $0x8a8] sm:$0xff]
  %v344 = vld [vmem:[%s8 + $0x8b0] sm:$0xff]
  %v345 = vld [vmem:[%s8 + $0x8b8] sm:$0xff]
  %v346 = vld [vmem:[%s8 + $0x8c0] sm:$0xff]
  %v347 = vld [vmem:[%s8 + $0x8c8] sm:$0xff]
  %v348 = vld [vmem:[%s8 + $0x8d0] sm:$0xff]
  %v349 = vld [vmem:[%s8 + $0x8d8] sm:$0xff]
  %v350 = vld [vmem:[%s8 + $0x8e0] sm:$0xff]
  %v351 = vld [vmem:[%s8 + $0x8e8] sm:$0xff]
  %v352 = vld [vmem:[%s8 + $0x8f0] sm:$0xff]
  %v353 = vld [vmem:[%s8 + $0x8f8] sm:$0xff]
  %v354 = vld [vmem:[%s8 + $0x900] sm:$0xff]
  %v355 = vld [vmem:[%s8 + $0x908] sm:$0xff]
  %v356 = vld [vmem:[%s8 + $0x910] sm:$0xff]
  %v357 = vld [vmem:[%s8 + $0x918] sm:$0xff]
  %v358 = vld [vmem:[%s8 + $0x920] sm:$0xff]
  %v359 = vld [vmem:[%s8 + $0x928] sm:$0xff]
  %v360 = vld [vmem:[%s8 + $0x930] sm:$0xff]
  %v361 = vld [vmem:[%s8 + $0x938] sm:$0xff]
  %v362 = vld [vmem:[%s8 + $0x940] sm:$0xff]
  %v363 = vld [vmem:[%s8 + $0x948] sm:$0xff]
  %v364 = vld [vmem:[%s8 + $0x950] sm:$0xff]
  %v365 = vld [vmem:[%s8 + $0x958] sm:$0xff]
  %v366 = vld [vmem:[%s8 + $0x960] sm:$0xff]
  %v367 = vld [vmem:[%s8 + $0x968] sm:$0xff]
  %v368 = vld [vmem:[%s8 + $0x970] sm:$0xff]
  %v369 = vld [vmem:[%s8 + $0x978] sm:$0xff]
  %v370 = vld [vmem:[%s8 + $0x980] sm:$0xff]
  %v371 = vld [vmem:[%s8 + $0x988] sm:$0xff]
  %v372 = vld [vmem:[%s8 + $0x990] sm:$0xff]
  %v373 = vld [vmem:[%s8 + $0x998] sm:$0xff]
  %v374 = vld [vmem:[%s8 + $0x9a0] sm:$0xff]
  %v375 = vld [vmem:[%s8 + $0x9a8] sm:$0xff]
  %v376 = vld [vmem:[%s8 + $0x9b0] sm:$0xff]
  %v377 = vld [vmem:[%s8 + $0x9b8] sm:$0xff]
  %v378 = vld [vmem:[%s8 + $0x9c0] sm:$0xff]
  %v379 = vld [vmem:[%s8 + $0x9c8] sm:$0xff]
  %v380 = vld [vmem:[%s8 + $0x9d0] sm:$0xff]
  %v381 = vld [vmem:[%s8 + $0x9d8] sm:$0xff]
  %v382 = vld [vmem:[%s8 + $0x9e0] sm:$0xff]
  %v383 = vld [vmem:[%s8 + $0x9e8] sm:$0xff]
  %v384 = vld [vmem:[%s8 + $0x9f0] sm:$0xff]
  %v385 = vld [vmem:[%s8 + $0x9f8] sm:$0xff]
  %v386 = vld [vmem:[%s8 + $0xa00] sm:$0xff]
  %v387 = vld [vmem:[%s8 + $0xa08] sm:$0xff]
  %v388 = vld [vmem:[%s8 + $0xa10] sm:$0xff]
  %v389 = vld [vmem:[%s8 + $0xa18] sm:$0xff]
  %v390 = vld [vmem:[%s8 + $0xa20] sm:$0xff]
  %v391 = vld [vmem:[%s8 + $0xa28] sm:$0xff]
  %v392 = vld [vmem:[%s8 + $0xa30] sm:$0xff]
  %v393 = vld [vmem:[%s8 + $0xa38] sm:$0xff]
  %v394 = vld [vmem:[%s8 + $0xa40] sm:$0xff]
  %v395 = vld [vmem:[%s8 + $0xa48] sm:$0xff]
  %v396 = vld [vmem:[%s8 + $0xa50] sm:$0xff]
  %v397 = vld [vmem:[%s8 + $0xa58] sm:$0xff]
  %v398 = vld [vmem:[%s8 + $0xa60] sm:$0xff]
  %v399 = vld [vmem:[%s8 + $0xa68] sm:$0xff]
  %v400 = vld [vmem:[%s8 + $0xa70] sm:$0xff]
  %v401 = vld [vmem:[%s8 + $0xa78] sm:$0xff]
  %v402 = vld [vmem:[%s8 + $0xa80] sm:$0xff]
  %v403 = vld [vmem:[%s8 + $0xa88] sm:$0xff]
  %v404 = vld [vmem:[%s8 + $0xa90] sm:$0xff]
  %v405 = vld [vmem:[%s8 + $0xa98] sm:$0xff]
  %v406 = vld [vmem:[%s8 + $0xaa0] sm:$0xff]
  %v407 = vld [vmem:[%s8 + $0xaa8] sm:$0xff]
  %v408 = vld [vmem:[%s8 + $0xab0] sm:$0xff]
  %v409 = vld [vmem:[%s8 + $0xab8] sm:$0xff]
  %v410 = vld [vmem:[%s8 + $0xac0] sm:$0xff]
  %v411 = vld [vmem:[%s8 + $0xac8] sm:$0xff]
  %v412 = vld [vmem:[%s8 + $0xad0] sm:$0xff]
  %v413 = vld [vmem:[%s8 + $0xad8] sm:$0xff]
  %v414 = vld [vmem:[%s8 + $0xae0] sm:$0xff]
  %v415 = vld [vmem:[%s8 + $0xae8] sm:$0xff]
  %v416 = vld [vmem:[%s8 + $0xaf0] sm:$0xff]
  %v417 = vld [vmem:[%s8 + $0xaf8] sm:$0xff]
  %v418 = vld [vmem:[%s8 + $0xb00] sm:$0xff]
  %v419 = vld [vmem:[%s8 + $0xb08] sm:$0xff]
  %v420 = vld [vmem:[%s8 + $0xb10] sm:$0xff]
  %v421 = vld [vmem:[%s8 + $0xb18] sm:$0xff]
  %v422 = vld [vmem:[%s8 + $0xb20] sm:$0xff]
  %v423 = vld [vmem:[%s8 + $0xb28] sm:$0xff]
  %v424 = vld [vmem:[%s8 + $0xb30] sm:$0xff]
  %v425 = vld [vmem:[%s8 + $0xb38] sm:$0xff]
  %v426 = vld [vmem:[%s8 + $0xb40] sm:$0xff]
  %v427 = vld [vmem:[%s8 + $0xb48] sm:$0xff]
  %v428 = vld [vmem:[%s8 + $0xb50] sm:$0xff]
  %v429 = vld [vmem:[%s8 + $0xb58] sm:$0xff]
  %v430 = vld [vmem:[%s8 + $0xb60] sm:$0xff]
  %v431 = vld [vmem:[%s8 + $0xb68] sm:$0xff]
  %v432 = vld [vmem:[%s8 + $0xb70] sm:$0xff]
  %v433 = vld [vmem:[%s8 + $0xb78] sm:$0xff]
  %v434 = vld [vmem:[%s8 + $0xb80] sm:$0xff]
  %v435 = vld [vmem:[%s8 + $0xb88] sm:$0xff]
  %v436 = vld [vmem:[%s8 + $0xb90] sm:$0xff]
  %v437 = vld [vmem:[%s8 + $0xb98] sm:$0xff]
  %v438 = vld [vmem:[%s8 + $0xba0] sm:$0xff]
  %v439 = vld [vmem:[%s8 + $0xba8] sm:$0xff]
  %v440 = vld [vmem:[%s8 + $0xbb0] sm:$0xff]
  %v441 = vld [vmem:[%s8 + $0xbb8] sm:$0xff]
  %v442 = vld [vmem:[%s8 + $0xbc0] sm:$0xff]
  %v443 = vld [vmem:[%s8 + $0xbc8] sm:$0xff]
  %v444 = vld [vmem:[%s8 + $0xbd0] sm:$0xff]
  %v445 = vld [vmem:[%s8 + $0xbd8] sm:$0xff]
  %v446 = vld [vmem:[%s8 + $0xbe0] sm:$0xff]
  %v447 = vld [vmem:[%s8 + $0xbe8] sm:$0xff]
  %v448 = vld [vmem:[%s8 + $0xbf0] sm:$0xff]
  %v449 = vld [vmem:[%s8 + $0xbf8] sm:$0xff]
  %v450 = vld [vmem:[%s8 + $0xc00] sm:$0xff]
  %v451 = vld [vmem:[%s8 + $0xc08] sm:$0xff]
  %v452 = vld [vmem:[%s8 + $0xc10] sm:$0xff]
  %v453 = vld [vmem:[%s8 + $0xc18] sm:$0xff]
  %v454 = vld [vmem:[%s8 + $0xc20] sm:$0xff]
  %v455 = vld [vmem:[%s8 + $0xc28] sm:$0xff]
  %v456 = vld [vmem:[%s8 + $0xc30] sm:$0xff]
  %v457 = vld [vmem:[%s8 + $0xc38] sm:$0xff]
  %v458 = vld [vmem:[%s8 + $0xc40] sm:$0xff]
  %v459 = vld [vmem:[%s8 + $0xc48] sm:$0xff]
  %v460 = vld [vmem:[%s8 + $0xc50] sm:$0xff]
  %v461 = vld [vmem:[%s8 + $0xc58] sm:$0xff]
  %v462 = vld [vmem:[%s8 + $0xc60] sm:$0xff]
  %v463 = vld [vmem:[%s8 + $0xc68] sm:$0xff]
  %v464 = vld [vmem:[%s8 + $0xc70] sm:$0xff]
  %v465 = vld [vmem:[%s8 + $0xc78] sm:$0xff]
  %v466 = vld [vmem:[%s8 + $0xc80] sm:$0xff]
  %v467 = vld [vmem:[%s8 + $0xc88] sm:$0xff]
  %v468 = vld [vmem:[%s8 + $0xc90] sm:$0xff]
  %v469 = vld [vmem:[%s8 + $0xc98] sm:$0xff]
  %v470 = vld [vmem:[%s8 + $0xca0] sm:$0xff]
  %v471 = vld [vmem:[%s8 + $0xca8] sm:$0xff]
  %v472 = vld [vmem:[%s8 + $0xcb0] sm:$0xff]
  %v473 = vld [vmem:[%s8 + $0xcb8] sm:$0xff]
  %v474 = vld [vmem:[%s8 + $0xcc0] sm:$0xff]
  %v475 = vld [vmem:[%s8 + $0xcc8] sm:$0xff]
  %v476 = vld [vmem:[%s8 + $0xcd0] sm:$0xff]
  %v477 = vld [vmem:[%s8 + $0xcd8] sm:$0xff]
  %v478 = vld [vmem:[%s8 + $0xce0] sm:$0xff]
  %v479 = vld [vmem:[%s8 + $0xce8] sm:$0xff]
  %v480 = vld [vmem:[%s8 + $0xcf0] sm:$0xff]
  %v481 = vld [vmem:[%s8 + $0xcf8] sm:$0xff]
  %v482 = vld [vmem:[%s1] sm:$0x7]
  %v483 = vld [vmem:[%s2] sm:$0x3f]
  %485 = vset.pattern.permute.xlu0 0
  %486 = vperm.xlu0 %485, %v483
  %v487 = vpop.permute.xlu0 %486
  %v496 = vunpack.c.l.b16 %v33
  %v497 = vunpack.c.h.b16 %v33
  %v498 = vunpack.c.l.b16 %v34
  %v499 = vunpack.c.h.b16 %v34
  %v500 = vunpack.c.l.b16 %v35
  %v501 = vunpack.c.h.b16 %v35
  %v502 = vunpack.c.l.b16 %v36
  %v503 = vunpack.c.h.b16 %v36
  %v504 = vunpack.c.l.b16 %v37
  %v505 = vunpack.c.h.b16 %v37
  %v506 = vunpack.c.l.b16 %v38
  %v507 = vunpack.c.h.b16 %v38
  %v508 = vunpack.c.l.b16 %v39
  %v509 = vpack.c.b16 %v496, %v496
  %v510 = vpack.c.b16 %v497, %v497
  %v511 = vpack.c.b16 %v498, %v498
  %v512 = vpack.c.b16 %v499, %v499
  %v513 = vpack.c.b16 %v500, %v500
  %v514 = vpack.c.b16 %v501, %v501
  %v515 = vpack.c.b16 %v502, %v502
  %v516 = vpack.c.b16 %v503, %v503
  %v517 = vpack.c.b16 %v504, %v504
  %v518 = vpack.c.b16 %v505, %v505
  %v519 = vpack.c.b16 %v506, %v506
  %v520 = vpack.c.b16 %v507, %v507
  %v521 = vpack.c.b16 %v508, %v508
  %vm522 = vcmask 64512
  %v524 = vsel %vm522, %v482, 0
  %vm526 = vcmask 1043456
  %v528 = vsel %vm526, %v509, 0
  %v531 = vsel %vm526, %v510, 0
  %v534 = vsel %vm526, %v511, 0
  %v537 = vsel %vm526, %v512, 0
  %v540 = vsel %vm526, %v513, 0
  %v543 = vsel %vm526, %v514, 0
  %v546 = vsel %vm526, %v515, 0
  %v549 = vsel %vm526, %v516, 0
  %v552 = vsel %vm526, %v517, 0
  %v555 = vsel %vm526, %v518, 0
  %v558 = vsel %vm526, %v519, 0
  %v561 = vsel %vm526, %v520, 0
  %v564 = vsel %vm526, %v521, 0
  %566 = vmatpush.bf16.msra.mxu0 0
  %567 = vmatpush.bf16.msra.mxu0 0
  %568 = vmatpush.bf16.msra.mxu0 0
  %569 = vmatpush.bf16.msra.mxu0 0
  %570 = vmatpush.bf16.msra.mxu0 0
  %571 = vmatpush.bf16.msra.mxu0 0
  %572 = vmatpush.bf16.msra.mxu0 0
  %573 = vmatpush.bf16.msra.mxu0 %v528
  %574 = vmatmul.bf16.gmra.mxu0 %v524
  %v575 = vpop.f32.mrf.mxu0
  %v576 = vadd.f32 %v487, %v575
  %v577 = vpop.f32.mrf.mxu0
  %578 = vdwg.mxu0
  %579 = vmatpush.bf16.msra.mxu0 0
  %580 = vmatpush.bf16.msra.mxu0 0
  %581 = vmatpush.bf16.msra.mxu0 0
  %582 = vmatpush.bf16.msra.mxu0 0
  %583 = vmatpush.bf16.msra.mxu0 0
  %584 = vmatpush.bf16.msra.mxu0 0
  %585 = vmatpush.bf16.msra.mxu0 0
  %586 = vmatpush.bf16.msra.mxu0 %v531
  %587 = vmatmul.bf16.gmra.mxu0 %v524
  %v588 = vpop.f32.mrf.mxu0
  %v589 = vadd.f32 %v487, %v588
  %v590 = vpop.f32.mrf.mxu0
  %591 = vdwg.mxu0
  %592 = vmatpush.bf16.msra.mxu0 0
  %593 = vmatpush.bf16.msra.mxu0 0
  %594 = vmatpush.bf16.msra.mxu0 0
  %595 = vmatpush.bf16.msra.mxu0 0
  %596 = vmatpush.bf16.msra.mxu0 0
  %597 = vmatpush.bf16.msra.mxu0 0
  %598 = vmatpush.bf16.msra.mxu0 0
  %599 = vmatpush.bf16.msra.mxu0 %v534
  %600 = vmatmul.bf16.gmra.mxu0 %v524
  %v601 = vpop.f32.mrf.mxu0
  %v602 = vadd.f32 %v487, %v601
  %v603 = vpop.f32.mrf.mxu0
  %604 = vdwg.mxu0
  %605 = vmatpush.bf16.msra.mxu0 0
  %606 = vmatpush.bf16.msra.mxu0 0
  %607 = vmatpush.bf16.msra.mxu0 0
  %608 = vmatpush.bf16.msra.mxu0 0
  %609 = vmatpush.bf16.msra.mxu0 0
  %610 = vmatpush.bf16.msra.mxu0 0
  %611 = vmatpush.bf16.msra.mxu0 0
  %612 = vmatpush.bf16.msra.mxu0 %v537
  %613 = vmatmul.bf16.gmra.mxu0 %v524
  %v614 = vpop.f32.mrf.mxu0
  %v615 = vadd.f32 %v487, %v614
  %v616 = vpop.f32.mrf.mxu0
  %617 = vdwg.mxu0
  %618 = vmatpush.bf16.msra.mxu0 0
  %619 = vmatpush.bf16.msra.mxu0 0
  %620 = vmatpush.bf16.msra.mxu0 0
  %621 = vmatpush.bf16.msra.mxu0 0
  %622 = vmatpush.bf16.msra.mxu0 0
  %623 = vmatpush.bf16.msra.mxu0 0
  %624 = vmatpush.bf16.msra.mxu0 0
  %625 = vmatpush.bf16.msra.mxu0 %v540
  %626 = vmatmul.bf16.gmra.mxu0 %v524
  %v627 = vpop.f32.mrf.mxu0
  %v628 = vadd.f32 %v487, %v627
  %v629 = vpop.f32.mrf.mxu0
  %630 = vdwg.mxu0
  %631 = vmatpush.bf16.msra.mxu0 0
  %632 = vmatpush.bf16.msra.mxu0 0
  %633 = vmatpush.bf16.msra.mxu0 0
  %634 = vmatpush.bf16.msra.mxu0 0
  %635 = vmatpush.bf16.msra.mxu0 0
  %636 = vmatpush.bf16.msra.mxu0 0
  %637 = vmatpush.bf16.msra.mxu0 0
  %638 = vmatpush.bf16.msra.mxu0 %v543
  %639 = vmatmul.bf16.gmra.mxu0 %v524
  %v640 = vpop.f32.mrf.mxu0
  %v641 = vadd.f32 %v487, %v640
  %v642 = vpop.f32.mrf.mxu0
  %643 = vdwg.mxu0
  %644 = vmatpush.bf16.msra.mxu0 0
  %645 = vmatpush.bf16.msra.mxu0 0
  %646 = vmatpush.bf16.msra.mxu0 0
  %647 = vmatpush.bf16.msra.mxu0 0
  %648 = vmatpush.bf16.msra.mxu0 0
  %649 = vmatpush.bf16.msra.mxu0 0
  %650 = vmatpush.bf16.msra.mxu0 0
  %651 = vmatpush.bf16.msra.mxu0 %v546
  %652 = vmatmul.bf16.gmra.mxu0 %v524
  %v653 = vpop.f32.mrf.mxu0
  %v654 = vadd.f32 %v487, %v653
  %v655 = vpop.f32.mrf.mxu0
  %656 = vdwg.mxu0
  %657 = vmatpush.bf16.msra.mxu0 0
  %658 = vmatpush.bf16.msra.mxu0 0
  %659 = vmatpush.bf16.msra.mxu0 0
  %660 = vmatpush.bf16.msra.mxu0 0
  %661 = vmatpush.bf16.msra.mxu0 0
  %662 = vmatpush.bf16.msra.mxu0 0
  %663 = vmatpush.bf16.msra.mxu0 0
  %664 = vmatpush.bf16.msra.mxu0 %v549
  %665 = vmatmul.bf16.gmra.mxu0 %v524
  %v666 = vpop.f32.mrf.mxu0
  %v667 = vadd.f32 %v487, %v666
  %v668 = vpop.f32.mrf.mxu0
  %669 = vdwg.mxu0
  %670 = vmatpush.bf16.msra.mxu0 0
  %671 = vmatpush.bf16.msra.mxu0 0
  %672 = vmatpush.bf16.msra.mxu0 0
  %673 = vmatpush.bf16.msra.mxu0 0
  %674 = vmatpush.bf16.msra.mxu0 0
  %675 = vmatpush.bf16.msra.mxu0 0
  %676 = vmatpush.bf16.msra.mxu0 0
  %677 = vmatpush.bf16.msra.mxu0 %v552
  %678 = vmatmul.bf16.gmra.mxu0 %v524
  %v679 = vpop.f32.mrf.mxu0
  %v680 = vadd.f32 %v487, %v679
  %v681 = vpop.f32.mrf.mxu0
  %682 = vdwg.mxu0
  %683 = vmatpush.bf16.msra.mxu0 0
  %684 = vmatpush.bf16.msra.mxu0 0
  %685 = vmatpush.bf16.msra.mxu0 0
  %686 = vmatpush.bf16.msra.mxu0 0
  %687 = vmatpush.bf16.msra.mxu0 0
  %688 = vmatpush.bf16.msra.mxu0 0
  %689 = vmatpush.bf16.msra.mxu0 0
  %690 = vmatpush.bf16.msra.mxu0 %v555
  %691 = vmatmul.bf16.gmra.mxu0 %v524
  %v692 = vpop.f32.mrf.mxu0
  %v693 = vadd.f32 %v487, %v692
  %v694 = vpop.f32.mrf.mxu0
  %695 = vdwg.mxu0
  %696 = vmatpush.bf16.msra.mxu0 0
  %697 = vmatpush.bf16.msra.mxu0 0
  %698 = vmatpush.bf16.msra.mxu0 0
  %699 = vmatpush.bf16.msra.mxu0 0
  %700 = vmatpush.bf16.msra.mxu0 0
  %701 = vmatpush.bf16.msra.mxu0 0
  %702 = vmatpush.bf16.msra.mxu0 0
  %703 = vmatpush.bf16.msra.mxu0 %v558
  %704 = vmatmul.bf16.gmra.mxu0 %v524
  %v705 = vpop.f32.mrf.mxu0
  %v706 = vadd.f32 %v487, %v705
  %v707 = vpop.f32.mrf.mxu0
  %708 = vdwg.mxu0
  %709 = vmatpush.bf16.msra.mxu0 0
  %710 = vmatpush.bf16.msra.mxu0 0
  %711 = vmatpush.bf16.msra.mxu0 0
  %712 = vmatpush.bf16.msra.mxu0 0
  %713 = vmatpush.bf16.msra.mxu0 0
  %714 = vmatpush.bf16.msra.mxu0 0
  %715 = vmatpush.bf16.msra.mxu0 0
  %716 = vmatpush.bf16.msra.mxu0 %v561
  %717 = vmatmul.bf16.gmra.mxu0 %v524
  %v718 = vpop.f32.mrf.mxu0
  %v719 = vadd.f32 %v487, %v718
  %v720 = vpop.f32.mrf.mxu0
  %721 = vdwg.mxu0
  %722 = vmatpush.bf16.msra.mxu0 0
  %723 = vmatpush.bf16.msra.mxu0 0
  %724 = vmatpush.bf16.msra.mxu0 0
  %725 = vmatpush.bf16.msra.mxu0 0
  %726 = vmatpush.bf16.msra.mxu0 0
  %727 = vmatpush.bf16.msra.mxu0 0
  %728 = vmatpush.bf16.msra.mxu0 0
  %729 = vmatpush.bf16.msra.mxu0 %v564
  %730 = vmatmul.bf16.gmra.mxu0 %v524
  %v731 = vpop.f32.mrf.mxu0
  %v732 = vadd.f32 %v487, %v731
  %v733 = vpop.f32.mrf.mxu0
  %734 = vdwg.mxu0
  %v735 = vmax.f32 %v576, 0.0
  %v736 = vmax.f32 %v589, 0.0
  %v737 = vmax.f32 %v602, 0.0
  %v738 = vmax.f32 %v615, 0.0
  %v739 = vmax.f32 %v628, 0.0
  %v740 = vmax.f32 %v641, 0.0
  %v741 = vmax.f32 %v654, 0.0
  %v742 = vmax.f32 %v667, 0.0
  %v743 = vmax.f32 %v680, 0.0
  %v744 = vmax.f32 %v693, 0.0
  %v745 = vmax.f32 %v706, 0.0
  %v746 = vmax.f32 %v719, 0.0
  %v747 = vmax.f32 %v732, 0.0
  %748 = vst [vmem:[#allocation2] sm:$0x3f] 0.0
  %749 = vst [vmem:[#allocation2 + $0x8] sm:$0x3f] 0.0
  %750 = vst [vmem:[#allocation2 + $0x10] sm:$0x3f] 0.0
  %751 = vst [vmem:[#allocation2 + $0x18] sm:$0x3f] 0.0
  %752 = vst [vmem:[#allocation2 + $0x20] sm:$0x3f] 0.0
  %753 = vst [vmem:[#allocation2 + $0x28] sm:$0x3f] 0.0
  %754 = vst [vmem:[#allocation2 + $0x30] sm:$0x3f] 0.0
  %755 = vst [vmem:[#allocation2 + $0x38] sm:$0x3f] 0.0
  %756 = vst [vmem:[#allocation2 + $0x40] sm:$0x3f] 0.0
  %757 = vst [vmem:[#allocation2 + $0x48] sm:$0x3f] 0.0
  %758 = vst [vmem:[#allocation2 + $0x50] sm:$0x3f] 0.0
  %759 = vst [vmem:[#allocation2 + $0x58] sm:$0x3f] 0.0
  %760 = vst [vmem:[#allocation2 + $0x60] sm:$0x3f] 0.0
  %vm761 = vcmask 472064
  %762 = vst.msk [vmem:[#allocation2 + $0x68] sm:$0x3f] %vm761, 0.0
  %776 = vrot.lane.b32.xlu0 %v735, 29
  %v777 = vpop.permute.xlu0 %776
  %778 = vrot.lane.b32.xlu0 %v736, 29
  %v779 = vpop.permute.xlu0 %778
  %780 = vrot.lane.b32.xlu0 %v737, 29
  %v781 = vpop.permute.xlu0 %780
  %782 = vrot.lane.b32.xlu0 %v738, 29
  %v783 = vpop.permute.xlu0 %782
  %784 = vrot.lane.b32.xlu0 %v739, 29
  %v785 = vpop.permute.xlu0 %784
  %786 = vrot.lane.b32.xlu0 %v740, 29
  %v787 = vpop.permute.xlu0 %786
  %788 = vrot.lane.b32.xlu0 %v741, 29
  %v789 = vpop.permute.xlu0 %788
  %790 = vrot.lane.b32.xlu0 %v742, 29
  %v791 = vpop.permute.xlu0 %790
  %792 = vrot.lane.b32.xlu0 %v743, 29
  %v793 = vpop.permute.xlu0 %792
  %794 = vrot.lane.b32.xlu0 %v744, 29
  %v795 = vpop.permute.xlu0 %794
  %796 = vrot.lane.b32.xlu0 %v745, 29
  %v797 = vpop.permute.xlu0 %796
  %798 = vrot.lane.b32.xlu0 %v746, 29
  %v799 = vpop.permute.xlu0 %798
  %800 = vrot.lane.b32.xlu0 %v747, 29
  %v801 = vpop.permute.xlu0 %800
  %vm802 = vcmask 236544
  %v803 = vsel %vm802, %v777, %v779
  %v804 = vsel %vm802, %v779, %v781
  %v805 = vsel %vm802, %v781, %v783
  %v806 = vsel %vm802, %v783, %v785
  %v807 = vsel %vm802, %v785, %v787
  %v808 = vsel %vm802, %v787, %v789
  %v809 = vsel %vm802, %v789, %v791
  %v810 = vsel %vm802, %v791, %v793
  %v811 = vsel %vm802, %v793, %v795
  %v812 = vsel %vm802, %v795, %v797
  %v813 = vsel %vm802, %v797, %v799
  %v814 = vsel %vm802, %v799, %v801
  %vm829 = vcmask 1045736
  %830 = vst.msk [vmem:[#allocation2] sm:$0x3f] %vm829, %v777
  %831 = vst [vmem:[#allocation2 + $0x8] sm:$0x3f] %v803
  %832 = vst [vmem:[#allocation2 + $0x10] sm:$0x3f] %v804
  %833 = vst [vmem:[#allocation2 + $0x18] sm:$0x3f] %v805
  %834 = vst [vmem:[#allocation2 + $0x20] sm:$0x3f] %v806
  %835 = vst [vmem:[#allocation2 + $0x28] sm:$0x3f] %v807
  %836 = vst [vmem:[#allocation2 + $0x30] sm:$0x3f] %v808
  %837 = vst [vmem:[#allocation2 + $0x38] sm:$0x3f] %v809
  %838 = vst [vmem:[#allocation2 + $0x40] sm:$0x3f] %v810
  %839 = vst [vmem:[#allocation2 + $0x48] sm:$0x3f] %v811
  %840 = vst [vmem:[#allocation2 + $0x50] sm:$0x3f] %v812
  %841 = vst [vmem:[#allocation2 + $0x58] sm:$0x3f] %v813
  %842 = vst [vmem:[#allocation2 + $0x60] sm:$0x3f] %v814
  %vm843 = vcmask 234496
  %844 = vst.msk [vmem:[#allocation2 + $0x68] sm:$0x3f] %vm843, %v801
  %v845 = vld [vmem:[%s3] sm:$0x3f]
  %v846 = vld [vmem:[#allocation2] sm:$0x3f]
  %v847 = vld [vmem:[#allocation2 + $0x8] sm:$0x3f]
  %v848 = vld [vmem:[#allocation2 + $0x10] sm:$0x3f]
  %v849 = vld [vmem:[#allocation2 + $0x18] sm:$0x3f]
  %v850 = vld [vmem:[#allocation2 + $0x20] sm:$0x3f]
  %v851 = vld [vmem:[#allocation2 + $0x28] sm:$0x3f]
  %v852 = vld [vmem:[#allocation2 + $0x30] sm:$0x3f]
  %v853 = vld [vmem:[#allocation2 + $0x38] sm:$0x3f]
  %v854 = vld [vmem:[#allocation2 + $0x40] sm:$0x3f]
  %v855 = vld [vmem:[#allocation2 + $0x48] sm:$0x3f]
  %v856 = vld [vmem:[#allocation2 + $0x50] sm:$0x3f]
  %v857 = vld [vmem:[#allocation2 + $0x58] sm:$0x3f]
  %v858 = vld [vmem:[#allocation2 + $0x60] sm:$0x3f]
  %v859 = vperm.slane %v40, 0
  %v860 = vperm.slane %v41, 0
  %v861 = vperm.slane %v42, 0
  %v862 = vperm.slane %v43, 0
  %v863 = vperm.slane %v44, 0
  %v864 = vperm.slane %v45, 0
  %v865 = vperm.slane %v46, 0
  %v866 = vperm.slane %v47, 0
  %v867 = vperm.slane %v48, 0
  %v868 = vperm.slane %v49, 0
  %v869 = vperm.slane %v50, 0
  %v870 = vperm.slane %v51, 0
  %v871 = vperm.slane %v52, 0
  %v872 = vmul.f32 %v846, %v859
  %v873 = vmul.f32 %v847, %v860
  %v874 = vmul.f32 %v848, %v861
  %v875 = vmul.f32 %v849, %v862
  %v876 = vmul.f32 %v850, %v863
  %v877 = vmul.f32 %v851, %v864
  %v878 = vmul.f32 %v852, %v865
  %v879 = vmul.f32 %v853, %v866
  %v880 = vmul.f32 %v854, %v867
  %v881 = vmul.f32 %v855, %v868
  %v882 = vmul.f32 %v856, %v869
  %v883 = vmul.f32 %v857, %v870
  %v884 = vmul.f32 %v858, %v871
  %886 = vset.pattern.permute.xlu0 0
  %887 = vperm.xlu0 %886, %v845
  %v888 = vpop.permute.xlu0 %887
  %v890 = vmul.f32 %v872, %v888
  %v891 = vmul.f32 %v873, %v888
  %v892 = vmul.f32 %v874, %v888
  %v893 = vmul.f32 %v875, %v888
  %v894 = vmul.f32 %v876, %v888
  %v895 = vmul.f32 %v877, %v888
  %v896 = vmul.f32 %v878, %v888
  %v897 = vmul.f32 %v879, %v888
  %v898 = vmul.f32 %v880, %v888
  %v899 = vmul.f32 %v881, %v888
  %v900 = vmul.f32 %v882, %v888
  %v901 = vmul.f32 %v883, %v888
  %v902 = vmul.f32 %v884, %v888
  %v903 = vld [vmem:[#allocation2] sm:$0x3f]
  %v904 = vld [vmem:[#allocation2 + $0x8] sm:$0x3f]
  %v905 = vld [vmem:[#allocation2 + $0x10] sm:$0x3f]
  %v906 = vld [vmem:[#allocation2 + $0x18] sm:$0x3f]
  %v907 = vld [vmem:[#allocation2 + $0x20] sm:$0x3f]
  %v908 = vld [vmem:[#allocation2 + $0x28] sm:$0x3f]
  %v909 = vld [vmem:[#allocation2 + $0x30] sm:$0x3f]
  %v910 = vld [vmem:[#allocation2 + $0x38] sm:$0x3f]
  %v911 = vld [vmem:[#allocation2 + $0x40] sm:$0x3f]
  %v912 = vld [vmem:[#allocation2 + $0x48] sm:$0x3f]
  %v913 = vld [vmem:[#allocation2 + $0x50] sm:$0x3f]
  %v914 = vld [vmem:[#allocation2 + $0x58] sm:$0x3f]
  %v915 = vld [vmem:[#allocation2 + $0x60] sm:$0x3f]
  %v916 = vld [vmem:[#allocation2 + $0x68] sm:$0x3f]
  %v917 = vperm.slane %v40, 1
  %v918 = vperm.slane %v41, 1
  %v919 = vperm.slane %v42, 1
  %v920 = vperm.slane %v43, 1
  %v921 = vperm.slane %v44, 1
  %v922 = vperm.slane %v45, 1
  %v923 = vperm.slane %v46, 1
  %v924 = vperm.slane %v47, 1
  %v925 = vperm.slane %v48, 1
  %v926 = vperm.slane %v49, 1
  %v927 = vperm.slane %v50, 1
  %v928 = vperm.slane %v51, 1
  %v929 = vperm.slane %v52, 1
  %943 = vrot.lane.b32.xlu0 %v917, 1
  %v944 = vpop.permute.xlu0 %943
  %945 = vrot.lane.b32.xlu0 %v918, 1
  %v946 = vpop.permute.xlu0 %945
  %947 = vrot.lane.b32.xlu0 %v919, 1
  %v948 = vpop.permute.xlu0 %947
  %949 = vrot.lane.b32.xlu0 %v920, 1
  %v950 = vpop.permute.xlu0 %949
  %951 = vrot.lane.b32.xlu0 %v921, 1
  %v952 = vpop.permute.xlu0 %951
  %953 = vrot.lane.b32.xlu0 %v922, 1
  %v954 = vpop.permute.xlu0 %953
  %955 = vrot.lane.b32.xlu0 %v923, 1
  %v956 = vpop.permute.xlu0 %955
  %957 = vrot.lane.b32.xlu0 %v924, 1
  %v958 = vpop.permute.xlu0 %957
  %959 = vrot.lane.b32.xlu0 %v925, 1
  %v960 = vpop.permute.xlu0 %959
  %961 = vrot.lane.b32.xlu0 %v926, 1
  %v962 = vpop.permute.xlu0 %961
  %963 = vrot.lane.b32.xlu0 %v927, 1
  %v964 = vpop.permute.xlu0 %963
  %965 = vrot.lane.b32.xlu0 %v928, 1
  %v966 = vpop.permute.xlu0 %965
  %967 = vrot.lane.b32.xlu0 %v929, 1
  %v968 = vpop.permute.xlu0 %967
  %vm969 = vcmask 7168
  %v970 = vsel %vm969, %v944, %v946
  %v971 = vsel %vm969, %v946, %v948
  %v972 = vsel %vm969, %v948, %v950
  %v973 = vsel %vm969, %v950, %v952
  %v974 = vsel %vm969, %v952, %v954
  %v975 = vsel %vm969, %v954, %v956
  %v976 = vsel %vm969, %v956, %v958
  %v977 = vsel %vm969, %v958, %v960
  %v978 = vsel %vm969, %v960, %v962
  %v979 = vsel %vm969, %v962, %v964
  %v980 = vsel %vm969, %v964, %v966
  %v981 = vsel %vm969, %v966, %v968
  %v996 = vmul.f32 %v903, %v944
  %v997 = vmul.f32 %v904, %v970
  %v998 = vmul.f32 %v905, %v971
  %v999 = vmul.f32 %v906, %v972
  %v1000 = vmul.f32 %v907, %v973
  %v1001 = vmul.f32 %v908, %v974
  %v1002 = vmul.f32 %v909, %v975
  %v1003 = vmul.f32 %v910, %v976
  %v1004 = vmul.f32 %v911, %v977
  %v1005 = vmul.f32 %v912, %v978
  %v1006 = vmul.f32 %v913, %v979
  %v1007 = vmul.f32 %v914, %v980
  %v1008 = vmul.f32 %v915, %v981
  %v1009 = vmul.f32 %v916, %v968
  %1010 = vset.pattern.permute.xlu0 1
  %1011 = vperm.xlu0 %1010, %v845
  %v1012 = vpop.permute.xlu0 %1011
  %v1014 = vmul.f32 %v996, %v1012
  %v1015 = vmul.f32 %v997, %v1012
  %v1016 = vmul.f32 %v998, %v1012
  %v1017 = vmul.f32 %v999, %v1012
  %v1018 = vmul.f32 %v1000, %v1012
  %v1019 = vmul.f32 %v1001, %v1012
  %v1020 = vmul.f32 %v1002, %v1012
  %v1021 = vmul.f32 %v1003, %v1012
  %v1022 = vmul.f32 %v1004, %v1012
  %v1023 = vmul.f32 %v1005, %v1012
  %v1024 = vmul.f32 %v1006, %v1012
  %v1025 = vmul.f32 %v1007, %v1012
  %v1026 = vmul.f32 %v1008, %v1012
  %v1027 = vmul.f32 %v1009, %v1012
  %1042 = vrot.lane.b32.xlu0 %v1014, 127
  %v1043 = vpop.permute.xlu0 %1042
  %1044 = vrot.lane.b32.xlu0 %v1015, 127
  %v1045 = vpop.permute.xlu0 %1044
  %1046 = vrot.lane.b32.xlu0 %v1016, 127
  %v1047 = vpop.permute.xlu0 %1046
  %1048 = vrot.lane.b32.xlu0 %v1017, 127
  %v1049 = vpop.permute.xlu0 %1048
  %1050 = vrot.lane.b32.xlu0 %v1018, 127
  %v1051 = vpop.permute.xlu0 %1050
  %1052 = vrot.lane.b32.xlu0 %v1019, 127
  %v1053 = vpop.permute.xlu0 %1052
  %1054 = vrot.lane.b32.xlu0 %v1020, 127
  %v1055 = vpop.permute.xlu0 %1054
  %1056 = vrot.lane.b32.xlu0 %v1021, 127
  %v1057 = vpop.permute.xlu0 %1056
  %1058 = vrot.lane.b32.xlu0 %v1022, 127
  %v1059 = vpop.permute.xlu0 %1058
  %1060 = vrot.lane.b32.xlu0 %v1023, 127
  %v1061 = vpop.permute.xlu0 %1060
  %1062 = vrot.lane.b32.xlu0 %v1024, 127
  %v1063 = vpop.permute.xlu0 %1062
  %1064 = vrot.lane.b32.xlu0 %v1025, 127
  %v1065 = vpop.permute.xlu0 %1064
  %1066 = vrot.lane.b32.xlu0 %v1026, 127
  %v1067 = vpop.permute.xlu0 %1066
  %1068 = vrot.lane.b32.xlu0 %v1027, 127
  %v1069 = vpop.permute.xlu0 %1068
  %vm1070 = vcmask 1039360
  %v1071 = vsel %vm1070, %v1043, %v1045
  %v1072 = vsel %vm1070, %v1045, %v1047
  %v1073 = vsel %vm1070, %v1047, %v1049
  %v1074 = vsel %vm1070, %v1049, %v1051
  %v1075 = vsel %vm1070, %v1051, %v1053
  %v1076 = vsel %vm1070, %v1053, %v1055
  %v1077 = vsel %vm1070, %v1055, %v1057
  %v1078 = vsel %vm1070, %v1057, %v1059
  %v1079 = vsel %vm1070, %v1059, %v1061
  %v1080 = vsel %vm1070, %v1061, %v1063
  %v1081 = vsel %vm1070, %v1063, %v1065
  %v1082 = vsel %vm1070, %v1065, %v1067
  %v1083 = vsel %vm1070, %v1067, %v1069
  %v1097 = vadd.f32 %v890, %v1071
  %v1098 = vadd.f32 %v891, %v1072
  %v1099 = vadd.f32 %v892, %v1073
  %v1100 = vadd.f32 %v893, %v1074
  %v1101 = vadd.f32 %v894, %v1075
  %v1102 = vadd.f32 %v895, %v1076
  %v1103 = vadd.f32 %v896, %v1077
  %v1104 = vadd.f32 %v897, %v1078
  %v1105 = vadd.f32 %v898, %v1079
  %v1106 = vadd.f32 %v899, %v1080
  %v1107 = vadd.f32 %v900, %v1081
  %v1108 = vadd.f32 %v901, %v1082
  %v1109 = vadd.f32 %v902, %v1083
  %v1110 = vperm.slane %v40, 2
  %v1111 = vperm.slane %v41, 2
  %v1112 = vperm.slane %v42, 2
  %v1113 = vperm.slane %v43, 2
  %v1114 = vperm.slane %v44, 2
  %v1115 = vperm.slane %v45, 2
  %v1116 = vperm.slane %v46, 2
  %v1117 = vperm.slane %v47, 2
  %v1118 = vperm.slane %v48, 2
  %v1119 = vperm.slane %v49, 2
  %v1120 = vperm.slane %v50, 2
  %v1121 = vperm.slane %v51, 2
  %v1122 = vperm.slane %v52, 2
  %1136 = vrot.lane.b32.xlu0 %v1110, 2
  %v1137 = vpop.permute.xlu0 %1136
  %1138 = vrot.lane.b32.xlu0 %v1111, 2
  %v1139 = vpop.permute.xlu0 %1138
  %1140 = vrot.lane.b32.xlu0 %v1112, 2
  %v1141 = vpop.permute.xlu0 %1140
  %1142 = vrot.lane.b32.xlu0 %v1113, 2
  %v1143 = vpop.permute.xlu0 %1142
  %1144 = vrot.lane.b32.xlu0 %v1114, 2
  %v1145 = vpop.permute.xlu0 %1144
  %1146 = vrot.lane.b32.xlu0 %v1115, 2
  %v1147 = vpop.permute.xlu0 %1146
  %1148 = vrot.lane.b32.xlu0 %v1116, 2
  %v1149 = vpop.permute.xlu0 %1148
  %1150 = vrot.lane.b32.xlu0 %v1117, 2
  %v1151 = vpop.permute.xlu0 %1150
  %1152 = vrot.lane.b32.xlu0 %v1118, 2
  %v1153 = vpop.permute.xlu0 %1152
  %1154 = vrot.lane.b32.xlu0 %v1119, 2
  %v1155 = vpop.permute.xlu0 %1154
  %1156 = vrot.lane.b32.xlu0 %v1120, 2
  %v1157 = vpop.permute.xlu0 %1156
  %1158 = vrot.lane.b32.xlu0 %v1121, 2
  %v1159 = vpop.permute.xlu0 %1158
  %1160 = vrot.lane.b32.xlu0 %v1122, 2
  %v1161 = vpop.permute.xlu0 %1160
  %vm1162 = vcmask 15360
  %v1163 = vsel %vm1162, %v1137, %v1139
  %v1164 = vsel %vm1162, %v1139, %v1141
  %v1165 = vsel %vm1162, %v1141, %v1143
  %v1166 = vsel %vm1162, %v1143, %v1145
  %v1167 = vsel %vm1162, %v1145, %v1147
  %v1168 = vsel %vm1162, %v1147, %v1149
  %v1169 = vsel %vm1162, %v1149, %v1151
  %v1170 = vsel %vm1162, %v1151, %v1153
  %v1171 = vsel %vm1162, %v1153, %v1155
  %v1172 = vsel %vm1162, %v1155, %v1157
  %v1173 = vsel %vm1162, %v1157, %v1159
  %v1174 = vsel %vm1162, %v1159, %v1161
  %v1189 = vmul.f32 %v903, %v1137
  %v1190 = vmul.f32 %v904, %v1163
  %v1191 = vmul.f32 %v905, %v1164
  %v1192 = vmul.f32 %v906, %v1165
  %v1193 = vmul.f32 %v907, %v1166
  %v1194 = vmul.f32 %v908, %v1167
  %v1195 = vmul.f32 %v909, %v1168
  %v1196 = vmul.f32 %v910, %v1169
  %v1197 = vmul.f32 %v911, %v1170
  %v1198 = vmul.f32 %v912, %v1171
  %v1199 = vmul.f32 %v913, %v1172
  %v1200 = vmul.f32 %v914, %v1173
  %v1201 = vmul.f32 %v915, %v1174
  %v1202 = vmul.f32 %v916, %v1161
  %1203 = vset.pattern.permute.xlu0 2
  %1204 = vperm.xlu0 %1203, %v845
  %v1205 = vpop.permute.xlu0 %1204
  %v1207 = vmul.f32 %v1189, %v1205
  %v1208 = vmul.f32 %v1190, %v1205
  %v1209 = vmul.f32 %v1191, %v1205
  %v1210 = vmul.f32 %v1192, %v1205
  %v1211 = vmul.f32 %v1193, %v1205
  %v1212 = vmul.f32 %v1194, %v1205
  %v1213 = vmul.f32 %v1195, %v1205
  %v1214 = vmul.f32 %v1196, %v1205
  %v1215 = vmul.f32 %v1197, %v1205
  %v1216 = vmul.f32 %v1198, %v1205
  %v1217 = vmul.f32 %v1199, %v1205
  %v1218 = vmul.f32 %v1200, %v1205
  %v1219 = vmul.f32 %v1201, %v1205
  %v1220 = vmul.f32 %v1202, %v1205
  %1235 = vrot.lane.b32.xlu0 %v1207, 126
  %v1236 = vpop.permute.xlu0 %1235
  %1237 = vrot.lane.b32.xlu0 %v1208, 126
  %v1238 = vpop.permute.xlu0 %1237
  %1239 = vrot.lane.b32.xlu0 %v1209, 126
  %v1240 = vpop.permute.xlu0 %1239
  %1241 = vrot.lane.b32.xlu0 %v1210, 126
  %v1242 = vpop.permute.xlu0 %1241
  %1243 = vrot.lane.b32.xlu0 %v1211, 126
  %v1244 = vpop.permute.xlu0 %1243
  %1245 = vrot.lane.b32.xlu0 %v1212, 126
  %v1246 = vpop.permute.xlu0 %1245
  %1247 = vrot.lane.b32.xlu0 %v1213, 126
  %v1248 = vpop.permute.xlu0 %1247
  %1249 = vrot.lane.b32.xlu0 %v1214, 126
  %v1250 = vpop.permute.xlu0 %1249
  %1251 = vrot.lane.b32.xlu0 %v1215, 126
  %v1252 = vpop.permute.xlu0 %1251
  %1253 = vrot.lane.b32.xlu0 %v1216, 126
  %v1254 = vpop.permute.xlu0 %1253
  %1255 = vrot.lane.b32.xlu0 %v1217, 126
  %v1256 = vpop.permute.xlu0 %1255
  %1257 = vrot.lane.b32.xlu0 %v1218, 126
  %v1258 = vpop.permute.xlu0 %1257
  %1259 = vrot.lane.b32.xlu0 %v1219, 126
  %v1260 = vpop.permute.xlu0 %1259
  %1261 = vrot.lane.b32.xlu0 %v1220, 126
  %v1262 = vpop.permute.xlu0 %1261
  %vm1263 = vcmask 1031168
  %v1264 = vsel %vm1263, %v1236, %v1238
  %v1265 = vsel %vm1263, %v1238, %v1240
  %v1266 = vsel %vm1263, %v1240, %v1242
  %v1267 = vsel %vm1263, %v1242, %v1244
  %v1268 = vsel %vm1263, %v1244, %v1246
  %v1269 = vsel %vm1263, %v1246, %v1248
  %v1270 = vsel %vm1263, %v1248, %v1250
  %v1271 = vsel %vm1263, %v1250, %v1252
  %v1272 = vsel %vm1263, %v1252, %v1254
  %v1273 = vsel %vm1263, %v1254, %v1256
  %v1274 = vsel %vm1263, %v1256, %v1258
  %v1275 = vsel %vm1263, %v1258, %v1260
  %v1276 = vsel %vm1263, %v1260, %v1262
  %v1290 = vadd.f32 %v1097, %v1264
  %v1291 = vadd.f32 %v1098, %v1265
  %v1292 = vadd.f32 %v1099, %v1266
  %v1293 = vadd.f32 %v1100, %v1267
  %v1294 = vadd.f32 %v1101, %v1268
  %v1295 = vadd.f32 %v1102, %v1269
  %v1296 = vadd.f32 %v1103, %v1270
  %v1297 = vadd.f32 %v1104, %v1271
  %v1298 = vadd.f32 %v1105, %v1272
  %v1299 = vadd.f32 %v1106, %v1273
  %v1300 = vadd.f32 %v1107, %v1274
  %v1301 = vadd.f32 %v1108, %v1275
  %v1302 = vadd.f32 %v1109, %v1276
  %v1303 = vperm.slane %v40, 3
  %v1304 = vperm.slane %v41, 3
  %v1305 = vperm.slane %v42, 3
  %v1306 = vperm.slane %v43, 3
  %v1307 = vperm.slane %v44, 3
  %v1308 = vperm.slane %v45, 3
  %v1309 = vperm.slane %v46, 3
  %v1310 = vperm.slane %v47, 3
  %v1311 = vperm.slane %v48, 3
  %v1312 = vperm.slane %v49, 3
  %v1313 = vperm.slane %v50, 3
  %v1314 = vperm.slane %v51, 3
  %v1315 = vperm.slane %v52, 3
  %1329 = vrot.lane.b32.xlu0 %v1303, 28
  %v1330 = vpop.permute.xlu0 %1329
  %1331 = vrot.lane.b32.xlu0 %v1304, 28
  %v1332 = vpop.permute.xlu0 %1331
  %1333 = vrot.lane.b32.xlu0 %v1305, 28
  %v1334 = vpop.permute.xlu0 %1333
  %1335 = vrot.lane.b32.xlu0 %v1306, 28
  %v1336 = vpop.permute.xlu0 %1335
  %1337 = vrot.lane.b32.xlu0 %v1307, 28
  %v1338 = vpop.permute.xlu0 %1337
  %1339 = vrot.lane.b32.xlu0 %v1308, 28
  %v1340 = vpop.permute.xlu0 %1339
  %1341 = vrot.lane.b32.xlu0 %v1309, 28
  %v1342 = vpop.permute.xlu0 %1341
  %1343 = vrot.lane.b32.xlu0 %v1310, 28
  %v1344 = vpop.permute.xlu0 %1343
  %1345 = vrot.lane.b32.xlu0 %v1311, 28
  %v1346 = vpop.permute.xlu0 %1345
  %1347 = vrot.lane.b32.xlu0 %v1312, 28
  %v1348 = vpop.permute.xlu0 %1347
  %1349 = vrot.lane.b32.xlu0 %v1313, 28
  %v1350 = vpop.permute.xlu0 %1349
  %1351 = vrot.lane.b32.xlu0 %v1314, 28
  %v1352 = vpop.permute.xlu0 %1351
  %1353 = vrot.lane.b32.xlu0 %v1315, 28
  %v1354 = vpop.permute.xlu0 %1353
  %vm1355 = vcmask 228352
  %v1356 = vsel %vm1355, %v1330, %v1332
  %v1357 = vsel %vm1355, %v1332, %v1334
  %v1358 = vsel %vm1355, %v1334, %v1336
  %v1359 = vsel %vm1355, %v1336, %v1338
  %v1360 = vsel %vm1355, %v1338, %v1340
  %v1361 = vsel %vm1355, %v1340, %v1342
  %v1362 = vsel %vm1355, %v1342, %v1344
  %v1363 = vsel %vm1355, %v1344, %v1346
  %v1364 = vsel %vm1355, %v1346, %v1348
  %v1365 = vsel %vm1355, %v1348, %v1350
  %v1366 = vsel %vm1355, %v1350, %v1352
  %v1367 = vsel %vm1355, %v1352, %v1354
  %v1382 = vmul.f32 %v903, %v1330
  %v1383 = vmul.f32 %v904, %v1356
  %v1384 = vmul.f32 %v905, %v1357
  %v1385 = vmul.f32 %v906, %v1358
  %v1386 = vmul.f32 %v907, %v1359
  %v1387 = vmul.f32 %v908, %v1360
  %v1388 = vmul.f32 %v909, %v1361
  %v1389 = vmul.f32 %v910, %v1362
  %v1390 = vmul.f32 %v911, %v1363
  %v1391 = vmul.f32 %v912, %v1364
  %v1392 = vmul.f32 %v913, %v1365
  %v1393 = vmul.f32 %v914, %v1366
  %v1394 = vmul.f32 %v915, %v1367
  %v1395 = vmul.f32 %v916, %v1354
  %1396 = vset.pattern.permute.xlu0 3
  %1397 = vperm.xlu0 %1396, %v845
  %v1398 = vpop.permute.xlu0 %1397
  %v1400 = vmul.f32 %v1382, %v1398
  %v1401 = vmul.f32 %v1383, %v1398
  %v1402 = vmul.f32 %v1384, %v1398
  %v1403 = vmul.f32 %v1385, %v1398
  %v1404 = vmul.f32 %v1386, %v1398
  %v1405 = vmul.f32 %v1387, %v1398
  %v1406 = vmul.f32 %v1388, %v1398
  %v1407 = vmul.f32 %v1389, %v1398
  %v1408 = vmul.f32 %v1390, %v1398
  %v1409 = vmul.f32 %v1391, %v1398
  %v1410 = vmul.f32 %v1392, %v1398
  %v1411 = vmul.f32 %v1393, %v1398
  %v1412 = vmul.f32 %v1394, %v1398
  %v1413 = vmul.f32 %v1395, %v1398
  %1428 = vrot.lane.b32.xlu0 %v1400, 100
  %v1429 = vpop.permute.xlu0 %1428
  %1430 = vrot.lane.b32.xlu0 %v1401, 100
  %v1431 = vpop.permute.xlu0 %1430
  %1432 = vrot.lane.b32.xlu0 %v1402, 100
  %v1433 = vpop.permute.xlu0 %1432
  %1434 = vrot.lane.b32.xlu0 %v1403, 100
  %v1435 = vpop.permute.xlu0 %1434
  %1436 = vrot.lane.b32.xlu0 %v1404, 100
  %v1437 = vpop.permute.xlu0 %1436
  %1438 = vrot.lane.b32.xlu0 %v1405, 100
  %v1439 = vpop.permute.xlu0 %1438
  %1440 = vrot.lane.b32.xlu0 %v1406, 100
  %v1441 = vpop.permute.xlu0 %1440
  %1442 = vrot.lane.b32.xlu0 %v1407, 100
  %v1443 = vpop.permute.xlu0 %1442
  %1444 = vrot.lane.b32.xlu0 %v1408, 100
  %v1445 = vpop.permute.xlu0 %1444
  %1446 = vrot.lane.b32.xlu0 %v1409, 100
  %v1447 = vpop.permute.xlu0 %1446
  %1448 = vrot.lane.b32.xlu0 %v1410, 100
  %v1449 = vpop.permute.xlu0 %1448
  %1450 = vrot.lane.b32.xlu0 %v1411, 100
  %v1451 = vpop.permute.xlu0 %1450
  %1452 = vrot.lane.b32.xlu0 %v1412, 100
  %v1453 = vpop.permute.xlu0 %1452
  %1454 = vrot.lane.b32.xlu0 %v1413, 100
  %v1455 = vpop.permute.xlu0 %1454
  %vm1456 = vcmask 818176
  %v1457 = vsel %vm1456, %v1429, %v1431
  %v1458 = vsel %vm1456, %v1431, %v1433
  %v1459 = vsel %vm1456, %v1433, %v1435
  %v1460 = vsel %vm1456, %v1435, %v1437
  %v1461 = vsel %vm1456, %v1437, %v1439
  %v1462 = vsel %vm1456, %v1439, %v1441
  %v1463 = vsel %vm1456, %v1441, %v1443
  %v1464 = vsel %vm1456, %v1443, %v1445
  %v1465 = vsel %vm1456, %v1445, %v1447
  %v1466 = vsel %vm1456, %v1447, %v1449
  %v1467 = vsel %vm1456, %v1449, %v1451
  %v1468 = vsel %vm1456, %v1451, %v1453
  %v1469 = vsel %vm1456, %v1453, %v1455
  %v1483 = vadd.f32 %v1290, %v1457
  %v1484 = vadd.f32 %v1291, %v1458
  %v1485 = vadd.f32 %v1292, %v1459
  %v1486 = vadd.f32 %v1293, %v1460
  %v1487 = vadd.f32 %v1294, %v1461
  %v1488 = vadd.f32 %v1295, %v1462
  %v1489 = vadd.f32 %v1296, %v1463
  %v1490 = vadd.f32 %v1297, %v1464
  %v1491 = vadd.f32 %v1298, %v1465
  %v1492 = vadd.f32 %v1299, %v1466
  %v1493 = vadd.f32 %v1300, %v1467
  %v1494 = vadd.f32 %v1301, %v1468
  %v1495 = vadd.f32 %v1302, %v1469
  %v1496 = vperm.slane %v40, 4
  %v1497 = vperm.slane %v41, 4
  %v1498 = vperm.slane %v42, 4
  %v1499 = vperm.slane %v43, 4
  %v1500 = vperm.slane %v44, 4
  %v1501 = vperm.slane %v45, 4
  %v1502 = vperm.slane %v46, 4
  %v1503 = vperm.slane %v47, 4
  %v1504 = vperm.slane %v48, 4
  %v1505 = vperm.slane %v49, 4
  %v1506 = vperm.slane %v50, 4
  %v1507 = vperm.slane %v51, 4
  %v1508 = vperm.slane %v52, 4
  %1522 = vrot.lane.b32.xlu0 %v1496, 29
  %v1523 = vpop.permute.xlu0 %1522
  %1524 = vrot.lane.b32.xlu0 %v1497, 29
  %v1525 = vpop.permute.xlu0 %1524
  %1526 = vrot.lane.b32.xlu0 %v1498, 29
  %v1527 = vpop.permute.xlu0 %1526
  %1528 = vrot.lane.b32.xlu0 %v1499, 29
  %v1529 = vpop.permute.xlu0 %1528
  %1530 = vrot.lane.b32.xlu0 %v1500, 29
  %v1531 = vpop.permute.xlu0 %1530
  %1532 = vrot.lane.b32.xlu0 %v1501, 29
  %v1533 = vpop.permute.xlu0 %1532
  %1534 = vrot.lane.b32.xlu0 %v1502, 29
  %v1535 = vpop.permute.xlu0 %1534
  %1536 = vrot.lane.b32.xlu0 %v1503, 29
  %v1537 = vpop.permute.xlu0 %1536
  %1538 = vrot.lane.b32.xlu0 %v1504, 29
  %v1539 = vpop.permute.xlu0 %1538
  %1540 = vrot.lane.b32.xlu0 %v1505, 29
  %v1541 = vpop.permute.xlu0 %1540
  %1542 = vrot.lane.b32.xlu0 %v1506, 29
  %v1543 = vpop.permute.xlu0 %1542
  %1544 = vrot.lane.b32.xlu0 %v1507, 29
  %v1545 = vpop.permute.xlu0 %1544
  %1546 = vrot.lane.b32.xlu0 %v1508, 29
  %v1547 = vpop.permute.xlu0 %1546
  %v1548 = vsel %vm802, %v1523, %v1525
  %v1549 = vsel %vm802, %v1525, %v1527
  %v1550 = vsel %vm802, %v1527, %v1529
  %v1551 = vsel %vm802, %v1529, %v1531
  %v1552 = vsel %vm802, %v1531, %v1533
  %v1553 = vsel %vm802, %v1533, %v1535
  %v1554 = vsel %vm802, %v1535, %v1537
  %v1555 = vsel %vm802, %v1537, %v1539
  %v1556 = vsel %vm802, %v1539, %v1541
  %v1557 = vsel %vm802, %v1541, %v1543
  %v1558 = vsel %vm802, %v1543, %v1545
  %v1559 = vsel %vm802, %v1545, %v1547
  %v1574 = vmul.f32 %v903, %v1523
  %v1575 = vmul.f32 %v904, %v1548
  %v1576 = vmul.f32 %v905, %v1549
  %v1577 = vmul.f32 %v906, %v1550
  %v1578 = vmul.f32 %v907, %v1551
  %v1579 = vmul.f32 %v908, %v1552
  %v1580 = vmul.f32 %v909, %v1553
  %v1581 = vmul.f32 %v910, %v1554
  %v1582 = vmul.f32 %v911, %v1555
  %v1583 = vmul.f32 %v912, %v1556
  %v1584 = vmul.f32 %v913, %v1557
  %v1585 = vmul.f32 %v914, %v1558
  %v1586 = vmul.f32 %v915, %v1559
  %v1587 = vmul.f32 %v916, %v1547
  %1588 = vset.pattern.permute.xlu0 4
  %1589 = vperm.xlu0 %1588, %v845
  %v1590 = vpop.permute.xlu0 %1589
  %v1592 = vmul.f32 %v1574, %v1590
  %v1593 = vmul.f32 %v1575, %v1590
  %v1594 = vmul.f32 %v1576, %v1590
  %v1595 = vmul.f32 %v1577, %v1590
  %v1596 = vmul.f32 %v1578, %v1590
  %v1597 = vmul.f32 %v1579, %v1590
  %v1598 = vmul.f32 %v1580, %v1590
  %v1599 = vmul.f32 %v1581, %v1590
  %v1600 = vmul.f32 %v1582, %v1590
  %v1601 = vmul.f32 %v1583, %v1590
  %v1602 = vmul.f32 %v1584, %v1590
  %v1603 = vmul.f32 %v1585, %v1590
  %v1604 = vmul.f32 %v1586, %v1590
  %v1605 = vmul.f32 %v1587, %v1590
  %1620 = vrot.lane.b32.xlu0 %v1592, 99
  %v1621 = vpop.permute.xlu0 %1620
  %1622 = vrot.lane.b32.xlu0 %v1593, 99
  %v1623 = vpop.permute.xlu0 %1622
  %1624 = vrot.lane.b32.xlu0 %v1594, 99
  %v1625 = vpop.permute.xlu0 %1624
  %1626 = vrot.lane.b32.xlu0 %v1595, 99
  %v1627 = vpop.permute.xlu0 %1626
  %1628 = vrot.lane.b32.xlu0 %v1596, 99
  %v1629 = vpop.permute.xlu0 %1628
  %1630 = vrot.lane.b32.xlu0 %v1597, 99
  %v1631 = vpop.permute.xlu0 %1630
  %1632 = vrot.lane.b32.xlu0 %v1598, 99
  %v1633 = vpop.permute.xlu0 %1632
  %1634 = vrot.lane.b32.xlu0 %v1599, 99
  %v1635 = vpop.permute.xlu0 %1634
  %1636 = vrot.lane.b32.xlu0 %v1600, 99
  %v1637 = vpop.permute.xlu0 %1636
  %1638 = vrot.lane.b32.xlu0 %v1601, 99
  %v1639 = vpop.permute.xlu0 %1638
  %1640 = vrot.lane.b32.xlu0 %v1602, 99
  %v1641 = vpop.permute.xlu0 %1640
  %1642 = vrot.lane.b32.xlu0 %v1603, 99
  %v1643 = vpop.permute.xlu0 %1642
  %1644 = vrot.lane.b32.xlu0 %v1604, 99
  %v1645 = vpop.permute.xlu0 %1644
  %1646 = vrot.lane.b32.xlu0 %v1605, 99
  %v1647 = vpop.permute.xlu0 %1646
  %vm1648 = vcmask 809984
  %v1649 = vsel %vm1648, %v1621, %v1623
  %v1650 = vsel %vm1648, %v1623, %v1625
  %v1651 = vsel %vm1648, %v1625, %v1627
  %v1652 = vsel %vm1648, %v1627, %v1629
  %v1653 = vsel %vm1648, %v1629, %v1631
  %v1654 = vsel %vm1648, %v1631, %v1633
  %v1655 = vsel %vm1648, %v1633, %v1635
  %v1656 = vsel %vm1648, %v1635, %v1637
  %v1657 = vsel %vm1648, %v1637, %v1639
  %v1658 = vsel %vm1648, %v1639, %v1641
  %v1659 = vsel %vm1648, %v1641, %v1643
  %v1660 = vsel %vm1648, %v1643, %v1645
  %v1661 = vsel %vm1648, %v1645, %v1647
  %v1675 = vadd.f32 %v1483, %v1649
  %v1676 = vadd.f32 %v1484, %v1650
  %v1677 = vadd.f32 %v1485, %v1651
  %v1678 = vadd.f32 %v1486, %v1652
  %v1679 = vadd.f32 %v1487, %v1653
  %v1680 = vadd.f32 %v1488, %v1654
  %v1681 = vadd.f32 %v1489, %v1655
  %v1682 = vadd.f32 %v1490, %v1656
  %v1683 = vadd.f32 %v1491, %v1657
  %v1684 = vadd.f32 %v1492, %v1658
  %v1685 = vadd.f32 %v1493, %v1659
  %v1686 = vadd.f32 %v1494, %v1660
  %v1687 = vadd.f32 %v1495, %v1661
  %v1688 = vperm.slane %v40, 5
  %v1689 = vperm.slane %v41, 5
  %v1690 = vperm.slane %v42, 5
  %v1691 = vperm.slane %v43, 5
  %v1692 = vperm.slane %v44, 5
  %v1693 = vperm.slane %v45, 5
  %v1694 = vperm.slane %v46, 5
  %v1695 = vperm.slane %v47, 5
  %v1696 = vperm.slane %v48, 5
  %v1697 = vperm.slane %v49, 5
  %v1698 = vperm.slane %v50, 5
  %v1699 = vperm.slane %v51, 5
  %v1700 = vperm.slane %v52, 5
  %1714 = vrot.lane.b32.xlu0 %v1688, 30
  %v1715 = vpop.permute.xlu0 %1714
  %1716 = vrot.lane.b32.xlu0 %v1689, 30
  %v1717 = vpop.permute.xlu0 %1716
  %1718 = vrot.lane.b32.xlu0 %v1690, 30
  %v1719 = vpop.permute.xlu0 %1718
  %1720 = vrot.lane.b32.xlu0 %v1691, 30
  %v1721 = vpop.permute.xlu0 %1720
  %1722 = vrot.lane.b32.xlu0 %v1692, 30
  %v1723 = vpop.permute.xlu0 %1722
  %1724 = vrot.lane.b32.xlu0 %v1693, 30
  %v1725 = vpop.permute.xlu0 %1724
  %1726 = vrot.lane.b32.xlu0 %v1694, 30
  %v1727 = vpop.permute.xlu0 %1726
  %1728 = vrot.lane.b32.xlu0 %v1695, 30
  %v1729 = vpop.permute.xlu0 %1728
  %1730 = vrot.lane.b32.xlu0 %v1696, 30
  %v1731 = vpop.permute.xlu0 %1730
  %1732 = vrot.lane.b32.xlu0 %v1697, 30
  %v1733 = vpop.permute.xlu0 %1732
  %1734 = vrot.lane.b32.xlu0 %v1698, 30
  %v1735 = vpop.permute.xlu0 %1734
  %1736 = vrot.lane.b32.xlu0 %v1699, 30
  %v1737 = vpop.permute.xlu0 %1736
  %1738 = vrot.lane.b32.xlu0 %v1700, 30
  %v1739 = vpop.permute.xlu0 %1738
  %vm1740 = vcmask 244736
  %v1741 = vsel %vm1740, %v1715, %v1717
  %v1742 = vsel %vm1740, %v1717, %v1719
  %v1743 = vsel %vm1740, %v1719, %v1721
  %v1744 = vsel %vm1740, %v1721, %v1723
  %v1745 = vsel %vm1740, %v1723, %v1725
  %v1746 = vsel %vm1740, %v1725, %v1727
  %v1747 = vsel %vm1740, %v1727, %v1729
  %v1748 = vsel %vm1740, %v1729, %v1731
  %v1749 = vsel %vm1740, %v1731, %v1733
  %v1750 = vsel %vm1740, %v1733, %v1735
  %v1751 = vsel %vm1740, %v1735, %v1737
  %v1752 = vsel %vm1740, %v1737, %v1739
  %v1767 = vmul.f32 %v903, %v1715
  %v1768 = vmul.f32 %v904, %v1741
  %v1769 = vmul.f32 %v905, %v1742
  %v1770 = vmul.f32 %v906, %v1743
  %v1771 = vmul.f32 %v907, %v1744
  %v1772 = vmul.f32 %v908, %v1745
  %v1773 = vmul.f32 %v909, %v1746
  %v1774 = vmul.f32 %v910, %v1747
  %v1775 = vmul.f32 %v911, %v1748
  %v1776 = vmul.f32 %v912, %v1749
  %v1777 = vmul.f32 %v913, %v1750
  %v1778 = vmul.f32 %v914, %v1751
  %v1779 = vmul.f32 %v915, %v1752
  %v1780 = vmul.f32 %v916, %v1739
  %1781 = vset.pattern.permute.xlu0 5
  %1782 = vperm.xlu0 %1781, %v845
  %v1783 = vpop.permute.xlu0 %1782
  %v1785 = vmul.f32 %v1767, %v1783
  %v1786 = vmul.f32 %v1768, %v1783
  %v1787 = vmul.f32 %v1769, %v1783
  %v1788 = vmul.f32 %v1770, %v1783
  %v1789 = vmul.f32 %v1771, %v1783
  %v1790 = vmul.f32 %v1772, %v1783
  %v1791 = vmul.f32 %v1773, %v1783
  %v1792 = vmul.f32 %v1774, %v1783
  %v1793 = vmul.f32 %v1775, %v1783
  %v1794 = vmul.f32 %v1776, %v1783
  %v1795 = vmul.f32 %v1777, %v1783
  %v1796 = vmul.f32 %v1778, %v1783
  %v1797 = vmul.f32 %v1779, %v1783
  %v1798 = vmul.f32 %v1780, %v1783
  %1813 = vrot.lane.b32.xlu0 %v1785, 98
  %v1814 = vpop.permute.xlu0 %1813
  %1815 = vrot.lane.b32.xlu0 %v1786, 98
  %v1816 = vpop.permute.xlu0 %1815
  %1817 = vrot.lane.b32.xlu0 %v1787, 98
  %v1818 = vpop.permute.xlu0 %1817
  %1819 = vrot.lane.b32.xlu0 %v1788, 98
  %v1820 = vpop.permute.xlu0 %1819
  %1821 = vrot.lane.b32.xlu0 %v1789, 98
  %v1822 = vpop.permute.xlu0 %1821
  %1823 = vrot.lane.b32.xlu0 %v1790, 98
  %v1824 = vpop.permute.xlu0 %1823
  %1825 = vrot.lane.b32.xlu0 %v1791, 98
  %v1826 = vpop.permute.xlu0 %1825
  %1827 = vrot.lane.b32.xlu0 %v1792, 98
  %v1828 = vpop.permute.xlu0 %1827
  %1829 = vrot.lane.b32.xlu0 %v1793, 98
  %v1830 = vpop.permute.xlu0 %1829
  %1831 = vrot.lane.b32.xlu0 %v1794, 98
  %v1832 = vpop.permute.xlu0 %1831
  %1833 = vrot.lane.b32.xlu0 %v1795, 98
  %v1834 = vpop.permute.xlu0 %1833
  %1835 = vrot.lane.b32.xlu0 %v1796, 98
  %v1836 = vpop.permute.xlu0 %1835
  %1837 = vrot.lane.b32.xlu0 %v1797, 98
  %v1838 = vpop.permute.xlu0 %1837
  %1839 = vrot.lane.b32.xlu0 %v1798, 98
  %v1840 = vpop.permute.xlu0 %1839
  %vm1841 = vcmask 801792
  %v1842 = vsel %vm1841, %v1814, %v1816
  %v1843 = vsel %vm1841, %v1816, %v1818
  %v1844 = vsel %vm1841, %v1818, %v1820
  %v1845 = vsel %vm1841, %v1820, %v1822
  %v1846 = vsel %vm1841, %v1822, %v1824
  %v1847 = vsel %vm1841, %v1824, %v1826
  %v1848 = vsel %vm1841, %v1826, %v1828
  %v1849 = vsel %vm1841, %v1828, %v1830
  %v1850 = vsel %vm1841, %v1830, %v1832
  %v1851 = vsel %vm1841, %v1832, %v1834
  %v1852 = vsel %vm1841, %v1834, %v1836
  %v1853 = vsel %vm1841, %v1836, %v1838
  %v1854 = vsel %vm1841, %v1838, %v1840
  %v1868 = vadd.f32 %v1675, %v1842
  %v1869 = vadd.f32 %v1676, %v1843
  %v1870 = vadd.f32 %v1677, %v1844
  %v1871 = vadd.f32 %v1678, %v1845
  %v1872 = vadd.f32 %v1679, %v1846
  %v1873 = vadd.f32 %v1680, %v1847
  %v1874 = vadd.f32 %v1681, %v1848
  %v1875 = vadd.f32 %v1682, %v1849
  %v1876 = vadd.f32 %v1683, %v1850
  %v1877 = vadd.f32 %v1684, %v1851
  %v1878 = vadd.f32 %v1685, %v1852
  %v1879 = vadd.f32 %v1686, %v1853
  %v1880 = vadd.f32 %v1687, %v1854
  %v1881 = vperm.slane %v40, 6
  %v1882 = vperm.slane %v41, 6
  %v1883 = vperm.slane %v42, 6
  %v1884 = vperm.slane %v43, 6
  %v1885 = vperm.slane %v44, 6
  %v1886 = vperm.slane %v45, 6
  %v1887 = vperm.slane %v46, 6
  %v1888 = vperm.slane %v47, 6
  %v1889 = vperm.slane %v48, 6
  %v1890 = vperm.slane %v49, 6
  %v1891 = vperm.slane %v50, 6
  %v1892 = vperm.slane %v51, 6
  %v1893 = vperm.slane %v52, 6
  %1907 = vrot.lane.b32.xlu0 %v1881, 56
  %v1908 = vpop.permute.xlu0 %1907
  %1909 = vrot.lane.b32.xlu0 %v1882, 56
  %v1910 = vpop.permute.xlu0 %1909
  %1911 = vrot.lane.b32.xlu0 %v1883, 56
  %v1912 = vpop.permute.xlu0 %1911
  %1913 = vrot.lane.b32.xlu0 %v1884, 56
  %v1914 = vpop.permute.xlu0 %1913
  %1915 = vrot.lane.b32.xlu0 %v1885, 56
  %v1916 = vpop.permute.xlu0 %1915
  %1917 = vrot.lane.b32.xlu0 %v1886, 56
  %v1918 = vpop.permute.xlu0 %1917
  %1919 = vrot.lane.b32.xlu0 %v1887, 56
  %v1920 = vpop.permute.xlu0 %1919
  %1921 = vrot.lane.b32.xlu0 %v1888, 56
  %v1922 = vpop.permute.xlu0 %1921
  %1923 = vrot.lane.b32.xlu0 %v1889, 56
  %v1924 = vpop.permute.xlu0 %1923
  %1925 = vrot.lane.b32.xlu0 %v1890, 56
  %v1926 = vpop.permute.xlu0 %1925
  %1927 = vrot.lane.b32.xlu0 %v1891, 56
  %v1928 = vpop.permute.xlu0 %1927
  %1929 = vrot.lane.b32.xlu0 %v1892, 56
  %v1930 = vpop.permute.xlu0 %1929
  %1931 = vrot.lane.b32.xlu0 %v1893, 56
  %v1932 = vpop.permute.xlu0 %1931
  %vm1933 = vcmask 457728
  %v1934 = vsel %vm1933, %v1908, %v1910
  %v1935 = vsel %vm1933, %v1910, %v1912
  %v1936 = vsel %vm1933, %v1912, %v1914
  %v1937 = vsel %vm1933, %v1914, %v1916
  %v1938 = vsel %vm1933, %v1916, %v1918
  %v1939 = vsel %vm1933, %v1918, %v1920
  %v1940 = vsel %vm1933, %v1920, %v1922
  %v1941 = vsel %vm1933, %v1922, %v1924
  %v1942 = vsel %vm1933, %v1924, %v1926
  %v1943 = vsel %vm1933, %v1926, %v1928
  %v1944 = vsel %vm1933, %v1928, %v1930
  %v1945 = vsel %vm1933, %v1930, %v1932
  %v1960 = vmul.f32 %v903, %v1908
  %v1961 = vmul.f32 %v904, %v1934
  %v1962 = vmul.f32 %v905, %v1935
  %v1963 = vmul.f32 %v906, %v1936
  %v1964 = vmul.f32 %v907, %v1937
  %v1965 = vmul.f32 %v908, %v1938
  %v1966 = vmul.f32 %v909, %v1939
  %v1967 = vmul.f32 %v910, %v1940
  %v1968 = vmul.f32 %v911, %v1941
  %v1969 = vmul.f32 %v912, %v1942
  %v1970 = vmul.f32 %v913, %v1943
  %v1971 = vmul.f32 %v914, %v1944
  %v1972 = vmul.f32 %v915, %v1945
  %v1973 = vmul.f32 %v916, %v1932
  %1974 = vset.pattern.permute.xlu0 6
  %1975 = vperm.xlu0 %1974, %v845
  %v1976 = vpop.permute.xlu0 %1975
  %v1978 = vmul.f32 %v1960, %v1976
  %v1979 = vmul.f32 %v1961, %v1976
  %v1980 = vmul.f32 %v1962, %v1976
  %v1981 = vmul.f32 %v1963, %v1976
  %v1982 = vmul.f32 %v1964, %v1976
  %v1983 = vmul.f32 %v1965, %v1976
  %v1984 = vmul.f32 %v1966, %v1976
  %v1985 = vmul.f32 %v1967, %v1976
  %v1986 = vmul.f32 %v1968, %v1976
  %v1987 = vmul.f32 %v1969, %v1976
  %v1988 = vmul.f32 %v1970, %v1976
  %v1989 = vmul.f32 %v1971, %v1976
  %v1990 = vmul.f32 %v1972, %v1976
  %v1991 = vmul.f32 %v1973, %v1976
  %2006 = vrot.lane.b32.xlu0 %v1978, 72
  %v2007 = vpop.permute.xlu0 %2006
  %2008 = vrot.lane.b32.xlu0 %v1979, 72
  %v2009 = vpop.permute.xlu0 %2008
  %2010 = vrot.lane.b32.xlu0 %v1980, 72
  %v2011 = vpop.permute.xlu0 %2010
  %2012 = vrot.lane.b32.xlu0 %v1981, 72
  %v2013 = vpop.permute.xlu0 %2012
  %2014 = vrot.lane.b32.xlu0 %v1982, 72
  %v2015 = vpop.permute.xlu0 %2014
  %2016 = vrot.lane.b32.xlu0 %v1983, 72
  %v2017 = vpop.permute.xlu0 %2016
  %2018 = vrot.lane.b32.xlu0 %v1984, 72
  %v2019 = vpop.permute.xlu0 %2018
  %2020 = vrot.lane.b32.xlu0 %v1985, 72
  %v2021 = vpop.permute.xlu0 %2020
  %2022 = vrot.lane.b32.xlu0 %v1986, 72
  %v2023 = vpop.permute.xlu0 %2022
  %2024 = vrot.lane.b32.xlu0 %v1987, 72
  %v2025 = vpop.permute.xlu0 %2024
  %2026 = vrot.lane.b32.xlu0 %v1988, 72
  %v2027 = vpop.permute.xlu0 %2026
  %2028 = vrot.lane.b32.xlu0 %v1989, 72
  %v2029 = vpop.permute.xlu0 %2028
  %2030 = vrot.lane.b32.xlu0 %v1990, 72
  %v2031 = vpop.permute.xlu0 %2030
  %2032 = vrot.lane.b32.xlu0 %v1991, 72
  %v2033 = vpop.permute.xlu0 %2032
  %vm2034 = vcmask 588800
  %v2035 = vsel %vm2034, %v2007, %v2009
  %v2036 = vsel %vm2034, %v2009, %v2011
  %v2037 = vsel %vm2034, %v2011, %v2013
  %v2038 = vsel %vm2034, %v2013, %v2015
  %v2039 = vsel %vm2034, %v2015, %v2017
  %v2040 = vsel %vm2034, %v2017, %v2019
  %v2041 = vsel %vm2034, %v2019, %v2021
  %v2042 = vsel %vm2034, %v2021, %v2023
  %v2043 = vsel %vm2034, %v2023, %v2025
  %v2044 = vsel %vm2034, %v2025, %v2027
  %v2045 = vsel %vm2034, %v2027, %v2029
  %v2046 = vsel %vm2034, %v2029, %v2031
  %v2047 = vsel %vm2034, %v2031, %v2033
  %v2061 = vadd.f32 %v1868, %v2035
  %v2062 = vadd.f32 %v1869, %v2036
  %v2063 = vadd.f32 %v1870, %v2037
  %v2064 = vadd.f32 %v1871, %v2038
  %v2065 = vadd.f32 %v1872, %v2039
  %v2066 = vadd.f32 %v1873, %v2040
  %v2067 = vadd.f32 %v1874, %v2041
  %v2068 = vadd.f32 %v1875, %v2042
  %v2069 = vadd.f32 %v1876, %v2043
  %v2070 = vadd.f32 %v1877, %v2044
  %v2071 = vadd.f32 %v1878, %v2045
  %v2072 = vadd.f32 %v1879, %v2046
  %v2073 = vadd.f32 %v1880, %v2047
  %v2074 = vperm.slane %v40, 7
  %v2075 = vperm.slane %v41, 7
  %v2076 = vperm.slane %v42, 7
  %v2077 = vperm.slane %v43, 7
  %v2078 = vperm.slane %v44, 7
  %v2079 = vperm.slane %v45, 7
  %v2080 = vperm.slane %v46, 7
  %v2081 = vperm.slane %v47, 7
  %v2082 = vperm.slane %v48, 7
  %v2083 = vperm.slane %v49, 7
  %v2084 = vperm.slane %v50, 7
  %v2085 = vperm.slane %v51, 7
  %v2086 = vperm.slane %v52, 7
  %2100 = vrot.lane.b32.xlu0 %v2074, 57
  %v2101 = vpop.permute.xlu0 %2100
  %2102 = vrot.lane.b32.xlu0 %v2075, 57
  %v2103 = vpop.permute.xlu0 %2102
  %2104 = vrot.lane.b32.xlu0 %v2076, 57
  %v2105 = vpop.permute.xlu0 %2104
  %2106 = vrot.lane.b32.xlu0 %v2077, 57
  %v2107 = vpop.permute.xlu0 %2106
  %2108 = vrot.lane.b32.xlu0 %v2078, 57
  %v2109 = vpop.permute.xlu0 %2108
  %2110 = vrot.lane.b32.xlu0 %v2079, 57
  %v2111 = vpop.permute.xlu0 %2110
  %2112 = vrot.lane.b32.xlu0 %v2080, 57
  %v2113 = vpop.permute.xlu0 %2112
  %2114 = vrot.lane.b32.xlu0 %v2081, 57
  %v2115 = vpop.permute.xlu0 %2114
  %2116 = vrot.lane.b32.xlu0 %v2082, 57
  %v2117 = vpop.permute.xlu0 %2116
  %2118 = vrot.lane.b32.xlu0 %v2083, 57
  %v2119 = vpop.permute.xlu0 %2118
  %2120 = vrot.lane.b32.xlu0 %v2084, 57
  %v2121 = vpop.permute.xlu0 %2120
  %2122 = vrot.lane.b32.xlu0 %v2085, 57
  %v2123 = vpop.permute.xlu0 %2122
  %2124 = vrot.lane.b32.xlu0 %v2086, 57
  %v2125 = vpop.permute.xlu0 %2124
  %vm2126 = vcmask 465920
  %v2127 = vsel %vm2126, %v2101, %v2103
  %v2128 = vsel %vm2126, %v2103, %v2105
  %v2129 = vsel %vm2126, %v2105, %v2107
  %v2130 = vsel %vm2126, %v2107, %v2109
  %v2131 = vsel %vm2126, %v2109, %v2111
  %v2132 = vsel %vm2126, %v2111, %v2113
  %v2133 = vsel %vm2126, %v2113, %v2115
  %v2134 = vsel %vm2126, %v2115, %v2117
  %v2135 = vsel %vm2126, %v2117, %v2119
  %v2136 = vsel %vm2126, %v2119, %v2121
  %v2137 = vsel %vm2126, %v2121, %v2123
  %v2138 = vsel %vm2126, %v2123, %v2125
  %v2153 = vmul.f32 %v903, %v2101
  %v2154 = vmul.f32 %v904, %v2127
  %v2155 = vmul.f32 %v905, %v2128
  %v2156 = vmul.f32 %v906, %v2129
  %v2157 = vmul.f32 %v907, %v2130
  %v2158 = vmul.f32 %v908, %v2131
  %v2159 = vmul.f32 %v909, %v2132
  %v2160 = vmul.f32 %v910, %v2133
  %v2161 = vmul.f32 %v911, %v2134
  %v2162 = vmul.f32 %v912, %v2135
  %v2163 = vmul.f32 %v913, %v2136
  %v2164 = vmul.f32 %v914, %v2137
  %v2165 = vmul.f32 %v915, %v2138
  %v2166 = vmul.f32 %v916, %v2125
  %2167 = vset.pattern.permute.xlu0 7
  %2168 = vperm.xlu0 %2167, %v845
  %v2169 = vpop.permute.xlu0 %2168
  %v2171 = vmul.f32 %v2153, %v2169
  %v2172 = vmul.f32 %v2154, %v2169
  %v2173 = vmul.f32 %v2155, %v2169
  %v2174 = vmul.f32 %v2156, %v2169
  %v2175 = vmul.f32 %v2157, %v2169
  %v2176 = vmul.f32 %v2158, %v2169
  %v2177 = vmul.f32 %v2159, %v2169
  %v2178 = vmul.f32 %v2160, %v2169
  %v2179 = vmul.f32 %v2161, %v2169
  %v2180 = vmul.f32 %v2162, %v2169
  %v2181 = vmul.f32 %v2163, %v2169
  %v2182 = vmul.f32 %v2164, %v2169
  %v2183 = vmul.f32 %v2165, %v2169
  %v2184 = vmul.f32 %v2166, %v2169
  %2199 = vrot.lane.b32.xlu0 %v2171, 71
  %v2200 = vpop.permute.xlu0 %2199
  %2201 = vrot.lane.b32.xlu0 %v2172, 71
  %v2202 = vpop.permute.xlu0 %2201
  %2203 = vrot.lane.b32.xlu0 %v2173, 71
  %v2204 = vpop.permute.xlu0 %2203
  %2205 = vrot.lane.b32.xlu0 %v2174, 71
  %v2206 = vpop.permute.xlu0 %2205
  %2207 = vrot.lane.b32.xlu0 %v2175, 71
  %v2208 = vpop.permute.xlu0 %2207
  %2209 = vrot.lane.b32.xlu0 %v2176, 71
  %v2210 = vpop.permute.xlu0 %2209
  %2211 = vrot.lane.b32.xlu0 %v2177, 71
  %v2212 = vpop.permute.xlu0 %2211
  %2213 = vrot.lane.b32.xlu0 %v2178, 71
  %v2214 = vpop.permute.xlu0 %2213
  %2215 = vrot.lane.b32.xlu0 %v2179, 71
  %v2216 = vpop.permute.xlu0 %2215
  %2217 = vrot.lane.b32.xlu0 %v2180, 71
  %v2218 = vpop.permute.xlu0 %2217
  %2219 = vrot.lane.b32.xlu0 %v2181, 71
  %v2220 = vpop.permute.xlu0 %2219
  %2221 = vrot.lane.b32.xlu0 %v2182, 71
  %v2222 = vpop.permute.xlu0 %2221
  %2223 = vrot.lane.b32.xlu0 %v2183, 71
  %v2224 = vpop.permute.xlu0 %2223
  %2225 = vrot.lane.b32.xlu0 %v2184, 71
  %v2226 = vpop.permute.xlu0 %2225
  %vm2227 = vcmask 580608
  %v2228 = vsel %vm2227, %v2200, %v2202
  %v2229 = vsel %vm2227, %v2202, %v2204
  %v2230 = vsel %vm2227, %v2204, %v2206
  %v2231 = vsel %vm2227, %v2206, %v2208
  %v2232 = vsel %vm2227, %v2208, %v2210
  %v2233 = vsel %vm2227, %v2210, %v2212
  %v2234 = vsel %vm2227, %v2212, %v2214
  %v2235 = vsel %vm2227, %v2214, %v2216
  %v2236 = vsel %vm2227, %v2216, %v2218
  %v2237 = vsel %vm2227, %v2218, %v2220
  %v2238 = vsel %vm2227, %v2220, %v2222
  %v2239 = vsel %vm2227, %v2222, %v2224
  %v2240 = vsel %vm2227, %v2224, %v2226
  %v2254 = vadd.f32 %v2061, %v2228
  %v2255 = vadd.f32 %v2062, %v2229
  %v2256 = vadd.f32 %v2063, %v2230
  %v2257 = vadd.f32 %v2064, %v2231
  %v2258 = vadd.f32 %v2065, %v2232
  %v2259 = vadd.f32 %v2066, %v2233
  %v2260 = vadd.f32 %v2067, %v2234
  %v2261 = vadd.f32 %v2068, %v2235
  %v2262 = vadd.f32 %v2069, %v2236
  %v2263 = vadd.f32 %v2070, %v2237
  %v2264 = vadd.f32 %v2071, %v2238
  %v2265 = vadd.f32 %v2072, %v2239
  %v2266 = vadd.f32 %v2073, %v2240
  %v2267 = vperm.slane %v53, 0
  %v2268 = vperm.slane %v54, 0
  %v2269 = vperm.slane %v55, 0
  %v2270 = vperm.slane %v56, 0
  %v2271 = vperm.slane %v57, 0
  %v2272 = vperm.slane %v58, 0
  %v2273 = vperm.slane %v59, 0
  %v2274 = vperm.slane %v60, 0
  %v2275 = vperm.slane %v61, 0
  %v2276 = vperm.slane %v62, 0
  %v2277 = vperm.slane %v63, 0
  %v2278 = vperm.slane %v64, 0
  %v2279 = vperm.slane %v65, 0
  %2293 = vrot.lane.b32.xlu0 %v2267, 58
  %v2294 = vpop.permute.xlu0 %2293
  %2295 = vrot.lane.b32.xlu0 %v2268, 58
  %v2296 = vpop.permute.xlu0 %2295
  %2297 = vrot.lane.b32.xlu0 %v2269, 58
  %v2298 = vpop.permute.xlu0 %2297
  %2299 = vrot.lane.b32.xlu0 %v2270, 58
  %v2300 = vpop.permute.xlu0 %2299
  %2301 = vrot.lane.b32.xlu0 %v2271, 58
  %v2302 = vpop.permute.xlu0 %2301
  %2303 = vrot.lane.b32.xlu0 %v2272, 58
  %v2304 = vpop.permute.xlu0 %2303
  %2305 = vrot.lane.b32.xlu0 %v2273, 58
  %v2306 = vpop.permute.xlu0 %2305
  %2307 = vrot.lane.b32.xlu0 %v2274, 58
  %v2308 = vpop.permute.xlu0 %2307
  %2309 = vrot.lane.b32.xlu0 %v2275, 58
  %v2310 = vpop.permute.xlu0 %2309
  %2311 = vrot.lane.b32.xlu0 %v2276, 58
  %v2312 = vpop.permute.xlu0 %2311
  %2313 = vrot.lane.b32.xlu0 %v2277, 58
  %v2314 = vpop.permute.xlu0 %2313
  %2315 = vrot.lane.b32.xlu0 %v2278, 58
  %v2316 = vpop.permute.xlu0 %2315
  %2317 = vrot.lane.b32.xlu0 %v2279, 58
  %v2318 = vpop.permute.xlu0 %2317
  %vm2319 = vcmask 474112
  %v2320 = vsel %vm2319, %v2294, %v2296
  %v2321 = vsel %vm2319, %v2296, %v2298
  %v2322 = vsel %vm2319, %v2298, %v2300
  %v2323 = vsel %vm2319, %v2300, %v2302
  %v2324 = vsel %vm2319, %v2302, %v2304
  %v2325 = vsel %vm2319, %v2304, %v2306
  %v2326 = vsel %vm2319, %v2306, %v2308
  %v2327 = vsel %vm2319, %v2308, %v2310
  %v2328 = vsel %vm2319, %v2310, %v2312
  %v2329 = vsel %vm2319, %v2312, %v2314
  %v2330 = vsel %vm2319, %v2314, %v2316
  %v2331 = vsel %vm2319, %v2316, %v2318
  %v2346 = vmul.f32 %v903, %v2294
  %v2347 = vmul.f32 %v904, %v2320
  %v2348 = vmul.f32 %v905, %v2321
  %v2349 = vmul.f32 %v906, %v2322
  %v2350 = vmul.f32 %v907, %v2323
  %v2351 = vmul.f32 %v908, %v2324
  %v2352 = vmul.f32 %v909, %v2325
  %v2353 = vmul.f32 %v910, %v2326
  %v2354 = vmul.f32 %v911, %v2327
  %v2355 = vmul.f32 %v912, %v2328
  %v2356 = vmul.f32 %v913, %v2329
  %v2357 = vmul.f32 %v914, %v2330
  %v2358 = vmul.f32 %v915, %v2331
  %v2359 = vmul.f32 %v916, %v2318
  %2360 = vset.pattern.permute.xlu0 8
  %2361 = vperm.xlu0 %2360, %v845
  %v2362 = vpop.permute.xlu0 %2361
  %v2364 = vmul.f32 %v2346, %v2362
  %v2365 = vmul.f32 %v2347, %v2362
  %v2366 = vmul.f32 %v2348, %v2362
  %v2367 = vmul.f32 %v2349, %v2362
  %v2368 = vmul.f32 %v2350, %v2362
  %v2369 = vmul.f32 %v2351, %v2362
  %v2370 = vmul.f32 %v2352, %v2362
  %v2371 = vmul.f32 %v2353, %v2362
  %v2372 = vmul.f32 %v2354, %v2362
  %v2373 = vmul.f32 %v2355, %v2362
  %v2374 = vmul.f32 %v2356, %v2362
  %v2375 = vmul.f32 %v2357, %v2362
  %v2376 = vmul.f32 %v2358, %v2362
  %v2377 = vmul.f32 %v2359, %v2362
  %2392 = vrot.lane.b32.xlu0 %v2364, 70
  %v2393 = vpop.permute.xlu0 %2392
  %2394 = vrot.lane.b32.xlu0 %v2365, 70
  %v2395 = vpop.permute.xlu0 %2394
  %2396 = vrot.lane.b32.xlu0 %v2366, 70
  %v2397 = vpop.permute.xlu0 %2396
  %2398 = vrot.lane.b32.xlu0 %v2367, 70
  %v2399 = vpop.permute.xlu0 %2398
  %2400 = vrot.lane.b32.xlu0 %v2368, 70
  %v2401 = vpop.permute.xlu0 %2400
  %2402 = vrot.lane.b32.xlu0 %v2369, 70
  %v2403 = vpop.permute.xlu0 %2402
  %2404 = vrot.lane.b32.xlu0 %v2370, 70
  %v2405 = vpop.permute.xlu0 %2404
  %2406 = vrot.lane.b32.xlu0 %v2371, 70
  %v2407 = vpop.permute.xlu0 %2406
  %2408 = vrot.lane.b32.xlu0 %v2372, 70
  %v2409 = vpop.permute.xlu0 %2408
  %2410 = vrot.lane.b32.xlu0 %v2373, 70
  %v2411 = vpop.permute.xlu0 %2410
  %2412 = vrot.lane.b32.xlu0 %v2374, 70
  %v2413 = vpop.permute.xlu0 %2412
  %2414 = vrot.lane.b32.xlu0 %v2375, 70
  %v2415 = vpop.permute.xlu0 %2414
  %2416 = vrot.lane.b32.xlu0 %v2376, 70
  %v2417 = vpop.permute.xlu0 %2416
  %2418 = vrot.lane.b32.xlu0 %v2377, 70
  %v2419 = vpop.permute.xlu0 %2418
  %vm2420 = vcmask 572416
  %v2421 = vsel %vm2420, %v2393, %v2395
  %v2422 = vsel %vm2420, %v2395, %v2397
  %v2423 = vsel %vm2420, %v2397, %v2399
  %v2424 = vsel %vm2420, %v2399, %v2401
  %v2425 = vsel %vm2420, %v2401, %v2403
  %v2426 = vsel %vm2420, %v2403, %v2405
  %v2427 = vsel %vm2420, %v2405, %v2407
  %v2428 = vsel %vm2420, %v2407, %v2409
  %v2429 = vsel %vm2420, %v2409, %v2411
  %v2430 = vsel %vm2420, %v2411, %v2413
  %v2431 = vsel %vm2420, %v2413, %v2415
  %v2432 = vsel %vm2420, %v2415, %v2417
  %v2433 = vsel %vm2420, %v2417, %v2419
  %v2447 = vadd.f32 %v2254, %v2421
  %v2448 = vadd.f32 %v2255, %v2422
  %v2449 = vadd.f32 %v2256, %v2423
  %v2450 = vadd.f32 %v2257, %v2424
  %v2451 = vadd.f32 %v2258, %v2425
  %v2452 = vadd.f32 %v2259, %v2426
  %v2453 = vadd.f32 %v2260, %v2427
  %v2454 = vadd.f32 %v2261, %v2428
  %v2455 = vadd.f32 %v2262, %v2429
  %v2456 = vadd.f32 %v2263, %v2430
  %v2457 = vadd.f32 %v2264, %v2431
  %v2458 = vadd.f32 %v2265, %v2432
  %v2459 = vadd.f32 %v2266, %v2433
  %v2460 = vpack.c.bf16 %v2447, %v2447
  %v2461 = vpack.c.bf16 %v2448, %v2448
  %v2462 = vpack.c.bf16 %v2449, %v2449
  %v2463 = vpack.c.bf16 %v2450, %v2450
  %v2464 = vpack.c.bf16 %v2451, %v2451
  %v2465 = vpack.c.bf16 %v2452, %v2452
  %v2466 = vpack.c.bf16 %v2453, %v2453
  %v2467 = vpack.c.bf16 %v2454, %v2454
  %v2468 = vpack.c.bf16 %v2455, %v2455
  %v2469 = vpack.c.bf16 %v2456, %v2456
  %v2470 = vpack.c.bf16 %v2457, %v2457
  %v2471 = vpack.c.bf16 %v2458, %v2458
  %v2472 = vpack.c.bf16 %v2459, %v2459
  %v2473 = vld [vmem:[%s4] sm:$0x3f]
  %2475 = vset.pattern.permute.xlu0 0
  %2476 = vperm.xlu0 %2475, %v2473
  %v2477 = vpop.permute.xlu0 %2476
  %v2895 = vunpack.c.l.b16 %v66
  %v2896 = vunpack.c.h.b16 %v66
  %v2897 = vunpack.c.l.b16 %v67
  %v2898 = vunpack.c.h.b16 %v67
  %v2899 = vunpack.c.l.b16 %v68
  %v2900 = vunpack.c.h.b16 %v68
  %v2901 = vunpack.c.l.b16 %v69
  %v2902 = vunpack.c.h.b16 %v69
  %v2903 = vunpack.c.l.b16 %v70
  %v2904 = vunpack.c.h.b16 %v70
  %v2905 = vunpack.c.l.b16 %v71
  %v2906 = vunpack.c.h.b16 %v71
  %v2907 = vunpack.c.l.b16 %v72
  %v2908 = vunpack.c.h.b16 %v72
  %v2909 = vunpack.c.l.b16 %v73
  %v2910 = vunpack.c.h.b16 %v73
  %v2911 = vunpack.c.l.b16 %v74
  %v2912 = vunpack.c.h.b16 %v74
  %v2913 = vunpack.c.l.b16 %v75
  %v2914 = vunpack.c.h.b16 %v75
  %v2915 = vunpack.c.l.b16 %v76
  %v2916 = vunpack.c.h.b16 %v76
  %v2917 = vunpack.c.l.b16 %v77
  %v2918 = vunpack.c.h.b16 %v77
  %v2919 = vunpack.c.l.b16 %v78
  %v2920 = vunpack.c.h.b16 %v78
  %v2921 = vunpack.c.l.b16 %v79
  %v2922 = vunpack.c.h.b16 %v79
  %v2923 = vunpack.c.l.b16 %v80
  %v2924 = vunpack.c.h.b16 %v80
  %v2925 = vunpack.c.l.b16 %v81
  %v2926 = vunpack.c.h.b16 %v81
  %v2927 = vunpack.c.l.b16 %v82
  %v2928 = vunpack.c.h.b16 %v82
  %v2929 = vunpack.c.l.b16 %v83
  %v2930 = vunpack.c.h.b16 %v83
  %v2931 = vunpack.c.l.b16 %v84
  %v2932 = vunpack.c.h.b16 %v84
  %v2933 = vunpack.c.l.b16 %v85
  %v2934 = vunpack.c.h.b16 %v85
  %v2935 = vunpack.c.l.b16 %v86
  %v2936 = vunpack.c.h.b16 %v86
  %v2937 = vunpack.c.l.b16 %v87
  %v2938 = vunpack.c.h.b16 %v87
  %v2939 = vunpack.c.l.b16 %v88
  %v2940 = vunpack.c.h.b16 %v88
  %v2941 = vunpack.c.l.b16 %v89
  %v2942 = vunpack.c.h.b16 %v89
  %v2943 = vunpack.c.l.b16 %v90
  %v2944 = vunpack.c.h.b16 %v90
  %v2945 = vunpack.c.l.b16 %v91
  %v2946 = vunpack.c.h.b16 %v91
  %v2947 = vunpack.c.l.b16 %v92
  %v2948 = vunpack.c.h.b16 %v92
  %v2949 = vunpack.c.l.b16 %v93
  %v2950 = vunpack.c.h.b16 %v93
  %v2951 = vunpack.c.l.b16 %v94
  %v2952 = vunpack.c.h.b16 %v94
  %v2953 = vunpack.c.l.b16 %v95
  %v2954 = vunpack.c.h.b16 %v95
  %v2955 = vunpack.c.l.b16 %v96
  %v2956 = vunpack.c.h.b16 %v96
  %v2957 = vunpack.c.l.b16 %v97
  %v2958 = vunpack.c.h.b16 %v97
  %v2959 = vunpack.c.l.b16 %v98
  %v2960 = vunpack.c.h.b16 %v98
  %v2961 = vunpack.c.l.b16 %v99
  %v2962 = vunpack.c.h.b16 %v99
  %v2963 = vunpack.c.l.b16 %v100
  %v2964 = vunpack.c.h.b16 %v100
  %v2965 = vunpack.c.l.b16 %v101
  %v2966 = vunpack.c.h.b16 %v101
  %v2967 = vunpack.c.l.b16 %v102
  %v2968 = vunpack.c.h.b16 %v102
  %v2969 = vunpack.c.l.b16 %v103
  %v2970 = vunpack.c.h.b16 %v103
  %v2971 = vunpack.c.l.b16 %v104
  %v2972 = vunpack.c.h.b16 %v104
  %v2973 = vunpack.c.l.b16 %v105
  %v2974 = vunpack.c.h.b16 %v105
  %v2975 = vunpack.c.l.b16 %v106
  %v2976 = vunpack.c.h.b16 %v106
  %v2977 = vunpack.c.l.b16 %v107
  %v2978 = vunpack.c.h.b16 %v107
  %v2979 = vunpack.c.l.b16 %v108
  %v2980 = vunpack.c.h.b16 %v108
  %v2981 = vunpack.c.l.b16 %v109
  %v2982 = vunpack.c.h.b16 %v109
  %v2983 = vunpack.c.l.b16 %v110
  %v2984 = vunpack.c.h.b16 %v110
  %v2985 = vunpack.c.l.b16 %v111
  %v2986 = vunpack.c.h.b16 %v111
  %v2987 = vunpack.c.l.b16 %v112
  %v2988 = vunpack.c.h.b16 %v112
  %v2989 = vunpack.c.l.b16 %v113
  %v2990 = vunpack.c.h.b16 %v113
  %v2991 = vunpack.c.l.b16 %v114
  %v2992 = vunpack.c.h.b16 %v114
  %v2993 = vunpack.c.l.b16 %v115
  %v2994 = vunpack.c.h.b16 %v115
  %v2995 = vunpack.c.l.b16 %v116
  %v2996 = vunpack.c.h.b16 %v116
  %v2997 = vunpack.c.l.b16 %v117
  %v2998 = vunpack.c.h.b16 %v117
  %v2999 = vunpack.c.l.b16 %v118
  %v3000 = vunpack.c.h.b16 %v118
  %v3001 = vunpack.c.l.b16 %v119
  %v3002 = vunpack.c.h.b16 %v119
  %v3003 = vunpack.c.l.b16 %v120
  %v3004 = vunpack.c.h.b16 %v120
  %v3005 = vunpack.c.l.b16 %v121
  %v3006 = vunpack.c.h.b16 %v121
  %v3007 = vunpack.c.l.b16 %v122
  %v3008 = vunpack.c.h.b16 %v122
  %v3009 = vunpack.c.l.b16 %v123
  %v3010 = vunpack.c.h.b16 %v123
  %v3011 = vunpack.c.l.b16 %v124
  %v3012 = vunpack.c.h.b16 %v124
  %v3013 = vunpack.c.l.b16 %v125
  %v3014 = vunpack.c.h.b16 %v125
  %v3015 = vunpack.c.l.b16 %v126
  %v3016 = vunpack.c.h.b16 %v126
  %v3017 = vunpack.c.l.b16 %v127
  %v3018 = vunpack.c.h.b16 %v127
  %v3019 = vunpack.c.l.b16 %v128
  %v3020 = vunpack.c.h.b16 %v128
  %v3021 = vunpack.c.l.b16 %v129
  %v3022 = vunpack.c.h.b16 %v129
  %v3023 = vunpack.c.l.b16 %v130
  %v3024 = vunpack.c.h.b16 %v130
  %v3025 = vunpack.c.l.b16 %v131
  %v3026 = vunpack.c.h.b16 %v131
  %v3027 = vunpack.c.l.b16 %v132
  %v3028 = vunpack.c.h.b16 %v132
  %v3029 = vunpack.c.l.b16 %v133
  %v3030 = vunpack.c.h.b16 %v133
  %v3031 = vunpack.c.l.b16 %v134
  %v3032 = vunpack.c.h.b16 %v134
  %v3033 = vunpack.c.l.b16 %v135
  %v3034 = vunpack.c.h.b16 %v135
  %v3035 = vunpack.c.l.b16 %v136
  %v3036 = vunpack.c.h.b16 %v136
  %v3037 = vunpack.c.l.b16 %v137
  %v3038 = vunpack.c.h.b16 %v137
  %v3039 = vunpack.c.l.b16 %v138
  %v3040 = vunpack.c.h.b16 %v138
  %v3041 = vunpack.c.l.b16 %v139
  %v3042 = vunpack.c.h.b16 %v139
  %v3043 = vunpack.c.l.b16 %v140
  %v3044 = vunpack.c.h.b16 %v140
  %v3045 = vunpack.c.l.b16 %v141
  %v3046 = vunpack.c.h.b16 %v141
  %v3047 = vunpack.c.l.b16 %v142
  %v3048 = vunpack.c.h.b16 %v142
  %v3049 = vunpack.c.l.b16 %v143
  %v3050 = vunpack.c.h.b16 %v143
  %v3051 = vunpack.c.l.b16 %v144
  %v3052 = vunpack.c.h.b16 %v144
  %v3053 = vunpack.c.l.b16 %v145
  %v3054 = vunpack.c.h.b16 %v145
  %v3055 = vunpack.c.l.b16 %v146
  %v3056 = vunpack.c.h.b16 %v146
  %v3057 = vunpack.c.l.b16 %v147
  %v3058 = vunpack.c.h.b16 %v147
  %v3059 = vunpack.c.l.b16 %v148
  %v3060 = vunpack.c.h.b16 %v148
  %v3061 = vunpack.c.l.b16 %v149
  %v3062 = vunpack.c.h.b16 %v149
  %v3063 = vunpack.c.l.b16 %v150
  %v3064 = vunpack.c.h.b16 %v150
  %v3065 = vunpack.c.l.b16 %v151
  %v3066 = vunpack.c.h.b16 %v151
  %v3067 = vunpack.c.l.b16 %v152
  %v3068 = vunpack.c.h.b16 %v152
  %v3069 = vunpack.c.l.b16 %v153
  %v3070 = vunpack.c.h.b16 %v153
  %v3071 = vunpack.c.l.b16 %v154
  %v3072 = vunpack.c.h.b16 %v154
  %v3073 = vunpack.c.l.b16 %v155
  %v3074 = vunpack.c.h.b16 %v155
  %v3075 = vunpack.c.l.b16 %v156
  %v3076 = vunpack.c.h.b16 %v156
  %v3077 = vunpack.c.l.b16 %v157
  %v3078 = vunpack.c.h.b16 %v157
  %v3079 = vunpack.c.l.b16 %v158
  %v3080 = vunpack.c.h.b16 %v158
  %v3081 = vunpack.c.l.b16 %v159
  %v3082 = vunpack.c.h.b16 %v159
  %v3083 = vunpack.c.l.b16 %v160
  %v3084 = vunpack.c.h.b16 %v160
  %v3085 = vunpack.c.l.b16 %v161
  %v3086 = vunpack.c.h.b16 %v161
  %v3087 = vunpack.c.l.b16 %v162
  %v3088 = vunpack.c.h.b16 %v162
  %v3089 = vunpack.c.l.b16 %v163
  %v3090 = vunpack.c.h.b16 %v163
  %v3091 = vunpack.c.l.b16 %v164
  %v3092 = vunpack.c.h.b16 %v164
  %v3093 = vunpack.c.l.b16 %v165
  %v3094 = vunpack.c.h.b16 %v165
  %v3095 = vunpack.c.l.b16 %v166
  %v3096 = vunpack.c.h.b16 %v166
  %v3097 = vunpack.c.l.b16 %v167
  %v3098 = vunpack.c.h.b16 %v167
  %v3099 = vunpack.c.l.b16 %v168
  %v3100 = vunpack.c.h.b16 %v168
  %v3101 = vunpack.c.l.b16 %v169
  %v3102 = vunpack.c.h.b16 %v169
  %v3103 = vunpack.c.l.b16 %v170
  %v3104 = vunpack.c.h.b16 %v170
  %v3105 = vunpack.c.l.b16 %v171
  %v3106 = vunpack.c.h.b16 %v171
  %v3107 = vunpack.c.l.b16 %v172
  %v3108 = vunpack.c.h.b16 %v172
  %v3109 = vunpack.c.l.b16 %v173
  %v3110 = vunpack.c.h.b16 %v173
  %v3111 = vunpack.c.l.b16 %v174
  %v3112 = vunpack.c.h.b16 %v174
  %v3113 = vunpack.c.l.b16 %v175
  %v3114 = vunpack.c.h.b16 %v175
  %v3115 = vunpack.c.l.b16 %v176
  %v3116 = vunpack.c.h.b16 %v176
  %v3117 = vunpack.c.l.b16 %v177
  %v3118 = vunpack.c.h.b16 %v177
  %v3119 = vunpack.c.l.b16 %v178
  %v3120 = vunpack.c.h.b16 %v178
  %v3121 = vunpack.c.l.b16 %v179
  %v3122 = vunpack.c.h.b16 %v179
  %v3123 = vunpack.c.l.b16 %v180
  %v3124 = vunpack.c.h.b16 %v180
  %v3125 = vunpack.c.l.b16 %v181
  %v3126 = vunpack.c.h.b16 %v181
  %v3127 = vunpack.c.l.b16 %v182
  %v3128 = vunpack.c.h.b16 %v182
  %v3129 = vunpack.c.l.b16 %v183
  %v3130 = vunpack.c.h.b16 %v183
  %v3131 = vunpack.c.l.b16 %v184
  %v3132 = vunpack.c.h.b16 %v184
  %v3133 = vunpack.c.l.b16 %v185
  %v3134 = vunpack.c.h.b16 %v185
  %v3135 = vunpack.c.l.b16 %v186
  %v3136 = vunpack.c.h.b16 %v186
  %v3137 = vunpack.c.l.b16 %v187
  %v3138 = vunpack.c.h.b16 %v187
  %v3139 = vunpack.c.l.b16 %v188
  %v3140 = vunpack.c.h.b16 %v188
  %v3141 = vunpack.c.l.b16 %v189
  %v3142 = vunpack.c.h.b16 %v189
  %v3143 = vunpack.c.l.b16 %v190
  %v3144 = vunpack.c.h.b16 %v190
  %v3145 = vunpack.c.l.b16 %v191
  %v3146 = vunpack.c.h.b16 %v191
  %v3147 = vunpack.c.l.b16 %v192
  %v3148 = vunpack.c.h.b16 %v192
  %v3149 = vunpack.c.l.b16 %v193
  %v3150 = vunpack.c.h.b16 %v193
  %v3151 = vunpack.c.l.b16 %v194
  %v3152 = vunpack.c.h.b16 %v194
  %v3153 = vunpack.c.l.b16 %v195
  %v3154 = vunpack.c.h.b16 %v195
  %v3155 = vunpack.c.l.b16 %v196
  %v3156 = vunpack.c.h.b16 %v196
  %v3157 = vunpack.c.l.b16 %v197
  %v3158 = vunpack.c.h.b16 %v197
  %v3159 = vunpack.c.l.b16 %v198
  %v3160 = vunpack.c.h.b16 %v198
  %v3161 = vunpack.c.l.b16 %v199
  %v3162 = vunpack.c.h.b16 %v199
  %v3163 = vunpack.c.l.b16 %v200
  %v3164 = vunpack.c.h.b16 %v200
  %v3165 = vunpack.c.l.b16 %v201
  %v3166 = vunpack.c.h.b16 %v201
  %v3167 = vunpack.c.l.b16 %v202
  %v3168 = vunpack.c.h.b16 %v202
  %v3169 = vunpack.c.l.b16 %v203
  %v3170 = vunpack.c.h.b16 %v203
  %v3171 = vunpack.c.l.b16 %v204
  %v3172 = vunpack.c.h.b16 %v204
  %v3173 = vunpack.c.l.b16 %v205
  %v3174 = vunpack.c.h.b16 %v205
  %v3175 = vunpack.c.l.b16 %v206
  %v3176 = vunpack.c.h.b16 %v206
  %v3177 = vunpack.c.l.b16 %v207
  %v3178 = vunpack.c.h.b16 %v207
  %v3179 = vunpack.c.l.b16 %v208
  %v3180 = vunpack.c.h.b16 %v208
  %v3181 = vunpack.c.l.b16 %v209
  %v3182 = vunpack.c.h.b16 %v209
  %v3183 = vunpack.c.l.b16 %v210
  %v3184 = vunpack.c.h.b16 %v210
  %v3185 = vunpack.c.l.b16 %v211
  %v3186 = vunpack.c.h.b16 %v211
  %v3187 = vunpack.c.l.b16 %v212
  %v3188 = vunpack.c.h.b16 %v212
  %v3189 = vunpack.c.l.b16 %v213
  %v3190 = vunpack.c.h.b16 %v213
  %v3191 = vunpack.c.l.b16 %v214
  %v3192 = vunpack.c.h.b16 %v214
  %v3193 = vunpack.c.l.b16 %v215
  %v3194 = vunpack.c.h.b16 %v215
  %v3195 = vunpack.c.l.b16 %v216
  %v3196 = vunpack.c.h.b16 %v216
  %v3197 = vunpack.c.l.b16 %v217
  %v3198 = vunpack.c.h.b16 %v217
  %v3199 = vunpack.c.l.b16 %v218
  %v3200 = vunpack.c.h.b16 %v218
  %v3201 = vunpack.c.l.b16 %v219
  %v3202 = vunpack.c.h.b16 %v219
  %v3203 = vunpack.c.l.b16 %v220
  %v3204 = vunpack.c.h.b16 %v220
  %v3205 = vunpack.c.l.b16 %v221
  %v3206 = vunpack.c.h.b16 %v221
  %v3207 = vunpack.c.l.b16 %v222
  %v3208 = vunpack.c.h.b16 %v222
  %v3209 = vunpack.c.l.b16 %v223
  %v3210 = vunpack.c.h.b16 %v223
  %v3211 = vunpack.c.l.b16 %v224
  %v3212 = vunpack.c.h.b16 %v224
  %v3213 = vunpack.c.l.b16 %v225
  %v3214 = vunpack.c.h.b16 %v225
  %v3215 = vunpack.c.l.b16 %v226
  %v3216 = vunpack.c.h.b16 %v226
  %v3217 = vunpack.c.l.b16 %v227
  %v3218 = vunpack.c.h.b16 %v227
  %v3219 = vunpack.c.l.b16 %v228
  %v3220 = vunpack.c.h.b16 %v228
  %v3221 = vunpack.c.l.b16 %v229
  %v3222 = vunpack.c.h.b16 %v229
  %v3223 = vunpack.c.l.b16 %v230
  %v3224 = vunpack.c.h.b16 %v230
  %v3225 = vunpack.c.l.b16 %v231
  %v3226 = vunpack.c.h.b16 %v231
  %v3227 = vunpack.c.l.b16 %v232
  %v3228 = vunpack.c.h.b16 %v232
  %v3229 = vunpack.c.l.b16 %v233
  %v3230 = vunpack.c.h.b16 %v233
  %v3231 = vunpack.c.l.b16 %v234
  %v3232 = vunpack.c.h.b16 %v234
  %v3233 = vunpack.c.l.b16 %v235
  %v3234 = vunpack.c.h.b16 %v235
  %v3235 = vunpack.c.l.b16 %v236
  %v3236 = vunpack.c.h.b16 %v236
  %v3237 = vunpack.c.l.b16 %v237
  %v3238 = vunpack.c.h.b16 %v237
  %v3239 = vunpack.c.l.b16 %v238
  %v3240 = vunpack.c.h.b16 %v238
  %v3241 = vunpack.c.l.b16 %v239
  %v3242 = vunpack.c.h.b16 %v239
  %v3243 = vunpack.c.l.b16 %v240
  %v3244 = vunpack.c.h.b16 %v240
  %v3245 = vunpack.c.l.b16 %v241
  %v3246 = vunpack.c.h.b16 %v241
  %v3247 = vunpack.c.l.b16 %v242
  %v3248 = vunpack.c.h.b16 %v242
  %v3249 = vunpack.c.l.b16 %v243
  %v3250 = vunpack.c.h.b16 %v243
  %v3251 = vunpack.c.l.b16 %v244
  %v3252 = vunpack.c.h.b16 %v244
  %v3253 = vunpack.c.l.b16 %v245
  %v3254 = vunpack.c.h.b16 %v245
  %v3255 = vunpack.c.l.b16 %v246
  %v3256 = vunpack.c.h.b16 %v246
  %v3257 = vunpack.c.l.b16 %v247
  %v3258 = vunpack.c.h.b16 %v247
  %v3259 = vunpack.c.l.b16 %v248
  %v3260 = vunpack.c.h.b16 %v248
  %v3261 = vunpack.c.l.b16 %v249
  %v3262 = vunpack.c.h.b16 %v249
  %v3263 = vunpack.c.l.b16 %v250
  %v3264 = vunpack.c.h.b16 %v250
  %v3265 = vunpack.c.l.b16 %v251
  %v3266 = vunpack.c.h.b16 %v251
  %v3267 = vunpack.c.l.b16 %v252
  %v3268 = vunpack.c.h.b16 %v252
  %v3269 = vunpack.c.l.b16 %v253
  %v3270 = vunpack.c.h.b16 %v253
  %v3271 = vunpack.c.l.b16 %v254
  %v3272 = vunpack.c.h.b16 %v254
  %v3273 = vunpack.c.l.b16 %v255
  %v3274 = vunpack.c.h.b16 %v255
  %v3275 = vunpack.c.l.b16 %v256
  %v3276 = vunpack.c.h.b16 %v256
  %v3277 = vunpack.c.l.b16 %v257
  %v3278 = vunpack.c.h.b16 %v257
  %v3279 = vunpack.c.l.b16 %v258
  %v3280 = vunpack.c.h.b16 %v258
  %v3281 = vunpack.c.l.b16 %v259
  %v3282 = vunpack.c.h.b16 %v259
  %v3283 = vunpack.c.l.b16 %v260
  %v3284 = vunpack.c.h.b16 %v260
  %v3285 = vunpack.c.l.b16 %v261
  %v3286 = vunpack.c.h.b16 %v261
  %v3287 = vunpack.c.l.b16 %v262
  %v3288 = vunpack.c.h.b16 %v262
  %v3289 = vunpack.c.l.b16 %v263
  %v3290 = vunpack.c.h.b16 %v263
  %v3291 = vunpack.c.l.b16 %v264
  %v3292 = vunpack.c.h.b16 %v264
  %v3293 = vunpack.c.l.b16 %v265
  %v3294 = vunpack.c.h.b16 %v265
  %v3295 = vunpack.c.l.b16 %v266
  %v3296 = vunpack.c.h.b16 %v266
  %v3297 = vunpack.c.l.b16 %v267
  %v3298 = vunpack.c.h.b16 %v267
  %v3299 = vunpack.c.l.b16 %v268
  %v3300 = vunpack.c.h.b16 %v268
  %v3301 = vunpack.c.l.b16 %v269
  %v3302 = vunpack.c.h.b16 %v269
  %v3303 = vunpack.c.l.b16 %v270
  %v3304 = vunpack.c.h.b16 %v270
  %v3305 = vunpack.c.l.b16 %v271
  %v3306 = vunpack.c.h.b16 %v271
  %v3307 = vunpack.c.l.b16 %v272
  %v3308 = vunpack.c.h.b16 %v272
  %v3309 = vunpack.c.l.b16 %v273
  %v3310 = vunpack.c.h.b16 %v273
  %v3311 = vunpack.c.l.b16 %v274
  %v3312 = vunpack.c.h.b16 %v274
  %v3313 = vunpack.c.l.b16 %v275
  %v3314 = vunpack.c.h.b16 %v275
  %v3315 = vunpack.c.l.b16 %v276
  %v3316 = vunpack.c.h.b16 %v276
  %v3317 = vunpack.c.l.b16 %v277
  %v3318 = vunpack.c.h.b16 %v277
  %v3319 = vunpack.c.l.b16 %v278
  %v3320 = vunpack.c.h.b16 %v278
  %v3321 = vunpack.c.l.b16 %v279
  %v3322 = vunpack.c.h.b16 %v279
  %v3323 = vunpack.c.l.b16 %v280
  %v3324 = vunpack.c.h.b16 %v280
  %v3325 = vunpack.c.l.b16 %v281
  %v3326 = vunpack.c.h.b16 %v281
  %v3327 = vunpack.c.l.b16 %v282
  %v3328 = vunpack.c.h.b16 %v282
  %v3329 = vunpack.c.l.b16 %v283
  %v3330 = vunpack.c.h.b16 %v283
  %v3331 = vunpack.c.l.b16 %v284
  %v3332 = vunpack.c.h.b16 %v284
  %v3333 = vunpack.c.l.b16 %v285
  %v3334 = vunpack.c.h.b16 %v285
  %v3335 = vunpack.c.l.b16 %v286
  %v3336 = vunpack.c.h.b16 %v286
  %v3337 = vunpack.c.l.b16 %v287
  %v3338 = vunpack.c.h.b16 %v287
  %v3339 = vunpack.c.l.b16 %v288
  %v3340 = vunpack.c.h.b16 %v288
  %v3341 = vunpack.c.l.b16 %v289
  %v3342 = vunpack.c.h.b16 %v289
  %v3343 = vunpack.c.l.b16 %v290
  %v3344 = vunpack.c.h.b16 %v290
  %v3345 = vunpack.c.l.b16 %v291
  %v3346 = vunpack.c.h.b16 %v291
  %v3347 = vunpack.c.l.b16 %v292
  %v3348 = vunpack.c.h.b16 %v292
  %v3349 = vunpack.c.l.b16 %v293
  %v3350 = vunpack.c.h.b16 %v293
  %v3351 = vunpack.c.l.b16 %v294
  %v3352 = vunpack.c.h.b16 %v294
  %v3353 = vunpack.c.l.b16 %v295
  %v3354 = vunpack.c.h.b16 %v295
  %v3355 = vunpack.c.l.b16 %v296
  %v3356 = vunpack.c.h.b16 %v296
  %v3357 = vunpack.c.l.b16 %v297
  %v3358 = vunpack.c.h.b16 %v297
  %v3359 = vunpack.c.l.b16 %v298
  %v3360 = vunpack.c.h.b16 %v298
  %v3361 = vunpack.c.l.b16 %v299
  %v3362 = vunpack.c.h.b16 %v299
  %v3363 = vunpack.c.l.b16 %v300
  %v3364 = vunpack.c.h.b16 %v300
  %v3365 = vunpack.c.l.b16 %v301
  %v3366 = vunpack.c.h.b16 %v301
  %v3367 = vunpack.c.l.b16 %v302
  %v3368 = vunpack.c.h.b16 %v302
  %v3369 = vunpack.c.l.b16 %v303
  %v3370 = vunpack.c.h.b16 %v303
  %v3371 = vunpack.c.l.b16 %v304
  %v3372 = vunpack.c.h.b16 %v304
  %v3373 = vunpack.c.l.b16 %v305
  %v3374 = vunpack.c.h.b16 %v305
  %v3375 = vunpack.c.l.b16 %v306
  %v3376 = vunpack.c.h.b16 %v306
  %v3377 = vunpack.c.l.b16 %v307
  %v3378 = vunpack.c.h.b16 %v307
  %v3379 = vunpack.c.l.b16 %v308
  %v3380 = vunpack.c.h.b16 %v308
  %v3381 = vunpack.c.l.b16 %v309
  %v3382 = vunpack.c.h.b16 %v309
  %v3383 = vunpack.c.l.b16 %v310
  %v3384 = vunpack.c.h.b16 %v310
  %v3385 = vunpack.c.l.b16 %v311
  %v3386 = vunpack.c.h.b16 %v311
  %v3387 = vunpack.c.l.b16 %v312
  %v3388 = vunpack.c.h.b16 %v312
  %v3389 = vunpack.c.l.b16 %v313
  %v3390 = vunpack.c.h.b16 %v313
  %v3391 = vunpack.c.l.b16 %v314
  %v3392 = vunpack.c.h.b16 %v314
  %v3393 = vunpack.c.l.b16 %v315
  %v3394 = vunpack.c.h.b16 %v315
  %v3395 = vunpack.c.l.b16 %v316
  %v3396 = vunpack.c.h.b16 %v316
  %v3397 = vunpack.c.l.b16 %v317
  %v3398 = vunpack.c.h.b16 %v317
  %v3399 = vunpack.c.l.b16 %v318
  %v3400 = vunpack.c.h.b16 %v318
  %v3401 = vunpack.c.l.b16 %v319
  %v3402 = vunpack.c.h.b16 %v319
  %v3403 = vunpack.c.l.b16 %v320
  %v3404 = vunpack.c.h.b16 %v320
  %v3405 = vunpack.c.l.b16 %v321
  %v3406 = vunpack.c.h.b16 %v321
  %v3407 = vunpack.c.l.b16 %v322
  %v3408 = vunpack.c.h.b16 %v322
  %v3409 = vunpack.c.l.b16 %v323
  %v3410 = vunpack.c.h.b16 %v323
  %v3411 = vunpack.c.l.b16 %v324
  %v3412 = vunpack.c.h.b16 %v324
  %v3413 = vunpack.c.l.b16 %v325
  %v3414 = vunpack.c.h.b16 %v325
  %v3415 = vunpack.c.l.b16 %v326
  %v3416 = vunpack.c.h.b16 %v326
  %v3417 = vunpack.c.l.b16 %v327
  %v3418 = vunpack.c.h.b16 %v327
  %v3419 = vunpack.c.l.b16 %v328
  %v3420 = vunpack.c.h.b16 %v328
  %v3421 = vunpack.c.l.b16 %v329
  %v3422 = vunpack.c.h.b16 %v329
  %v3423 = vunpack.c.l.b16 %v330
  %v3424 = vunpack.c.h.b16 %v330
  %v3425 = vunpack.c.l.b16 %v331
  %v3426 = vunpack.c.h.b16 %v331
  %v3427 = vunpack.c.l.b16 %v332
  %v3428 = vunpack.c.h.b16 %v332
  %v3429 = vunpack.c.l.b16 %v333
  %v3430 = vunpack.c.h.b16 %v333
  %v3431 = vunpack.c.l.b16 %v334
  %v3432 = vunpack.c.h.b16 %v334
  %v3433 = vunpack.c.l.b16 %v335
  %v3434 = vunpack.c.h.b16 %v335
  %v3435 = vunpack.c.l.b16 %v336
  %v3436 = vunpack.c.h.b16 %v336
  %v3437 = vunpack.c.l.b16 %v337
  %v3438 = vunpack.c.h.b16 %v337
  %v3439 = vunpack.c.l.b16 %v338
  %v3440 = vunpack.c.h.b16 %v338
  %v3441 = vunpack.c.l.b16 %v339
  %v3442 = vunpack.c.h.b16 %v339
  %v3443 = vunpack.c.l.b16 %v340
  %v3444 = vunpack.c.h.b16 %v340
  %v3445 = vunpack.c.l.b16 %v341
  %v3446 = vunpack.c.h.b16 %v341
  %v3447 = vunpack.c.l.b16 %v342
  %v3448 = vunpack.c.h.b16 %v342
  %v3449 = vunpack.c.l.b16 %v343
  %v3450 = vunpack.c.h.b16 %v343
  %v3451 = vunpack.c.l.b16 %v344
  %v3452 = vunpack.c.h.b16 %v344
  %v3453 = vunpack.c.l.b16 %v345
  %v3454 = vunpack.c.h.b16 %v345
  %v3455 = vunpack.c.l.b16 %v346
  %v3456 = vunpack.c.h.b16 %v346
  %v3457 = vunpack.c.l.b16 %v347
  %v3458 = vunpack.c.h.b16 %v347
  %v3459 = vunpack.c.l.b16 %v348
  %v3460 = vunpack.c.h.b16 %v348
  %v3461 = vunpack.c.l.b16 %v349
  %v3462 = vunpack.c.h.b16 %v349
  %v3463 = vunpack.c.l.b16 %v350
  %v3464 = vunpack.c.h.b16 %v350
  %v3465 = vunpack.c.l.b16 %v351
  %v3466 = vunpack.c.h.b16 %v351
  %v3467 = vunpack.c.l.b16 %v352
  %v3468 = vunpack.c.h.b16 %v352
  %v3469 = vunpack.c.l.b16 %v353
  %v3470 = vunpack.c.h.b16 %v353
  %v3471 = vunpack.c.l.b16 %v354
  %v3472 = vunpack.c.h.b16 %v354
  %v3473 = vunpack.c.l.b16 %v355
  %v3474 = vunpack.c.h.b16 %v355
  %v3475 = vunpack.c.l.b16 %v356
  %v3476 = vunpack.c.h.b16 %v356
  %v3477 = vunpack.c.l.b16 %v357
  %v3478 = vunpack.c.h.b16 %v357
  %v3479 = vunpack.c.l.b16 %v358
  %v3480 = vunpack.c.h.b16 %v358
  %v3481 = vunpack.c.l.b16 %v359
  %v3482 = vunpack.c.h.b16 %v359
  %v3483 = vunpack.c.l.b16 %v360
  %v3484 = vunpack.c.h.b16 %v360
  %v3485 = vunpack.c.l.b16 %v361
  %v3486 = vunpack.c.h.b16 %v361
  %v3487 = vunpack.c.l.b16 %v362
  %v3488 = vunpack.c.h.b16 %v362
  %v3489 = vunpack.c.l.b16 %v363
  %v3490 = vunpack.c.h.b16 %v363
  %v3491 = vunpack.c.l.b16 %v364
  %v3492 = vunpack.c.h.b16 %v364
  %v3493 = vunpack.c.l.b16 %v365
  %v3494 = vunpack.c.h.b16 %v365
  %v3495 = vunpack.c.l.b16 %v366
  %v3496 = vunpack.c.h.b16 %v366
  %v3497 = vunpack.c.l.b16 %v367
  %v3498 = vunpack.c.h.b16 %v367
  %v3499 = vunpack.c.l.b16 %v368
  %v3500 = vunpack.c.h.b16 %v368
  %v3501 = vunpack.c.l.b16 %v369
  %v3502 = vunpack.c.h.b16 %v369
  %v3503 = vunpack.c.l.b16 %v370
  %v3504 = vunpack.c.h.b16 %v370
  %v3505 = vunpack.c.l.b16 %v371
  %v3506 = vunpack.c.h.b16 %v371
  %v3507 = vunpack.c.l.b16 %v372
  %v3508 = vunpack.c.h.b16 %v372
  %v3509 = vunpack.c.l.b16 %v373
  %v3510 = vunpack.c.h.b16 %v373
  %v3511 = vunpack.c.l.b16 %v374
  %v3512 = vunpack.c.h.b16 %v374
  %v3513 = vunpack.c.l.b16 %v375
  %v3514 = vunpack.c.h.b16 %v375
  %v3515 = vunpack.c.l.b16 %v376
  %v3516 = vunpack.c.h.b16 %v376
  %v3517 = vunpack.c.l.b16 %v377
  %v3518 = vunpack.c.h.b16 %v377
  %v3519 = vunpack.c.l.b16 %v378
  %v3520 = vunpack.c.h.b16 %v378
  %v3521 = vunpack.c.l.b16 %v379
  %v3522 = vunpack.c.h.b16 %v379
  %v3523 = vunpack.c.l.b16 %v380
  %v3524 = vunpack.c.h.b16 %v380
  %v3525 = vunpack.c.l.b16 %v381
  %v3526 = vunpack.c.h.b16 %v381
  %v3527 = vunpack.c.l.b16 %v382
  %v3528 = vunpack.c.h.b16 %v382
  %v3529 = vunpack.c.l.b16 %v383
  %v3530 = vunpack.c.h.b16 %v383
  %v3531 = vunpack.c.l.b16 %v384
  %v3532 = vunpack.c.h.b16 %v384
  %v3533 = vunpack.c.l.b16 %v385
  %v3534 = vunpack.c.h.b16 %v385
  %v3535 = vunpack.c.l.b16 %v386
  %v3536 = vunpack.c.h.b16 %v386
  %v3537 = vunpack.c.l.b16 %v387
  %v3538 = vunpack.c.h.b16 %v387
  %v3539 = vunpack.c.l.b16 %v388
  %v3540 = vunpack.c.h.b16 %v388
  %v3541 = vunpack.c.l.b16 %v389
  %v3542 = vunpack.c.h.b16 %v389
  %v3543 = vunpack.c.l.b16 %v390
  %v3544 = vunpack.c.h.b16 %v390
  %v3545 = vunpack.c.l.b16 %v391
  %v3546 = vunpack.c.h.b16 %v391
  %v3547 = vunpack.c.l.b16 %v392
  %v3548 = vunpack.c.h.b16 %v392
  %v3549 = vunpack.c.l.b16 %v393
  %v3550 = vunpack.c.h.b16 %v393
  %v3551 = vunpack.c.l.b16 %v394
  %v3552 = vunpack.c.h.b16 %v394
  %v3553 = vunpack.c.l.b16 %v395
  %v3554 = vunpack.c.h.b16 %v395
  %v3555 = vunpack.c.l.b16 %v396
  %v3556 = vunpack.c.h.b16 %v396
  %v3557 = vunpack.c.l.b16 %v397
  %v3558 = vunpack.c.h.b16 %v397
  %v3559 = vunpack.c.l.b16 %v398
  %v3560 = vunpack.c.h.b16 %v398
  %v3561 = vunpack.c.l.b16 %v399
  %v3562 = vunpack.c.h.b16 %v399
  %v3563 = vunpack.c.l.b16 %v400
  %v3564 = vunpack.c.h.b16 %v400
  %v3565 = vunpack.c.l.b16 %v401
  %v3566 = vunpack.c.h.b16 %v401
  %v3567 = vunpack.c.l.b16 %v402
  %v3568 = vunpack.c.h.b16 %v402
  %v3569 = vunpack.c.l.b16 %v403
  %v3570 = vunpack.c.h.b16 %v403
  %v3571 = vunpack.c.l.b16 %v404
  %v3572 = vunpack.c.h.b16 %v404
  %v3573 = vunpack.c.l.b16 %v405
  %v3574 = vunpack.c.h.b16 %v405
  %v3575 = vunpack.c.l.b16 %v406
  %v3576 = vunpack.c.h.b16 %v406
  %v3577 = vunpack.c.l.b16 %v407
  %v3578 = vunpack.c.h.b16 %v407
  %v3579 = vunpack.c.l.b16 %v408
  %v3580 = vunpack.c.h.b16 %v408
  %v3581 = vunpack.c.l.b16 %v409
  %v3582 = vunpack.c.h.b16 %v409
  %v3583 = vunpack.c.l.b16 %v410
  %v3584 = vunpack.c.h.b16 %v410
  %v3585 = vunpack.c.l.b16 %v411
  %v3586 = vunpack.c.h.b16 %v411
  %v3587 = vunpack.c.l.b16 %v412
  %v3588 = vunpack.c.h.b16 %v412
  %v3589 = vunpack.c.l.b16 %v413
  %v3590 = vunpack.c.h.b16 %v413
  %v3591 = vunpack.c.l.b16 %v414
  %v3592 = vunpack.c.h.b16 %v414
  %v3593 = vunpack.c.l.b16 %v415
  %v3594 = vunpack.c.h.b16 %v415
  %v3595 = vunpack.c.l.b16 %v416
  %v3596 = vunpack.c.h.b16 %v416
  %v3597 = vunpack.c.l.b16 %v417
  %v3598 = vunpack.c.h.b16 %v417
  %v3599 = vunpack.c.l.b16 %v418
  %v3600 = vunpack.c.h.b16 %v418
  %v3601 = vunpack.c.l.b16 %v419
  %v3602 = vunpack.c.h.b16 %v419
  %v3603 = vunpack.c.l.b16 %v420
  %v3604 = vunpack.c.h.b16 %v420
  %v3605 = vunpack.c.l.b16 %v421
  %v3606 = vunpack.c.h.b16 %v421
  %v3607 = vunpack.c.l.b16 %v422
  %v3608 = vunpack.c.h.b16 %v422
  %v3609 = vunpack.c.l.b16 %v423
  %v3610 = vunpack.c.h.b16 %v423
  %v3611 = vunpack.c.l.b16 %v424
  %v3612 = vunpack.c.h.b16 %v424
  %v3613 = vunpack.c.l.b16 %v425
  %v3614 = vunpack.c.h.b16 %v425
  %v3615 = vunpack.c.l.b16 %v426
  %v3616 = vunpack.c.h.b16 %v426
  %v3617 = vunpack.c.l.b16 %v427
  %v3618 = vunpack.c.h.b16 %v427
  %v3619 = vunpack.c.l.b16 %v428
  %v3620 = vunpack.c.h.b16 %v428
  %v3621 = vunpack.c.l.b16 %v429
  %v3622 = vunpack.c.h.b16 %v429
  %v3623 = vunpack.c.l.b16 %v430
  %v3624 = vunpack.c.h.b16 %v430
  %v3625 = vunpack.c.l.b16 %v431
  %v3626 = vunpack.c.h.b16 %v431
  %v3627 = vunpack.c.l.b16 %v432
  %v3628 = vunpack.c.h.b16 %v432
  %v3629 = vunpack.c.l.b16 %v433
  %v3630 = vunpack.c.h.b16 %v433
  %v3631 = vunpack.c.l.b16 %v434
  %v3632 = vunpack.c.h.b16 %v434
  %v3633 = vunpack.c.l.b16 %v435
  %v3634 = vunpack.c.h.b16 %v435
  %v3635 = vunpack.c.l.b16 %v436
  %v3636 = vunpack.c.h.b16 %v436
  %v3637 = vunpack.c.l.b16 %v437
  %v3638 = vunpack.c.h.b16 %v437
  %v3639 = vunpack.c.l.b16 %v438
  %v3640 = vunpack.c.h.b16 %v438
  %v3641 = vunpack.c.l.b16 %v439
  %v3642 = vunpack.c.h.b16 %v439
  %v3643 = vunpack.c.l.b16 %v440
  %v3644 = vunpack.c.h.b16 %v440
  %v3645 = vunpack.c.l.b16 %v441
  %v3646 = vunpack.c.h.b16 %v441
  %v3647 = vunpack.c.l.b16 %v442
  %v3648 = vunpack.c.h.b16 %v442
  %v3649 = vunpack.c.l.b16 %v443
  %v3650 = vunpack.c.h.b16 %v443
  %v3651 = vunpack.c.l.b16 %v444
  %v3652 = vunpack.c.h.b16 %v444
  %v3653 = vunpack.c.l.b16 %v445
  %v3654 = vunpack.c.h.b16 %v445
  %v3655 = vunpack.c.l.b16 %v446
  %v3656 = vunpack.c.h.b16 %v446
  %v3657 = vunpack.c.l.b16 %v447
  %v3658 = vunpack.c.h.b16 %v447
  %v3659 = vunpack.c.l.b16 %v448
  %v3660 = vunpack.c.h.b16 %v448
  %v3661 = vunpack.c.l.b16 %v449
  %v3662 = vunpack.c.h.b16 %v449
  %v3663 = vunpack.c.l.b16 %v450
  %v3664 = vunpack.c.h.b16 %v450
  %v3665 = vunpack.c.l.b16 %v451
  %v3666 = vunpack.c.h.b16 %v451
  %v3667 = vunpack.c.l.b16 %v452
  %v3668 = vunpack.c.h.b16 %v452
  %v3669 = vunpack.c.l.b16 %v453
  %v3670 = vunpack.c.h.b16 %v453
  %v3671 = vunpack.c.l.b16 %v454
  %v3672 = vunpack.c.h.b16 %v454
  %v3673 = vunpack.c.l.b16 %v455
  %v3674 = vunpack.c.h.b16 %v455
  %v3675 = vunpack.c.l.b16 %v456
  %v3676 = vunpack.c.h.b16 %v456
  %v3677 = vunpack.c.l.b16 %v457
  %v3678 = vunpack.c.h.b16 %v457
  %v3679 = vunpack.c.l.b16 %v458
  %v3680 = vunpack.c.h.b16 %v458
  %v3681 = vunpack.c.l.b16 %v459
  %v3682 = vunpack.c.h.b16 %v459
  %v3683 = vunpack.c.l.b16 %v460
  %v3684 = vunpack.c.h.b16 %v460
  %v3685 = vunpack.c.l.b16 %v461
  %v3686 = vunpack.c.h.b16 %v461
  %v3687 = vunpack.c.l.b16 %v462
  %v3688 = vunpack.c.h.b16 %v462
  %v3689 = vunpack.c.l.b16 %v463
  %v3690 = vunpack.c.h.b16 %v463
  %v3691 = vunpack.c.l.b16 %v464
  %v3692 = vunpack.c.h.b16 %v464
  %v3693 = vunpack.c.l.b16 %v465
  %v3694 = vunpack.c.h.b16 %v465
  %v3695 = vunpack.c.l.b16 %v466
  %v3696 = vunpack.c.h.b16 %v466
  %v3697 = vunpack.c.l.b16 %v467
  %v3698 = vunpack.c.h.b16 %v467
  %v3699 = vunpack.c.l.b16 %v468
  %v3700 = vunpack.c.h.b16 %v468
  %v3701 = vunpack.c.l.b16 %v469
  %v3702 = vunpack.c.h.b16 %v469
  %v3703 = vunpack.c.l.b16 %v470
  %v3704 = vunpack.c.h.b16 %v470
  %v3705 = vunpack.c.l.b16 %v471
  %v3706 = vunpack.c.h.b16 %v471
  %v3707 = vunpack.c.l.b16 %v472
  %v3708 = vunpack.c.h.b16 %v472
  %v3709 = vunpack.c.l.b16 %v473
  %v3710 = vunpack.c.h.b16 %v473
  %v3711 = vunpack.c.l.b16 %v474
  %v3712 = vunpack.c.h.b16 %v474
  %v3713 = vunpack.c.l.b16 %v475
  %v3714 = vunpack.c.h.b16 %v475
  %v3715 = vunpack.c.l.b16 %v476
  %v3716 = vunpack.c.h.b16 %v476
  %v3717 = vunpack.c.l.b16 %v477
  %v3718 = vunpack.c.h.b16 %v477
  %v3719 = vunpack.c.l.b16 %v478
  %v3720 = vunpack.c.h.b16 %v478
  %v3721 = vunpack.c.l.b16 %v479
  %v3722 = vunpack.c.h.b16 %v479
  %v3723 = vunpack.c.l.b16 %v480
  %v3724 = vunpack.c.h.b16 %v480
  %v3725 = vunpack.c.l.b16 %v481
  %v3726 = vunpack.c.h.b16 %v481
  %v3727 = vpack.c.b16 %v2899, %v2895
  %v3728 = vpack.c.b16 %v2900, %v2896
  %v3729 = vpack.c.b16 %v2901, %v2897
  %v3730 = vpack.c.b16 %v2902, %v2898
  %v3731 = vpack.c.b16 %v2907, %v2903
  %v3732 = vpack.c.b16 %v2908, %v2904
  %v3733 = vpack.c.b16 %v2909, %v2905
  %v3734 = vpack.c.b16 %v2910, %v2906
  %v3735 = vpack.c.b16 %v2915, %v2911
  %v3736 = vpack.c.b16 %v2916, %v2912
  %v3737 = vpack.c.b16 %v2917, %v2913
  %v3738 = vpack.c.b16 %v2918, %v2914
  %v3739 = vpack.c.b16 %v2923, %v2919
  %v3740 = vpack.c.b16 %v2924, %v2920
  %v3741 = vpack.c.b16 %v2925, %v2921
  %v3742 = vpack.c.b16 %v2926, %v2922
  %v3743 = vpack.c.b16 %v2931, %v2927
  %v3744 = vpack.c.b16 %v2932, %v2928
  %v3745 = vpack.c.b16 %v2933, %v2929
  %v3746 = vpack.c.b16 %v2934, %v2930
  %v3747 = vpack.c.b16 %v2939, %v2935
  %v3748 = vpack.c.b16 %v2940, %v2936
  %v3749 = vpack.c.b16 %v2941, %v2937
  %v3750 = vpack.c.b16 %v2942, %v2938
  %v3751 = vpack.c.b16 %v2947, %v2943
  %v3752 = vpack.c.b16 %v2948, %v2944
  %v3753 = vpack.c.b16 %v2949, %v2945
  %v3754 = vpack.c.b16 %v2950, %v2946
  %v3755 = vpack.c.b16 %v2955, %v2951
  %v3756 = vpack.c.b16 %v2956, %v2952
  %v3757 = vpack.c.b16 %v2957, %v2953
  %v3758 = vpack.c.b16 %v2958, %v2954
  %v3759 = vpack.c.b16 %v2963, %v2959
  %v3760 = vpack.c.b16 %v2964, %v2960
  %v3761 = vpack.c.b16 %v2965, %v2961
  %v3762 = vpack.c.b16 %v2966, %v2962
  %v3763 = vpack.c.b16 %v2971, %v2967
  %v3764 = vpack.c.b16 %v2972, %v2968
  %v3765 = vpack.c.b16 %v2973, %v2969
  %v3766 = vpack.c.b16 %v2974, %v2970
  %v3767 = vpack.c.b16 %v2979, %v2975
  %v3768 = vpack.c.b16 %v2980, %v2976
  %v3769 = vpack.c.b16 %v2981, %v2977
  %v3770 = vpack.c.b16 %v2982, %v2978
  %v3771 = vpack.c.b16 %v2987, %v2983
  %v3772 = vpack.c.b16 %v2988, %v2984
  %v3773 = vpack.c.b16 %v2989, %v2985
  %v3774 = vpack.c.b16 %v2990, %v2986
  %v3775 = vpack.c.b16 %v2995, %v2991
  %v3776 = vpack.c.b16 %v2996, %v2992
  %v3777 = vpack.c.b16 %v2997, %v2993
  %v3778 = vpack.c.b16 %v2998, %v2994
  %v3779 = vpack.c.b16 %v3003, %v2999
  %v3780 = vpack.c.b16 %v3004, %v3000
  %v3781 = vpack.c.b16 %v3005, %v3001
  %v3782 = vpack.c.b16 %v3006, %v3002
  %v3783 = vpack.c.b16 %v3011, %v3007
  %v3784 = vpack.c.b16 %v3012, %v3008
  %v3785 = vpack.c.b16 %v3013, %v3009
  %v3786 = vpack.c.b16 %v3014, %v3010
  %v3787 = vpack.c.b16 %v3019, %v3015
  %v3788 = vpack.c.b16 %v3020, %v3016
  %v3789 = vpack.c.b16 %v3021, %v3017
  %v3790 = vpack.c.b16 %v3022, %v3018
  %v3791 = vpack.c.b16 %v3027, %v3023
  %v3792 = vpack.c.b16 %v3028, %v3024
  %v3793 = vpack.c.b16 %v3029, %v3025
  %v3794 = vpack.c.b16 %v3030, %v3026
  %v3795 = vpack.c.b16 %v3035, %v3031
  %v3796 = vpack.c.b16 %v3036, %v3032
  %v3797 = vpack.c.b16 %v3037, %v3033
  %v3798 = vpack.c.b16 %v3038, %v3034
  %v3799 = vpack.c.b16 %v3043, %v3039
  %v3800 = vpack.c.b16 %v3044, %v3040
  %v3801 = vpack.c.b16 %v3045, %v3041
  %v3802 = vpack.c.b16 %v3046, %v3042
  %v3803 = vpack.c.b16 %v3051, %v3047
  %v3804 = vpack.c.b16 %v3052, %v3048
  %v3805 = vpack.c.b16 %v3053, %v3049
  %v3806 = vpack.c.b16 %v3054, %v3050
  %v3807 = vpack.c.b16 %v3059, %v3055
  %v3808 = vpack.c.b16 %v3060, %v3056
  %v3809 = vpack.c.b16 %v3061, %v3057
  %v3810 = vpack.c.b16 %v3062, %v3058
  %v3811 = vpack.c.b16 %v3067, %v3063
  %v3812 = vpack.c.b16 %v3068, %v3064
  %v3813 = vpack.c.b16 %v3069, %v3065
  %v3814 = vpack.c.b16 %v3070, %v3066
  %v3815 = vpack.c.b16 %v3075, %v3071
  %v3816 = vpack.c.b16 %v3076, %v3072
  %v3817 = vpack.c.b16 %v3077, %v3073
  %v3818 = vpack.c.b16 %v3078, %v3074
  %v3819 = vpack.c.b16 %v3083, %v3079
  %v3820 = vpack.c.b16 %v3084, %v3080
  %v3821 = vpack.c.b16 %v3085, %v3081
  %v3822 = vpack.c.b16 %v3086, %v3082
  %v3823 = vpack.c.b16 %v3091, %v3087
  %v3824 = vpack.c.b16 %v3092, %v3088
  %v3825 = vpack.c.b16 %v3093, %v3089
  %v3826 = vpack.c.b16 %v3094, %v3090
  %v3827 = vpack.c.b16 %v3099, %v3095
  %v3828 = vpack.c.b16 %v3100, %v3096
  %v3829 = vpack.c.b16 %v3101, %v3097
  %v3830 = vpack.c.b16 %v3102, %v3098
  %v3831 = vpack.c.b16 %v3107, %v3103
  %v3832 = vpack.c.b16 %v3108, %v3104
  %v3833 = vpack.c.b16 %v3109, %v3105
  %v3834 = vpack.c.b16 %v3110, %v3106
  %v3835 = vpack.c.b16 %v3115, %v3111
  %v3836 = vpack.c.b16 %v3116, %v3112
  %v3837 = vpack.c.b16 %v3117, %v3113
  %v3838 = vpack.c.b16 %v3118, %v3114
  %v3839 = vpack.c.b16 %v3123, %v3119
  %v3840 = vpack.c.b16 %v3124, %v3120
  %v3841 = vpack.c.b16 %v3125, %v3121
  %v3842 = vpack.c.b16 %v3126, %v3122
  %v3843 = vpack.c.b16 %v3131, %v3127
  %v3844 = vpack.c.b16 %v3132, %v3128
  %v3845 = vpack.c.b16 %v3133, %v3129
  %v3846 = vpack.c.b16 %v3134, %v3130
  %v3847 = vpack.c.b16 %v3139, %v3135
  %v3848 = vpack.c.b16 %v3140, %v3136
  %v3849 = vpack.c.b16 %v3141, %v3137
  %v3850 = vpack.c.b16 %v3142, %v3138
  %v3851 = vpack.c.b16 %v3147, %v3143
  %v3852 = vpack.c.b16 %v3148, %v3144
  %v3853 = vpack.c.b16 %v3149, %v3145
  %v3854 = vpack.c.b16 %v3150, %v3146
  %v3855 = vpack.c.b16 %v3155, %v3151
  %v3856 = vpack.c.b16 %v3156, %v3152
  %v3857 = vpack.c.b16 %v3157, %v3153
  %v3858 = vpack.c.b16 %v3158, %v3154
  %v3859 = vpack.c.b16 %v3163, %v3159
  %v3860 = vpack.c.b16 %v3164, %v3160
  %v3861 = vpack.c.b16 %v3165, %v3161
  %v3862 = vpack.c.b16 %v3166, %v3162
  %v3863 = vpack.c.b16 %v3171, %v3167
  %v3864 = vpack.c.b16 %v3172, %v3168
  %v3865 = vpack.c.b16 %v3173, %v3169
  %v3866 = vpack.c.b16 %v3174, %v3170
  %v3867 = vpack.c.b16 %v3179, %v3175
  %v3868 = vpack.c.b16 %v3180, %v3176
  %v3869 = vpack.c.b16 %v3181, %v3177
  %v3870 = vpack.c.b16 %v3182, %v3178
  %v3871 = vpack.c.b16 %v3187, %v3183
  %v3872 = vpack.c.b16 %v3188, %v3184
  %v3873 = vpack.c.b16 %v3189, %v3185
  %v3874 = vpack.c.b16 %v3190, %v3186
  %v3875 = vpack.c.b16 %v3195, %v3191
  %v3876 = vpack.c.b16 %v3196, %v3192
  %v3877 = vpack.c.b16 %v3197, %v3193
  %v3878 = vpack.c.b16 %v3198, %v3194
  %v3879 = vpack.c.b16 %v3203, %v3199
  %v3880 = vpack.c.b16 %v3204, %v3200
  %v3881 = vpack.c.b16 %v3205, %v3201
  %v3882 = vpack.c.b16 %v3206, %v3202
  %v3883 = vpack.c.b16 %v3211, %v3207
  %v3884 = vpack.c.b16 %v3212, %v3208
  %v3885 = vpack.c.b16 %v3213, %v3209
  %v3886 = vpack.c.b16 %v3214, %v3210
  %v3887 = vpack.c.b16 %v3219, %v3215
  %v3888 = vpack.c.b16 %v3220, %v3216
  %v3889 = vpack.c.b16 %v3221, %v3217
  %v3890 = vpack.c.b16 %v3222, %v3218
  %v3891 = vpack.c.b16 %v3227, %v3223
  %v3892 = vpack.c.b16 %v3228, %v3224
  %v3893 = vpack.c.b16 %v3229, %v3225
  %v3894 = vpack.c.b16 %v3230, %v3226
  %v3895 = vpack.c.b16 %v3235, %v3231
  %v3896 = vpack.c.b16 %v3236, %v3232
  %v3897 = vpack.c.b16 %v3237, %v3233
  %v3898 = vpack.c.b16 %v3238, %v3234
  %v3899 = vpack.c.b16 %v3243, %v3239
  %v3900 = vpack.c.b16 %v3244, %v3240
  %v3901 = vpack.c.b16 %v3245, %v3241
  %v3902 = vpack.c.b16 %v3246, %v3242
  %v3903 = vpack.c.b16 %v3251, %v3247
  %v3904 = vpack.c.b16 %v3252, %v3248
  %v3905 = vpack.c.b16 %v3253, %v3249
  %v3906 = vpack.c.b16 %v3254, %v3250
  %v3907 = vpack.c.b16 %v3259, %v3255
  %v3908 = vpack.c.b16 %v3260, %v3256
  %v3909 = vpack.c.b16 %v3261, %v3257
  %v3910 = vpack.c.b16 %v3262, %v3258
  %v3911 = vpack.c.b16 %v3267, %v3263
  %v3912 = vpack.c.b16 %v3268, %v3264
  %v3913 = vpack.c.b16 %v3269, %v3265
  %v3914 = vpack.c.b16 %v3270, %v3266
  %v3915 = vpack.c.b16 %v3275, %v3271
  %v3916 = vpack.c.b16 %v3276, %v3272
  %v3917 = vpack.c.b16 %v3277, %v3273
  %v3918 = vpack.c.b16 %v3278, %v3274
  %v3919 = vpack.c.b16 %v3283, %v3279
  %v3920 = vpack.c.b16 %v3284, %v3280
  %v3921 = vpack.c.b16 %v3285, %v3281
  %v3922 = vpack.c.b16 %v3286, %v3282
  %v3923 = vpack.c.b16 %v3291, %v3287
  %v3924 = vpack.c.b16 %v3292, %v3288
  %v3925 = vpack.c.b16 %v3293, %v3289
  %v3926 = vpack.c.b16 %v3294, %v3290
  %v3927 = vpack.c.b16 %v3299, %v3295
  %v3928 = vpack.c.b16 %v3300, %v3296
  %v3929 = vpack.c.b16 %v3301, %v3297
  %v3930 = vpack.c.b16 %v3302, %v3298
  %v3931 = vpack.c.b16 %v3307, %v3303
  %v3932 = vpack.c.b16 %v3308, %v3304
  %v3933 = vpack.c.b16 %v3309, %v3305
  %v3934 = vpack.c.b16 %v3310, %v3306
  %v3935 = vpack.c.b16 %v3315, %v3311
  %v3936 = vpack.c.b16 %v3316, %v3312
  %v3937 = vpack.c.b16 %v3317, %v3313
  %v3938 = vpack.c.b16 %v3318, %v3314
  %v3939 = vpack.c.b16 %v3323, %v3319
  %v3940 = vpack.c.b16 %v3324, %v3320
  %v3941 = vpack.c.b16 %v3325, %v3321
  %v3942 = vpack.c.b16 %v3326, %v3322
  %v3943 = vpack.c.b16 %v3331, %v3327
  %v3944 = vpack.c.b16 %v3332, %v3328
  %v3945 = vpack.c.b16 %v3333, %v3329
  %v3946 = vpack.c.b16 %v3334, %v3330
  %v3947 = vpack.c.b16 %v3339, %v3335
  %v3948 = vpack.c.b16 %v3340, %v3336
  %v3949 = vpack.c.b16 %v3341, %v3337
  %v3950 = vpack.c.b16 %v3342, %v3338
  %v3951 = vpack.c.b16 %v3347, %v3343
  %v3952 = vpack.c.b16 %v3348, %v3344
  %v3953 = vpack.c.b16 %v3349, %v3345
  %v3954 = vpack.c.b16 %v3350, %v3346
  %v3955 = vpack.c.b16 %v3355, %v3351
  %v3956 = vpack.c.b16 %v3356, %v3352
  %v3957 = vpack.c.b16 %v3357, %v3353
  %v3958 = vpack.c.b16 %v3358, %v3354
  %v3959 = vpack.c.b16 %v3363, %v3359
  %v3960 = vpack.c.b16 %v3364, %v3360
  %v3961 = vpack.c.b16 %v3365, %v3361
  %v3962 = vpack.c.b16 %v3366, %v3362
  %v3963 = vpack.c.b16 %v3371, %v3367
  %v3964 = vpack.c.b16 %v3372, %v3368
  %v3965 = vpack.c.b16 %v3373, %v3369
  %v3966 = vpack.c.b16 %v3374, %v3370
  %v3967 = vpack.c.b16 %v3379, %v3375
  %v3968 = vpack.c.b16 %v3380, %v3376
  %v3969 = vpack.c.b16 %v3381, %v3377
  %v3970 = vpack.c.b16 %v3382, %v3378
  %v3971 = vpack.c.b16 %v3387, %v3383
  %v3972 = vpack.c.b16 %v3388, %v3384
  %v3973 = vpack.c.b16 %v3389, %v3385
  %v3974 = vpack.c.b16 %v3390, %v3386
  %v3975 = vpack.c.b16 %v3395, %v3391
  %v3976 = vpack.c.b16 %v3396, %v3392
  %v3977 = vpack.c.b16 %v3397, %v3393
  %v3978 = vpack.c.b16 %v3398, %v3394
  %v3979 = vpack.c.b16 %v3403, %v3399
  %v3980 = vpack.c.b16 %v3404, %v3400
  %v3981 = vpack.c.b16 %v3405, %v3401
  %v3982 = vpack.c.b16 %v3406, %v3402
  %v3983 = vpack.c.b16 %v3411, %v3407
  %v3984 = vpack.c.b16 %v3412, %v3408
  %v3985 = vpack.c.b16 %v3413, %v3409
  %v3986 = vpack.c.b16 %v3414, %v3410
  %v3987 = vpack.c.b16 %v3419, %v3415
  %v3988 = vpack.c.b16 %v3420, %v3416
  %v3989 = vpack.c.b16 %v3421, %v3417
  %v3990 = vpack.c.b16 %v3422, %v3418
  %v3991 = vpack.c.b16 %v3427, %v3423
  %v3992 = vpack.c.b16 %v3428, %v3424
  %v3993 = vpack.c.b16 %v3429, %v3425
  %v3994 = vpack.c.b16 %v3430, %v3426
  %v3995 = vpack.c.b16 %v3435, %v3431
  %v3996 = vpack.c.b16 %v3436, %v3432
  %v3997 = vpack.c.b16 %v3437, %v3433
  %v3998 = vpack.c.b16 %v3438, %v3434
  %v3999 = vpack.c.b16 %v3443, %v3439
  %v4000 = vpack.c.b16 %v3444, %v3440
  %v4001 = vpack.c.b16 %v3445, %v3441
  %v4002 = vpack.c.b16 %v3446, %v3442
  %v4003 = vpack.c.b16 %v3451, %v3447
  %v4004 = vpack.c.b16 %v3452, %v3448
  %v4005 = vpack.c.b16 %v3453, %v3449
  %v4006 = vpack.c.b16 %v3454, %v3450
  %v4007 = vpack.c.b16 %v3459, %v3455
  %v4008 = vpack.c.b16 %v3460, %v3456
  %v4009 = vpack.c.b16 %v3461, %v3457
  %v4010 = vpack.c.b16 %v3462, %v3458
  %v4011 = vpack.c.b16 %v3467, %v3463
  %v4012 = vpack.c.b16 %v3468, %v3464
  %v4013 = vpack.c.b16 %v3469, %v3465
  %v4014 = vpack.c.b16 %v3470, %v3466
  %v4015 = vpack.c.b16 %v3475, %v3471
  %v4016 = vpack.c.b16 %v3476, %v3472
  %v4017 = vpack.c.b16 %v3477, %v3473
  %v4018 = vpack.c.b16 %v3478, %v3474
  %v4019 = vpack.c.b16 %v3483, %v3479
  %v4020 = vpack.c.b16 %v3484, %v3480
  %v4021 = vpack.c.b16 %v3485, %v3481
  %v4022 = vpack.c.b16 %v3486, %v3482
  %v4023 = vpack.c.b16 %v3491, %v3487
  %v4024 = vpack.c.b16 %v3492, %v3488
  %v4025 = vpack.c.b16 %v3493, %v3489
  %v4026 = vpack.c.b16 %v3494, %v3490
  %v4027 = vpack.c.b16 %v3499, %v3495
  %v4028 = vpack.c.b16 %v3500, %v3496
  %v4029 = vpack.c.b16 %v3501, %v3497
  %v4030 = vpack.c.b16 %v3502, %v3498
  %v4031 = vpack.c.b16 %v3507, %v3503
  %v4032 = vpack.c.b16 %v3508, %v3504
  %v4033 = vpack.c.b16 %v3509, %v3505
  %v4034 = vpack.c.b16 %v3510, %v3506
  %v4035 = vpack.c.b16 %v3515, %v3511
  %v4036 = vpack.c.b16 %v3516, %v3512
  %v4037 = vpack.c.b16 %v3517, %v3513
  %v4038 = vpack.c.b16 %v3518, %v3514
  %v4039 = vpack.c.b16 %v3523, %v3519
  %v4040 = vpack.c.b16 %v3524, %v3520
  %v4041 = vpack.c.b16 %v3525, %v3521
  %v4042 = vpack.c.b16 %v3526, %v3522
  %v4043 = vpack.c.b16 %v3531, %v3527
  %v4044 = vpack.c.b16 %v3532, %v3528
  %v4045 = vpack.c.b16 %v3533, %v3529
  %v4046 = vpack.c.b16 %v3534, %v3530
  %v4047 = vpack.c.b16 %v3539, %v3535
  %v4048 = vpack.c.b16 %v3540, %v3536
  %v4049 = vpack.c.b16 %v3541, %v3537
  %v4050 = vpack.c.b16 %v3542, %v3538
  %v4051 = vpack.c.b16 %v3547, %v3543
  %v4052 = vpack.c.b16 %v3548, %v3544
  %v4053 = vpack.c.b16 %v3549, %v3545
  %v4054 = vpack.c.b16 %v3550, %v3546
  %v4055 = vpack.c.b16 %v3555, %v3551
  %v4056 = vpack.c.b16 %v3556, %v3552
  %v4057 = vpack.c.b16 %v3557, %v3553
  %v4058 = vpack.c.b16 %v3558, %v3554
  %v4059 = vpack.c.b16 %v3563, %v3559
  %v4060 = vpack.c.b16 %v3564, %v3560
  %v4061 = vpack.c.b16 %v3565, %v3561
  %v4062 = vpack.c.b16 %v3566, %v3562
  %v4063 = vpack.c.b16 %v3571, %v3567
  %v4064 = vpack.c.b16 %v3572, %v3568
  %v4065 = vpack.c.b16 %v3573, %v3569
  %v4066 = vpack.c.b16 %v3574, %v3570
  %v4067 = vpack.c.b16 %v3579, %v3575
  %v4068 = vpack.c.b16 %v3580, %v3576
  %v4069 = vpack.c.b16 %v3581, %v3577
  %v4070 = vpack.c.b16 %v3582, %v3578
  %v4071 = vpack.c.b16 %v3587, %v3583
  %v4072 = vpack.c.b16 %v3588, %v3584
  %v4073 = vpack.c.b16 %v3589, %v3585
  %v4074 = vpack.c.b16 %v3590, %v3586
  %v4075 = vpack.c.b16 %v3595, %v3591
  %v4076 = vpack.c.b16 %v3596, %v3592
  %v4077 = vpack.c.b16 %v3597, %v3593
  %v4078 = vpack.c.b16 %v3598, %v3594
  %v4079 = vpack.c.b16 %v3603, %v3599
  %v4080 = vpack.c.b16 %v3604, %v3600
  %v4081 = vpack.c.b16 %v3605, %v3601
  %v4082 = vpack.c.b16 %v3606, %v3602
  %v4083 = vpack.c.b16 %v3611, %v3607
  %v4084 = vpack.c.b16 %v3612, %v3608
  %v4085 = vpack.c.b16 %v3613, %v3609
  %v4086 = vpack.c.b16 %v3614, %v3610
  %v4087 = vpack.c.b16 %v3619, %v3615
  %v4088 = vpack.c.b16 %v3620, %v3616
  %v4089 = vpack.c.b16 %v3621, %v3617
  %v4090 = vpack.c.b16 %v3622, %v3618
  %v4091 = vpack.c.b16 %v3627, %v3623
  %v4092 = vpack.c.b16 %v3628, %v3624
  %v4093 = vpack.c.b16 %v3629, %v3625
  %v4094 = vpack.c.b16 %v3630, %v3626
  %v4095 = vpack.c.b16 %v3635, %v3631
  %v4096 = vpack.c.b16 %v3636, %v3632
  %v4097 = vpack.c.b16 %v3637, %v3633
  %v4098 = vpack.c.b16 %v3638, %v3634
  %v4099 = vpack.c.b16 %v3643, %v3639
  %v4100 = vpack.c.b16 %v3644, %v3640
  %v4101 = vpack.c.b16 %v3645, %v3641
  %v4102 = vpack.c.b16 %v3646, %v3642
  %v4103 = vpack.c.b16 %v3651, %v3647
  %v4104 = vpack.c.b16 %v3652, %v3648
  %v4105 = vpack.c.b16 %v3653, %v3649
  %v4106 = vpack.c.b16 %v3654, %v3650
  %v4107 = vpack.c.b16 %v3659, %v3655
  %v4108 = vpack.c.b16 %v3660, %v3656
  %v4109 = vpack.c.b16 %v3661, %v3657
  %v4110 = vpack.c.b16 %v3662, %v3658
  %v4111 = vpack.c.b16 %v3667, %v3663
  %v4112 = vpack.c.b16 %v3668, %v3664
  %v4113 = vpack.c.b16 %v3669, %v3665
  %v4114 = vpack.c.b16 %v3670, %v3666
  %v4115 = vpack.c.b16 %v3675, %v3671
  %v4116 = vpack.c.b16 %v3676, %v3672
  %v4117 = vpack.c.b16 %v3677, %v3673
  %v4118 = vpack.c.b16 %v3678, %v3674
  %v4119 = vpack.c.b16 %v3683, %v3679
  %v4120 = vpack.c.b16 %v3684, %v3680
  %v4121 = vpack.c.b16 %v3685, %v3681
  %v4122 = vpack.c.b16 %v3686, %v3682
  %v4123 = vpack.c.b16 %v3691, %v3687
  %v4124 = vpack.c.b16 %v3692, %v3688
  %v4125 = vpack.c.b16 %v3693, %v3689
  %v4126 = vpack.c.b16 %v3694, %v3690
  %v4127 = vpack.c.b16 %v3699, %v3695
  %v4128 = vpack.c.b16 %v3700, %v3696
  %v4129 = vpack.c.b16 %v3701, %v3697
  %v4130 = vpack.c.b16 %v3702, %v3698
  %v4131 = vpack.c.b16 %v3707, %v3703
  %v4132 = vpack.c.b16 %v3708, %v3704
  %v4133 = vpack.c.b16 %v3709, %v3705
  %v4134 = vpack.c.b16 %v3710, %v3706
  %v4135 = vpack.c.b16 %v3715, %v3711
  %v4136 = vpack.c.b16 %v3716, %v3712
  %v4137 = vpack.c.b16 %v3717, %v3713
  %v4138 = vpack.c.b16 %v3718, %v3714
  %v4139 = vpack.c.b16 %v3723, %v3719
  %v4140 = vpack.c.b16 %v3724, %v3720
  %v4141 = vpack.c.b16 %v3725, %v3721
  %v4142 = vpack.c.b16 %v3726, %v3722
  %4559 = vmatpush.bf16.msra.mxu0 %v3755
  %4560 = vmatpush.bf16.msra.mxu0 %v3751
  %4561 = vmatpush.bf16.msra.mxu0 %v3747
  %4562 = vmatpush.bf16.msra.mxu0 %v3743
  %4563 = vmatpush.bf16.msra.mxu0 %v3739
  %4564 = vmatpush.bf16.msra.mxu0 %v3735
  %4565 = vmatpush.bf16.msra.mxu0 %v3731
  %4566 = vmatpush.bf16.msra.mxu0 %v3727
  %4567 = vmatmul.bf16.gmra.mxu0 %v2460
  %v4568 = vpop.f32.mrf.mxu0
  %v4569 = vadd.f32 %v2477, %v4568
  %v4570 = vpop.f32.mrf.mxu0
  %4571 = vdwg.mxu0
  %4572 = vmatpush.bf16.msra.mxu0 %v3787
  %4573 = vmatpush.bf16.msra.mxu0 %v3783
  %4574 = vmatpush.bf16.msra.mxu0 %v3779
  %4575 = vmatpush.bf16.msra.mxu0 %v3775
  %4576 = vmatpush.bf16.msra.mxu0 %v3771
  %4577 = vmatpush.bf16.msra.mxu0 %v3767
  %4578 = vmatpush.bf16.msra.mxu0 %v3763
  %4579 = vmatpush.bf16.msra.mxu0 %v3759
  %4580 = vmatmul.bf16.gmra.mxu0 %v2461
  %v4581 = vpop.f32.mrf.mxu0
  %v4582 = vadd.f32 %v4569, %v4581
  %v4583 = vpop.f32.mrf.mxu0
  %4584 = vdwg.mxu0
  %4585 = vmatpush.bf16.msra.mxu0 %v3819
  %4586 = vmatpush.bf16.msra.mxu0 %v3815
  %4587 = vmatpush.bf16.msra.mxu0 %v3811
  %4588 = vmatpush.bf16.msra.mxu0 %v3807
  %4589 = vmatpush.bf16.msra.mxu0 %v3803
  %4590 = vmatpush.bf16.msra.mxu0 %v3799
  %4591 = vmatpush.bf16.msra.mxu0 %v3795
  %4592 = vmatpush.bf16.msra.mxu0 %v3791
  %4593 = vmatmul.bf16.gmra.mxu0 %v2462
  %v4594 = vpop.f32.mrf.mxu0
  %v4595 = vadd.f32 %v4582, %v4594
  %v4596 = vpop.f32.mrf.mxu0
  %4597 = vdwg.mxu0
  %4598 = vmatpush.bf16.msra.mxu0 %v3851
  %4599 = vmatpush.bf16.msra.mxu0 %v3847
  %4600 = vmatpush.bf16.msra.mxu0 %v3843
  %4601 = vmatpush.bf16.msra.mxu0 %v3839
  %4602 = vmatpush.bf16.msra.mxu0 %v3835
  %4603 = vmatpush.bf16.msra.mxu0 %v3831
  %4604 = vmatpush.bf16.msra.mxu0 %v3827
  %4605 = vmatpush.bf16.msra.mxu0 %v3823
  %4606 = vmatmul.bf16.gmra.mxu0 %v2463
  %v4607 = vpop.f32.mrf.mxu0
  %v4608 = vadd.f32 %v4595, %v4607
  %v4609 = vpop.f32.mrf.mxu0
  %4610 = vdwg.mxu0
  %4611 = vmatpush.bf16.msra.mxu0 %v3883
  %4612 = vmatpush.bf16.msra.mxu0 %v3879
  %4613 = vmatpush.bf16.msra.mxu0 %v3875
  %4614 = vmatpush.bf16.msra.mxu0 %v3871
  %4615 = vmatpush.bf16.msra.mxu0 %v3867
  %4616 = vmatpush.bf16.msra.mxu0 %v3863
  %4617 = vmatpush.bf16.msra.mxu0 %v3859
  %4618 = vmatpush.bf16.msra.mxu0 %v3855
  %4619 = vmatmul.bf16.gmra.mxu0 %v2464
  %v4620 = vpop.f32.mrf.mxu0
  %v4621 = vadd.f32 %v4608, %v4620
  %v4622 = vpop.f32.mrf.mxu0
  %4623 = vdwg.mxu0
  %4624 = vmatpush.bf16.msra.mxu0 %v3915
  %4625 = vmatpush.bf16.msra.mxu0 %v3911
  %4626 = vmatpush.bf16.msra.mxu0 %v3907
  %4627 = vmatpush.bf16.msra.mxu0 %v3903
  %4628 = vmatpush.bf16.msra.mxu0 %v3899
  %4629 = vmatpush.bf16.msra.mxu0 %v3895
  %4630 = vmatpush.bf16.msra.mxu0 %v3891
  %4631 = vmatpush.bf16.msra.mxu0 %v3887
  %4632 = vmatmul.bf16.gmra.mxu0 %v2465
  %v4633 = vpop.f32.mrf.mxu0
  %v4634 = vadd.f32 %v4621, %v4633
  %v4635 = vpop.f32.mrf.mxu0
  %4636 = vdwg.mxu0
  %4637 = vmatpush.bf16.msra.mxu0 %v3947
  %4638 = vmatpush.bf16.msra.mxu0 %v3943
  %4639 = vmatpush.bf16.msra.mxu0 %v3939
  %4640 = vmatpush.bf16.msra.mxu0 %v3935
  %4641 = vmatpush.bf16.msra.mxu0 %v3931
  %4642 = vmatpush.bf16.msra.mxu0 %v3927
  %4643 = vmatpush.bf16.msra.mxu0 %v3923
  %4644 = vmatpush.bf16.msra.mxu0 %v3919
  %4645 = vmatmul.bf16.gmra.mxu0 %v2466
  %v4646 = vpop.f32.mrf.mxu0
  %v4647 = vadd.f32 %v4634, %v4646
  %v4648 = vpop.f32.mrf.mxu0
  %4649 = vdwg.mxu0
  %4650 = vmatpush.bf16.msra.mxu0 %v3979
  %4651 = vmatpush.bf16.msra.mxu0 %v3975
  %4652 = vmatpush.bf16.msra.mxu0 %v3971
  %4653 = vmatpush.bf16.msra.mxu0 %v3967
  %4654 = vmatpush.bf16.msra.mxu0 %v3963
  %4655 = vmatpush.bf16.msra.mxu0 %v3959
  %4656 = vmatpush.bf16.msra.mxu0 %v3955
  %4657 = vmatpush.bf16.msra.mxu0 %v3951
  %4658 = vmatmul.bf16.gmra.mxu0 %v2467
  %v4659 = vpop.f32.mrf.mxu0
  %v4660 = vadd.f32 %v4647, %v4659
  %v4661 = vpop.f32.mrf.mxu0
  %4662 = vdwg.mxu0
  %4663 = vmatpush.bf16.msra.mxu0 %v4011
  %4664 = vmatpush.bf16.msra.mxu0 %v4007
  %4665 = vmatpush.bf16.msra.mxu0 %v4003
  %4666 = vmatpush.bf16.msra.mxu0 %v3999
  %4667 = vmatpush.bf16.msra.mxu0 %v3995
  %4668 = vmatpush.bf16.msra.mxu0 %v3991
  %4669 = vmatpush.bf16.msra.mxu0 %v3987
  %4670 = vmatpush.bf16.msra.mxu0 %v3983
  %4671 = vmatmul.bf16.gmra.mxu0 %v2468
  %v4672 = vpop.f32.mrf.mxu0
  %v4673 = vadd.f32 %v4660, %v4672
  %v4674 = vpop.f32.mrf.mxu0
  %4675 = vdwg.mxu0
  %4676 = vmatpush.bf16.msra.mxu0 %v4043
  %4677 = vmatpush.bf16.msra.mxu0 %v4039
  %4678 = vmatpush.bf16.msra.mxu0 %v4035
  %4679 = vmatpush.bf16.msra.mxu0 %v4031
  %4680 = vmatpush.bf16.msra.mxu0 %v4027
  %4681 = vmatpush.bf16.msra.mxu0 %v4023
  %4682 = vmatpush.bf16.msra.mxu0 %v4019
  %4683 = vmatpush.bf16.msra.mxu0 %v4015
  %4684 = vmatmul.bf16.gmra.mxu0 %v2469
  %v4685 = vpop.f32.mrf.mxu0
  %v4686 = vadd.f32 %v4673, %v4685
  %v4687 = vpop.f32.mrf.mxu0
  %4688 = vdwg.mxu0
  %4689 = vmatpush.bf16.msra.mxu0 %v4075
  %4690 = vmatpush.bf16.msra.mxu0 %v4071
  %4691 = vmatpush.bf16.msra.mxu0 %v4067
  %4692 = vmatpush.bf16.msra.mxu0 %v4063
  %4693 = vmatpush.bf16.msra.mxu0 %v4059
  %4694 = vmatpush.bf16.msra.mxu0 %v4055
  %4695 = vmatpush.bf16.msra.mxu0 %v4051
  %4696 = vmatpush.bf16.msra.mxu0 %v4047
  %4697 = vmatmul.bf16.gmra.mxu0 %v2470
  %v4698 = vpop.f32.mrf.mxu0
  %v4699 = vadd.f32 %v4686, %v4698
  %v4700 = vpop.f32.mrf.mxu0
  %4701 = vdwg.mxu0
  %4702 = vmatpush.bf16.msra.mxu0 %v4107
  %4703 = vmatpush.bf16.msra.mxu0 %v4103
  %4704 = vmatpush.bf16.msra.mxu0 %v4099
  %4705 = vmatpush.bf16.msra.mxu0 %v4095
  %4706 = vmatpush.bf16.msra.mxu0 %v4091
  %4707 = vmatpush.bf16.msra.mxu0 %v4087
  %4708 = vmatpush.bf16.msra.mxu0 %v4083
  %4709 = vmatpush.bf16.msra.mxu0 %v4079
  %4710 = vmatmul.bf16.gmra.mxu0 %v2471
  %v4711 = vpop.f32.mrf.mxu0
  %v4712 = vadd.f32 %v4699, %v4711
  %v4713 = vpop.f32.mrf.mxu0
  %4714 = vdwg.mxu0
  %4715 = vmatpush.bf16.msra.mxu0 %v4139
  %4716 = vmatpush.bf16.msra.mxu0 %v4135
  %4717 = vmatpush.bf16.msra.mxu0 %v4131
  %4718 = vmatpush.bf16.msra.mxu0 %v4127
  %4719 = vmatpush.bf16.msra.mxu0 %v4123
  %4720 = vmatpush.bf16.msra.mxu0 %v4119
  %4721 = vmatpush.bf16.msra.mxu0 %v4115
  %4722 = vmatpush.bf16.msra.mxu0 %v4111
  %4723 = vmatmul.bf16.gmra.mxu0 %v2472
  %v4724 = vpop.f32.mrf.mxu0
  %v4725 = vadd.f32 %v4712, %v4724
  %v4726 = vpop.f32.mrf.mxu0
  %4727 = vdwg.mxu0
  %4728 = vmatpush.bf16.msra.mxu0 %v3756
  %4729 = vmatpush.bf16.msra.mxu0 %v3752
  %4730 = vmatpush.bf16.msra.mxu0 %v3748
  %4731 = vmatpush.bf16.msra.mxu0 %v3744
  %4732 = vmatpush.bf16.msra.mxu0 %v3740
  %4733 = vmatpush.bf16.msra.mxu0 %v3736
  %4734 = vmatpush.bf16.msra.mxu0 %v3732
  %4735 = vmatpush.bf16.msra.mxu0 %v3728
  %4736 = vmatmul.bf16.gmra.mxu0 %v2460
  %v4737 = vpop.f32.mrf.mxu0
  %v4738 = vadd.f32 %v2477, %v4737
  %v4739 = vpop.f32.mrf.mxu0
  %4740 = vdwg.mxu0
  %4741 = vmatpush.bf16.msra.mxu0 %v3788
  %4742 = vmatpush.bf16.msra.mxu0 %v3784
  %4743 = vmatpush.bf16.msra.mxu0 %v3780
  %4744 = vmatpush.bf16.msra.mxu0 %v3776
  %4745 = vmatpush.bf16.msra.mxu0 %v3772
  %4746 = vmatpush.bf16.msra.mxu0 %v3768
  %4747 = vmatpush.bf16.msra.mxu0 %v3764
  %4748 = vmatpush.bf16.msra.mxu0 %v3760
  %4749 = vmatmul.bf16.gmra.mxu0 %v2461
  %v4750 = vpop.f32.mrf.mxu0
  %v4751 = vadd.f32 %v4738, %v4750
  %v4752 = vpop.f32.mrf.mxu0
  %4753 = vdwg.mxu0
  %4754 = vmatpush.bf16.msra.mxu0 %v3820
  %4755 = vmatpush.bf16.msra.mxu0 %v3816
  %4756 = vmatpush.bf16.msra.mxu0 %v3812
  %4757 = vmatpush.bf16.msra.mxu0 %v3808
  %4758 = vmatpush.bf16.msra.mxu0 %v3804
  %4759 = vmatpush.bf16.msra.mxu0 %v3800
  %4760 = vmatpush.bf16.msra.mxu0 %v3796
  %4761 = vmatpush.bf16.msra.mxu0 %v3792
  %4762 = vmatmul.bf16.gmra.mxu0 %v2462
  %v4763 = vpop.f32.mrf.mxu0
  %v4764 = vadd.f32 %v4751, %v4763
  %v4765 = vpop.f32.mrf.mxu0
  %4766 = vdwg.mxu0
  %4767 = vmatpush.bf16.msra.mxu0 %v3852
  %4768 = vmatpush.bf16.msra.mxu0 %v3848
  %4769 = vmatpush.bf16.msra.mxu0 %v3844
  %4770 = vmatpush.bf16.msra.mxu0 %v3840
  %4771 = vmatpush.bf16.msra.mxu0 %v3836
  %4772 = vmatpush.bf16.msra.mxu0 %v3832
  %4773 = vmatpush.bf16.msra.mxu0 %v3828
  %4774 = vmatpush.bf16.msra.mxu0 %v3824
  %4775 = vmatmul.bf16.gmra.mxu0 %v2463
  %v4776 = vpop.f32.mrf.mxu0
  %v4777 = vadd.f32 %v4764, %v4776
  %v4778 = vpop.f32.mrf.mxu0
  %4779 = vdwg.mxu0
  %4780 = vmatpush.bf16.msra.mxu0 %v3884
  %4781 = vmatpush.bf16.msra.mxu0 %v3880
  %4782 = vmatpush.bf16.msra.mxu0 %v3876
  %4783 = vmatpush.bf16.msra.mxu0 %v3872
  %4784 = vmatpush.bf16.msra.mxu0 %v3868
  %4785 = vmatpush.bf16.msra.mxu0 %v3864
  %4786 = vmatpush.bf16.msra.mxu0 %v3860
  %4787 = vmatpush.bf16.msra.mxu0 %v3856
  %4788 = vmatmul.bf16.gmra.mxu0 %v2464
  %v4789 = vpop.f32.mrf.mxu0
  %v4790 = vadd.f32 %v4777, %v4789
  %v4791 = vpop.f32.mrf.mxu0
  %4792 = vdwg.mxu0
  %4793 = vmatpush.bf16.msra.mxu0 %v3916
  %4794 = vmatpush.bf16.msra.mxu0 %v3912
  %4795 = vmatpush.bf16.msra.mxu0 %v3908
  %4796 = vmatpush.bf16.msra.mxu0 %v3904
  %4797 = vmatpush.bf16.msra.mxu0 %v3900
  %4798 = vmatpush.bf16.msra.mxu0 %v3896
  %4799 = vmatpush.bf16.msra.mxu0 %v3892
  %4800 = vmatpush.bf16.msra.mxu0 %v3888
  %4801 = vmatmul.bf16.gmra.mxu0 %v2465
  %v4802 = vpop.f32.mrf.mxu0
  %v4803 = vadd.f32 %v4790, %v4802
  %v4804 = vpop.f32.mrf.mxu0
  %4805 = vdwg.mxu0
  %4806 = vmatpush.bf16.msra.mxu0 %v3948
  %4807 = vmatpush.bf16.msra.mxu0 %v3944
  %4808 = vmatpush.bf16.msra.mxu0 %v3940
  %4809 = vmatpush.bf16.msra.mxu0 %v3936
  %4810 = vmatpush.bf16.msra.mxu0 %v3932
  %4811 = vmatpush.bf16.msra.mxu0 %v3928
  %4812 = vmatpush.bf16.msra.mxu0 %v3924
  %4813 = vmatpush.bf16.msra.mxu0 %v3920
  %4814 = vmatmul.bf16.gmra.mxu0 %v2466
  %v4815 = vpop.f32.mrf.mxu0
  %v4816 = vadd.f32 %v4803, %v4815
  %v4817 = vpop.f32.mrf.mxu0
  %4818 = vdwg.mxu0
  %4819 = vmatpush.bf16.msra.mxu0 %v3980
  %4820 = vmatpush.bf16.msra.mxu0 %v3976
  %4821 = vmatpush.bf16.msra.mxu0 %v3972
  %4822 = vmatpush.bf16.msra.mxu0 %v3968
  %4823 = vmatpush.bf16.msra.mxu0 %v3964
  %4824 = vmatpush.bf16.msra.mxu0 %v3960
  %4825 = vmatpush.bf16.msra.mxu0 %v3956
  %4826 = vmatpush.bf16.msra.mxu0 %v3952
  %4827 = vmatmul.bf16.gmra.mxu0 %v2467
  %v4828 = vpop.f32.mrf.mxu0
  %v4829 = vadd.f32 %v4816, %v4828
  %v4830 = vpop.f32.mrf.mxu0
  %4831 = vdwg.mxu0
  %4832 = vmatpush.bf16.msra.mxu0 %v4012
  %4833 = vmatpush.bf16.msra.mxu0 %v4008
  %4834 = vmatpush.bf16.msra.mxu0 %v4004
  %4835 = vmatpush.bf16.msra.mxu0 %v4000
  %4836 = vmatpush.bf16.msra.mxu0 %v3996
  %4837 = vmatpush.bf16.msra.mxu0 %v3992
  %4838 = vmatpush.bf16.msra.mxu0 %v3988
  %4839 = vmatpush.bf16.msra.mxu0 %v3984
  %4840 = vmatmul.bf16.gmra.mxu0 %v2468
  %v4841 = vpop.f32.mrf.mxu0
  %v4842 = vadd.f32 %v4829, %v4841
  %v4843 = vpop.f32.mrf.mxu0
  %4844 = vdwg.mxu0
  %4845 = vmatpush.bf16.msra.mxu0 %v4044
  %4846 = vmatpush.bf16.msra.mxu0 %v4040
  %4847 = vmatpush.bf16.msra.mxu0 %v4036
  %4848 = vmatpush.bf16.msra.mxu0 %v4032
  %4849 = vmatpush.bf16.msra.mxu0 %v4028
  %4850 = vmatpush.bf16.msra.mxu0 %v4024
  %4851 = vmatpush.bf16.msra.mxu0 %v4020
  %4852 = vmatpush.bf16.msra.mxu0 %v4016
  %4853 = vmatmul.bf16.gmra.mxu0 %v2469
  %v4854 = vpop.f32.mrf.mxu0
  %v4855 = vadd.f32 %v4842, %v4854
  %v4856 = vpop.f32.mrf.mxu0
  %4857 = vdwg.mxu0
  %4858 = vmatpush.bf16.msra.mxu0 %v4076
  %4859 = vmatpush.bf16.msra.mxu0 %v4072
  %4860 = vmatpush.bf16.msra.mxu0 %v4068
  %4861 = vmatpush.bf16.msra.mxu0 %v4064
  %4862 = vmatpush.bf16.msra.mxu0 %v4060
  %4863 = vmatpush.bf16.msra.mxu0 %v4056
  %4864 = vmatpush.bf16.msra.mxu0 %v4052
  %4865 = vmatpush.bf16.msra.mxu0 %v4048
  %4866 = vmatmul.bf16.gmra.mxu0 %v2470
  %v4867 = vpop.f32.mrf.mxu0
  %v4868 = vadd.f32 %v4855, %v4867
  %v4869 = vpop.f32.mrf.mxu0
  %4870 = vdwg.mxu0
  %4871 = vmatpush.bf16.msra.mxu0 %v4108
  %4872 = vmatpush.bf16.msra.mxu0 %v4104
  %4873 = vmatpush.bf16.msra.mxu0 %v4100
  %4874 = vmatpush.bf16.msra.mxu0 %v4096
  %4875 = vmatpush.bf16.msra.mxu0 %v4092
  %4876 = vmatpush.bf16.msra.mxu0 %v4088
  %4877 = vmatpush.bf16.msra.mxu0 %v4084
  %4878 = vmatpush.bf16.msra.mxu0 %v4080
  %4879 = vmatmul.bf16.gmra.mxu0 %v2471
  %v4880 = vpop.f32.mrf.mxu0
  %v4881 = vadd.f32 %v4868, %v4880
  %v4882 = vpop.f32.mrf.mxu0
  %4883 = vdwg.mxu0
  %4884 = vmatpush.bf16.msra.mxu0 %v4140
  %4885 = vmatpush.bf16.msra.mxu0 %v4136
  %4886 = vmatpush.bf16.msra.mxu0 %v4132
  %4887 = vmatpush.bf16.msra.mxu0 %v4128
  %4888 = vmatpush.bf16.msra.mxu0 %v4124
  %4889 = vmatpush.bf16.msra.mxu0 %v4120
  %4890 = vmatpush.bf16.msra.mxu0 %v4116
  %4891 = vmatpush.bf16.msra.mxu0 %v4112
  %4892 = vmatmul.bf16.gmra.mxu0 %v2472
  %v4893 = vpop.f32.mrf.mxu0
  %v4894 = vadd.f32 %v4881, %v4893
  %v4895 = vpop.f32.mrf.mxu0
  %4896 = vdwg.mxu0
  %4897 = vmatpush.bf16.msra.mxu0 %v3757
  %4898 = vmatpush.bf16.msra.mxu0 %v3753
  %4899 = vmatpush.bf16.msra.mxu0 %v3749
  %4900 = vmatpush.bf16.msra.mxu0 %v3745
  %4901 = vmatpush.bf16.msra.mxu0 %v3741
  %4902 = vmatpush.bf16.msra.mxu0 %v3737
  %4903 = vmatpush.bf16.msra.mxu0 %v3733
  %4904 = vmatpush.bf16.msra.mxu0 %v3729
  %4905 = vmatmul.bf16.gmra.mxu0 %v2460
  %v4906 = vpop.f32.mrf.mxu0
  %v4907 = vadd.f32 %v2477, %v4906
  %v4908 = vpop.f32.mrf.mxu0
  %4909 = vdwg.mxu0
  %4910 = vmatpush.bf16.msra.mxu0 %v3789
  %4911 = vmatpush.bf16.msra.mxu0 %v3785
  %4912 = vmatpush.bf16.msra.mxu0 %v3781
  %4913 = vmatpush.bf16.msra.mxu0 %v3777
  %4914 = vmatpush.bf16.msra.mxu0 %v3773
  %4915 = vmatpush.bf16.msra.mxu0 %v3769
  %4916 = vmatpush.bf16.msra.mxu0 %v3765
  %4917 = vmatpush.bf16.msra.mxu0 %v3761
  %4918 = vmatmul.bf16.gmra.mxu0 %v2461
  %v4919 = vpop.f32.mrf.mxu0
  %v4920 = vadd.f32 %v4907, %v4919
  %v4921 = vpop.f32.mrf.mxu0
  %4922 = vdwg.mxu0
  %4923 = vmatpush.bf16.msra.mxu0 %v3821
  %4924 = vmatpush.bf16.msra.mxu0 %v3817
  %4925 = vmatpush.bf16.msra.mxu0 %v3813
  %4926 = vmatpush.bf16.msra.mxu0 %v3809
  %4927 = vmatpush.bf16.msra.mxu0 %v3805
  %4928 = vmatpush.bf16.msra.mxu0 %v3801
  %4929 = vmatpush.bf16.msra.mxu0 %v3797
  %4930 = vmatpush.bf16.msra.mxu0 %v3793
  %4931 = vmatmul.bf16.gmra.mxu0 %v2462
  %v4932 = vpop.f32.mrf.mxu0
  %v4933 = vadd.f32 %v4920, %v4932
  %v4934 = vpop.f32.mrf.mxu0
  %4935 = vdwg.mxu0
  %4936 = vmatpush.bf16.msra.mxu0 %v3853
  %4937 = vmatpush.bf16.msra.mxu0 %v3849
  %4938 = vmatpush.bf16.msra.mxu0 %v3845
  %4939 = vmatpush.bf16.msra.mxu0 %v3841
  %4940 = vmatpush.bf16.msra.mxu0 %v3837
  %4941 = vmatpush.bf16.msra.mxu0 %v3833
  %4942 = vmatpush.bf16.msra.mxu0 %v3829
  %4943 = vmatpush.bf16.msra.mxu0 %v3825
  %4944 = vmatmul.bf16.gmra.mxu0 %v2463
  %v4945 = vpop.f32.mrf.mxu0
  %v4946 = vadd.f32 %v4933, %v4945
  %v4947 = vpop.f32.mrf.mxu0
  %4948 = vdwg.mxu0
  %4949 = vmatpush.bf16.msra.mxu0 %v3885
  %4950 = vmatpush.bf16.msra.mxu0 %v3881
  %4951 = vmatpush.bf16.msra.mxu0 %v3877
  %4952 = vmatpush.bf16.msra.mxu0 %v3873
  %4953 = vmatpush.bf16.msra.mxu0 %v3869
  %4954 = vmatpush.bf16.msra.mxu0 %v3865
  %4955 = vmatpush.bf16.msra.mxu0 %v3861
  %4956 = vmatpush.bf16.msra.mxu0 %v3857
  %4957 = vmatmul.bf16.gmra.mxu0 %v2464
  %v4958 = vpop.f32.mrf.mxu0
  %v4959 = vadd.f32 %v4946, %v4958
  %v4960 = vpop.f32.mrf.mxu0
  %4961 = vdwg.mxu0
  %4962 = vmatpush.bf16.msra.mxu0 %v3917
  %4963 = vmatpush.bf16.msra.mxu0 %v3913
  %4964 = vmatpush.bf16.msra.mxu0 %v3909
  %4965 = vmatpush.bf16.msra.mxu0 %v3905
  %4966 = vmatpush.bf16.msra.mxu0 %v3901
  %4967 = vmatpush.bf16.msra.mxu0 %v3897
  %4968 = vmatpush.bf16.msra.mxu0 %v3893
  %4969 = vmatpush.bf16.msra.mxu0 %v3889
  %4970 = vmatmul.bf16.gmra.mxu0 %v2465
  %v4971 = vpop.f32.mrf.mxu0
  %v4972 = vadd.f32 %v4959, %v4971
  %v4973 = vpop.f32.mrf.mxu0
  %4974 = vdwg.mxu0
  %4975 = vmatpush.bf16.msra.mxu0 %v3949
  %4976 = vmatpush.bf16.msra.mxu0 %v3945
  %4977 = vmatpush.bf16.msra.mxu0 %v3941
  %4978 = vmatpush.bf16.msra.mxu0 %v3937
  %4979 = vmatpush.bf16.msra.mxu0 %v3933
  %4980 = vmatpush.bf16.msra.mxu0 %v3929
  %4981 = vmatpush.bf16.msra.mxu0 %v3925
  %4982 = vmatpush.bf16.msra.mxu0 %v3921
  %4983 = vmatmul.bf16.gmra.mxu0 %v2466
  %v4984 = vpop.f32.mrf.mxu0
  %v4985 = vadd.f32 %v4972, %v4984
  %v4986 = vpop.f32.mrf.mxu0
  %4987 = vdwg.mxu0
  %4988 = vmatpush.bf16.msra.mxu0 %v3981
  %4989 = vmatpush.bf16.msra.mxu0 %v3977
  %4990 = vmatpush.bf16.msra.mxu0 %v3973
  %4991 = vmatpush.bf16.msra.mxu0 %v3969
  %4992 = vmatpush.bf16.msra.mxu0 %v3965
  %4993 = vmatpush.bf16.msra.mxu0 %v3961
  %4994 = vmatpush.bf16.msra.mxu0 %v3957
  %4995 = vmatpush.bf16.msra.mxu0 %v3953
  %4996 = vmatmul.bf16.gmra.mxu0 %v2467
  %v4997 = vpop.f32.mrf.mxu0
  %v4998 = vadd.f32 %v4985, %v4997
  %v4999 = vpop.f32.mrf.mxu0
  %5000 = vdwg.mxu0
  %5001 = vmatpush.bf16.msra.mxu0 %v4013
  %5002 = vmatpush.bf16.msra.mxu0 %v4009
  %5003 = vmatpush.bf16.msra.mxu0 %v4005
  %5004 = vmatpush.bf16.msra.mxu0 %v4001
  %5005 = vmatpush.bf16.msra.mxu0 %v3997
  %5006 = vmatpush.bf16.msra.mxu0 %v3993
  %5007 = vmatpush.bf16.msra.mxu0 %v3989
  %5008 = vmatpush.bf16.msra.mxu0 %v3985
  %5009 = vmatmul.bf16.gmra.mxu0 %v2468
  %v5010 = vpop.f32.mrf.mxu0
  %v5011 = vadd.f32 %v4998, %v5010
  %v5012 = vpop.f32.mrf.mxu0
  %5013 = vdwg.mxu0
  %5014 = vmatpush.bf16.msra.mxu0 %v4045
  %5015 = vmatpush.bf16.msra.mxu0 %v4041
  %5016 = vmatpush.bf16.msra.mxu0 %v4037
  %5017 = vmatpush.bf16.msra.mxu0 %v4033
  %5018 = vmatpush.bf16.msra.mxu0 %v4029
  %5019 = vmatpush.bf16.msra.mxu0 %v4025
  %5020 = vmatpush.bf16.msra.mxu0 %v4021
  %5021 = vmatpush.bf16.msra.mxu0 %v4017
  %5022 = vmatmul.bf16.gmra.mxu0 %v2469
  %v5023 = vpop.f32.mrf.mxu0
  %v5024 = vadd.f32 %v5011, %v5023
  %v5025 = vpop.f32.mrf.mxu0
  %5026 = vdwg.mxu0
  %5027 = vmatpush.bf16.msra.mxu0 %v4077
  %5028 = vmatpush.bf16.msra.mxu0 %v4073
  %5029 = vmatpush.bf16.msra.mxu0 %v4069
  %5030 = vmatpush.bf16.msra.mxu0 %v4065
  %5031 = vmatpush.bf16.msra.mxu0 %v4061
  %5032 = vmatpush.bf16.msra.mxu0 %v4057
  %5033 = vmatpush.bf16.msra.mxu0 %v4053
  %5034 = vmatpush.bf16.msra.mxu0 %v4049
  %5035 = vmatmul.bf16.gmra.mxu0 %v2470
  %v5036 = vpop.f32.mrf.mxu0
  %v5037 = vadd.f32 %v5024, %v5036
  %v5038 = vpop.f32.mrf.mxu0
  %5039 = vdwg.mxu0
  %5040 = vmatpush.bf16.msra.mxu0 %v4109
  %5041 = vmatpush.bf16.msra.mxu0 %v4105
  %5042 = vmatpush.bf16.msra.mxu0 %v4101
  %5043 = vmatpush.bf16.msra.mxu0 %v4097
  %5044 = vmatpush.bf16.msra.mxu0 %v4093
  %5045 = vmatpush.bf16.msra.mxu0 %v4089
  %5046 = vmatpush.bf16.msra.mxu0 %v4085
  %5047 = vmatpush.bf16.msra.mxu0 %v4081
  %5048 = vmatmul.bf16.gmra.mxu0 %v2471
  %v5049 = vpop.f32.mrf.mxu0
  %v5050 = vadd.f32 %v5037, %v5049
  %v5051 = vpop.f32.mrf.mxu0
  %5052 = vdwg.mxu0
  %5053 = vmatpush.bf16.msra.mxu0 %v4141
  %5054 = vmatpush.bf16.msra.mxu0 %v4137
  %5055 = vmatpush.bf16.msra.mxu0 %v4133
  %5056 = vmatpush.bf16.msra.mxu0 %v4129
  %5057 = vmatpush.bf16.msra.mxu0 %v4125
  %5058 = vmatpush.bf16.msra.mxu0 %v4121
  %5059 = vmatpush.bf16.msra.mxu0 %v4117
  %5060 = vmatpush.bf16.msra.mxu0 %v4113
  %5061 = vmatmul.bf16.gmra.mxu0 %v2472
  %v5062 = vpop.f32.mrf.mxu0
  %v5063 = vadd.f32 %v5050, %v5062
  %v5064 = vpop.f32.mrf.mxu0
  %5065 = vdwg.mxu0
  %5066 = vmatpush.bf16.msra.mxu0 %v3758
  %5067 = vmatpush.bf16.msra.mxu0 %v3754
  %5068 = vmatpush.bf16.msra.mxu0 %v3750
  %5069 = vmatpush.bf16.msra.mxu0 %v3746
  %5070 = vmatpush.bf16.msra.mxu0 %v3742
  %5071 = vmatpush.bf16.msra.mxu0 %v3738
  %5072 = vmatpush.bf16.msra.mxu0 %v3734
  %5073 = vmatpush.bf16.msra.mxu0 %v3730
  %5074 = vmatmul.bf16.gmra.mxu0 %v2460
  %v5075 = vpop.f32.mrf.mxu0
  %v5076 = vadd.f32 %v2477, %v5075
  %v5077 = vpop.f32.mrf.mxu0
  %5078 = vdwg.mxu0
  %5079 = vmatpush.bf16.msra.mxu0 %v3790
  %5080 = vmatpush.bf16.msra.mxu0 %v3786
  %5081 = vmatpush.bf16.msra.mxu0 %v3782
  %5082 = vmatpush.bf16.msra.mxu0 %v3778
  %5083 = vmatpush.bf16.msra.mxu0 %v3774
  %5084 = vmatpush.bf16.msra.mxu0 %v3770
  %5085 = vmatpush.bf16.msra.mxu0 %v3766
  %5086 = vmatpush.bf16.msra.mxu0 %v3762
  %5087 = vmatmul.bf16.gmra.mxu0 %v2461
  %v5088 = vpop.f32.mrf.mxu0
  %v5089 = vadd.f32 %v5076, %v5088
  %v5090 = vpop.f32.mrf.mxu0
  %5091 = vdwg.mxu0
  %5092 = vmatpush.bf16.msra.mxu0 %v3822
  %5093 = vmatpush.bf16.msra.mxu0 %v3818
  %5094 = vmatpush.bf16.msra.mxu0 %v3814
  %5095 = vmatpush.bf16.msra.mxu0 %v3810
  %5096 = vmatpush.bf16.msra.mxu0 %v3806
  %5097 = vmatpush.bf16.msra.mxu0 %v3802
  %5098 = vmatpush.bf16.msra.mxu0 %v3798
  %5099 = vmatpush.bf16.msra.mxu0 %v3794
  %5100 = vmatmul.bf16.gmra.mxu0 %v2462
  %v5101 = vpop.f32.mrf.mxu0
  %v5102 = vadd.f32 %v5089, %v5101
  %v5103 = vpop.f32.mrf.mxu0
  %5104 = vdwg.mxu0
  %5105 = vmatpush.bf16.msra.mxu0 %v3854
  %5106 = vmatpush.bf16.msra.mxu0 %v3850
  %5107 = vmatpush.bf16.msra.mxu0 %v3846
  %5108 = vmatpush.bf16.msra.mxu0 %v3842
  %5109 = vmatpush.bf16.msra.mxu0 %v3838
  %5110 = vmatpush.bf16.msra.mxu0 %v3834
  %5111 = vmatpush.bf16.msra.mxu0 %v3830
  %5112 = vmatpush.bf16.msra.mxu0 %v3826
  %5113 = vmatmul.bf16.gmra.mxu0 %v2463
  %v5114 = vpop.f32.mrf.mxu0
  %v5115 = vadd.f32 %v5102, %v5114
  %v5116 = vpop.f32.mrf.mxu0
  %5117 = vdwg.mxu0
  %5118 = vmatpush.bf16.msra.mxu0 %v3886
  %5119 = vmatpush.bf16.msra.mxu0 %v3882
  %5120 = vmatpush.bf16.msra.mxu0 %v3878
  %5121 = vmatpush.bf16.msra.mxu0 %v3874
  %5122 = vmatpush.bf16.msra.mxu0 %v3870
  %5123 = vmatpush.bf16.msra.mxu0 %v3866
  %5124 = vmatpush.bf16.msra.mxu0 %v3862
  %5125 = vmatpush.bf16.msra.mxu0 %v3858
  %5126 = vmatmul.bf16.gmra.mxu0 %v2464
  %v5127 = vpop.f32.mrf.mxu0
  %v5128 = vadd.f32 %v5115, %v5127
  %v5129 = vpop.f32.mrf.mxu0
  %5130 = vdwg.mxu0
  %5131 = vmatpush.bf16.msra.mxu0 %v3918
  %5132 = vmatpush.bf16.msra.mxu0 %v3914
  %5133 = vmatpush.bf16.msra.mxu0 %v3910
  %5134 = vmatpush.bf16.msra.mxu0 %v3906
  %5135 = vmatpush.bf16.msra.mxu0 %v3902
  %5136 = vmatpush.bf16.msra.mxu0 %v3898
  %5137 = vmatpush.bf16.msra.mxu0 %v3894
  %5138 = vmatpush.bf16.msra.mxu0 %v3890
  %5139 = vmatmul.bf16.gmra.mxu0 %v2465
  %v5140 = vpop.f32.mrf.mxu0
  %v5141 = vadd.f32 %v5128, %v5140
  %v5142 = vpop.f32.mrf.mxu0
  %5143 = vdwg.mxu0
  %5144 = vmatpush.bf16.msra.mxu0 %v3950
  %5145 = vmatpush.bf16.msra.mxu0 %v3946
  %5146 = vmatpush.bf16.msra.mxu0 %v3942
  %5147 = vmatpush.bf16.msra.mxu0 %v3938
  %5148 = vmatpush.bf16.msra.mxu0 %v3934
  %5149 = vmatpush.bf16.msra.mxu0 %v3930
  %5150 = vmatpush.bf16.msra.mxu0 %v3926
  %5151 = vmatpush.bf16.msra.mxu0 %v3922
  %5152 = vmatmul.bf16.gmra.mxu0 %v2466
  %v5153 = vpop.f32.mrf.mxu0
  %v5154 = vadd.f32 %v5141, %v5153
  %v5155 = vpop.f32.mrf.mxu0
  %5156 = vdwg.mxu0
  %5157 = vmatpush.bf16.msra.mxu0 %v3982
  %5158 = vmatpush.bf16.msra.mxu0 %v3978
  %5159 = vmatpush.bf16.msra.mxu0 %v3974
  %5160 = vmatpush.bf16.msra.mxu0 %v3970
  %5161 = vmatpush.bf16.msra.mxu0 %v3966
  %5162 = vmatpush.bf16.msra.mxu0 %v3962
  %5163 = vmatpush.bf16.msra.mxu0 %v3958
  %5164 = vmatpush.bf16.msra.mxu0 %v3954
  %5165 = vmatmul.bf16.gmra.mxu0 %v2467
  %v5166 = vpop.f32.mrf.mxu0
  %v5167 = vadd.f32 %v5154, %v5166
  %v5168 = vpop.f32.mrf.mxu0
  %5169 = vdwg.mxu0
  %5170 = vmatpush.bf16.msra.mxu0 %v4014
  %5171 = vmatpush.bf16.msra.mxu0 %v4010
  %5172 = vmatpush.bf16.msra.mxu0 %v4006
  %5173 = vmatpush.bf16.msra.mxu0 %v4002
  %5174 = vmatpush.bf16.msra.mxu0 %v3998
  %5175 = vmatpush.bf16.msra.mxu0 %v3994
  %5176 = vmatpush.bf16.msra.mxu0 %v3990
  %5177 = vmatpush.bf16.msra.mxu0 %v3986
  %5178 = vmatmul.bf16.gmra.mxu0 %v2468
  %v5179 = vpop.f32.mrf.mxu0
  %v5180 = vadd.f32 %v5167, %v5179
  %v5181 = vpop.f32.mrf.mxu0
  %5182 = vdwg.mxu0
  %5183 = vmatpush.bf16.msra.mxu0 %v4046
  %5184 = vmatpush.bf16.msra.mxu0 %v4042
  %5185 = vmatpush.bf16.msra.mxu0 %v4038
  %5186 = vmatpush.bf16.msra.mxu0 %v4034
  %5187 = vmatpush.bf16.msra.mxu0 %v4030
  %5188 = vmatpush.bf16.msra.mxu0 %v4026
  %5189 = vmatpush.bf16.msra.mxu0 %v4022
  %5190 = vmatpush.bf16.msra.mxu0 %v4018
  %5191 = vmatmul.bf16.gmra.mxu0 %v2469
  %v5192 = vpop.f32.mrf.mxu0
  %v5193 = vadd.f32 %v5180, %v5192
  %v5194 = vpop.f32.mrf.mxu0
  %5195 = vdwg.mxu0
  %5196 = vmatpush.bf16.msra.mxu0 %v4078
  %5197 = vmatpush.bf16.msra.mxu0 %v4074
  %5198 = vmatpush.bf16.msra.mxu0 %v4070
  %5199 = vmatpush.bf16.msra.mxu0 %v4066
  %5200 = vmatpush.bf16.msra.mxu0 %v4062
  %5201 = vmatpush.bf16.msra.mxu0 %v4058
  %5202 = vmatpush.bf16.msra.mxu0 %v4054
  %5203 = vmatpush.bf16.msra.mxu0 %v4050
  %5204 = vmatmul.bf16.gmra.mxu0 %v2470
  %v5205 = vpop.f32.mrf.mxu0
  %v5206 = vadd.f32 %v5193, %v5205
  %v5207 = vpop.f32.mrf.mxu0
  %5208 = vdwg.mxu0
  %5209 = vmatpush.bf16.msra.mxu0 %v4110
  %5210 = vmatpush.bf16.msra.mxu0 %v4106
  %5211 = vmatpush.bf16.msra.mxu0 %v4102
  %5212 = vmatpush.bf16.msra.mxu0 %v4098
  %5213 = vmatpush.bf16.msra.mxu0 %v4094
  %5214 = vmatpush.bf16.msra.mxu0 %v4090
  %5215 = vmatpush.bf16.msra.mxu0 %v4086
  %5216 = vmatpush.bf16.msra.mxu0 %v4082
  %5217 = vmatmul.bf16.gmra.mxu0 %v2471
  %v5218 = vpop.f32.mrf.mxu0
  %v5219 = vadd.f32 %v5206, %v5218
  %v5220 = vpop.f32.mrf.mxu0
  %5221 = vdwg.mxu0
  %5222 = vmatpush.bf16.msra.mxu0 %v4142
  %5223 = vmatpush.bf16.msra.mxu0 %v4138
  %5224 = vmatpush.bf16.msra.mxu0 %v4134
  %5225 = vmatpush.bf16.msra.mxu0 %v4130
  %5226 = vmatpush.bf16.msra.mxu0 %v4126
  %5227 = vmatpush.bf16.msra.mxu0 %v4122
  %5228 = vmatpush.bf16.msra.mxu0 %v4118
  %5229 = vmatpush.bf16.msra.mxu0 %v4114
  %5230 = vmatmul.bf16.gmra.mxu0 %v2472
  %v5231 = vpop.f32.mrf.mxu0
  %v5232 = vadd.f32 %v5219, %v5231
  %v5233 = vpop.f32.mrf.mxu0
  %5234 = vdwg.mxu0
  %v5235 = vld [vmem:[%s5] sm:$0xf]
  %v5236 = vld [vmem:[%s5 + $0x4] sm:$0xf]
  %v5237 = vpack.c.bf16 %v4725, %v4725
  %v5238 = vpack.c.bf16 %v4894, %v4894
  %v5239 = vpack.c.bf16 %v5063, %v5063
  %v5240 = vpack.c.bf16 %v5232, %v5232
  %v5241 = vld [vmem:[%s6] sm:$0xff]
  %v5242 = vld [vmem:[%s6 + $0x8] sm:$0xff]
  %5244 = vset.pattern.permute.xlu0 0
  %5245 = vperm.xlu0 %5244, %v5241
  %v5246 = vpop.permute.xlu0 %5245
  %5249 = vset.pattern.permute.xlu0 0
  %5250 = vperm.xlu0 %5249, %v5242
  %v5251 = vpop.permute.xlu0 %5250
  %v5255 = vunpack.c.l.b16 %v5235
  %v5256 = vunpack.c.l.b16 %v5236
  %v5257 = vpack.c.b16 %v5256, %v5255
  %vm5258 = vcmask 48128
  %v5260 = vsel %vm5258, %v5257, 0
  %vm5262 = vcmask 1042432
  %v5264 = vsel %vm5262, %v5237, 0
  %v5267 = vsel %vm5262, %v5238, 0
  %v5270 = vsel %vm5262, %v5239, 0
  %v5273 = vsel %vm5262, %v5240, 0
  %5275 = vmatpush.bf16.msra.mxu0 0
  %5276 = vmatpush.bf16.msra.mxu0 0
  %5277 = vmatpush.bf16.msra.mxu0 0
  %5278 = vmatpush.bf16.msra.mxu0 0
  %5279 = vmatpush.bf16.msra.mxu0 0
  %5280 = vmatpush.bf16.msra.mxu0 0
  %5281 = vmatpush.bf16.msra.mxu0 0
  %5282 = vmatpush.bf16.msra.mxu0 %v5264
  %5283 = vmatmul.bf16.gmra.mxu0 %v5260
  %v5284 = vpop.f32.mrf.mxu0
  %v5285 = vadd.f32 %v5246, %v5284
  %v5286 = vpop.f32.mrf.mxu0
  %v5287 = vadd.f32 %v5251, %v5286
  %5288 = vdwg.mxu0
  %5289 = vmatpush.bf16.msra.mxu0 0
  %5290 = vmatpush.bf16.msra.mxu0 0
  %5291 = vmatpush.bf16.msra.mxu0 0
  %5292 = vmatpush.bf16.msra.mxu0 0
  %5293 = vmatpush.bf16.msra.mxu0 0
  %5294 = vmatpush.bf16.msra.mxu0 0
  %5295 = vmatpush.bf16.msra.mxu0 0
  %5296 = vmatpush.bf16.msra.mxu0 %v5267
  %5297 = vmatmul.bf16.gmra.mxu0 %v5260
  %v5298 = vpop.f32.mrf.mxu0
  %v5299 = vadd.f32 %v5246, %v5298
  %v5300 = vpop.f32.mrf.mxu0
  %v5301 = vadd.f32 %v5251, %v5300
  %5302 = vdwg.mxu0
  %5303 = vmatpush.bf16.msra.mxu0 0
  %5304 = vmatpush.bf16.msra.mxu0 0
  %5305 = vmatpush.bf16.msra.mxu0 0
  %5306 = vmatpush.bf16.msra.mxu0 0
  %5307 = vmatpush.bf16.msra.mxu0 0
  %5308 = vmatpush.bf16.msra.mxu0 0
  %5309 = vmatpush.bf16.msra.mxu0 0
  %5310 = vmatpush.bf16.msra.mxu0 %v5270
  %5311 = vmatmul.bf16.gmra.mxu0 %v5260
  %v5312 = vpop.f32.mrf.mxu0
  %v5313 = vadd.f32 %v5246, %v5312
  %v5314 = vpop.f32.mrf.mxu0
  %v5315 = vadd.f32 %v5251, %v5314
  %5316 = vdwg.mxu0
  %5317 = vmatpush.bf16.msra.mxu0 0
  %5318 = vmatpush.bf16.msra.mxu0 0
  %5319 = vmatpush.bf16.msra.mxu0 0
  %5320 = vmatpush.bf16.msra.mxu0 0
  %5321 = vmatpush.bf16.msra.mxu0 0
  %5322 = vmatpush.bf16.msra.mxu0 0
  %5323 = vmatpush.bf16.msra.mxu0 0
  %5324 = vmatpush.bf16.msra.mxu0 %v5273
  %5325 = vmatmul.bf16.gmra.mxu0 %v5260
  %v5326 = vpop.f32.mrf.mxu0
  %v5327 = vadd.f32 %v5246, %v5326
  %v5328 = vpop.f32.mrf.mxu0
  %v5329 = vadd.f32 %v5251, %v5328
  %5330 = vdwg.mxu0
  %v5331 = vmax.f32 %v5285, 0.0
  %v5332 = vmax.f32 %v5299, 0.0
  %v5333 = vmax.f32 %v5313, 0.0
  %v5334 = vmax.f32 %v5327, 0.0
  %v5335 = vmax.f32 %v5287, 0.0
  %v5336 = vmax.f32 %v5301, 0.0
  %v5337 = vmax.f32 %v5315, 0.0
  %v5338 = vmax.f32 %v5329, 0.0
  %v5339 = vpack.c.bf16 %v5332, %v5331
  %v5340 = vpack.c.bf16 %v5334, %v5333
  %v5341 = vpack.c.bf16 %v5336, %v5335
  %v5342 = vpack.c.bf16 %v5338, %v5337
  %5343 = vst [vmem:[%s9] sm:$0xff] %v5339
  %5344 = vst [vmem:[%s9 + $0x8] sm:$0xff] %v5340
  %5345 = vst [vmem:[%s9 + $0x10] sm:$0xff] %v5341
  %5346 = vst [vmem:[%s9 + $0x18] sm:$0xff] %v5342
  %5347 = vst [vmem:[#allocation3] sm:$0xff] 0.0
  %5348 = vst [vmem:[#allocation3 + $0x8] sm:$0xff] 0.0
  %5349 = vst [vmem:[#allocation3 + $0x10] sm:$0xff] 0.0
  %5350 = vst [vmem:[#allocation3 + $0x18] sm:$0xff] 0.0
  %5351 = vst [vmem:[#allocation3 + $0x20] sm:$0xff] 0.0
  %5352 = vst [vmem:[#allocation3 + $0x28] sm:$0xff] 0.0
  %5353 = vst [vmem:[#allocation3 + $0x30] sm:$0xff] 0.0
  %5354 = vst [vmem:[#allocation3 + $0x38] sm:$0xff] 0.0
  %5355 = vst [vmem:[#allocation3 + $0x40] sm:$0xff] 0.0
  %5356 = vst [vmem:[#allocation3 + $0x48] sm:$0xff] 0.0
  %5357 = vst [vmem:[#allocation3 + $0x50] sm:$0xff] 0.0
  %5358 = vst [vmem:[#allocation3 + $0x58] sm:$0xff] 0.0
  %5359 = vst [vmem:[#allocation3 + $0x60] sm:$0xff] 0.0
  %5360 = vst.msk [vmem:[#allocation3 + $0x68] sm:$0xff] %vm2319, 0.0
  %v5361 = vunpack.c.l.bf16 %v33
  %v5362 = vunpack.c.h.bf16 %v33
  %v5363 = vunpack.c.l.bf16 %v34
  %v5364 = vunpack.c.h.bf16 %v34
  %v5365 = vunpack.c.l.bf16 %v35
  %v5366 = vunpack.c.h.bf16 %v35
  %v5367 = vunpack.c.l.bf16 %v36
  %v5368 = vunpack.c.h.bf16 %v36
  %v5369 = vunpack.c.l.bf16 %v37
  %v5370 = vunpack.c.h.bf16 %v37
  %v5371 = vunpack.c.l.bf16 %v38
  %v5372 = vunpack.c.h.bf16 %v38
  %v5373 = vunpack.c.l.bf16 %v39
  %5387 = vrot.lane.b32.xlu0 %v5361, 29
  %v5388 = vpop.permute.xlu0 %5387
  %5389 = vrot.lane.b32.xlu0 %v5362, 29
  %v5390 = vpop.permute.xlu0 %5389
  %5391 = vrot.lane.b32.xlu0 %v5363, 29
  %v5392 = vpop.permute.xlu0 %5391
  %5393 = vrot.lane.b32.xlu0 %v5364, 29
  %v5394 = vpop.permute.xlu0 %5393
  %5395 = vrot.lane.b32.xlu0 %v5365, 29
  %v5396 = vpop.permute.xlu0 %5395
  %5397 = vrot.lane.b32.xlu0 %v5366, 29
  %v5398 = vpop.permute.xlu0 %5397
  %5399 = vrot.lane.b32.xlu0 %v5367, 29
  %v5400 = vpop.permute.xlu0 %5399
  %5401 = vrot.lane.b32.xlu0 %v5368, 29
  %v5402 = vpop.permute.xlu0 %5401
  %5403 = vrot.lane.b32.xlu0 %v5369, 29
  %v5404 = vpop.permute.xlu0 %5403
  %5405 = vrot.lane.b32.xlu0 %v5370, 29
  %v5406 = vpop.permute.xlu0 %5405
  %5407 = vrot.lane.b32.xlu0 %v5371, 29
  %v5408 = vpop.permute.xlu0 %5407
  %5409 = vrot.lane.b32.xlu0 %v5372, 29
  %v5410 = vpop.permute.xlu0 %5409
  %5411 = vrot.lane.b32.xlu0 %v5373, 29
  %v5412 = vpop.permute.xlu0 %5411
  %v5413 = vsel %vm802, %v5388, %v5390
  %v5414 = vsel %vm802, %v5390, %v5392
  %v5415 = vsel %vm802, %v5392, %v5394
  %v5416 = vsel %vm802, %v5394, %v5396
  %v5417 = vsel %vm802, %v5396, %v5398
  %v5418 = vsel %vm802, %v5398, %v5400
  %v5419 = vsel %vm802, %v5400, %v5402
  %v5420 = vsel %vm802, %v5402, %v5404
  %v5421 = vsel %vm802, %v5404, %v5406
  %v5422 = vsel %vm802, %v5406, %v5408
  %v5423 = vsel %vm802, %v5408, %v5410
  %v5424 = vsel %vm802, %v5410, %v5412
  %vm5439 = vcmask 1047784
  %5440 = vst.msk [vmem:[#allocation3] sm:$0xff] %vm5439, %v5388
  %5441 = vst [vmem:[#allocation3 + $0x8] sm:$0xff] %v5413
  %5442 = vst [vmem:[#allocation3 + $0x10] sm:$0xff] %v5414
  %5443 = vst [vmem:[#allocation3 + $0x18] sm:$0xff] %v5415
  %5444 = vst [vmem:[#allocation3 + $0x20] sm:$0xff] %v5416
  %5445 = vst [vmem:[#allocation3 + $0x28] sm:$0xff] %v5417
  %5446 = vst [vmem:[#allocation3 + $0x30] sm:$0xff] %v5418
  %5447 = vst [vmem:[#allocation3 + $0x38] sm:$0xff] %v5419
  %5448 = vst [vmem:[#allocation3 + $0x40] sm:$0xff] %v5420
  %5449 = vst [vmem:[#allocation3 + $0x48] sm:$0xff] %v5421
  %5450 = vst [vmem:[#allocation3 + $0x50] sm:$0xff] %v5422
  %5451 = vst [vmem:[#allocation3 + $0x58] sm:$0xff] %v5423
  %5452 = vst [vmem:[#allocation3 + $0x60] sm:$0xff] %v5424
  %5453 = vst.msk [vmem:[#allocation3 + $0x68] sm:$0xff] %vm802, %v5412
  %v5454 = vld [vmem:[#allocation3] sm:$0xff]
  %v5455 = vld [vmem:[#allocation3 + $0x8] sm:$0xff]
  %v5456 = vld [vmem:[#allocation3 + $0x10] sm:$0xff]
  %v5457 = vld [vmem:[#allocation3 + $0x18] sm:$0xff]
  %v5458 = vld [vmem:[#allocation3 + $0x20] sm:$0xff]
  %v5459 = vld [vmem:[#allocation3 + $0x28] sm:$0xff]
  %v5460 = vld [vmem:[#allocation3 + $0x30] sm:$0xff]
  %v5461 = vld [vmem:[#allocation3 + $0x38] sm:$0xff]
  %v5462 = vld [vmem:[#allocation3 + $0x40] sm:$0xff]
  %v5463 = vld [vmem:[#allocation3 + $0x48] sm:$0xff]
  %v5464 = vld [vmem:[#allocation3 + $0x50] sm:$0xff]
  %v5465 = vld [vmem:[#allocation3 + $0x58] sm:$0xff]
  %v5466 = vld [vmem:[#allocation3 + $0x60] sm:$0xff]
  %v5467 = vmul.f32 %v5454, %v859
  %v5468 = vmul.f32 %v5455, %v860
  %v5469 = vmul.f32 %v5456, %v861
  %v5470 = vmul.f32 %v5457, %v862
  %v5471 = vmul.f32 %v5458, %v863
  %v5472 = vmul.f32 %v5459, %v864
  %v5473 = vmul.f32 %v5460, %v865
  %v5474 = vmul.f32 %v5461, %v866
  %v5475 = vmul.f32 %v5462, %v867
  %v5476 = vmul.f32 %v5463, %v868
  %v5477 = vmul.f32 %v5464, %v869
  %v5478 = vmul.f32 %v5465, %v870
  %v5479 = vmul.f32 %v5466, %v871
  %v5480 = vld [vmem:[#allocation3 + $0x68] sm:$0xff]
  %v5481 = vmul.f32 %v5454, %v944
  %v5482 = vmul.f32 %v5455, %v970
  %v5483 = vmul.f32 %v5456, %v971
  %v5484 = vmul.f32 %v5457, %v972
  %v5485 = vmul.f32 %v5458, %v973
  %v5486 = vmul.f32 %v5459, %v974
  %v5487 = vmul.f32 %v5460, %v975
  %v5488 = vmul.f32 %v5461, %v976
  %v5489 = vmul.f32 %v5462, %v977
  %v5490 = vmul.f32 %v5463, %v978
  %v5491 = vmul.f32 %v5464, %v979
  %v5492 = vmul.f32 %v5465, %v980
  %v5493 = vmul.f32 %v5466, %v981
  %v5494 = vmul.f32 %v5480, %v968
  %5509 = vrot.lane.b32.xlu0 %v5481, 127
  %v5510 = vpop.permute.xlu0 %5509
  %5511 = vrot.lane.b32.xlu0 %v5482, 127
  %v5512 = vpop.permute.xlu0 %5511
  %5513 = vrot.lane.b32.xlu0 %v5483, 127
  %v5514 = vpop.permute.xlu0 %5513
  %5515 = vrot.lane.b32.xlu0 %v5484, 127
  %v5516 = vpop.permute.xlu0 %5515
  %5517 = vrot.lane.b32.xlu0 %v5485, 127
  %v5518 = vpop.permute.xlu0 %5517
  %5519 = vrot.lane.b32.xlu0 %v5486, 127
  %v5520 = vpop.permute.xlu0 %5519
  %5521 = vrot.lane.b32.xlu0 %v5487, 127
  %v5522 = vpop.permute.xlu0 %5521
  %5523 = vrot.lane.b32.xlu0 %v5488, 127
  %v5524 = vpop.permute.xlu0 %5523
  %5525 = vrot.lane.b32.xlu0 %v5489, 127
  %v5526 = vpop.permute.xlu0 %5525
  %5527 = vrot.lane.b32.xlu0 %v5490, 127
  %v5528 = vpop.permute.xlu0 %5527
  %5529 = vrot.lane.b32.xlu0 %v5491, 127
  %v5530 = vpop.permute.xlu0 %5529
  %5531 = vrot.lane.b32.xlu0 %v5492, 127
  %v5532 = vpop.permute.xlu0 %5531
  %5533 = vrot.lane.b32.xlu0 %v5493, 127
  %v5534 = vpop.permute.xlu0 %5533
  %5535 = vrot.lane.b32.xlu0 %v5494, 127
  %v5536 = vpop.permute.xlu0 %5535
  %v5537 = vsel %vm1070, %v5510, %v5512
  %v5538 = vsel %vm1070, %v5512, %v5514
  %v5539 = vsel %vm1070, %v5514, %v5516
  %v5540 = vsel %vm1070, %v5516, %v5518
  %v5541 = vsel %vm1070, %v5518, %v5520
  %v5542 = vsel %vm1070, %v5520, %v5522
  %v5543 = vsel %vm1070, %v5522, %v5524
  %v5544 = vsel %vm1070, %v5524, %v5526
  %v5545 = vsel %vm1070, %v5526, %v5528
  %v5546 = vsel %vm1070, %v5528, %v5530
  %v5547 = vsel %vm1070, %v5530, %v5532
  %v5548 = vsel %vm1070, %v5532, %v5534
  %v5549 = vsel %vm1070, %v5534, %v5536
  %v5563 = vadd.f32 %v5467, %v5537
  %v5564 = vadd.f32 %v5468, %v5538
  %v5565 = vadd.f32 %v5469, %v5539
  %v5566 = vadd.f32 %v5470, %v5540
  %v5567 = vadd.f32 %v5471, %v5541
  %v5568 = vadd.f32 %v5472, %v5542
  %v5569 = vadd.f32 %v5473, %v5543
  %v5570 = vadd.f32 %v5474, %v5544
  %v5571 = vadd.f32 %v5475, %v5545
  %v5572 = vadd.f32 %v5476, %v5546
  %v5573 = vadd.f32 %v5477, %v5547
  %v5574 = vadd.f32 %v5478, %v5548
  %v5575 = vadd.f32 %v5479, %v5549
  %v5576 = vmul.f32 %v5454, %v1137
  %v5577 = vmul.f32 %v5455, %v1163
  %v5578 = vmul.f32 %v5456, %v1164
  %v5579 = vmul.f32 %v5457, %v1165
  %v5580 = vmul.f32 %v5458, %v1166
  %v5581 = vmul.f32 %v5459, %v1167
  %v5582 = vmul.f32 %v5460, %v1168
  %v5583 = vmul.f32 %v5461, %v1169
  %v5584 = vmul.f32 %v5462, %v1170
  %v5585 = vmul.f32 %v5463, %v1171
  %v5586 = vmul.f32 %v5464, %v1172
  %v5587 = vmul.f32 %v5465, %v1173
  %v5588 = vmul.f32 %v5466, %v1174
  %v5589 = vmul.f32 %v5480, %v1161
  %5604 = vrot.lane.b32.xlu0 %v5576, 126
  %v5605 = vpop.permute.xlu0 %5604
  %5606 = vrot.lane.b32.xlu0 %v5577, 126
  %v5607 = vpop.permute.xlu0 %5606
  %5608 = vrot.lane.b32.xlu0 %v5578, 126
  %v5609 = vpop.permute.xlu0 %5608
  %5610 = vrot.lane.b32.xlu0 %v5579, 126
  %v5611 = vpop.permute.xlu0 %5610
  %5612 = vrot.lane.b32.xlu0 %v5580, 126
  %v5613 = vpop.permute.xlu0 %5612
  %5614 = vrot.lane.b32.xlu0 %v5581, 126
  %v5615 = vpop.permute.xlu0 %5614
  %5616 = vrot.lane.b32.xlu0 %v5582, 126
  %v5617 = vpop.permute.xlu0 %5616
  %5618 = vrot.lane.b32.xlu0 %v5583, 126
  %v5619 = vpop.permute.xlu0 %5618
  %5620 = vrot.lane.b32.xlu0 %v5584, 126
  %v5621 = vpop.permute.xlu0 %5620
  %5622 = vrot.lane.b32.xlu0 %v5585, 126
  %v5623 = vpop.permute.xlu0 %5622
  %5624 = vrot.lane.b32.xlu0 %v5586, 126
  %v5625 = vpop.permute.xlu0 %5624
  %5626 = vrot.lane.b32.xlu0 %v5587, 126
  %v5627 = vpop.permute.xlu0 %5626
  %5628 = vrot.lane.b32.xlu0 %v5588, 126
  %v5629 = vpop.permute.xlu0 %5628
  %5630 = vrot.lane.b32.xlu0 %v5589, 126
  %v5631 = vpop.permute.xlu0 %5630
  %v5632 = vsel %vm1263, %v5605, %v5607
  %v5633 = vsel %vm1263, %v5607, %v5609
  %v5634 = vsel %vm1263, %v5609, %v5611
  %v5635 = vsel %vm1263, %v5611, %v5613
  %v5636 = vsel %vm1263, %v5613, %v5615
  %v5637 = vsel %vm1263, %v5615, %v5617
  %v5638 = vsel %vm1263, %v5617, %v5619
  %v5639 = vsel %vm1263, %v5619, %v5621
  %v5640 = vsel %vm1263, %v5621, %v5623
  %v5641 = vsel %vm1263, %v5623, %v5625
  %v5642 = vsel %vm1263, %v5625, %v5627
  %v5643 = vsel %vm1263, %v5627, %v5629
  %v5644 = vsel %vm1263, %v5629, %v5631
  %v5658 = vadd.f32 %v5563, %v5632
  %v5659 = vadd.f32 %v5564, %v5633
  %v5660 = vadd.f32 %v5565, %v5634
  %v5661 = vadd.f32 %v5566, %v5635
  %v5662 = vadd.f32 %v5567, %v5636
  %v5663 = vadd.f32 %v5568, %v5637
  %v5664 = vadd.f32 %v5569, %v5638
  %v5665 = vadd.f32 %v5570, %v5639
  %v5666 = vadd.f32 %v5571, %v5640
  %v5667 = vadd.f32 %v5572, %v5641
  %v5668 = vadd.f32 %v5573, %v5642
  %v5669 = vadd.f32 %v5574, %v5643
  %v5670 = vadd.f32 %v5575, %v5644
  %v5671 = vmul.f32 %v5454, %v1330
  %v5672 = vmul.f32 %v5455, %v1356
  %v5673 = vmul.f32 %v5456, %v1357
  %v5674 = vmul.f32 %v5457, %v1358
  %v5675 = vmul.f32 %v5458, %v1359
  %v5676 = vmul.f32 %v5459, %v1360
  %v5677 = vmul.f32 %v5460, %v1361
  %v5678 = vmul.f32 %v5461, %v1362
  %v5679 = vmul.f32 %v5462, %v1363
  %v5680 = vmul.f32 %v5463, %v1364
  %v5681 = vmul.f32 %v5464, %v1365
  %v5682 = vmul.f32 %v5465, %v1366
  %v5683 = vmul.f32 %v5466, %v1367
  %v5684 = vmul.f32 %v5480, %v1354
  %5699 = vrot.lane.b32.xlu0 %v5671, 100
  %v5700 = vpop.permute.xlu0 %5699
  %5701 = vrot.lane.b32.xlu0 %v5672, 100
  %v5702 = vpop.permute.xlu0 %5701
  %5703 = vrot.lane.b32.xlu0 %v5673, 100
  %v5704 = vpop.permute.xlu0 %5703
  %5705 = vrot.lane.b32.xlu0 %v5674, 100
  %v5706 = vpop.permute.xlu0 %5705
  %5707 = vrot.lane.b32.xlu0 %v5675, 100
  %v5708 = vpop.permute.xlu0 %5707
  %5709 = vrot.lane.b32.xlu0 %v5676, 100
  %v5710 = vpop.permute.xlu0 %5709
  %5711 = vrot.lane.b32.xlu0 %v5677, 100
  %v5712 = vpop.permute.xlu0 %5711
  %5713 = vrot.lane.b32.xlu0 %v5678, 100
  %v5714 = vpop.permute.xlu0 %5713
  %5715 = vrot.lane.b32.xlu0 %v5679, 100
  %v5716 = vpop.permute.xlu0 %5715
  %5717 = vrot.lane.b32.xlu0 %v5680, 100
  %v5718 = vpop.permute.xlu0 %5717
  %5719 = vrot.lane.b32.xlu0 %v5681, 100
  %v5720 = vpop.permute.xlu0 %5719
  %5721 = vrot.lane.b32.xlu0 %v5682, 100
  %v5722 = vpop.permute.xlu0 %5721
  %5723 = vrot.lane.b32.xlu0 %v5683, 100
  %v5724 = vpop.permute.xlu0 %5723
  %5725 = vrot.lane.b32.xlu0 %v5684, 100
  %v5726 = vpop.permute.xlu0 %5725
  %v5727 = vsel %vm1456, %v5700, %v5702
  %v5728 = vsel %vm1456, %v5702, %v5704
  %v5729 = vsel %vm1456, %v5704, %v5706
  %v5730 = vsel %vm1456, %v5706, %v5708
  %v5731 = vsel %vm1456, %v5708, %v5710
  %v5732 = vsel %vm1456, %v5710, %v5712
  %v5733 = vsel %vm1456, %v5712, %v5714
  %v5734 = vsel %vm1456, %v5714, %v5716
  %v5735 = vsel %vm1456, %v5716, %v5718
  %v5736 = vsel %vm1456, %v5718, %v5720
  %v5737 = vsel %vm1456, %v5720, %v5722
  %v5738 = vsel %vm1456, %v5722, %v5724
  %v5739 = vsel %vm1456, %v5724, %v5726
  %v5753 = vadd.f32 %v5658, %v5727
  %v5754 = vadd.f32 %v5659, %v5728
  %v5755 = vadd.f32 %v5660, %v5729
  %v5756 = vadd.f32 %v5661, %v5730
  %v5757 = vadd.f32 %v5662, %v5731
  %v5758 = vadd.f32 %v5663, %v5732
  %v5759 = vadd.f32 %v5664, %v5733
  %v5760 = vadd.f32 %v5665, %v5734
  %v5761 = vadd.f32 %v5666, %v5735
  %v5762 = vadd.f32 %v5667, %v5736
  %v5763 = vadd.f32 %v5668, %v5737
  %v5764 = vadd.f32 %v5669, %v5738
  %v5765 = vadd.f32 %v5670, %v5739
  %v5766 = vmul.f32 %v5454, %v1523
  %v5767 = vmul.f32 %v5455, %v1548
  %v5768 = vmul.f32 %v5456, %v1549
  %v5769 = vmul.f32 %v5457, %v1550
  %v5770 = vmul.f32 %v5458, %v1551
  %v5771 = vmul.f32 %v5459, %v1552
  %v5772 = vmul.f32 %v5460, %v1553
  %v5773 = vmul.f32 %v5461, %v1554
  %v5774 = vmul.f32 %v5462, %v1555
  %v5775 = vmul.f32 %v5463, %v1556
  %v5776 = vmul.f32 %v5464, %v1557
  %v5777 = vmul.f32 %v5465, %v1558
  %v5778 = vmul.f32 %v5466, %v1559
  %v5779 = vmul.f32 %v5480, %v1547
  %5794 = vrot.lane.b32.xlu0 %v5766, 99
  %v5795 = vpop.permute.xlu0 %5794
  %5796 = vrot.lane.b32.xlu0 %v5767, 99
  %v5797 = vpop.permute.xlu0 %5796
  %5798 = vrot.lane.b32.xlu0 %v5768, 99
  %v5799 = vpop.permute.xlu0 %5798
  %5800 = vrot.lane.b32.xlu0 %v5769, 99
  %v5801 = vpop.permute.xlu0 %5800
  %5802 = vrot.lane.b32.xlu0 %v5770, 99
  %v5803 = vpop.permute.xlu0 %5802
  %5804 = vrot.lane.b32.xlu0 %v5771, 99
  %v5805 = vpop.permute.xlu0 %5804
  %5806 = vrot.lane.b32.xlu0 %v5772, 99
  %v5807 = vpop.permute.xlu0 %5806
  %5808 = vrot.lane.b32.xlu0 %v5773, 99
  %v5809 = vpop.permute.xlu0 %5808
  %5810 = vrot.lane.b32.xlu0 %v5774, 99
  %v5811 = vpop.permute.xlu0 %5810
  %5812 = vrot.lane.b32.xlu0 %v5775, 99
  %v5813 = vpop.permute.xlu0 %5812
  %5814 = vrot.lane.b32.xlu0 %v5776, 99
  %v5815 = vpop.permute.xlu0 %5814
  %5816 = vrot.lane.b32.xlu0 %v5777, 99
  %v5817 = vpop.permute.xlu0 %5816
  %5818 = vrot.lane.b32.xlu0 %v5778, 99
  %v5819 = vpop.permute.xlu0 %5818
  %5820 = vrot.lane.b32.xlu0 %v5779, 99
  %v5821 = vpop.permute.xlu0 %5820
  %v5822 = vsel %vm1648, %v5795, %v5797
  %v5823 = vsel %vm1648, %v5797, %v5799
  %v5824 = vsel %vm1648, %v5799, %v5801
  %v5825 = vsel %vm1648, %v5801, %v5803
  %v5826 = vsel %vm1648, %v5803, %v5805
  %v5827 = vsel %vm1648, %v5805, %v5807
  %v5828 = vsel %vm1648, %v5807, %v5809
  %v5829 = vsel %vm1648, %v5809, %v5811
  %v5830 = vsel %vm1648, %v5811, %v5813
  %v5831 = vsel %vm1648, %v5813, %v5815
  %v5832 = vsel %vm1648, %v5815, %v5817
  %v5833 = vsel %vm1648, %v5817, %v5819
  %v5834 = vsel %vm1648, %v5819, %v5821
  %v5848 = vadd.f32 %v5753, %v5822
  %v5849 = vadd.f32 %v5754, %v5823
  %v5850 = vadd.f32 %v5755, %v5824
  %v5851 = vadd.f32 %v5756, %v5825
  %v5852 = vadd.f32 %v5757, %v5826
  %v5853 = vadd.f32 %v5758, %v5827
  %v5854 = vadd.f32 %v5759, %v5828
  %v5855 = vadd.f32 %v5760, %v5829
  %v5856 = vadd.f32 %v5761, %v5830
  %v5857 = vadd.f32 %v5762, %v5831
  %v5858 = vadd.f32 %v5763, %v5832
  %v5859 = vadd.f32 %v5764, %v5833
  %v5860 = vadd.f32 %v5765, %v5834
  %v5861 = vmul.f32 %v5454, %v1715
  %v5862 = vmul.f32 %v5455, %v1741
  %v5863 = vmul.f32 %v5456, %v1742
  %v5864 = vmul.f32 %v5457, %v1743
  %v5865 = vmul.f32 %v5458, %v1744
  %v5866 = vmul.f32 %v5459, %v1745
  %v5867 = vmul.f32 %v5460, %v1746
  %v5868 = vmul.f32 %v5461, %v1747
  %v5869 = vmul.f32 %v5462, %v1748
  %v5870 = vmul.f32 %v5463, %v1749
  %v5871 = vmul.f32 %v5464, %v1750
  %v5872 = vmul.f32 %v5465, %v1751
  %v5873 = vmul.f32 %v5466, %v1752
  %v5874 = vmul.f32 %v5480, %v1739
  %5889 = vrot.lane.b32.xlu0 %v5861, 98
  %v5890 = vpop.permute.xlu0 %5889
  %5891 = vrot.lane.b32.xlu0 %v5862, 98
  %v5892 = vpop.permute.xlu0 %5891
  %5893 = vrot.lane.b32.xlu0 %v5863, 98
  %v5894 = vpop.permute.xlu0 %5893
  %5895 = vrot.lane.b32.xlu0 %v5864, 98
  %v5896 = vpop.permute.xlu0 %5895
  %5897 = vrot.lane.b32.xlu0 %v5865, 98
  %v5898 = vpop.permute.xlu0 %5897
  %5899 = vrot.lane.b32.xlu0 %v5866, 98
  %v5900 = vpop.permute.xlu0 %5899
  %5901 = vrot.lane.b32.xlu0 %v5867, 98
  %v5902 = vpop.permute.xlu0 %5901
  %5903 = vrot.lane.b32.xlu0 %v5868, 98
  %v5904 = vpop.permute.xlu0 %5903
  %5905 = vrot.lane.b32.xlu0 %v5869, 98
  %v5906 = vpop.permute.xlu0 %5905
  %5907 = vrot.lane.b32.xlu0 %v5870, 98
  %v5908 = vpop.permute.xlu0 %5907
  %5909 = vrot.lane.b32.xlu0 %v5871, 98
  %v5910 = vpop.permute.xlu0 %5909
  %5911 = vrot.lane.b32.xlu0 %v5872, 98
  %v5912 = vpop.permute.xlu0 %5911
  %5913 = vrot.lane.b32.xlu0 %v5873, 98
  %v5914 = vpop.permute.xlu0 %5913
  %5915 = vrot.lane.b32.xlu0 %v5874, 98
  %v5916 = vpop.permute.xlu0 %5915
  %v5917 = vsel %vm1841, %v5890, %v5892
  %v5918 = vsel %vm1841, %v5892, %v5894
  %v5919 = vsel %vm1841, %v5894, %v5896
  %v5920 = vsel %vm1841, %v5896, %v5898
  %v5921 = vsel %vm1841, %v5898, %v5900
  %v5922 = vsel %vm1841, %v5900, %v5902
  %v5923 = vsel %vm1841, %v5902, %v5904
  %v5924 = vsel %vm1841, %v5904, %v5906
  %v5925 = vsel %vm1841, %v5906, %v5908
  %v5926 = vsel %vm1841, %v5908, %v5910
  %v5927 = vsel %vm1841, %v5910, %v5912
  %v5928 = vsel %vm1841, %v5912, %v5914
  %v5929 = vsel %vm1841, %v5914, %v5916
  %v5943 = vadd.f32 %v5848, %v5917
  %v5944 = vadd.f32 %v5849, %v5918
  %v5945 = vadd.f32 %v5850, %v5919
  %v5946 = vadd.f32 %v5851, %v5920
  %v5947 = vadd.f32 %v5852, %v5921
  %v5948 = vadd.f32 %v5853, %v5922
  %v5949 = vadd.f32 %v5854, %v5923
  %v5950 = vadd.f32 %v5855, %v5924
  %v5951 = vadd.f32 %v5856, %v5925
  %v5952 = vadd.f32 %v5857, %v5926
  %v5953 = vadd.f32 %v5858, %v5927
  %v5954 = vadd.f32 %v5859, %v5928
  %v5955 = vadd.f32 %v5860, %v5929
  %v5956 = vmul.f32 %v5454, %v1908
  %v5957 = vmul.f32 %v5455, %v1934
  %v5958 = vmul.f32 %v5456, %v1935
  %v5959 = vmul.f32 %v5457, %v1936
  %v5960 = vmul.f32 %v5458, %v1937
  %v5961 = vmul.f32 %v5459, %v1938
  %v5962 = vmul.f32 %v5460, %v1939
  %v5963 = vmul.f32 %v5461, %v1940
  %v5964 = vmul.f32 %v5462, %v1941
  %v5965 = vmul.f32 %v5463, %v1942
  %v5966 = vmul.f32 %v5464, %v1943
  %v5967 = vmul.f32 %v5465, %v1944
  %v5968 = vmul.f32 %v5466, %v1945
  %v5969 = vmul.f32 %v5480, %v1932
  %5984 = vrot.lane.b32.xlu0 %v5956, 72
  %v5985 = vpop.permute.xlu0 %5984
  %5986 = vrot.lane.b32.xlu0 %v5957, 72
  %v5987 = vpop.permute.xlu0 %5986
  %5988 = vrot.lane.b32.xlu0 %v5958, 72
  %v5989 = vpop.permute.xlu0 %5988
  %5990 = vrot.lane.b32.xlu0 %v5959, 72
  %v5991 = vpop.permute.xlu0 %5990
  %5992 = vrot.lane.b32.xlu0 %v5960, 72
  %v5993 = vpop.permute.xlu0 %5992
  %5994 = vrot.lane.b32.xlu0 %v5961, 72
  %v5995 = vpop.permute.xlu0 %5994
  %5996 = vrot.lane.b32.xlu0 %v5962, 72
  %v5997 = vpop.permute.xlu0 %5996
  %5998 = vrot.lane.b32.xlu0 %v5963, 72
  %v5999 = vpop.permute.xlu0 %5998
  %6000 = vrot.lane.b32.xlu0 %v5964, 72
  %v6001 = vpop.permute.xlu0 %6000
  %6002 = vrot.lane.b32.xlu0 %v5965, 72
  %v6003 = vpop.permute.xlu0 %6002
  %6004 = vrot.lane.b32.xlu0 %v5966, 72
  %v6005 = vpop.permute.xlu0 %6004
  %6006 = vrot.lane.b32.xlu0 %v5967, 72
  %v6007 = vpop.permute.xlu0 %6006
  %6008 = vrot.lane.b32.xlu0 %v5968, 72
  %v6009 = vpop.permute.xlu0 %6008
  %6010 = vrot.lane.b32.xlu0 %v5969, 72
  %v6011 = vpop.permute.xlu0 %6010
  %v6012 = vsel %vm2034, %v5985, %v5987
  %v6013 = vsel %vm2034, %v5987, %v5989
  %v6014 = vsel %vm2034, %v5989, %v5991
  %v6015 = vsel %vm2034, %v5991, %v5993
  %v6016 = vsel %vm2034, %v5993, %v5995
  %v6017 = vsel %vm2034, %v5995, %v5997
  %v6018 = vsel %vm2034, %v5997, %v5999
  %v6019 = vsel %vm2034, %v5999, %v6001
  %v6020 = vsel %vm2034, %v6001, %v6003
  %v6021 = vsel %vm2034, %v6003, %v6005
  %v6022 = vsel %vm2034, %v6005, %v6007
  %v6023 = vsel %vm2034, %v6007, %v6009
  %v6024 = vsel %vm2034, %v6009, %v6011
  %v6038 = vadd.f32 %v5943, %v6012
  %v6039 = vadd.f32 %v5944, %v6013
  %v6040 = vadd.f32 %v5945, %v6014
  %v6041 = vadd.f32 %v5946, %v6015
  %v6042 = vadd.f32 %v5947, %v6016
  %v6043 = vadd.f32 %v5948, %v6017
  %v6044 = vadd.f32 %v5949, %v6018
  %v6045 = vadd.f32 %v5950, %v6019
  %v6046 = vadd.f32 %v5951, %v6020
  %v6047 = vadd.f32 %v5952, %v6021
  %v6048 = vadd.f32 %v5953, %v6022
  %v6049 = vadd.f32 %v5954, %v6023
  %v6050 = vadd.f32 %v5955, %v6024
  %v6051 = vmul.f32 %v5454, %v2101
  %v6052 = vmul.f32 %v5455, %v2127
  %v6053 = vmul.f32 %v5456, %v2128
  %v6054 = vmul.f32 %v5457, %v2129
  %v6055 = vmul.f32 %v5458, %v2130
  %v6056 = vmul.f32 %v5459, %v2131
  %v6057 = vmul.f32 %v5460, %v2132
  %v6058 = vmul.f32 %v5461, %v2133
  %v6059 = vmul.f32 %v5462, %v2134
  %v6060 = vmul.f32 %v5463, %v2135
  %v6061 = vmul.f32 %v5464, %v2136
  %v6062 = vmul.f32 %v5465, %v2137
  %v6063 = vmul.f32 %v5466, %v2138
  %v6064 = vmul.f32 %v5480, %v2125
  %6079 = vrot.lane.b32.xlu0 %v6051, 71
  %v6080 = vpop.permute.xlu0 %6079
  %6081 = vrot.lane.b32.xlu0 %v6052, 71
  %v6082 = vpop.permute.xlu0 %6081
  %6083 = vrot.lane.b32.xlu0 %v6053, 71
  %v6084 = vpop.permute.xlu0 %6083
  %6085 = vrot.lane.b32.xlu0 %v6054, 71
  %v6086 = vpop.permute.xlu0 %6085
  %6087 = vrot.lane.b32.xlu0 %v6055, 71
  %v6088 = vpop.permute.xlu0 %6087
  %6089 = vrot.lane.b32.xlu0 %v6056, 71
  %v6090 = vpop.permute.xlu0 %6089
  %6091 = vrot.lane.b32.xlu0 %v6057, 71
  %v6092 = vpop.permute.xlu0 %6091
  %6093 = vrot.lane.b32.xlu0 %v6058, 71
  %v6094 = vpop.permute.xlu0 %6093
  %6095 = vrot.lane.b32.xlu0 %v6059, 71
  %v6096 = vpop.permute.xlu0 %6095
  %6097 = vrot.lane.b32.xlu0 %v6060, 71
  %v6098 = vpop.permute.xlu0 %6097
  %6099 = vrot.lane.b32.xlu0 %v6061, 71
  %v6100 = vpop.permute.xlu0 %6099
  %6101 = vrot.lane.b32.xlu0 %v6062, 71
  %v6102 = vpop.permute.xlu0 %6101
  %6103 = vrot.lane.b32.xlu0 %v6063, 71
  %v6104 = vpop.permute.xlu0 %6103
  %6105 = vrot.lane.b32.xlu0 %v6064, 71
  %v6106 = vpop.permute.xlu0 %6105
  %v6107 = vsel %vm2227, %v6080, %v6082
  %v6108 = vsel %vm2227, %v6082, %v6084
  %v6109 = vsel %vm2227, %v6084, %v6086
  %v6110 = vsel %vm2227, %v6086, %v6088
  %v6111 = vsel %vm2227, %v6088, %v6090
  %v6112 = vsel %vm2227, %v6090, %v6092
  %v6113 = vsel %vm2227, %v6092, %v6094
  %v6114 = vsel %vm2227, %v6094, %v6096
  %v6115 = vsel %vm2227, %v6096, %v6098
  %v6116 = vsel %vm2227, %v6098, %v6100
  %v6117 = vsel %vm2227, %v6100, %v6102
  %v6118 = vsel %vm2227, %v6102, %v6104
  %v6119 = vsel %vm2227, %v6104, %v6106
  %v6133 = vadd.f32 %v6038, %v6107
  %v6134 = vadd.f32 %v6039, %v6108
  %v6135 = vadd.f32 %v6040, %v6109
  %v6136 = vadd.f32 %v6041, %v6110
  %v6137 = vadd.f32 %v6042, %v6111
  %v6138 = vadd.f32 %v6043, %v6112
  %v6139 = vadd.f32 %v6044, %v6113
  %v6140 = vadd.f32 %v6045, %v6114
  %v6141 = vadd.f32 %v6046, %v6115
  %v6142 = vadd.f32 %v6047, %v6116
  %v6143 = vadd.f32 %v6048, %v6117
  %v6144 = vadd.f32 %v6049, %v6118
  %v6145 = vadd.f32 %v6050, %v6119
  %v6146 = vmul.f32 %v5454, %v2294
  %v6147 = vmul.f32 %v5455, %v2320
  %v6148 = vmul.f32 %v5456, %v2321
  %v6149 = vmul.f32 %v5457, %v2322
  %v6150 = vmul.f32 %v5458, %v2323
  %v6151 = vmul.f32 %v5459, %v2324
  %v6152 = vmul.f32 %v5460, %v2325
  %v6153 = vmul.f32 %v5461, %v2326
  %v6154 = vmul.f32 %v5462, %v2327
  %v6155 = vmul.f32 %v5463, %v2328
  %v6156 = vmul.f32 %v5464, %v2329
  %v6157 = vmul.f32 %v5465, %v2330
  %v6158 = vmul.f32 %v5466, %v2331
  %v6159 = vmul.f32 %v5480, %v2318
  %6174 = vrot.lane.b32.xlu0 %v6146, 70
  %v6175 = vpop.permute.xlu0 %6174
  %6176 = vrot.lane.b32.xlu0 %v6147, 70
  %v6177 = vpop.permute.xlu0 %6176
  %6178 = vrot.lane.b32.xlu0 %v6148, 70
  %v6179 = vpop.permute.xlu0 %6178
  %6180 = vrot.lane.b32.xlu0 %v6149, 70
  %v6181 = vpop.permute.xlu0 %6180
  %6182 = vrot.lane.b32.xlu0 %v6150, 70
  %v6183 = vpop.permute.xlu0 %6182
  %6184 = vrot.lane.b32.xlu0 %v6151, 70
  %v6185 = vpop.permute.xlu0 %6184
  %6186 = vrot.lane.b32.xlu0 %v6152, 70
  %v6187 = vpop.permute.xlu0 %6186
  %6188 = vrot.lane.b32.xlu0 %v6153, 70
  %v6189 = vpop.permute.xlu0 %6188
  %6190 = vrot.lane.b32.xlu0 %v6154, 70
  %v6191 = vpop.permute.xlu0 %6190
  %6192 = vrot.lane.b32.xlu0 %v6155, 70
  %v6193 = vpop.permute.xlu0 %6192
  %6194 = vrot.lane.b32.xlu0 %v6156, 70
  %v6195 = vpop.permute.xlu0 %6194
  %6196 = vrot.lane.b32.xlu0 %v6157, 70
  %v6197 = vpop.permute.xlu0 %6196
  %6198 = vrot.lane.b32.xlu0 %v6158, 70
  %v6199 = vpop.permute.xlu0 %6198
  %6200 = vrot.lane.b32.xlu0 %v6159, 70
  %v6201 = vpop.permute.xlu0 %6200
  %v6202 = vsel %vm2420, %v6175, %v6177
  %v6203 = vsel %vm2420, %v6177, %v6179
  %v6204 = vsel %vm2420, %v6179, %v6181
  %v6205 = vsel %vm2420, %v6181, %v6183
  %v6206 = vsel %vm2420, %v6183, %v6185
  %v6207 = vsel %vm2420, %v6185, %v6187
  %v6208 = vsel %vm2420, %v6187, %v6189
  %v6209 = vsel %vm2420, %v6189, %v6191
  %v6210 = vsel %vm2420, %v6191, %v6193
  %v6211 = vsel %vm2420, %v6193, %v6195
  %v6212 = vsel %vm2420, %v6195, %v6197
  %v6213 = vsel %vm2420, %v6197, %v6199
  %v6214 = vsel %vm2420, %v6199, %v6201
  %v6228 = vadd.f32 %v6133, %v6202
  %v6229 = vadd.f32 %v6134, %v6203
  %v6230 = vadd.f32 %v6135, %v6204
  %v6231 = vadd.f32 %v6136, %v6205
  %v6232 = vadd.f32 %v6137, %v6206
  %v6233 = vadd.f32 %v6138, %v6207
  %v6234 = vadd.f32 %v6139, %v6208
  %v6235 = vadd.f32 %v6140, %v6209
  %v6236 = vadd.f32 %v6141, %v6210
  %v6237 = vadd.f32 %v6142, %v6211
  %v6238 = vadd.f32 %v6143, %v6212
  %v6239 = vadd.f32 %v6144, %v6213
  %v6240 = vadd.f32 %v6145, %v6214
  %v6241 = vmul.f32 %v6228, 0.11111111
  %v6242 = vmul.f32 %v6229, 0.11111111
  %v6243 = vmul.f32 %v6230, 0.11111111
  %v6244 = vmul.f32 %v6231, 0.11111111
  %v6245 = vmul.f32 %v6232, 0.11111111
  %v6246 = vmul.f32 %v6233, 0.11111111
  %v6247 = vmul.f32 %v6234, 0.11111111
  %v6248 = vmul.f32 %v6235, 0.11111111
  %v6249 = vmul.f32 %v6236, 0.11111111
  %v6250 = vmul.f32 %v6237, 0.11111111
  %v6251 = vmul.f32 %v6238, 0.11111111
  %v6252 = vmul.f32 %v6239, 0.11111111
  %v6253 = vmul.f32 %v6240, 0.11111111
  %v6254 = vpack.c.bf16 %v6241, %v6241
  %v6255 = vpack.c.bf16 %v6242, %v6242
  %v6256 = vpack.c.bf16 %v6243, %v6243
  %v6257 = vpack.c.bf16 %v6244, %v6244
  %v6258 = vpack.c.bf16 %v6245, %v6245
  %v6259 = vpack.c.bf16 %v6246, %v6246
  %v6260 = vpack.c.bf16 %v6247, %v6247
  %v6261 = vpack.c.bf16 %v6248, %v6248
  %v6262 = vpack.c.bf16 %v6249, %v6249
  %v6263 = vpack.c.bf16 %v6250, %v6250
  %v6264 = vpack.c.bf16 %v6251, %v6251
  %v6265 = vpack.c.bf16 %v6252, %v6252
  %v6266 = vpack.c.bf16 %v6253, %v6253
  %6267 = vmatpush.bf16.msra.mxu0 %v3755
  %6268 = vmatpush.bf16.msra.mxu0 %v3751
  %6269 = vmatpush.bf16.msra.mxu0 %v3747
  %6270 = vmatpush.bf16.msra.mxu0 %v3743
  %6271 = vmatpush.bf16.msra.mxu0 %v3739
  %6272 = vmatpush.bf16.msra.mxu0 %v3735
  %6273 = vmatpush.bf16.msra.mxu0 %v3731
  %6274 = vmatpush.bf16.msra.mxu0 %v3727
  %6275 = vmatmul.bf16.gmra.mxu0 %v6254
  %v6276 = vpop.f32.mrf.mxu0
  %v6277 = vadd.f32 0.0, %v6276
  %v6278 = vpop.f32.mrf.mxu0
  %6279 = vdwg.mxu0
  %6280 = vmatpush.bf16.msra.mxu0 %v3787
  %6281 = vmatpush.bf16.msra.mxu0 %v3783
  %6282 = vmatpush.bf16.msra.mxu0 %v3779
  %6283 = vmatpush.bf16.msra.mxu0 %v3775
  %6284 = vmatpush.bf16.msra.mxu0 %v3771
  %6285 = vmatpush.bf16.msra.mxu0 %v3767
  %6286 = vmatpush.bf16.msra.mxu0 %v3763
  %6287 = vmatpush.bf16.msra.mxu0 %v3759
  %6288 = vmatmul.bf16.gmra.mxu0 %v6255
  %v6289 = vpop.f32.mrf.mxu0
  %v6290 = vadd.f32 %v6277, %v6289
  %v6291 = vpop.f32.mrf.mxu0
  %6292 = vdwg.mxu0
  %6293 = vmatpush.bf16.msra.mxu0 %v3819
  %6294 = vmatpush.bf16.msra.mxu0 %v3815
  %6295 = vmatpush.bf16.msra.mxu0 %v3811
  %6296 = vmatpush.bf16.msra.mxu0 %v3807
  %6297 = vmatpush.bf16.msra.mxu0 %v3803
  %6298 = vmatpush.bf16.msra.mxu0 %v3799
  %6299 = vmatpush.bf16.msra.mxu0 %v3795
  %6300 = vmatpush.bf16.msra.mxu0 %v3791
  %6301 = vmatmul.bf16.gmra.mxu0 %v6256
  %v6302 = vpop.f32.mrf.mxu0
  %v6303 = vadd.f32 %v6290, %v6302
  %v6304 = vpop.f32.mrf.mxu0
  %6305 = vdwg.mxu0
  %6306 = vmatpush.bf16.msra.mxu0 %v3851
  %6307 = vmatpush.bf16.msra.mxu0 %v3847
  %6308 = vmatpush.bf16.msra.mxu0 %v3843
  %6309 = vmatpush.bf16.msra.mxu0 %v3839
  %6310 = vmatpush.bf16.msra.mxu0 %v3835
  %6311 = vmatpush.bf16.msra.mxu0 %v3831
  %6312 = vmatpush.bf16.msra.mxu0 %v3827
  %6313 = vmatpush.bf16.msra.mxu0 %v3823
  %6314 = vmatmul.bf16.gmra.mxu0 %v6257
  %v6315 = vpop.f32.mrf.mxu0
  %v6316 = vadd.f32 %v6303, %v6315
  %v6317 = vpop.f32.mrf.mxu0
  %6318 = vdwg.mxu0
  %6319 = vmatpush.bf16.msra.mxu0 %v3883
  %6320 = vmatpush.bf16.msra.mxu0 %v3879
  %6321 = vmatpush.bf16.msra.mxu0 %v3875
  %6322 = vmatpush.bf16.msra.mxu0 %v3871
  %6323 = vmatpush.bf16.msra.mxu0 %v3867
  %6324 = vmatpush.bf16.msra.mxu0 %v3863
  %6325 = vmatpush.bf16.msra.mxu0 %v3859
  %6326 = vmatpush.bf16.msra.mxu0 %v3855
  %6327 = vmatmul.bf16.gmra.mxu0 %v6258
  %v6328 = vpop.f32.mrf.mxu0
  %v6329 = vadd.f32 %v6316, %v6328
  %v6330 = vpop.f32.mrf.mxu0
  %6331 = vdwg.mxu0
  %6332 = vmatpush.bf16.msra.mxu0 %v3915
  %6333 = vmatpush.bf16.msra.mxu0 %v3911
  %6334 = vmatpush.bf16.msra.mxu0 %v3907
  %6335 = vmatpush.bf16.msra.mxu0 %v3903
  %6336 = vmatpush.bf16.msra.mxu0 %v3899
  %6337 = vmatpush.bf16.msra.mxu0 %v3895
  %6338 = vmatpush.bf16.msra.mxu0 %v3891
  %6339 = vmatpush.bf16.msra.mxu0 %v3887
  %6340 = vmatmul.bf16.gmra.mxu0 %v6259
  %v6341 = vpop.f32.mrf.mxu0
  %v6342 = vadd.f32 %v6329, %v6341
  %v6343 = vpop.f32.mrf.mxu0
  %6344 = vdwg.mxu0
  %6345 = vmatpush.bf16.msra.mxu0 %v3947
  %6346 = vmatpush.bf16.msra.mxu0 %v3943
  %6347 = vmatpush.bf16.msra.mxu0 %v3939
  %6348 = vmatpush.bf16.msra.mxu0 %v3935
  %6349 = vmatpush.bf16.msra.mxu0 %v3931
  %6350 = vmatpush.bf16.msra.mxu0 %v3927
  %6351 = vmatpush.bf16.msra.mxu0 %v3923
  %6352 = vmatpush.bf16.msra.mxu0 %v3919
  %6353 = vmatmul.bf16.gmra.mxu0 %v6260
  %v6354 = vpop.f32.mrf.mxu0
  %v6355 = vadd.f32 %v6342, %v6354
  %v6356 = vpop.f32.mrf.mxu0
  %6357 = vdwg.mxu0
  %6358 = vmatpush.bf16.msra.mxu0 %v3979
  %6359 = vmatpush.bf16.msra.mxu0 %v3975
  %6360 = vmatpush.bf16.msra.mxu0 %v3971
  %6361 = vmatpush.bf16.msra.mxu0 %v3967
  %6362 = vmatpush.bf16.msra.mxu0 %v3963
  %6363 = vmatpush.bf16.msra.mxu0 %v3959
  %6364 = vmatpush.bf16.msra.mxu0 %v3955
  %6365 = vmatpush.bf16.msra.mxu0 %v3951
  %6366 = vmatmul.bf16.gmra.mxu0 %v6261
  %v6367 = vpop.f32.mrf.mxu0
  %v6368 = vadd.f32 %v6355, %v6367
  %v6369 = vpop.f32.mrf.mxu0
  %6370 = vdwg.mxu0
  %6371 = vmatpush.bf16.msra.mxu0 %v4011
  %6372 = vmatpush.bf16.msra.mxu0 %v4007
  %6373 = vmatpush.bf16.msra.mxu0 %v4003
  %6374 = vmatpush.bf16.msra.mxu0 %v3999
  %6375 = vmatpush.bf16.msra.mxu0 %v3995
  %6376 = vmatpush.bf16.msra.mxu0 %v3991
  %6377 = vmatpush.bf16.msra.mxu0 %v3987
  %6378 = vmatpush.bf16.msra.mxu0 %v3983
  %6379 = vmatmul.bf16.gmra.mxu0 %v6262
  %v6380 = vpop.f32.mrf.mxu0
  %v6381 = vadd.f32 %v6368, %v6380
  %v6382 = vpop.f32.mrf.mxu0
  %6383 = vdwg.mxu0
  %6384 = vmatpush.bf16.msra.mxu0 %v4043
  %6385 = vmatpush.bf16.msra.mxu0 %v4039
  %6386 = vmatpush.bf16.msra.mxu0 %v4035
  %6387 = vmatpush.bf16.msra.mxu0 %v4031
  %6388 = vmatpush.bf16.msra.mxu0 %v4027
  %6389 = vmatpush.bf16.msra.mxu0 %v4023
  %6390 = vmatpush.bf16.msra.mxu0 %v4019
  %6391 = vmatpush.bf16.msra.mxu0 %v4015
  %6392 = vmatmul.bf16.gmra.mxu0 %v6263
  %v6393 = vpop.f32.mrf.mxu0
  %v6394 = vadd.f32 %v6381, %v6393
  %v6395 = vpop.f32.mrf.mxu0
  %6396 = vdwg.mxu0
  %6397 = vmatpush.bf16.msra.mxu0 %v4075
  %6398 = vmatpush.bf16.msra.mxu0 %v4071
  %6399 = vmatpush.bf16.msra.mxu0 %v4067
  %6400 = vmatpush.bf16.msra.mxu0 %v4063
  %6401 = vmatpush.bf16.msra.mxu0 %v4059
  %6402 = vmatpush.bf16.msra.mxu0 %v4055
  %6403 = vmatpush.bf16.msra.mxu0 %v4051
  %6404 = vmatpush.bf16.msra.mxu0 %v4047
  %6405 = vmatmul.bf16.gmra.mxu0 %v6264
  %v6406 = vpop.f32.mrf.mxu0
  %v6407 = vadd.f32 %v6394, %v6406
  %v6408 = vpop.f32.mrf.mxu0
  %6409 = vdwg.mxu0
  %6410 = vmatpush.bf16.msra.mxu0 %v4107
  %6411 = vmatpush.bf16.msra.mxu0 %v4103
  %6412 = vmatpush.bf16.msra.mxu0 %v4099
  %6413 = vmatpush.bf16.msra.mxu0 %v4095
  %6414 = vmatpush.bf16.msra.mxu0 %v4091
  %6415 = vmatpush.bf16.msra.mxu0 %v4087
  %6416 = vmatpush.bf16.msra.mxu0 %v4083
  %6417 = vmatpush.bf16.msra.mxu0 %v4079
  %6418 = vmatmul.bf16.gmra.mxu0 %v6265
  %v6419 = vpop.f32.mrf.mxu0
  %v6420 = vadd.f32 %v6407, %v6419
  %v6421 = vpop.f32.mrf.mxu0
  %6422 = vdwg.mxu0
  %6423 = vmatpush.bf16.msra.mxu0 %v4139
  %6424 = vmatpush.bf16.msra.mxu0 %v4135
  %6425 = vmatpush.bf16.msra.mxu0 %v4131
  %6426 = vmatpush.bf16.msra.mxu0 %v4127
  %6427 = vmatpush.bf16.msra.mxu0 %v4123
  %6428 = vmatpush.bf16.msra.mxu0 %v4119
  %6429 = vmatpush.bf16.msra.mxu0 %v4115
  %6430 = vmatpush.bf16.msra.mxu0 %v4111
  %6431 = vmatmul.bf16.gmra.mxu0 %v6266
  %v6432 = vpop.f32.mrf.mxu0
  %v6433 = vadd.f32 %v6420, %v6432
  %v6434 = vpop.f32.mrf.mxu0
  %6435 = vdwg.mxu0
  %6436 = vmatpush.bf16.msra.mxu0 %v3756
  %6437 = vmatpush.bf16.msra.mxu0 %v3752
  %6438 = vmatpush.bf16.msra.mxu0 %v3748
  %6439 = vmatpush.bf16.msra.mxu0 %v3744
  %6440 = vmatpush.bf16.msra.mxu0 %v3740
  %6441 = vmatpush.bf16.msra.mxu0 %v3736
  %6442 = vmatpush.bf16.msra.mxu0 %v3732
  %6443 = vmatpush.bf16.msra.mxu0 %v3728
  %6444 = vmatmul.bf16.gmra.mxu0 %v6254
  %v6445 = vpop.f32.mrf.mxu0
  %v6446 = vadd.f32 0.0, %v6445
  %v6447 = vpop.f32.mrf.mxu0
  %6448 = vdwg.mxu0
  %6449 = vmatpush.bf16.msra.mxu0 %v3788
  %6450 = vmatpush.bf16.msra.mxu0 %v3784
  %6451 = vmatpush.bf16.msra.mxu0 %v3780
  %6452 = vmatpush.bf16.msra.mxu0 %v3776
  %6453 = vmatpush.bf16.msra.mxu0 %v3772
  %6454 = vmatpush.bf16.msra.mxu0 %v3768
  %6455 = vmatpush.bf16.msra.mxu0 %v3764
  %6456 = vmatpush.bf16.msra.mxu0 %v3760
  %6457 = vmatmul.bf16.gmra.mxu0 %v6255
  %v6458 = vpop.f32.mrf.mxu0
  %v6459 = vadd.f32 %v6446, %v6458
  %v6460 = vpop.f32.mrf.mxu0
  %6461 = vdwg.mxu0
  %6462 = vmatpush.bf16.msra.mxu0 %v3820
  %6463 = vmatpush.bf16.msra.mxu0 %v3816
  %6464 = vmatpush.bf16.msra.mxu0 %v3812
  %6465 = vmatpush.bf16.msra.mxu0 %v3808
  %6466 = vmatpush.bf16.msra.mxu0 %v3804
  %6467 = vmatpush.bf16.msra.mxu0 %v3800
  %6468 = vmatpush.bf16.msra.mxu0 %v3796
  %6469 = vmatpush.bf16.msra.mxu0 %v3792
  %6470 = vmatmul.bf16.gmra.mxu0 %v6256
  %v6471 = vpop.f32.mrf.mxu0
  %v6472 = vadd.f32 %v6459, %v6471
  %v6473 = vpop.f32.mrf.mxu0
  %6474 = vdwg.mxu0
  %6475 = vmatpush.bf16.msra.mxu0 %v3852
  %6476 = vmatpush.bf16.msra.mxu0 %v3848
  %6477 = vmatpush.bf16.msra.mxu0 %v3844
  %6478 = vmatpush.bf16.msra.mxu0 %v3840
  %6479 = vmatpush.bf16.msra.mxu0 %v3836
  %6480 = vmatpush.bf16.msra.mxu0 %v3832
  %6481 = vmatpush.bf16.msra.mxu0 %v3828
  %6482 = vmatpush.bf16.msra.mxu0 %v3824
  %6483 = vmatmul.bf16.gmra.mxu0 %v6257
  %v6484 = vpop.f32.mrf.mxu0
  %v6485 = vadd.f32 %v6472, %v6484
  %v6486 = vpop.f32.mrf.mxu0
  %6487 = vdwg.mxu0
  %6488 = vmatpush.bf16.msra.mxu0 %v3884
  %6489 = vmatpush.bf16.msra.mxu0 %v3880
  %6490 = vmatpush.bf16.msra.mxu0 %v3876
  %6491 = vmatpush.bf16.msra.mxu0 %v3872
  %6492 = vmatpush.bf16.msra.mxu0 %v3868
  %6493 = vmatpush.bf16.msra.mxu0 %v3864
  %6494 = vmatpush.bf16.msra.mxu0 %v3860
  %6495 = vmatpush.bf16.msra.mxu0 %v3856
  %6496 = vmatmul.bf16.gmra.mxu0 %v6258
  %v6497 = vpop.f32.mrf.mxu0
  %v6498 = vadd.f32 %v6485, %v6497
  %v6499 = vpop.f32.mrf.mxu0
  %6500 = vdwg.mxu0
  %6501 = vmatpush.bf16.msra.mxu0 %v3916
  %6502 = vmatpush.bf16.msra.mxu0 %v3912
  %6503 = vmatpush.bf16.msra.mxu0 %v3908
  %6504 = vmatpush.bf16.msra.mxu0 %v3904
  %6505 = vmatpush.bf16.msra.mxu0 %v3900
  %6506 = vmatpush.bf16.msra.mxu0 %v3896
  %6507 = vmatpush.bf16.msra.mxu0 %v3892
  %6508 = vmatpush.bf16.msra.mxu0 %v3888
  %6509 = vmatmul.bf16.gmra.mxu0 %v6259
  %v6510 = vpop.f32.mrf.mxu0
  %v6511 = vadd.f32 %v6498, %v6510
  %v6512 = vpop.f32.mrf.mxu0
  %6513 = vdwg.mxu0
  %6514 = vmatpush.bf16.msra.mxu0 %v3948
  %6515 = vmatpush.bf16.msra.mxu0 %v3944
  %6516 = vmatpush.bf16.msra.mxu0 %v3940
  %6517 = vmatpush.bf16.msra.mxu0 %v3936
  %6518 = vmatpush.bf16.msra.mxu0 %v3932
  %6519 = vmatpush.bf16.msra.mxu0 %v3928
  %6520 = vmatpush.bf16.msra.mxu0 %v3924
  %6521 = vmatpush.bf16.msra.mxu0 %v3920
  %6522 = vmatmul.bf16.gmra.mxu0 %v6260
  %v6523 = vpop.f32.mrf.mxu0
  %v6524 = vadd.f32 %v6511, %v6523
  %v6525 = vpop.f32.mrf.mxu0
  %6526 = vdwg.mxu0
  %6527 = vmatpush.bf16.msra.mxu0 %v3980
  %6528 = vmatpush.bf16.msra.mxu0 %v3976
  %6529 = vmatpush.bf16.msra.mxu0 %v3972
  %6530 = vmatpush.bf16.msra.mxu0 %v3968
  %6531 = vmatpush.bf16.msra.mxu0 %v3964
  %6532 = vmatpush.bf16.msra.mxu0 %v3960
  %6533 = vmatpush.bf16.msra.mxu0 %v3956
  %6534 = vmatpush.bf16.msra.mxu0 %v3952
  %6535 = vmatmul.bf16.gmra.mxu0 %v6261
  %v6536 = vpop.f32.mrf.mxu0
  %v6537 = vadd.f32 %v6524, %v6536
  %v6538 = vpop.f32.mrf.mxu0
  %6539 = vdwg.mxu0
  %6540 = vmatpush.bf16.msra.mxu0 %v4012
  %6541 = vmatpush.bf16.msra.mxu0 %v4008
  %6542 = vmatpush.bf16.msra.mxu0 %v4004
  %6543 = vmatpush.bf16.msra.mxu0 %v4000
  %6544 = vmatpush.bf16.msra.mxu0 %v3996
  %6545 = vmatpush.bf16.msra.mxu0 %v3992
  %6546 = vmatpush.bf16.msra.mxu0 %v3988
  %6547 = vmatpush.bf16.msra.mxu0 %v3984
  %6548 = vmatmul.bf16.gmra.mxu0 %v6262
  %v6549 = vpop.f32.mrf.mxu0
  %v6550 = vadd.f32 %v6537, %v6549
  %v6551 = vpop.f32.mrf.mxu0
  %6552 = vdwg.mxu0
  %6553 = vmatpush.bf16.msra.mxu0 %v4044
  %6554 = vmatpush.bf16.msra.mxu0 %v4040
  %6555 = vmatpush.bf16.msra.mxu0 %v4036
  %6556 = vmatpush.bf16.msra.mxu0 %v4032
  %6557 = vmatpush.bf16.msra.mxu0 %v4028
  %6558 = vmatpush.bf16.msra.mxu0 %v4024
  %6559 = vmatpush.bf16.msra.mxu0 %v4020
  %6560 = vmatpush.bf16.msra.mxu0 %v4016
  %6561 = vmatmul.bf16.gmra.mxu0 %v6263
  %v6562 = vpop.f32.mrf.mxu0
  %v6563 = vadd.f32 %v6550, %v6562
  %v6564 = vpop.f32.mrf.mxu0
  %6565 = vdwg.mxu0
  %6566 = vmatpush.bf16.msra.mxu0 %v4076
  %6567 = vmatpush.bf16.msra.mxu0 %v4072
  %6568 = vmatpush.bf16.msra.mxu0 %v4068
  %6569 = vmatpush.bf16.msra.mxu0 %v4064
  %6570 = vmatpush.bf16.msra.mxu0 %v4060
  %6571 = vmatpush.bf16.msra.mxu0 %v4056
  %6572 = vmatpush.bf16.msra.mxu0 %v4052
  %6573 = vmatpush.bf16.msra.mxu0 %v4048
  %6574 = vmatmul.bf16.gmra.mxu0 %v6264
  %v6575 = vpop.f32.mrf.mxu0
  %v6576 = vadd.f32 %v6563, %v6575
  %v6577 = vpop.f32.mrf.mxu0
  %6578 = vdwg.mxu0
  %6579 = vmatpush.bf16.msra.mxu0 %v4108
  %6580 = vmatpush.bf16.msra.mxu0 %v4104
  %6581 = vmatpush.bf16.msra.mxu0 %v4100
  %6582 = vmatpush.bf16.msra.mxu0 %v4096
  %6583 = vmatpush.bf16.msra.mxu0 %v4092
  %6584 = vmatpush.bf16.msra.mxu0 %v4088
  %6585 = vmatpush.bf16.msra.mxu0 %v4084
  %6586 = vmatpush.bf16.msra.mxu0 %v4080
  %6587 = vmatmul.bf16.gmra.mxu0 %v6265
  %v6588 = vpop.f32.mrf.mxu0
  %v6589 = vadd.f32 %v6576, %v6588
  %v6590 = vpop.f32.mrf.mxu0
  %6591 = vdwg.mxu0
  %6592 = vmatpush.bf16.msra.mxu0 %v4140
  %6593 = vmatpush.bf16.msra.mxu0 %v4136
  %6594 = vmatpush.bf16.msra.mxu0 %v4132
  %6595 = vmatpush.bf16.msra.mxu0 %v4128
  %6596 = vmatpush.bf16.msra.mxu0 %v4124
  %6597 = vmatpush.bf16.msra.mxu0 %v4120
  %6598 = vmatpush.bf16.msra.mxu0 %v4116
  %6599 = vmatpush.bf16.msra.mxu0 %v4112
  %6600 = vmatmul.bf16.gmra.mxu0 %v6266
  %v6601 = vpop.f32.mrf.mxu0
  %v6602 = vadd.f32 %v6589, %v6601
  %v6603 = vpop.f32.mrf.mxu0
  %6604 = vdwg.mxu0
  %6605 = vmatpush.bf16.msra.mxu0 %v3757
  %6606 = vmatpush.bf16.msra.mxu0 %v3753
  %6607 = vmatpush.bf16.msra.mxu0 %v3749
  %6608 = vmatpush.bf16.msra.mxu0 %v3745
  %6609 = vmatpush.bf16.msra.mxu0 %v3741
  %6610 = vmatpush.bf16.msra.mxu0 %v3737
  %6611 = vmatpush.bf16.msra.mxu0 %v3733
  %6612 = vmatpush.bf16.msra.mxu0 %v3729
  %6613 = vmatmul.bf16.gmra.mxu0 %v6254
  %v6614 = vpop.f32.mrf.mxu0
  %v6615 = vadd.f32 0.0, %v6614
  %v6616 = vpop.f32.mrf.mxu0
  %6617 = vdwg.mxu0
  %6618 = vmatpush.bf16.msra.mxu0 %v3789
  %6619 = vmatpush.bf16.msra.mxu0 %v3785
  %6620 = vmatpush.bf16.msra.mxu0 %v3781
  %6621 = vmatpush.bf16.msra.mxu0 %v3777
  %6622 = vmatpush.bf16.msra.mxu0 %v3773
  %6623 = vmatpush.bf16.msra.mxu0 %v3769
  %6624 = vmatpush.bf16.msra.mxu0 %v3765
  %6625 = vmatpush.bf16.msra.mxu0 %v3761
  %6626 = vmatmul.bf16.gmra.mxu0 %v6255
  %v6627 = vpop.f32.mrf.mxu0
  %v6628 = vadd.f32 %v6615, %v6627
  %v6629 = vpop.f32.mrf.mxu0
  %6630 = vdwg.mxu0
  %6631 = vmatpush.bf16.msra.mxu0 %v3821
  %6632 = vmatpush.bf16.msra.mxu0 %v3817
  %6633 = vmatpush.bf16.msra.mxu0 %v3813
  %6634 = vmatpush.bf16.msra.mxu0 %v3809
  %6635 = vmatpush.bf16.msra.mxu0 %v3805
  %6636 = vmatpush.bf16.msra.mxu0 %v3801
  %6637 = vmatpush.bf16.msra.mxu0 %v3797
  %6638 = vmatpush.bf16.msra.mxu0 %v3793
  %6639 = vmatmul.bf16.gmra.mxu0 %v6256
  %v6640 = vpop.f32.mrf.mxu0
  %v6641 = vadd.f32 %v6628, %v6640
  %v6642 = vpop.f32.mrf.mxu0
  %6643 = vdwg.mxu0
  %6644 = vmatpush.bf16.msra.mxu0 %v3853
  %6645 = vmatpush.bf16.msra.mxu0 %v3849
  %6646 = vmatpush.bf16.msra.mxu0 %v3845
  %6647 = vmatpush.bf16.msra.mxu0 %v3841
  %6648 = vmatpush.bf16.msra.mxu0 %v3837
  %6649 = vmatpush.bf16.msra.mxu0 %v3833
  %6650 = vmatpush.bf16.msra.mxu0 %v3829
  %6651 = vmatpush.bf16.msra.mxu0 %v3825
  %6652 = vmatmul.bf16.gmra.mxu0 %v6257
  %v6653 = vpop.f32.mrf.mxu0
  %v6654 = vadd.f32 %v6641, %v6653
  %v6655 = vpop.f32.mrf.mxu0
  %6656 = vdwg.mxu0
  %6657 = vmatpush.bf16.msra.mxu0 %v3885
  %6658 = vmatpush.bf16.msra.mxu0 %v3881
  %6659 = vmatpush.bf16.msra.mxu0 %v3877
  %6660 = vmatpush.bf16.msra.mxu0 %v3873
  %6661 = vmatpush.bf16.msra.mxu0 %v3869
  %6662 = vmatpush.bf16.msra.mxu0 %v3865
  %6663 = vmatpush.bf16.msra.mxu0 %v3861
  %6664 = vmatpush.bf16.msra.mxu0 %v3857
  %6665 = vmatmul.bf16.gmra.mxu0 %v6258
  %v6666 = vpop.f32.mrf.mxu0
  %v6667 = vadd.f32 %v6654, %v6666
  %v6668 = vpop.f32.mrf.mxu0
  %6669 = vdwg.mxu0
  %6670 = vmatpush.bf16.msra.mxu0 %v3917
  %6671 = vmatpush.bf16.msra.mxu0 %v3913
  %6672 = vmatpush.bf16.msra.mxu0 %v3909
  %6673 = vmatpush.bf16.msra.mxu0 %v3905
  %6674 = vmatpush.bf16.msra.mxu0 %v3901
  %6675 = vmatpush.bf16.msra.mxu0 %v3897
  %6676 = vmatpush.bf16.msra.mxu0 %v3893
  %6677 = vmatpush.bf16.msra.mxu0 %v3889
  %6678 = vmatmul.bf16.gmra.mxu0 %v6259
  %v6679 = vpop.f32.mrf.mxu0
  %v6680 = vadd.f32 %v6667, %v6679
  %v6681 = vpop.f32.mrf.mxu0
  %6682 = vdwg.mxu0
  %6683 = vmatpush.bf16.msra.mxu0 %v3949
  %6684 = vmatpush.bf16.msra.mxu0 %v3945
  %6685 = vmatpush.bf16.msra.mxu0 %v3941
  %6686 = vmatpush.bf16.msra.mxu0 %v3937
  %6687 = vmatpush.bf16.msra.mxu0 %v3933
  %6688 = vmatpush.bf16.msra.mxu0 %v3929
  %6689 = vmatpush.bf16.msra.mxu0 %v3925
  %6690 = vmatpush.bf16.msra.mxu0 %v3921
  %6691 = vmatmul.bf16.gmra.mxu0 %v6260
  %v6692 = vpop.f32.mrf.mxu0
  %v6693 = vadd.f32 %v6680, %v6692
  %v6694 = vpop.f32.mrf.mxu0
  %6695 = vdwg.mxu0
  %6696 = vmatpush.bf16.msra.mxu0 %v3981
  %6697 = vmatpush.bf16.msra.mxu0 %v3977
  %6698 = vmatpush.bf16.msra.mxu0 %v3973
  %6699 = vmatpush.bf16.msra.mxu0 %v3969
  %6700 = vmatpush.bf16.msra.mxu0 %v3965
  %6701 = vmatpush.bf16.msra.mxu0 %v3961
  %6702 = vmatpush.bf16.msra.mxu0 %v3957
  %6703 = vmatpush.bf16.msra.mxu0 %v3953
  %6704 = vmatmul.bf16.gmra.mxu0 %v6261
  %v6705 = vpop.f32.mrf.mxu0
  %v6706 = vadd.f32 %v6693, %v6705
  %v6707 = vpop.f32.mrf.mxu0
  %6708 = vdwg.mxu0
  %6709 = vmatpush.bf16.msra.mxu0 %v4013
  %6710 = vmatpush.bf16.msra.mxu0 %v4009
  %6711 = vmatpush.bf16.msra.mxu0 %v4005
  %6712 = vmatpush.bf16.msra.mxu0 %v4001
  %6713 = vmatpush.bf16.msra.mxu0 %v3997
  %6714 = vmatpush.bf16.msra.mxu0 %v3993
  %6715 = vmatpush.bf16.msra.mxu0 %v3989
  %6716 = vmatpush.bf16.msra.mxu0 %v3985
  %6717 = vmatmul.bf16.gmra.mxu0 %v6262
  %v6718 = vpop.f32.mrf.mxu0
  %v6719 = vadd.f32 %v6706, %v6718
  %v6720 = vpop.f32.mrf.mxu0
  %6721 = vdwg.mxu0
  %6722 = vmatpush.bf16.msra.mxu0 %v4045
  %6723 = vmatpush.bf16.msra.mxu0 %v4041
  %6724 = vmatpush.bf16.msra.mxu0 %v4037
  %6725 = vmatpush.bf16.msra.mxu0 %v4033
  %6726 = vmatpush.bf16.msra.mxu0 %v4029
  %6727 = vmatpush.bf16.msra.mxu0 %v4025
  %6728 = vmatpush.bf16.msra.mxu0 %v4021
  %6729 = vmatpush.bf16.msra.mxu0 %v4017
  %6730 = vmatmul.bf16.gmra.mxu0 %v6263
  %v6731 = vpop.f32.mrf.mxu0
  %v6732 = vadd.f32 %v6719, %v6731
  %v6733 = vpop.f32.mrf.mxu0
  %6734 = vdwg.mxu0
  %6735 = vmatpush.bf16.msra.mxu0 %v4077
  %6736 = vmatpush.bf16.msra.mxu0 %v4073
  %6737 = vmatpush.bf16.msra.mxu0 %v4069
  %6738 = vmatpush.bf16.msra.mxu0 %v4065
  %6739 = vmatpush.bf16.msra.mxu0 %v4061
  %6740 = vmatpush.bf16.msra.mxu0 %v4057
  %6741 = vmatpush.bf16.msra.mxu0 %v4053
  %6742 = vmatpush.bf16.msra.mxu0 %v4049
  %6743 = vmatmul.bf16.gmra.mxu0 %v6264
  %v6744 = vpop.f32.mrf.mxu0
  %v6745 = vadd.f32 %v6732, %v6744
  %v6746 = vpop.f32.mrf.mxu0
  %6747 = vdwg.mxu0
  %6748 = vmatpush.bf16.msra.mxu0 %v4109
  %6749 = vmatpush.bf16.msra.mxu0 %v4105
  %6750 = vmatpush.bf16.msra.mxu0 %v4101
  %6751 = vmatpush.bf16.msra.mxu0 %v4097
  %6752 = vmatpush.bf16.msra.mxu0 %v4093
  %6753 = vmatpush.bf16.msra.mxu0 %v4089
  %6754 = vmatpush.bf16.msra.mxu0 %v4085
  %6755 = vmatpush.bf16.msra.mxu0 %v4081
  %6756 = vmatmul.bf16.gmra.mxu0 %v6265
  %v6757 = vpop.f32.mrf.mxu0
  %v6758 = vadd.f32 %v6745, %v6757
  %v6759 = vpop.f32.mrf.mxu0
  %6760 = vdwg.mxu0
  %6761 = vmatpush.bf16.msra.mxu0 %v4141
  %6762 = vmatpush.bf16.msra.mxu0 %v4137
  %6763 = vmatpush.bf16.msra.mxu0 %v4133
  %6764 = vmatpush.bf16.msra.mxu0 %v4129
  %6765 = vmatpush.bf16.msra.mxu0 %v4125
  %6766 = vmatpush.bf16.msra.mxu0 %v4121
  %6767 = vmatpush.bf16.msra.mxu0 %v4117
  %6768 = vmatpush.bf16.msra.mxu0 %v4113
  %6769 = vmatmul.bf16.gmra.mxu0 %v6266
  %v6770 = vpop.f32.mrf.mxu0
  %v6771 = vadd.f32 %v6758, %v6770
  %v6772 = vpop.f32.mrf.mxu0
  %6773 = vdwg.mxu0
  %6774 = vmatpush.bf16.msra.mxu0 %v3758
  %6775 = vmatpush.bf16.msra.mxu0 %v3754
  %6776 = vmatpush.bf16.msra.mxu0 %v3750
  %6777 = vmatpush.bf16.msra.mxu0 %v3746
  %6778 = vmatpush.bf16.msra.mxu0 %v3742
  %6779 = vmatpush.bf16.msra.mxu0 %v3738
  %6780 = vmatpush.bf16.msra.mxu0 %v3734
  %6781 = vmatpush.bf16.msra.mxu0 %v3730
  %6782 = vmatmul.bf16.gmra.mxu0 %v6254
  %v6783 = vpop.f32.mrf.mxu0
  %v6784 = vadd.f32 0.0, %v6783
  %v6785 = vpop.f32.mrf.mxu0
  %6786 = vdwg.mxu0
  %6787 = vmatpush.bf16.msra.mxu0 %v3790
  %6788 = vmatpush.bf16.msra.mxu0 %v3786
  %6789 = vmatpush.bf16.msra.mxu0 %v3782
  %6790 = vmatpush.bf16.msra.mxu0 %v3778
  %6791 = vmatpush.bf16.msra.mxu0 %v3774
  %6792 = vmatpush.bf16.msra.mxu0 %v3770
  %6793 = vmatpush.bf16.msra.mxu0 %v3766
  %6794 = vmatpush.bf16.msra.mxu0 %v3762
  %6795 = vmatmul.bf16.gmra.mxu0 %v6255
  %v6796 = vpop.f32.mrf.mxu0
  %v6797 = vadd.f32 %v6784, %v6796
  %v6798 = vpop.f32.mrf.mxu0
  %6799 = vdwg.mxu0
  %6800 = vmatpush.bf16.msra.mxu0 %v3822
  %6801 = vmatpush.bf16.msra.mxu0 %v3818
  %6802 = vmatpush.bf16.msra.mxu0 %v3814
  %6803 = vmatpush.bf16.msra.mxu0 %v3810
  %6804 = vmatpush.bf16.msra.mxu0 %v3806
  %6805 = vmatpush.bf16.msra.mxu0 %v3802
  %6806 = vmatpush.bf16.msra.mxu0 %v3798
  %6807 = vmatpush.bf16.msra.mxu0 %v3794
  %6808 = vmatmul.bf16.gmra.mxu0 %v6256
  %v6809 = vpop.f32.mrf.mxu0
  %v6810 = vadd.f32 %v6797, %v6809
  %v6811 = vpop.f32.mrf.mxu0
  %6812 = vdwg.mxu0
  %6813 = vmatpush.bf16.msra.mxu0 %v3854
  %6814 = vmatpush.bf16.msra.mxu0 %v3850
  %6815 = vmatpush.bf16.msra.mxu0 %v3846
  %6816 = vmatpush.bf16.msra.mxu0 %v3842
  %6817 = vmatpush.bf16.msra.mxu0 %v3838
  %6818 = vmatpush.bf16.msra.mxu0 %v3834
  %6819 = vmatpush.bf16.msra.mxu0 %v3830
  %6820 = vmatpush.bf16.msra.mxu0 %v3826
  %6821 = vmatmul.bf16.gmra.mxu0 %v6257
  %v6822 = vpop.f32.mrf.mxu0
  %v6823 = vadd.f32 %v6810, %v6822
  %v6824 = vpop.f32.mrf.mxu0
  %6825 = vdwg.mxu0
  %6826 = vmatpush.bf16.msra.mxu0 %v3886
  %6827 = vmatpush.bf16.msra.mxu0 %v3882
  %6828 = vmatpush.bf16.msra.mxu0 %v3878
  %6829 = vmatpush.bf16.msra.mxu0 %v3874
  %6830 = vmatpush.bf16.msra.mxu0 %v3870
  %6831 = vmatpush.bf16.msra.mxu0 %v3866
  %6832 = vmatpush.bf16.msra.mxu0 %v3862
  %6833 = vmatpush.bf16.msra.mxu0 %v3858
  %6834 = vmatmul.bf16.gmra.mxu0 %v6258
  %v6835 = vpop.f32.mrf.mxu0
  %v6836 = vadd.f32 %v6823, %v6835
  %v6837 = vpop.f32.mrf.mxu0
  %6838 = vdwg.mxu0
  %6839 = vmatpush.bf16.msra.mxu0 %v3918
  %6840 = vmatpush.bf16.msra.mxu0 %v3914
  %6841 = vmatpush.bf16.msra.mxu0 %v3910
  %6842 = vmatpush.bf16.msra.mxu0 %v3906
  %6843 = vmatpush.bf16.msra.mxu0 %v3902
  %6844 = vmatpush.bf16.msra.mxu0 %v3898
  %6845 = vmatpush.bf16.msra.mxu0 %v3894
  %6846 = vmatpush.bf16.msra.mxu0 %v3890
  %6847 = vmatmul.bf16.gmra.mxu0 %v6259
  %v6848 = vpop.f32.mrf.mxu0
  %v6849 = vadd.f32 %v6836, %v6848
  %v6850 = vpop.f32.mrf.mxu0
  %6851 = vdwg.mxu0
  %6852 = vmatpush.bf16.msra.mxu0 %v3950
  %6853 = vmatpush.bf16.msra.mxu0 %v3946
  %6854 = vmatpush.bf16.msra.mxu0 %v3942
  %6855 = vmatpush.bf16.msra.mxu0 %v3938
  %6856 = vmatpush.bf16.msra.mxu0 %v3934
  %6857 = vmatpush.bf16.msra.mxu0 %v3930
  %6858 = vmatpush.bf16.msra.mxu0 %v3926
  %6859 = vmatpush.bf16.msra.mxu0 %v3922
  %6860 = vmatmul.bf16.gmra.mxu0 %v6260
  %v6861 = vpop.f32.mrf.mxu0
  %v6862 = vadd.f32 %v6849, %v6861
  %v6863 = vpop.f32.mrf.mxu0
  %6864 = vdwg.mxu0
  %6865 = vmatpush.bf16.msra.mxu0 %v3982
  %6866 = vmatpush.bf16.msra.mxu0 %v3978
  %6867 = vmatpush.bf16.msra.mxu0 %v3974
  %6868 = vmatpush.bf16.msra.mxu0 %v3970
  %6869 = vmatpush.bf16.msra.mxu0 %v3966
  %6870 = vmatpush.bf16.msra.mxu0 %v3962
  %6871 = vmatpush.bf16.msra.mxu0 %v3958
  %6872 = vmatpush.bf16.msra.mxu0 %v3954
  %6873 = vmatmul.bf16.gmra.mxu0 %v6261
  %v6874 = vpop.f32.mrf.mxu0
  %v6875 = vadd.f32 %v6862, %v6874
  %v6876 = vpop.f32.mrf.mxu0
  %6877 = vdwg.mxu0
  %6878 = vmatpush.bf16.msra.mxu0 %v4014
  %6879 = vmatpush.bf16.msra.mxu0 %v4010
  %6880 = vmatpush.bf16.msra.mxu0 %v4006
  %6881 = vmatpush.bf16.msra.mxu0 %v4002
  %6882 = vmatpush.bf16.msra.mxu0 %v3998
  %6883 = vmatpush.bf16.msra.mxu0 %v3994
  %6884 = vmatpush.bf16.msra.mxu0 %v3990
  %6885 = vmatpush.bf16.msra.mxu0 %v3986
  %6886 = vmatmul.bf16.gmra.mxu0 %v6262
  %v6887 = vpop.f32.mrf.mxu0
  %v6888 = vadd.f32 %v6875, %v6887
  %v6889 = vpop.f32.mrf.mxu0
  %6890 = vdwg.mxu0
  %6891 = vmatpush.bf16.msra.mxu0 %v4046
  %6892 = vmatpush.bf16.msra.mxu0 %v4042
  %6893 = vmatpush.bf16.msra.mxu0 %v4038
  %6894 = vmatpush.bf16.msra.mxu0 %v4034
  %6895 = vmatpush.bf16.msra.mxu0 %v4030
  %6896 = vmatpush.bf16.msra.mxu0 %v4026
  %6897 = vmatpush.bf16.msra.mxu0 %v4022
  %6898 = vmatpush.bf16.msra.mxu0 %v4018
  %6899 = vmatmul.bf16.gmra.mxu0 %v6263
  %v6900 = vpop.f32.mrf.mxu0
  %v6901 = vadd.f32 %v6888, %v6900
  %v6902 = vpop.f32.mrf.mxu0
  %6903 = vdwg.mxu0
  %6904 = vmatpush.bf16.msra.mxu0 %v4078
  %6905 = vmatpush.bf16.msra.mxu0 %v4074
  %6906 = vmatpush.bf16.msra.mxu0 %v4070
  %6907 = vmatpush.bf16.msra.mxu0 %v4066
  %6908 = vmatpush.bf16.msra.mxu0 %v4062
  %6909 = vmatpush.bf16.msra.mxu0 %v4058
  %6910 = vmatpush.bf16.msra.mxu0 %v4054
  %6911 = vmatpush.bf16.msra.mxu0 %v4050
  %6912 = vmatmul.bf16.gmra.mxu0 %v6264
  %v6913 = vpop.f32.mrf.mxu0
  %v6914 = vadd.f32 %v6901, %v6913
  %v6915 = vpop.f32.mrf.mxu0
  %6916 = vdwg.mxu0
  %6917 = vmatpush.bf16.msra.mxu0 %v4110
  %6918 = vmatpush.bf16.msra.mxu0 %v4106
  %6919 = vmatpush.bf16.msra.mxu0 %v4102
  %6920 = vmatpush.bf16.msra.mxu0 %v4098
  %6921 = vmatpush.bf16.msra.mxu0 %v4094
  %6922 = vmatpush.bf16.msra.mxu0 %v4090
  %6923 = vmatpush.bf16.msra.mxu0 %v4086
  %6924 = vmatpush.bf16.msra.mxu0 %v4082
  %6925 = vmatmul.bf16.gmra.mxu0 %v6265
  %v6926 = vpop.f32.mrf.mxu0
  %v6927 = vadd.f32 %v6914, %v6926
  %v6928 = vpop.f32.mrf.mxu0
  %6929 = vdwg.mxu0
  %6930 = vmatpush.bf16.msra.mxu0 %v4142
  %6931 = vmatpush.bf16.msra.mxu0 %v4138
  %6932 = vmatpush.bf16.msra.mxu0 %v4134
  %6933 = vmatpush.bf16.msra.mxu0 %v4130
  %6934 = vmatpush.bf16.msra.mxu0 %v4126
  %6935 = vmatpush.bf16.msra.mxu0 %v4122
  %6936 = vmatpush.bf16.msra.mxu0 %v4118
  %6937 = vmatpush.bf16.msra.mxu0 %v4114
  %6938 = vmatmul.bf16.gmra.mxu0 %v6266
  %v6939 = vpop.f32.mrf.mxu0
  %v6940 = vadd.f32 %v6927, %v6939
  %v6941 = vpop.f32.mrf.mxu0
  %6942 = vdwg.mxu0
  %v6943 = vmax.f32 %v6433, 0.0
  %v6944 = vmax.f32 %v6602, 0.0
  %v6945 = vmax.f32 %v6771, 0.0
  %v6946 = vmax.f32 %v6940, 0.0
  %v6947 = vpack.c.bf16 %v6944, %v6943
  %v6948 = vpack.c.bf16 %v6946, %v6945
  %6949 = vst [vmem:[%s9 + $0x20] sm:$0xff] %v6947
  %6950 = vst [vmem:[%s9 + $0x28] sm:$0xff] %v6948
  // Predicated region
  $region38: #{_lambda_.6} parent=0 // pred_check
    _
  $region39: #{_lambda_.6} parent=0 // pred_check_branch
    %6952 = sbr.rel (0) target = $region41
  $region40: #{_lambda_.6} parent=0 // pred_region
    _
  $region41: #{_lambda_.6} parent=0 // pred_fallthru
    _
  // Predicated region
  $region42: #{_lambda_.6} parent=0 // pred_check
    _
  $region43: #{_lambda_.6} parent=0 // pred_check_branch
    %6954 = sbr.rel (0) target = $region45
  $region44: #{_lambda_.6} parent=0 // pred_region
    _
  $region45: #{_lambda_.6} parent=0 // pred_fallthru
    _

// kernel: _lambda_.8
$region0: #{_lambda_.8}
  #allocation0 [shape = 'u32[]', space=smem, size = 0x4, offset = 0x4, fixed_abs, tag = 'smem constant byte address 0x4 - core index']
  #allocation1 [shape = 'u32[72,128]{1,0:T(1,128)}', space=vmem, size = 0x9000, scoped, tag = 'internal scratch']
  #allocation2 [shape = 'f32[12,542]{1,0:T(8,128)}', space=vmem, size = 0xa000, scoped, tag = 'scratch operand']
  #allocation3 [shape = 'f32[24,542]{1,0:T(8,128)}', space=vmem, size = 0xf000, scoped, tag = 'scratch operand']
  %s0 = inlined_call_operand.vmem [shape: bf16[24,512], index: 0, kind: input, shape index: {}]
  %s1 = inlined_call_operand.vmem [shape: bf16[12,24], index: 1, kind: input, shape index: {}]
  %s2 = inlined_call_operand.vmem [shape: f32[12,1], index: 2, kind: input, shape index: {}]
  %s3 = inlined_call_operand.vmem [shape: f32[12,9], index: 3, kind: input, shape index: {}]
  %s4 = inlined_call_operand.vmem [shape: f32[12,1], index: 4, kind: input, shape index: {}]
  %s5 = inlined_call_operand.vmem [shape: bf16[24,12], index: 5, kind: input, shape index: {}]
  %s6 = inlined_call_operand.vmem [shape: f32[24,1], index: 6, kind: input, shape index: {}]
  %s7 = inlined_call_operand.vmem [shape: f32[9,512], index: 7, kind: input, shape index: {}]
  %s8 = inlined_call_operand.vmem [shape: bf16[512,128], index: 8, kind: input, shape index: {}]
  %s9 = inlined_call_operand.vmem [shape: bf16[48,128], index: 9, kind: output, shape index: {}]
  %s10 = sld [smem:[#allocation0]]
  $region46: #{_lambda_.8} parent=0
    _
  %s12 = ssub.s32 1, %s10
  %s13 = scalar_select 0, %s12, %s10
  // Predicated region
  $region2: #{_lambda_.8} parent=0 // pred_check
    _
  $region3: #{_lambda_.8} parent=0 // pred_check_branch
    %15 = sbr.rel (0) target = $region5
  $region4: #{_lambda_.8} parent=0 // pred_region
    _
  $region5: #{_lambda_.8} parent=0 // pred_fallthru
    _
  // Predicated region
  $region6: #{_lambda_.8} parent=0 // pred_check
    _
  $region7: #{_lambda_.8} parent=0 // pred_check_branch
    %17 = sbr.rel (0) target = $region9
  $region8: #{_lambda_.8} parent=0 // pred_region
    _
  $region9: #{_lambda_.8} parent=0 // pred_fallthru
    _
  // Predicated region
  $region10: #{_lambda_.8} parent=0 // pred_check
    _
  $region11: #{_lambda_.8} parent=0 // pred_check_branch
    %19 = sbr.rel (0) target = $region13
  $region12: #{_lambda_.8} parent=0 // pred_region
    _
  $region13: #{_lambda_.8} parent=0 // pred_fallthru
    _
  // Predicated region
  $region14: #{_lambda_.8} parent=0 // pred_check
    _
  $region15: #{_lambda_.8} parent=0 // pred_check_branch
    %21 = sbr.rel (0) target = $region17
  $region16: #{_lambda_.8} parent=0 // pred_region
    _
  $region17: #{_lambda_.8} parent=0 // pred_fallthru
    _
  // Predicated region
  $region18: #{_lambda_.8} parent=0 // pred_check
    _
  $region19: #{_lambda_.8} parent=0 // pred_check_branch
    %23 = sbr.rel (0) target = $region21
  $region20: #{_lambda_.8} parent=0 // pred_region
    _
  $region21: #{_lambda_.8} parent=0 // pred_fallthru
    _
  // Predicated region
  $region22: #{_lambda_.8} parent=0 // pred_check
    _
  $region23: #{_lambda_.8} parent=0 // pred_check_branch
    %25 = sbr.rel (0) target = $region25
  $region24: #{_lambda_.8} parent=0 // pred_region
    _
  $region25: #{_lambda_.8} parent=0 // pred_fallthru
    _
  // Predicated region
  $region26: #{_lambda_.8} parent=0 // pred_check
    _
  $region27: #{_lambda_.8} parent=0 // pred_check_branch
    %27 = sbr.rel (0) target = $region29
  $region28: #{_lambda_.8} parent=0 // pred_region
    _
  $region29: #{_lambda_.8} parent=0 // pred_fallthru
    _
  // Predicated region
  $region30: #{_lambda_.8} parent=0 // pred_check
    _
  $region31: #{_lambda_.8} parent=0 // pred_check_branch
    %29 = sbr.rel (0) target = $region33
  $region32: #{_lambda_.8} parent=0 // pred_region
    _
  $region33: #{_lambda_.8} parent=0 // pred_fallthru
    _
  // Predicated region
  $region34: #{_lambda_.8} parent=0 // pred_check
    _
  $region35: #{_lambda_.8} parent=0 // pred_check_branch
    %31 = sbr.rel (0) target = $region37
  $region36: #{_lambda_.8} parent=0 // pred_region
    _
  $region37: #{_lambda_.8} parent=0 // pred_fallthru
    _
  %v33 = vld [vmem:[%s0] sm:$0xff]
  %v34 = vld [vmem:[%s0 + $0x8] sm:$0xff]
  %v35 = vld [vmem:[%s0 + $0x10] sm:$0xff]
  %v36 = vld [vmem:[%s0 + $0x18] sm:$0xff]
  %v37 = vld [vmem:[%s0 + $0x20] sm:$0xff]
  %v38 = vld [vmem:[%s0 + $0x28] sm:$0xff]
  %v39 = vld [vmem:[%s7] sm:$0xff]
  %v40 = vld [vmem:[%s7 + $0x8] sm:$0xff]
  %v41 = vld [vmem:[%s7 + $0x10] sm:$0xff]
  %v42 = vld [vmem:[%s7 + $0x18] sm:$0xff]
  %v43 = vld [vmem:[%s7 + $0x20] sm:$0x1]
  %v44 = vld [vmem:[%s7 + $0x28] sm:$0x1]
  %v45 = vld [vmem:[%s7 + $0x30] sm:$0x1]
  %v46 = vld [vmem:[%s7 + $0x38] sm:$0x1]
  %v47 = vld [vmem:[%s8] sm:$0xf]
  %v48 = vld [vmem:[%s8 + $0x4] sm:$0xf]
  %v49 = vld [vmem:[%s8 + $0x8] sm:$0xf]
  %v50 = vld [vmem:[%s8 + $0xc] sm:$0xf]
  %v51 = vld [vmem:[%s8 + $0x10] sm:$0xf]
  %v52 = vld [vmem:[%s8 + $0x14] sm:$0xf]
  %v53 = vld [vmem:[%s8 + $0x18] sm:$0xf]
  %v54 = vld [vmem:[%s8 + $0x1c] sm:$0xf]
  %v55 = vld [vmem:[%s8 + $0x20] sm:$0xf]
  %v56 = vld [vmem:[%s8 + $0x24] sm:$0xf]
  %v57 = vld [vmem:[%s8 + $0x28] sm:$0xf]
  %v58 = vld [vmem:[%s8 + $0x2c] sm:$0xf]
  %v59 = vld [vmem:[%s8 + $0x30] sm:$0xf]
  %v60 = vld [vmem:[%s8 + $0x34] sm:$0xf]
  %v61 = vld [vmem:[%s8 + $0x38] sm:$0xf]
  %v62 = vld [vmem:[%s8 + $0x3c] sm:$0xf]
  %v63 = vld [vmem:[%s8 + $0x40] sm:$0xf]
  %v64 = vld [vmem:[%s8 + $0x44] sm:$0xf]
  %v65 = vld [vmem:[%s8 + $0x48] sm:$0xf]
  %v66 = vld [vmem:[%s8 + $0x4c] sm:$0xf]
  %v67 = vld [vmem:[%s8 + $0x50] sm:$0xf]
  %v68 = vld [vmem:[%s8 + $0x54] sm:$0xf]
  %v69 = vld [vmem:[%s8 + $0x58] sm:$0xf]
  %v70 = vld [vmem:[%s8 + $0x5c] sm:$0xf]
  %v71 = vld [vmem:[%s8 + $0x60] sm:$0xf]
  %v72 = vld [vmem:[%s8 + $0x64] sm:$0xf]
  %v73 = vld [vmem:[%s8 + $0x68] sm:$0xf]
  %v74 = vld [vmem:[%s8 + $0x6c] sm:$0xf]
  %v75 = vld [vmem:[%s8 + $0x70] sm:$0xf]
  %v76 = vld [vmem:[%s8 + $0x74] sm:$0xf]
  %v77 = vld [vmem:[%s8 + $0x78] sm:$0xf]
  %v78 = vld [vmem:[%s8 + $0x7c] sm:$0xf]
  %v79 = vld [vmem:[%s8 + $0x80] sm:$0xf]
  %v80 = vld [vmem:[%s8 + $0x84] sm:$0xf]
  %v81 = vld [vmem:[%s8 + $0x88] sm:$0xf]
  %v82 = vld [vmem:[%s8 + $0x8c] sm:$0xf]
  %v83 = vld [vmem:[%s8 + $0x90] sm:$0xf]
  %v84 = vld [vmem:[%s8 + $0x94] sm:$0xf]
  %v85 = vld [vmem:[%s8 + $0x98] sm:$0xf]
  %v86 = vld [vmem:[%s8 + $0x9c] sm:$0xf]
  %v87 = vld [vmem:[%s8 + $0xa0] sm:$0xf]
  %v88 = vld [vmem:[%s8 + $0xa4] sm:$0xf]
  %v89 = vld [vmem:[%s8 + $0xa8] sm:$0xf]
  %v90 = vld [vmem:[%s8 + $0xac] sm:$0xf]
  %v91 = vld [vmem:[%s8 + $0xb0] sm:$0xf]
  %v92 = vld [vmem:[%s8 + $0xb4] sm:$0xf]
  %v93 = vld [vmem:[%s8 + $0xb8] sm:$0xf]
  %v94 = vld [vmem:[%s8 + $0xbc] sm:$0xf]
  %v95 = vld [vmem:[%s8 + $0xc0] sm:$0xf]
  %v96 = vld [vmem:[%s8 + $0xc4] sm:$0xf]
  %v97 = vld [vmem:[%s8 + $0xc8] sm:$0xf]
  %v98 = vld [vmem:[%s8 + $0xcc] sm:$0xf]
  %v99 = vld [vmem:[%s8 + $0xd0] sm:$0xf]
  %v100 = vld [vmem:[%s8 + $0xd4] sm:$0xf]
  %v101 = vld [vmem:[%s8 + $0xd8] sm:$0xf]
  %v102 = vld [vmem:[%s8 + $0xdc] sm:$0xf]
  %v103 = vld [vmem:[%s8 + $0xe0] sm:$0xf]
  %v104 = vld [vmem:[%s8 + $0xe4] sm:$0xf]
  %v105 = vld [vmem:[%s8 + $0xe8] sm:$0xf]
  %v106 = vld [vmem:[%s8 + $0xec] sm:$0xf]
  %v107 = vld [vmem:[%s8 + $0xf0] sm:$0xf]
  %v108 = vld [vmem:[%s8 + $0xf4] sm:$0xf]
  %v109 = vld [vmem:[%s8 + $0xf8] sm:$0xf]
  %v110 = vld [vmem:[%s8 + $0xfc] sm:$0xf]
  %v111 = vld [vmem:[%s1] sm:$0xf]
  %v112 = vld [vmem:[%s1 + $0x4] sm:$0x3]
  %v113 = vld [vmem:[%s2] sm:$0xff]
  %v114 = vld [vmem:[%s2 + $0x8] sm:$0xf]
  %116 = vset.pattern.permute.xlu0 0
  %117 = vperm.xlu0 %116, %v113
  %v118 = vpop.permute.xlu0 %117
  %121 = vset.pattern.permute.xlu0 0
  %122 = vperm.xlu0 %121, %v114
  %v123 = vpop.permute.xlu0 %122
  %v127 = vunpack.c.l.b16 %v111
  %v128 = vunpack.c.l.b16 %v112
  %v129 = vpack.c.b16 %v128, %v127
  %v136 = vunpack.c.l.b16 %v33
  %v137 = vunpack.c.h.b16 %v33
  %v138 = vunpack.c.l.b16 %v34
  %v139 = vunpack.c.h.b16 %v34
  %v140 = vunpack.c.l.b16 %v35
  %v141 = vunpack.c.h.b16 %v35
  %v142 = vunpack.c.l.b16 %v36
  %v143 = vunpack.c.h.b16 %v36
  %v144 = vunpack.c.l.b16 %v37
  %v145 = vunpack.c.h.b16 %v37
  %v146 = vunpack.c.l.b16 %v38
  %v147 = vunpack.c.h.b16 %v38
  %v148 = vpack.c.b16 %v140, %v136
  %v149 = vpack.c.b16 %v141, %v137
  %v150 = vpack.c.b16 %v142, %v138
  %v151 = vpack.c.b16 %v143, %v139
  %v152 = vpack.c.b16 %v144, %v144
  %v153 = vpack.c.b16 %v145, %v145
  %v154 = vpack.c.b16 %v146, %v146
  %v155 = vpack.c.b16 %v147, %v147
  %vm160 = vcmask 195584
  %v162 = vsel %vm160, %v129, 0
  %vm164 = vcmask 1043456
  %v166 = vsel %vm164, %v152, 0
  %v169 = vsel %vm164, %v153, 0
  %v172 = vsel %vm164, %v154, 0
  %v175 = vsel %vm164, %v155, 0
  %177 = vmatpush.bf16.msra.mxu0 0
  %178 = vmatpush.bf16.msra.mxu0 0
  %179 = vmatpush.bf16.msra.mxu0 0
  %180 = vmatpush.bf16.msra.mxu0 0
  %181 = vmatpush.bf16.msra.mxu0 0
  %182 = vmatpush.bf16.msra.mxu0 0
  %183 = vmatpush.bf16.msra.mxu0 %v166
  %184 = vmatpush.bf16.msra.mxu0 %v148
  %185 = vmatmul.bf16.gmra.mxu0 %v162
  %v186 = vpop.f32.mrf.mxu0
  %v187 = vadd.f32 %v118, %v186
  %v188 = vpop.f32.mrf.mxu0
  %v189 = vadd.f32 %v123, %v188
  %190 = vdwg.mxu0
  %191 = vmatpush.bf16.msra.mxu0 0
  %192 = vmatpush.bf16.msra.mxu0 0
  %193 = vmatpush.bf16.msra.mxu0 0
  %194 = vmatpush.bf16.msra.mxu0 0
  %195 = vmatpush.bf16.msra.mxu0 0
  %196 = vmatpush.bf16.msra.mxu0 0
  %197 = vmatpush.bf16.msra.mxu0 %v169
  %198 = vmatpush.bf16.msra.mxu0 %v149
  %199 = vmatmul.bf16.gmra.mxu0 %v162
  %v200 = vpop.f32.mrf.mxu0
  %v201 = vadd.f32 %v118, %v200
  %v202 = vpop.f32.mrf.mxu0
  %v203 = vadd.f32 %v123, %v202
  %204 = vdwg.mxu0
  %205 = vmatpush.bf16.msra.mxu0 0
  %206 = vmatpush.bf16.msra.mxu0 0
  %207 = vmatpush.bf16.msra.mxu0 0
  %208 = vmatpush.bf16.msra.mxu0 0
  %209 = vmatpush.bf16.msra.mxu0 0
  %210 = vmatpush.bf16.msra.mxu0 0
  %211 = vmatpush.bf16.msra.mxu0 %v172
  %212 = vmatpush.bf16.msra.mxu0 %v150
  %213 = vmatmul.bf16.gmra.mxu0 %v162
  %v214 = vpop.f32.mrf.mxu0
  %v215 = vadd.f32 %v118, %v214
  %v216 = vpop.f32.mrf.mxu0
  %v217 = vadd.f32 %v123, %v216
  %218 = vdwg.mxu0
  %219 = vmatpush.bf16.msra.mxu0 0
  %220 = vmatpush.bf16.msra.mxu0 0
  %221 = vmatpush.bf16.msra.mxu0 0
  %222 = vmatpush.bf16.msra.mxu0 0
  %223 = vmatpush.bf16.msra.mxu0 0
  %224 = vmatpush.bf16.msra.mxu0 0
  %225 = vmatpush.bf16.msra.mxu0 %v175
  %226 = vmatpush.bf16.msra.mxu0 %v151
  %227 = vmatmul.bf16.gmra.mxu0 %v162
  %v228 = vpop.f32.mrf.mxu0
  %v229 = vadd.f32 %v118, %v228
  %v230 = vpop.f32.mrf.mxu0
  %v231 = vadd.f32 %v123, %v230
  %232 = vdwg.mxu0
  %v233 = vmax.f32 %v187, 0.0
  %v234 = vmax.f32 %v201, 0.0
  %v235 = vmax.f32 %v215, 0.0
  %v236 = vmax.f32 %v229, 0.0
  %v237 = vmax.f32 %v189, 0.0
  %v238 = vmax.f32 %v203, 0.0
  %v239 = vmax.f32 %v217, 0.0
  %v240 = vmax.f32 %v231, 0.0
  %241 = vst [vmem:[#allocation2] sm:$0xff] 0.0
  %242 = vst [vmem:[#allocation2 + $0x8] sm:$0xff] 0.0
  %243 = vst [vmem:[#allocation2 + $0x10] sm:$0xff] 0.0
  %244 = vst [vmem:[#allocation2 + $0x18] sm:$0xff] 0.0
  %vm245 = vcmask 244736
  %246 = vst.msk [vmem:[#allocation2 + $0x20] sm:$0xff] %vm245, 0.0
  %247 = vst [vmem:[#allocation2 + $0x28] sm:$0xf] 0.0
  %248 = vst [vmem:[#allocation2 + $0x30] sm:$0xf] 0.0
  %249 = vst [vmem:[#allocation2 + $0x38] sm:$0xf] 0.0
  %250 = vst [vmem:[#allocation2 + $0x40] sm:$0xf] 0.0
  %vm251 = vcmask 240640
  %252 = vst.msk [vmem:[#allocation2 + $0x48] sm:$0xf] %vm251, 0.0
  %261 = vrot.lane.b32.xlu0 %v233, 15
  %v262 = vpop.permute.xlu0 %261
  %263 = vrot.lane.b32.xlu0 %v234, 15
  %v264 = vpop.permute.xlu0 %263
  %265 = vrot.lane.b32.xlu0 %v235, 15
  %v266 = vpop.permute.xlu0 %265
  %267 = vrot.lane.b32.xlu0 %v236, 15
  %v268 = vpop.permute.xlu0 %267
  %269 = vrot.lane.b32.xlu0 %v237, 15
  %v270 = vpop.permute.xlu0 %269
  %271 = vrot.lane.b32.xlu0 %v238, 15
  %v272 = vpop.permute.xlu0 %271
  %273 = vrot.lane.b32.xlu0 %v239, 15
  %v274 = vpop.permute.xlu0 %273
  %275 = vrot.lane.b32.xlu0 %v240, 15
  %v276 = vpop.permute.xlu0 %275
  %vm277 = vcmask 121856
  %v278 = vsel %vm277, %v262, %v264
  %v279 = vsel %vm277, %v264, %v266
  %v280 = vsel %vm277, %v266, %v268
  %v281 = vsel %vm277, %v270, %v272
  %v282 = vsel %vm277, %v272, %v274
  %v283 = vsel %vm277, %v274, %v276
  %vm294 = vcmask 1047672
  %295 = vst.msk [vmem:[#allocation2] sm:$0xff] %vm294, %v262
  %296 = vst [vmem:[#allocation2 + $0x8] sm:$0xff] %v278
  %297 = vst [vmem:[#allocation2 + $0x10] sm:$0xff] %v279
  %298 = vst [vmem:[#allocation2 + $0x18] sm:$0xff] %v280
  %299 = vst.msk [vmem:[#allocation2 + $0x20] sm:$0xff] %vm277, %v268
  %vm300 = vcmask 1043576
  %301 = vst.msk [vmem:[#allocation2 + $0x28] sm:$0xf] %vm300, %v270
  %302 = vst [vmem:[#allocation2 + $0x30] sm:$0xf] %v281
  %303 = vst [vmem:[#allocation2 + $0x38] sm:$0xf] %v282
  %304 = vst [vmem:[#allocation2 + $0x40] sm:$0xf] %v283
  %vm305 = vcmask 117760
  %306 = vst.msk [vmem:[#allocation2 + $0x48] sm:$0xf] %vm305, %v276
  %v307 = vld [vmem:[%s3] sm:$0xff]
  %v308 = vld [vmem:[%s3 + $0x8] sm:$0xf]
  %v309 = vld [vmem:[#allocation2] sm:$0xff]
  %v310 = vld [vmem:[#allocation2 + $0x8] sm:$0xff]
  %v311 = vld [vmem:[#allocation2 + $0x10] sm:$0xff]
  %v312 = vld [vmem:[#allocation2 + $0x18] sm:$0xff]
  %v313 = vld [vmem:[#allocation2 + $0x28] sm:$0xf]
  %v314 = vld [vmem:[#allocation2 + $0x30] sm:$0xf]
  %v315 = vld [vmem:[#allocation2 + $0x38] sm:$0xf]
  %v316 = vld [vmem:[#allocation2 + $0x40] sm:$0xf]
  %v317 = vperm.slane %v39, 0
  %v318 = vperm.slane %v40, 0
  %v319 = vperm.slane %v41, 0
  %v320 = vperm.slane %v42, 0
  %v321 = vmul.f32 %v309, %v317
  %v322 = vmul.f32 %v310, %v318
  %v323 = vmul.f32 %v311, %v319
  %v324 = vmul.f32 %v312, %v320
  %v325 = vmul.f32 %v313, %v317
  %v326 = vmul.f32 %v314, %v318
  %v327 = vmul.f32 %v315, %v319
  %v328 = vmul.f32 %v316, %v320
  %330 = vset.pattern.permute.xlu0 0
  %331 = vperm.xlu0 %330, %v307
  %v332 = vpop.permute.xlu0 %331
  %335 = vset.pattern.permute.xlu0 0
  %336 = vperm.xlu0 %335, %v308
  %v337 = vpop.permute.xlu0 %336
  %v339 = vmul.f32 %v321, %v332
  %v340 = vmul.f32 %v322, %v332
  %v341 = vmul.f32 %v323, %v332
  %v342 = vmul.f32 %v324, %v332
  %v343 = vmul.f32 %v325, %v337
  %v344 = vmul.f32 %v326, %v337
  %v345 = vmul.f32 %v327, %v337
  %v346 = vmul.f32 %v328, %v337
  %v347 = vld [vmem:[#allocation2] sm:$0xff]
  %v348 = vld [vmem:[#allocation2 + $0x8] sm:$0xff]
  %v349 = vld [vmem:[#allocation2 + $0x10] sm:$0xff]
  %v350 = vld [vmem:[#allocation2 + $0x18] sm:$0xff]
  %v351 = vld [vmem:[#allocation2 + $0x20] sm:$0xff]
  %v352 = vld [vmem:[#allocation2 + $0x28] sm:$0xf]
  %v353 = vld [vmem:[#allocation2 + $0x30] sm:$0xf]
  %v354 = vld [vmem:[#allocation2 + $0x38] sm:$0xf]
  %v355 = vld [vmem:[#allocation2 + $0x40] sm:$0xf]
  %v356 = vld [vmem:[#allocation2 + $0x48] sm:$0xf]
  %v357 = vperm.slane %v39, 1
  %v358 = vperm.slane %v40, 1
  %v359 = vperm.slane %v41, 1
  %v360 = vperm.slane %v42, 1
  %365 = vrot.lane.b32.xlu0 %v357, 1
  %v366 = vpop.permute.xlu0 %365
  %367 = vrot.lane.b32.xlu0 %v358, 1
  %v368 = vpop.permute.xlu0 %367
  %369 = vrot.lane.b32.xlu0 %v359, 1
  %v370 = vpop.permute.xlu0 %369
  %371 = vrot.lane.b32.xlu0 %v360, 1
  %v372 = vpop.permute.xlu0 %371
  %vm373 = vcmask 7168
  %v374 = vsel %vm373, %v366, %v368
  %v375 = vsel %vm373, %v368, %v370
  %v376 = vsel %vm373, %v370, %v372
  %v382 = vmul.f32 %v347, %v366
  %v383 = vmul.f32 %v348, %v374
  %v384 = vmul.f32 %v349, %v375
  %v385 = vmul.f32 %v350, %v376
  %v386 = vmul.f32 %v351, %v372
  %v387 = vmul.f32 %v352, %v366
  %v388 = vmul.f32 %v353, %v374
  %v389 = vmul.f32 %v354, %v375
  %v390 = vmul.f32 %v355, %v376
  %v391 = vmul.f32 %v356, %v372
  %392 = vset.pattern.permute.xlu0 1
  %393 = vperm.xlu0 %392, %v307
  %v394 = vpop.permute.xlu0 %393
  %396 = vset.pattern.permute.xlu0 1
  %397 = vperm.xlu0 %396, %v308
  %v398 = vpop.permute.xlu0 %397
  %v400 = vmul.f32 %v382, %v394
  %v401 = vmul.f32 %v383, %v394
  %v402 = vmul.f32 %v384, %v394
  %v403 = vmul.f32 %v385, %v394
  %v404 = vmul.f32 %v386, %v394
  %v405 = vmul.f32 %v387, %v398
  %v406 = vmul.f32 %v388, %v398
  %v407 = vmul.f32 %v389, %v398
  %v408 = vmul.f32 %v390, %v398
  %v409 = vmul.f32 %v391, %v398
  %420 = vrot.lane.b32.xlu0 %v400, 127
  %v421 = vpop.permute.xlu0 %420
  %422 = vrot.lane.b32.xlu0 %v401, 127
  %v423 = vpop.permute.xlu0 %422
  %424 = vrot.lane.b32.xlu0 %v402, 127
  %v425 = vpop.permute.xlu0 %424
  %426 = vrot.lane.b32.xlu0 %v403, 127
  %v427 = vpop.permute.xlu0 %426
  %428 = vrot.lane.b32.xlu0 %v404, 127
  %v429 = vpop.permute.xlu0 %428
  %430 = vrot.lane.b32.xlu0 %v405, 127
  %v431 = vpop.permute.xlu0 %430
  %432 = vrot.lane.b32.xlu0 %v406, 127
  %v433 = vpop.permute.xlu0 %432
  %434 = vrot.lane.b32.xlu0 %v407, 127
  %v435 = vpop.permute.xlu0 %434
  %436 = vrot.lane.b32.xlu0 %v408, 127
  %v437 = vpop.permute.xlu0 %436
  %438 = vrot.lane.b32.xlu0 %v409, 127
  %v439 = vpop.permute.xlu0 %438
  %vm440 = vcmask 1039360
  %v441 = vsel %vm440, %v421, %v423
  %v442 = vsel %vm440, %v423, %v425
  %v443 = vsel %vm440, %v425, %v427
  %v444 = vsel %vm440, %v427, %v429
  %v445 = vsel %vm440, %v431, %v433
  %v446 = vsel %vm440, %v433, %v435
  %v447 = vsel %vm440, %v435, %v437
  %v448 = vsel %vm440, %v437, %v439
  %v457 = vadd.f32 %v339, %v441
  %v458 = vadd.f32 %v340, %v442
  %v459 = vadd.f32 %v341, %v443
  %v460 = vadd.f32 %v342, %v444
  %v461 = vadd.f32 %v343, %v445
  %v462 = vadd.f32 %v344, %v446
  %v463 = vadd.f32 %v345, %v447
  %v464 = vadd.f32 %v346, %v448
  %v465 = vperm.slane %v39, 2
  %v466 = vperm.slane %v40, 2
  %v467 = vperm.slane %v41, 2
  %v468 = vperm.slane %v42, 2
  %473 = vrot.lane.b32.xlu0 %v465, 2
  %v474 = vpop.permute.xlu0 %473
  %475 = vrot.lane.b32.xlu0 %v466, 2
  %v476 = vpop.permute.xlu0 %475
  %477 = vrot.lane.b32.xlu0 %v467, 2
  %v478 = vpop.permute.xlu0 %477
  %479 = vrot.lane.b32.xlu0 %v468, 2
  %v480 = vpop.permute.xlu0 %479
  %vm481 = vcmask 15360
  %v482 = vsel %vm481, %v474, %v476
  %v483 = vsel %vm481, %v476, %v478
  %v484 = vsel %vm481, %v478, %v480
  %v490 = vmul.f32 %v347, %v474
  %v491 = vmul.f32 %v348, %v482
  %v492 = vmul.f32 %v349, %v483
  %v493 = vmul.f32 %v350, %v484
  %v494 = vmul.f32 %v351, %v480
  %v495 = vmul.f32 %v352, %v474
  %v496 = vmul.f32 %v353, %v482
  %v497 = vmul.f32 %v354, %v483
  %v498 = vmul.f32 %v355, %v484
  %v499 = vmul.f32 %v356, %v480
  %500 = vset.pattern.permute.xlu0 2
  %501 = vperm.xlu0 %500, %v307
  %v502 = vpop.permute.xlu0 %501
  %504 = vset.pattern.permute.xlu0 2
  %505 = vperm.xlu0 %504, %v308
  %v506 = vpop.permute.xlu0 %505
  %v508 = vmul.f32 %v490, %v502
  %v509 = vmul.f32 %v491, %v502
  %v510 = vmul.f32 %v492, %v502
  %v511 = vmul.f32 %v493, %v502
  %v512 = vmul.f32 %v494, %v502
  %v513 = vmul.f32 %v495, %v506
  %v514 = vmul.f32 %v496, %v506
  %v515 = vmul.f32 %v497, %v506
  %v516 = vmul.f32 %v498, %v506
  %v517 = vmul.f32 %v499, %v506
  %528 = vrot.lane.b32.xlu0 %v508, 126
  %v529 = vpop.permute.xlu0 %528
  %530 = vrot.lane.b32.xlu0 %v509, 126
  %v531 = vpop.permute.xlu0 %530
  %532 = vrot.lane.b32.xlu0 %v510, 126
  %v533 = vpop.permute.xlu0 %532
  %534 = vrot.lane.b32.xlu0 %v511, 126
  %v535 = vpop.permute.xlu0 %534
  %536 = vrot.lane.b32.xlu0 %v512, 126
  %v537 = vpop.permute.xlu0 %536
  %538 = vrot.lane.b32.xlu0 %v513, 126
  %v539 = vpop.permute.xlu0 %538
  %540 = vrot.lane.b32.xlu0 %v514, 126
  %v541 = vpop.permute.xlu0 %540
  %542 = vrot.lane.b32.xlu0 %v515, 126
  %v543 = vpop.permute.xlu0 %542
  %544 = vrot.lane.b32.xlu0 %v516, 126
  %v545 = vpop.permute.xlu0 %544
  %546 = vrot.lane.b32.xlu0 %v517, 126
  %v547 = vpop.permute.xlu0 %546
  %vm548 = vcmask 1031168
  %v549 = vsel %vm548, %v529, %v531
  %v550 = vsel %vm548, %v531, %v533
  %v551 = vsel %vm548, %v533, %v535
  %v552 = vsel %vm548, %v535, %v537
  %v553 = vsel %vm548, %v539, %v541
  %v554 = vsel %vm548, %v541, %v543
  %v555 = vsel %vm548, %v543, %v545
  %v556 = vsel %vm548, %v545, %v547
  %v565 = vadd.f32 %v457, %v549
  %v566 = vadd.f32 %v458, %v550
  %v567 = vadd.f32 %v459, %v551
  %v568 = vadd.f32 %v460, %v552
  %v569 = vadd.f32 %v461, %v553
  %v570 = vadd.f32 %v462, %v554
  %v571 = vadd.f32 %v463, %v555
  %v572 = vadd.f32 %v464, %v556
  %v573 = vperm.slane %v39, 3
  %v574 = vperm.slane %v40, 3
  %v575 = vperm.slane %v41, 3
  %v576 = vperm.slane %v42, 3
  %581 = vrot.lane.b32.xlu0 %v573, 14
  %v582 = vpop.permute.xlu0 %581
  %583 = vrot.lane.b32.xlu0 %v574, 14
  %v584 = vpop.permute.xlu0 %583
  %585 = vrot.lane.b32.xlu0 %v575, 14
  %v586 = vpop.permute.xlu0 %585
  %587 = vrot.lane.b32.xlu0 %v576, 14
  %v588 = vpop.permute.xlu0 %587
  %vm589 = vcmask 113664
  %v590 = vsel %vm589, %v582, %v584
  %v591 = vsel %vm589, %v584, %v586
  %v592 = vsel %vm589, %v586, %v588
  %v598 = vmul.f32 %v347, %v582
  %v599 = vmul.f32 %v348, %v590
  %v600 = vmul.f32 %v349, %v591
  %v601 = vmul.f32 %v350, %v592
  %v602 = vmul.f32 %v351, %v588
  %v603 = vmul.f32 %v352, %v582
  %v604 = vmul.f32 %v353, %v590
  %v605 = vmul.f32 %v354, %v591
  %v606 = vmul.f32 %v355, %v592
  %v607 = vmul.f32 %v356, %v588
  %608 = vset.pattern.permute.xlu0 3
  %609 = vperm.xlu0 %608, %v307
  %v610 = vpop.permute.xlu0 %609
  %612 = vset.pattern.permute.xlu0 3
  %613 = vperm.xlu0 %612, %v308
  %v614 = vpop.permute.xlu0 %613
  %v616 = vmul.f32 %v598, %v610
  %v617 = vmul.f32 %v599, %v610
  %v618 = vmul.f32 %v600, %v610
  %v619 = vmul.f32 %v601, %v610
  %v620 = vmul.f32 %v602, %v610
  %v621 = vmul.f32 %v603, %v614
  %v622 = vmul.f32 %v604, %v614
  %v623 = vmul.f32 %v605, %v614
  %v624 = vmul.f32 %v606, %v614
  %v625 = vmul.f32 %v607, %v614
  %636 = vrot.lane.b32.xlu0 %v616, 114
  %v637 = vpop.permute.xlu0 %636
  %638 = vrot.lane.b32.xlu0 %v617, 114
  %v639 = vpop.permute.xlu0 %638
  %640 = vrot.lane.b32.xlu0 %v618, 114
  %v641 = vpop.permute.xlu0 %640
  %642 = vrot.lane.b32.xlu0 %v619, 114
  %v643 = vpop.permute.xlu0 %642
  %644 = vrot.lane.b32.xlu0 %v620, 114
  %v645 = vpop.permute.xlu0 %644
  %646 = vrot.lane.b32.xlu0 %v621, 114
  %v647 = vpop.permute.xlu0 %646
  %648 = vrot.lane.b32.xlu0 %v622, 114
  %v649 = vpop.permute.xlu0 %648
  %650 = vrot.lane.b32.xlu0 %v623, 114
  %v651 = vpop.permute.xlu0 %650
  %652 = vrot.lane.b32.xlu0 %v624, 114
  %v653 = vpop.permute.xlu0 %652
  %654 = vrot.lane.b32.xlu0 %v625, 114
  %v655 = vpop.permute.xlu0 %654
  %vm656 = vcmask 932864
  %v657 = vsel %vm656, %v637, %v639
  %v658 = vsel %vm656, %v639, %v641
  %v659 = vsel %vm656, %v641, %v643
  %v660 = vsel %vm656, %v643, %v645
  %v661 = vsel %vm656, %v647, %v649
  %v662 = vsel %vm656, %v649, %v651
  %v663 = vsel %vm656, %v651, %v653
  %v664 = vsel %vm656, %v653, %v655
  %v673 = vadd.f32 %v565, %v657
  %v674 = vadd.f32 %v566, %v658
  %v675 = vadd.f32 %v567, %v659
  %v676 = vadd.f32 %v568, %v660
  %v677 = vadd.f32 %v569, %v661
  %v678 = vadd.f32 %v570, %v662
  %v679 = vadd.f32 %v571, %v663
  %v680 = vadd.f32 %v572, %v664
  %v681 = vperm.slane %v39, 4
  %v682 = vperm.slane %v40, 4
  %v683 = vperm.slane %v41, 4
  %v684 = vperm.slane %v42, 4
  %689 = vrot.lane.b32.xlu0 %v681, 15
  %v690 = vpop.permute.xlu0 %689
  %691 = vrot.lane.b32.xlu0 %v682, 15
  %v692 = vpop.permute.xlu0 %691
  %693 = vrot.lane.b32.xlu0 %v683, 15
  %v694 = vpop.permute.xlu0 %693
  %695 = vrot.lane.b32.xlu0 %v684, 15
  %v696 = vpop.permute.xlu0 %695
  %v697 = vsel %vm277, %v690, %v692
  %v698 = vsel %vm277, %v692, %v694
  %v699 = vsel %vm277, %v694, %v696
  %v705 = vmul.f32 %v347, %v690
  %v706 = vmul.f32 %v348, %v697
  %v707 = vmul.f32 %v349, %v698
  %v708 = vmul.f32 %v350, %v699
  %v709 = vmul.f32 %v351, %v696
  %v710 = vmul.f32 %v352, %v690
  %v711 = vmul.f32 %v353, %v697
  %v712 = vmul.f32 %v354, %v698
  %v713 = vmul.f32 %v355, %v699
  %v714 = vmul.f32 %v356, %v696
  %715 = vset.pattern.permute.xlu0 4
  %716 = vperm.xlu0 %715, %v307
  %v717 = vpop.permute.xlu0 %716
  %719 = vset.pattern.permute.xlu0 4
  %720 = vperm.xlu0 %719, %v308
  %v721 = vpop.permute.xlu0 %720
  %v723 = vmul.f32 %v705, %v717
  %v724 = vmul.f32 %v706, %v717
  %v725 = vmul.f32 %v707, %v717
  %v726 = vmul.f32 %v708, %v717
  %v727 = vmul.f32 %v709, %v717
  %v728 = vmul.f32 %v710, %v721
  %v729 = vmul.f32 %v711, %v721
  %v730 = vmul.f32 %v712, %v721
  %v731 = vmul.f32 %v713, %v721
  %v732 = vmul.f32 %v714, %v721
  %743 = vrot.lane.b32.xlu0 %v723, 113
  %v744 = vpop.permute.xlu0 %743
  %745 = vrot.lane.b32.xlu0 %v724, 113
  %v746 = vpop.permute.xlu0 %745
  %747 = vrot.lane.b32.xlu0 %v725, 113
  %v748 = vpop.permute.xlu0 %747
  %749 = vrot.lane.b32.xlu0 %v726, 113
  %v750 = vpop.permute.xlu0 %749
  %751 = vrot.lane.b32.xlu0 %v727, 113
  %v752 = vpop.permute.xlu0 %751
  %753 = vrot.lane.b32.xlu0 %v728, 113
  %v754 = vpop.permute.xlu0 %753
  %755 = vrot.lane.b32.xlu0 %v729, 113
  %v756 = vpop.permute.xlu0 %755
  %757 = vrot.lane.b32.xlu0 %v730, 113
  %v758 = vpop.permute.xlu0 %757
  %759 = vrot.lane.b32.xlu0 %v731, 113
  %v760 = vpop.permute.xlu0 %759
  %761 = vrot.lane.b32.xlu0 %v732, 113
  %v762 = vpop.permute.xlu0 %761
  %vm763 = vcmask 924672
  %v764 = vsel %vm763, %v744, %v746
  %v765 = vsel %vm763, %v746, %v748
  %v766 = vsel %vm763, %v748, %v750
  %v767 = vsel %vm763, %v750, %v752
  %v768 = vsel %vm763, %v754, %v756
  %v769 = vsel %vm763, %v756, %v758
  %v770 = vsel %vm763, %v758, %v760
  %v771 = vsel %vm763, %v760, %v762
  %v780 = vadd.f32 %v673, %v764
  %v781 = vadd.f32 %v674, %v765
  %v782 = vadd.f32 %v675, %v766
  %v783 = vadd.f32 %v676, %v767
  %v784 = vadd.f32 %v677, %v768
  %v785 = vadd.f32 %v678, %v769
  %v786 = vadd.f32 %v679, %v770
  %v787 = vadd.f32 %v680, %v771
  %v788 = vperm.slane %v39, 5
  %v789 = vperm.slane %v40, 5
  %v790 = vperm.slane %v41, 5
  %v791 = vperm.slane %v42, 5
  %796 = vrot.lane.b32.xlu0 %v788, 16
  %v797 = vpop.permute.xlu0 %796
  %798 = vrot.lane.b32.xlu0 %v789, 16
  %v799 = vpop.permute.xlu0 %798
  %800 = vrot.lane.b32.xlu0 %v790, 16
  %v801 = vpop.permute.xlu0 %800
  %802 = vrot.lane.b32.xlu0 %v791, 16
  %v803 = vpop.permute.xlu0 %802
  %vm804 = vcmask 130048
  %v805 = vsel %vm804, %v797, %v799
  %v806 = vsel %vm804, %v799, %v801
  %v807 = vsel %vm804, %v801, %v803
  %v813 = vmul.f32 %v347, %v797
  %v814 = vmul.f32 %v348, %v805
  %v815 = vmul.f32 %v349, %v806
  %v816 = vmul.f32 %v350, %v807
  %v817 = vmul.f32 %v351, %v803
  %v818 = vmul.f32 %v352, %v797
  %v819 = vmul.f32 %v353, %v805
  %v820 = vmul.f32 %v354, %v806
  %v821 = vmul.f32 %v355, %v807
  %v822 = vmul.f32 %v356, %v803
  %823 = vset.pattern.permute.xlu0 5
  %824 = vperm.xlu0 %823, %v307
  %v825 = vpop.permute.xlu0 %824
  %827 = vset.pattern.permute.xlu0 5
  %828 = vperm.xlu0 %827, %v308
  %v829 = vpop.permute.xlu0 %828
  %v831 = vmul.f32 %v813, %v825
  %v832 = vmul.f32 %v814, %v825
  %v833 = vmul.f32 %v815, %v825
  %v834 = vmul.f32 %v816, %v825
  %v835 = vmul.f32 %v817, %v825
  %v836 = vmul.f32 %v818, %v829
  %v837 = vmul.f32 %v819, %v829
  %v838 = vmul.f32 %v820, %v829
  %v839 = vmul.f32 %v821, %v829
  %v840 = vmul.f32 %v822, %v829
  %851 = vrot.lane.b32.xlu0 %v831, 112
  %v852 = vpop.permute.xlu0 %851
  %853 = vrot.lane.b32.xlu0 %v832, 112
  %v854 = vpop.permute.xlu0 %853
  %855 = vrot.lane.b32.xlu0 %v833, 112
  %v856 = vpop.permute.xlu0 %855
  %857 = vrot.lane.b32.xlu0 %v834, 112
  %v858 = vpop.permute.xlu0 %857
  %859 = vrot.lane.b32.xlu0 %v835, 112
  %v860 = vpop.permute.xlu0 %859
  %861 = vrot.lane.b32.xlu0 %v836, 112
  %v862 = vpop.permute.xlu0 %861
  %863 = vrot.lane.b32.xlu0 %v837, 112
  %v864 = vpop.permute.xlu0 %863
  %865 = vrot.lane.b32.xlu0 %v838, 112
  %v866 = vpop.permute.xlu0 %865
  %867 = vrot.lane.b32.xlu0 %v839, 112
  %v868 = vpop.permute.xlu0 %867
  %869 = vrot.lane.b32.xlu0 %v840, 112
  %v870 = vpop.permute.xlu0 %869
  %vm871 = vcmask 916480
  %v872 = vsel %vm871, %v852, %v854
  %v873 = vsel %vm871, %v854, %v856
  %v874 = vsel %vm871, %v856, %v858
  %v875 = vsel %vm871, %v858, %v860
  %v876 = vsel %vm871, %v862, %v864
  %v877 = vsel %vm871, %v864, %v866
  %v878 = vsel %vm871, %v866, %v868
  %v879 = vsel %vm871, %v868, %v870
  %v888 = vadd.f32 %v780, %v872
  %v889 = vadd.f32 %v781, %v873
  %v890 = vadd.f32 %v782, %v874
  %v891 = vadd.f32 %v783, %v875
  %v892 = vadd.f32 %v784, %v876
  %v893 = vadd.f32 %v785, %v877
  %v894 = vadd.f32 %v786, %v878
  %v895 = vadd.f32 %v787, %v879
  %v896 = vperm.slane %v39, 6
  %v897 = vperm.slane %v40, 6
  %v898 = vperm.slane %v41, 6
  %v899 = vperm.slane %v42, 6
  %904 = vrot.lane.b32.xlu0 %v896, 28
  %v905 = vpop.permute.xlu0 %904
  %906 = vrot.lane.b32.xlu0 %v897, 28
  %v907 = vpop.permute.xlu0 %906
  %908 = vrot.lane.b32.xlu0 %v898, 28
  %v909 = vpop.permute.xlu0 %908
  %910 = vrot.lane.b32.xlu0 %v899, 28
  %v911 = vpop.permute.xlu0 %910
  %vm912 = vcmask 228352
  %v913 = vsel %vm912, %v905, %v907
  %v914 = vsel %vm912, %v907, %v909
  %v915 = vsel %vm912, %v909, %v911
  %v921 = vmul.f32 %v347, %v905
  %v922 = vmul.f32 %v348, %v913
  %v923 = vmul.f32 %v349, %v914
  %v924 = vmul.f32 %v350, %v915
  %v925 = vmul.f32 %v351, %v911
  %v926 = vmul.f32 %v352, %v905
  %v927 = vmul.f32 %v353, %v913
  %v928 = vmul.f32 %v354, %v914
  %v929 = vmul.f32 %v355, %v915
  %v930 = vmul.f32 %v356, %v911
  %931 = vset.pattern.permute.xlu0 6
  %932 = vperm.xlu0 %931, %v307
  %v933 = vpop.permute.xlu0 %932
  %935 = vset.pattern.permute.xlu0 6
  %936 = vperm.xlu0 %935, %v308
  %v937 = vpop.permute.xlu0 %936
  %v939 = vmul.f32 %v921, %v933
  %v940 = vmul.f32 %v922, %v933
  %v941 = vmul.f32 %v923, %v933
  %v942 = vmul.f32 %v924, %v933
  %v943 = vmul.f32 %v925, %v933
  %v944 = vmul.f32 %v926, %v937
  %v945 = vmul.f32 %v927, %v937
  %v946 = vmul.f32 %v928, %v937
  %v947 = vmul.f32 %v929, %v937
  %v948 = vmul.f32 %v930, %v937
  %959 = vrot.lane.b32.xlu0 %v939, 100
  %v960 = vpop.permute.xlu0 %959
  %961 = vrot.lane.b32.xlu0 %v940, 100
  %v962 = vpop.permute.xlu0 %961
  %963 = vrot.lane.b32.xlu0 %v941, 100
  %v964 = vpop.permute.xlu0 %963
  %965 = vrot.lane.b32.xlu0 %v942, 100
  %v966 = vpop.permute.xlu0 %965
  %967 = vrot.lane.b32.xlu0 %v943, 100
  %v968 = vpop.permute.xlu0 %967
  %969 = vrot.lane.b32.xlu0 %v944, 100
  %v970 = vpop.permute.xlu0 %969
  %971 = vrot.lane.b32.xlu0 %v945, 100
  %v972 = vpop.permute.xlu0 %971
  %973 = vrot.lane.b32.xlu0 %v946, 100
  %v974 = vpop.permute.xlu0 %973
  %975 = vrot.lane.b32.xlu0 %v947, 100
  %v976 = vpop.permute.xlu0 %975
  %977 = vrot.lane.b32.xlu0 %v948, 100
  %v978 = vpop.permute.xlu0 %977
  %vm979 = vcmask 818176
  %v980 = vsel %vm979, %v960, %v962
  %v981 = vsel %vm979, %v962, %v964
  %v982 = vsel %vm979, %v964, %v966
  %v983 = vsel %vm979, %v966, %v968
  %v984 = vsel %vm979, %v970, %v972
  %v985 = vsel %vm979, %v972, %v974
  %v986 = vsel %vm979, %v974, %v976
  %v987 = vsel %vm979, %v976, %v978
  %v996 = vadd.f32 %v888, %v980
  %v997 = vadd.f32 %v889, %v981
  %v998 = vadd.f32 %v890, %v982
  %v999 = vadd.f32 %v891, %v983
  %v1000 = vadd.f32 %v892, %v984
  %v1001 = vadd.f32 %v893, %v985
  %v1002 = vadd.f32 %v894, %v986
  %v1003 = vadd.f32 %v895, %v987
  %v1004 = vperm.slane %v39, 7
  %v1005 = vperm.slane %v40, 7
  %v1006 = vperm.slane %v41, 7
  %v1007 = vperm.slane %v42, 7
  %1012 = vrot.lane.b32.xlu0 %v1004, 29
  %v1013 = vpop.permute.xlu0 %1012
  %1014 = vrot.lane.b32.xlu0 %v1005, 29
  %v1015 = vpop.permute.xlu0 %1014
  %1016 = vrot.lane.b32.xlu0 %v1006, 29
  %v1017 = vpop.permute.xlu0 %1016
  %1018 = vrot.lane.b32.xlu0 %v1007, 29
  %v1019 = vpop.permute.xlu0 %1018
  %vm1020 = vcmask 236544
  %v1021 = vsel %vm1020, %v1013, %v1015
  %v1022 = vsel %vm1020, %v1015, %v1017
  %v1023 = vsel %vm1020, %v1017, %v1019
  %v1029 = vmul.f32 %v347, %v1013
  %v1030 = vmul.f32 %v348, %v1021
  %v1031 = vmul.f32 %v349, %v1022
  %v1032 = vmul.f32 %v350, %v1023
  %v1033 = vmul.f32 %v351, %v1019
  %v1034 = vmul.f32 %v352, %v1013
  %v1035 = vmul.f32 %v353, %v1021
  %v1036 = vmul.f32 %v354, %v1022
  %v1037 = vmul.f32 %v355, %v1023
  %v1038 = vmul.f32 %v356, %v1019
  %1039 = vset.pattern.permute.xlu0 7
  %1040 = vperm.xlu0 %1039, %v307
  %v1041 = vpop.permute.xlu0 %1040
  %1043 = vset.pattern.permute.xlu0 7
  %1044 = vperm.xlu0 %1043, %v308
  %v1045 = vpop.permute.xlu0 %1044
  %v1047 = vmul.f32 %v1029, %v1041
  %v1048 = vmul.f32 %v1030, %v1041
  %v1049 = vmul.f32 %v1031, %v1041
  %v1050 = vmul.f32 %v1032, %v1041
  %v1051 = vmul.f32 %v1033, %v1041
  %v1052 = vmul.f32 %v1034, %v1045
  %v1053 = vmul.f32 %v1035, %v1045
  %v1054 = vmul.f32 %v1036, %v1045
  %v1055 = vmul.f32 %v1037, %v1045
  %v1056 = vmul.f32 %v1038, %v1045
  %1067 = vrot.lane.b32.xlu0 %v1047, 99
  %v1068 = vpop.permute.xlu0 %1067
  %1069 = vrot.lane.b32.xlu0 %v1048, 99
  %v1070 = vpop.permute.xlu0 %1069
  %1071 = vrot.lane.b32.xlu0 %v1049, 99
  %v1072 = vpop.permute.xlu0 %1071
  %1073 = vrot.lane.b32.xlu0 %v1050, 99
  %v1074 = vpop.permute.xlu0 %1073
  %1075 = vrot.lane.b32.xlu0 %v1051, 99
  %v1076 = vpop.permute.xlu0 %1075
  %1077 = vrot.lane.b32.xlu0 %v1052, 99
  %v1078 = vpop.permute.xlu0 %1077
  %1079 = vrot.lane.b32.xlu0 %v1053, 99
  %v1080 = vpop.permute.xlu0 %1079
  %1081 = vrot.lane.b32.xlu0 %v1054, 99
  %v1082 = vpop.permute.xlu0 %1081
  %1083 = vrot.lane.b32.xlu0 %v1055, 99
  %v1084 = vpop.permute.xlu0 %1083
  %1085 = vrot.lane.b32.xlu0 %v1056, 99
  %v1086 = vpop.permute.xlu0 %1085
  %vm1087 = vcmask 809984
  %v1088 = vsel %vm1087, %v1068, %v1070
  %v1089 = vsel %vm1087, %v1070, %v1072
  %v1090 = vsel %vm1087, %v1072, %v1074
  %v1091 = vsel %vm1087, %v1074, %v1076
  %v1092 = vsel %vm1087, %v1078, %v1080
  %v1093 = vsel %vm1087, %v1080, %v1082
  %v1094 = vsel %vm1087, %v1082, %v1084
  %v1095 = vsel %vm1087, %v1084, %v1086
  %v1104 = vadd.f32 %v996, %v1088
  %v1105 = vadd.f32 %v997, %v1089
  %v1106 = vadd.f32 %v998, %v1090
  %v1107 = vadd.f32 %v999, %v1091
  %v1108 = vadd.f32 %v1000, %v1092
  %v1109 = vadd.f32 %v1001, %v1093
  %v1110 = vadd.f32 %v1002, %v1094
  %v1111 = vadd.f32 %v1003, %v1095
  %v1112 = vperm.slane %v43, 0
  %v1113 = vperm.slane %v44, 0
  %v1114 = vperm.slane %v45, 0
  %v1115 = vperm.slane %v46, 0
  %1120 = vrot.lane.b32.xlu0 %v1112, 30
  %v1121 = vpop.permute.xlu0 %1120
  %1122 = vrot.lane.b32.xlu0 %v1113, 30
  %v1123 = vpop.permute.xlu0 %1122
  %1124 = vrot.lane.b32.xlu0 %v1114, 30
  %v1125 = vpop.permute.xlu0 %1124
  %1126 = vrot.lane.b32.xlu0 %v1115, 30
  %v1127 = vpop.permute.xlu0 %1126
  %v1128 = vsel %vm245, %v1121, %v1123
  %v1129 = vsel %vm245, %v1123, %v1125
  %v1130 = vsel %vm245, %v1125, %v1127
  %v1136 = vmul.f32 %v347, %v1121
  %v1137 = vmul.f32 %v348, %v1128
  %v1138 = vmul.f32 %v349, %v1129
  %v1139 = vmul.f32 %v350, %v1130
  %v1140 = vmul.f32 %v351, %v1127
  %v1141 = vmul.f32 %v352, %v1121
  %v1142 = vmul.f32 %v353, %v1128
  %v1143 = vmul.f32 %v354, %v1129
  %v1144 = vmul.f32 %v355, %v1130
  %v1145 = vmul.f32 %v356, %v1127
  %1146 = vset.pattern.permute.xlu0 8
  %1147 = vperm.xlu0 %1146, %v307
  %v1148 = vpop.permute.xlu0 %1147
  %1150 = vset.pattern.permute.xlu0 8
  %1151 = vperm.xlu0 %1150, %v308
  %v1152 = vpop.permute.xlu0 %1151
  %v1154 = vmul.f32 %v1136, %v1148
  %v1155 = vmul.f32 %v1137, %v1148
  %v1156 = vmul.f32 %v1138, %v1148
  %v1157 = vmul.f32 %v1139, %v1148
  %v1158 = vmul.f32 %v1140, %v1148
  %v1159 = vmul.f32 %v1141, %v1152
  %v1160 = vmul.f32 %v1142, %v1152
  %v1161 = vmul.f32 %v1143, %v1152
  %v1162 = vmul.f32 %v1144, %v1152
  %v1163 = vmul.f32 %v1145, %v1152
  %1174 = vrot.lane.b32.xlu0 %v1154, 98
  %v1175 = vpop.permute.xlu0 %1174
  %1176 = vrot.lane.b32.xlu0 %v1155, 98
  %v1177 = vpop.permute.xlu0 %1176
  %1178 = vrot.lane.b32.xlu0 %v1156, 98
  %v1179 = vpop.permute.xlu0 %1178
  %1180 = vrot.lane.b32.xlu0 %v1157, 98
  %v1181 = vpop.permute.xlu0 %1180
  %1182 = vrot.lane.b32.xlu0 %v1158, 98
  %v1183 = vpop.permute.xlu0 %1182
  %1184 = vrot.lane.b32.xlu0 %v1159, 98
  %v1185 = vpop.permute.xlu0 %1184
  %1186 = vrot.lane.b32.xlu0 %v1160, 98
  %v1187 = vpop.permute.xlu0 %1186
  %1188 = vrot.lane.b32.xlu0 %v1161, 98
  %v1189 = vpop.permute.xlu0 %1188
  %1190 = vrot.lane.b32.xlu0 %v1162, 98
  %v1191 = vpop.permute.xlu0 %1190
  %1192 = vrot.lane.b32.xlu0 %v1163, 98
  %v1193 = vpop.permute.xlu0 %1192
  %vm1194 = vcmask 801792
  %v1195 = vsel %vm1194, %v1175, %v1177
  %v1196 = vsel %vm1194, %v1177, %v1179
  %v1197 = vsel %vm1194, %v1179, %v1181
  %v1198 = vsel %vm1194, %v1181, %v1183
  %v1199 = vsel %vm1194, %v1185, %v1187
  %v1200 = vsel %vm1194, %v1187, %v1189
  %v1201 = vsel %vm1194, %v1189, %v1191
  %v1202 = vsel %vm1194, %v1191, %v1193
  %v1211 = vadd.f32 %v1104, %v1195
  %v1212 = vadd.f32 %v1105, %v1196
  %v1213 = vadd.f32 %v1106, %v1197
  %v1214 = vadd.f32 %v1107, %v1198
  %v1215 = vadd.f32 %v1108, %v1199
  %v1216 = vadd.f32 %v1109, %v1200
  %v1217 = vadd.f32 %v1110, %v1201
  %v1218 = vadd.f32 %v1111, %v1202
  %v1219 = vpack.c.bf16 %v1215, %v1211
  %v1220 = vpack.c.bf16 %v1216, %v1212
  %v1221 = vpack.c.bf16 %v1217, %v1213
  %v1222 = vpack.c.bf16 %v1218, %v1214
  %v1223 = vld [vmem:[%s4] sm:$0xff]
  %v1224 = vld [vmem:[%s4 + $0x8] sm:$0xf]
  %1226 = vset.pattern.permute.xlu0 0
  %1227 = vperm.xlu0 %1226, %v1223
  %v1228 = vpop.permute.xlu0 %1227
  %1231 = vset.pattern.permute.xlu0 0
  %1232 = vperm.xlu0 %1231, %v1224
  %v1233 = vpop.permute.xlu0 %1232
  %v1299 = vunpack.c.l.b16 %v47
  %v1300 = vunpack.c.l.b16 %v48
  %v1301 = vunpack.c.l.b16 %v49
  %v1302 = vunpack.c.l.b16 %v50
  %v1303 = vunpack.c.l.b16 %v51
  %v1304 = vunpack.c.l.b16 %v52
  %v1305 = vunpack.c.l.b16 %v53
  %v1306 = vunpack.c.l.b16 %v54
  %v1307 = vunpack.c.l.b16 %v55
  %v1308 = vunpack.c.l.b16 %v56
  %v1309 = vunpack.c.l.b16 %v57
  %v1310 = vunpack.c.l.b16 %v58
  %v1311 = vunpack.c.l.b16 %v59
  %v1312 = vunpack.c.l.b16 %v60
  %v1313 = vunpack.c.l.b16 %v61
  %v1314 = vunpack.c.l.b16 %v62
  %v1315 = vunpack.c.l.b16 %v63
  %v1316 = vunpack.c.l.b16 %v64
  %v1317 = vunpack.c.l.b16 %v65
  %v1318 = vunpack.c.l.b16 %v66
  %v1319 = vunpack.c.l.b16 %v67
  %v1320 = vunpack.c.l.b16 %v68
  %v1321 = vunpack.c.l.b16 %v69
  %v1322 = vunpack.c.l.b16 %v70
  %v1323 = vunpack.c.l.b16 %v71
  %v1324 = vunpack.c.l.b16 %v72
  %v1325 = vunpack.c.l.b16 %v73
  %v1326 = vunpack.c.l.b16 %v74
  %v1327 = vunpack.c.l.b16 %v75
  %v1328 = vunpack.c.l.b16 %v76
  %v1329 = vunpack.c.l.b16 %v77
  %v1330 = vunpack.c.l.b16 %v78
  %v1331 = vunpack.c.l.b16 %v79
  %v1332 = vunpack.c.l.b16 %v80
  %v1333 = vunpack.c.l.b16 %v81
  %v1334 = vunpack.c.l.b16 %v82
  %v1335 = vunpack.c.l.b16 %v83
  %v1336 = vunpack.c.l.b16 %v84
  %v1337 = vunpack.c.l.b16 %v85
  %v1338 = vunpack.c.l.b16 %v86
  %v1339 = vunpack.c.l.b16 %v87
  %v1340 = vunpack.c.l.b16 %v88
  %v1341 = vunpack.c.l.b16 %v89
  %v1342 = vunpack.c.l.b16 %v90
  %v1343 = vunpack.c.l.b16 %v91
  %v1344 = vunpack.c.l.b16 %v92
  %v1345 = vunpack.c.l.b16 %v93
  %v1346 = vunpack.c.l.b16 %v94
  %v1347 = vunpack.c.l.b16 %v95
  %v1348 = vunpack.c.l.b16 %v96
  %v1349 = vunpack.c.l.b16 %v97
  %v1350 = vunpack.c.l.b16 %v98
  %v1351 = vunpack.c.l.b16 %v99
  %v1352 = vunpack.c.l.b16 %v100
  %v1353 = vunpack.c.l.b16 %v101
  %v1354 = vunpack.c.l.b16 %v102
  %v1355 = vunpack.c.l.b16 %v103
  %v1356 = vunpack.c.l.b16 %v104
  %v1357 = vunpack.c.l.b16 %v105
  %v1358 = vunpack.c.l.b16 %v106
  %v1359 = vunpack.c.l.b16 %v107
  %v1360 = vunpack.c.l.b16 %v108
  %v1361 = vunpack.c.l.b16 %v109
  %v1362 = vunpack.c.l.b16 %v110
  %v1363 = vpack.c.b16 %v1300, %v1299
  %v1364 = vpack.c.b16 %v1302, %v1301
  %v1365 = vpack.c.b16 %v1304, %v1303
  %v1366 = vpack.c.b16 %v1306, %v1305
  %v1367 = vpack.c.b16 %v1308, %v1307
  %v1368 = vpack.c.b16 %v1310, %v1309
  %v1369 = vpack.c.b16 %v1312, %v1311
  %v1370 = vpack.c.b16 %v1314, %v1313
  %v1371 = vpack.c.b16 %v1316, %v1315
  %v1372 = vpack.c.b16 %v1318, %v1317
  %v1373 = vpack.c.b16 %v1320, %v1319
  %v1374 = vpack.c.b16 %v1322, %v1321
  %v1375 = vpack.c.b16 %v1324, %v1323
  %v1376 = vpack.c.b16 %v1326, %v1325
  %v1377 = vpack.c.b16 %v1328, %v1327
  %v1378 = vpack.c.b16 %v1330, %v1329
  %v1379 = vpack.c.b16 %v1332, %v1331
  %v1380 = vpack.c.b16 %v1334, %v1333
  %v1381 = vpack.c.b16 %v1336, %v1335
  %v1382 = vpack.c.b16 %v1338, %v1337
  %v1383 = vpack.c.b16 %v1340, %v1339
  %v1384 = vpack.c.b16 %v1342, %v1341
  %v1385 = vpack.c.b16 %v1344, %v1343
  %v1386 = vpack.c.b16 %v1346, %v1345
  %v1387 = vpack.c.b16 %v1348, %v1347
  %v1388 = vpack.c.b16 %v1350, %v1349
  %v1389 = vpack.c.b16 %v1352, %v1351
  %v1390 = vpack.c.b16 %v1354, %v1353
  %v1391 = vpack.c.b16 %v1356, %v1355
  %v1392 = vpack.c.b16 %v1358, %v1357
  %v1393 = vpack.c.b16 %v1360, %v1359
  %v1394 = vpack.c.b16 %v1362, %v1361
  %1427 = vmatpush.bf16.msra.mxu0 %v1370
  %1428 = vmatpush.bf16.msra.mxu0 %v1369
  %1429 = vmatpush.bf16.msra.mxu0 %v1368
  %1430 = vmatpush.bf16.msra.mxu0 %v1367
  %1431 = vmatpush.bf16.msra.mxu0 %v1366
  %1432 = vmatpush.bf16.msra.mxu0 %v1365
  %1433 = vmatpush.bf16.msra.mxu0 %v1364
  %1434 = vmatpush.bf16.msra.mxu0 %v1363
  %1435 = vmatmul.bf16.gmra.mxu0 %v1219
  %v1436 = vpop.f32.mrf.mxu0
  %v1437 = vadd.f32 %v1228, %v1436
  %v1438 = vpop.f32.mrf.mxu0
  %v1439 = vadd.f32 %v1233, %v1438
  %1440 = vdwg.mxu0
  %1441 = vmatpush.bf16.msra.mxu0 %v1378
  %1442 = vmatpush.bf16.msra.mxu0 %v1377
  %1443 = vmatpush.bf16.msra.mxu0 %v1376
  %1444 = vmatpush.bf16.msra.mxu0 %v1375
  %1445 = vmatpush.bf16.msra.mxu0 %v1374
  %1446 = vmatpush.bf16.msra.mxu0 %v1373
  %1447 = vmatpush.bf16.msra.mxu0 %v1372
  %1448 = vmatpush.bf16.msra.mxu0 %v1371
  %1449 = vmatmul.bf16.gmra.mxu0 %v1220
  %v1450 = vpop.f32.mrf.mxu0
  %v1451 = vadd.f32 %v1437, %v1450
  %v1452 = vpop.f32.mrf.mxu0
  %v1453 = vadd.f32 %v1439, %v1452
  %1454 = vdwg.mxu0
  %1455 = vmatpush.bf16.msra.mxu0 %v1386
  %1456 = vmatpush.bf16.msra.mxu0 %v1385
  %1457 = vmatpush.bf16.msra.mxu0 %v1384
  %1458 = vmatpush.bf16.msra.mxu0 %v1383
  %1459 = vmatpush.bf16.msra.mxu0 %v1382
  %1460 = vmatpush.bf16.msra.mxu0 %v1381
  %1461 = vmatpush.bf16.msra.mxu0 %v1380
  %1462 = vmatpush.bf16.msra.mxu0 %v1379
  %1463 = vmatmul.bf16.gmra.mxu0 %v1221
  %v1464 = vpop.f32.mrf.mxu0
  %v1465 = vadd.f32 %v1451, %v1464
  %v1466 = vpop.f32.mrf.mxu0
  %v1467 = vadd.f32 %v1453, %v1466
  %1468 = vdwg.mxu0
  %1469 = vmatpush.bf16.msra.mxu0 %v1394
  %1470 = vmatpush.bf16.msra.mxu0 %v1393
  %1471 = vmatpush.bf16.msra.mxu0 %v1392
  %1472 = vmatpush.bf16.msra.mxu0 %v1391
  %1473 = vmatpush.bf16.msra.mxu0 %v1390
  %1474 = vmatpush.bf16.msra.mxu0 %v1389
  %1475 = vmatpush.bf16.msra.mxu0 %v1388
  %1476 = vmatpush.bf16.msra.mxu0 %v1387
  %1477 = vmatmul.bf16.gmra.mxu0 %v1222
  %v1478 = vpop.f32.mrf.mxu0
  %v1479 = vadd.f32 %v1465, %v1478
  %v1480 = vpop.f32.mrf.mxu0
  %v1481 = vadd.f32 %v1467, %v1480
  %1482 = vdwg.mxu0
  %v1483 = vld [vmem:[%s5] sm:$0xf]
  %v1484 = vld [vmem:[%s5 + $0x4] sm:$0xf]
  %v1485 = vld [vmem:[%s5 + $0x8] sm:$0xf]
  %v1486 = vpack.c.bf16 %v1481, %v1479
  %v1487 = vld [vmem:[%s6] sm:$0xff]
  %v1488 = vld [vmem:[%s6 + $0x8] sm:$0xff]
  %v1489 = vld [vmem:[%s6 + $0x10] sm:$0xff]
  %1491 = vset.pattern.permute.xlu0 0
  %1492 = vperm.xlu0 %1491, %v1487
  %v1493 = vpop.permute.xlu0 %1492
  %1496 = vset.pattern.permute.xlu0 0
  %1497 = vperm.xlu0 %1496, %v1488
  %v1498 = vpop.permute.xlu0 %1497
  %1501 = vset.pattern.permute.xlu0 0
  %1502 = vperm.xlu0 %1501, %v1489
  %v1503 = vpop.permute.xlu0 %1502
  %v1508 = vunpack.c.l.b16 %v1483
  %v1509 = vunpack.c.l.b16 %v1484
  %v1510 = vunpack.c.l.b16 %v1485
  %v1511 = vpack.c.b16 %v1509, %v1508
  %v1512 = vpack.c.b16 %v1510, %v1510
  %vm1513 = vcmask 97280
  %v1515 = vsel %vm1513, %v1511, 0
  %v1518 = vsel %vm1513, %v1512, 0
  %vm1520 = vcmask 1045504
  %v1522 = vsel %vm1520, %v1486, 0
  %1524 = vmatpush.bf16.msra.mxu0 0
  %1525 = vmatpush.bf16.msra.mxu0 0
  %1526 = vmatpush.bf16.msra.mxu0 0
  %1527 = vmatpush.bf16.msra.mxu0 0
  %1528 = vmatpush.bf16.msra.mxu0 0
  %1529 = vmatpush.bf16.msra.mxu0 0
  %1530 = vmatpush.bf16.msra.mxu0 0
  %1531 = vmatpush.bf16.msra.mxu0 %v1522
  %1532 = vmatmul.bf16.gmra.mxu0 %v1515
  %v1533 = vpop.f32.mrf.mxu0
  %v1534 = vadd.f32 %v1493, %v1533
  %v1535 = vpop.f32.mrf.mxu0
  %v1536 = vadd.f32 %v1498, %v1535
  %1537 = vmatmul.bf16.gmra.mxu0 %v1518
  %v1538 = vpop.f32.mrf.mxu0
  %v1539 = vadd.f32 %v1503, %v1538
  %v1540 = vpop.f32.mrf.mxu0
  %1541 = vdwg.mxu0
  %v1542 = vmax.f32 %v1534, 0.0
  %v1543 = vmax.f32 %v1536, 0.0
  %v1544 = vmax.f32 %v1539, 0.0
  %v1545 = vpack.c.bf16 %v1542, %v1542
  %v1546 = vpack.c.bf16 %v1543, %v1543
  %v1547 = vpack.c.bf16 %v1544, %v1544
  %1548 = vst [vmem:[%s9] sm:$0xf] %v1545
  %1549 = vst [vmem:[%s9 + $0x4] sm:$0xf] %v1546
  %1550 = vst [vmem:[%s9 + $0x8] sm:$0xf] %v1547
  %1551 = vst [vmem:[#allocation3] sm:$0xff] 0.0
  %1552 = vst [vmem:[#allocation3 + $0x8] sm:$0xff] 0.0
  %1553 = vst [vmem:[#allocation3 + $0x10] sm:$0xff] 0.0
  %1554 = vst [vmem:[#allocation3 + $0x18] sm:$0xff] 0.0
  %1555 = vst.msk [vmem:[#allocation3 + $0x20] sm:$0xff] %vm245, 0.0
  %1556 = vst [vmem:[#allocation3 + $0x28] sm:$0xff] 0.0
  %1557 = vst [vmem:[#allocation3 + $0x30] sm:$0xff] 0.0
  %1558 = vst [vmem:[#allocation3 + $0x38] sm:$0xff] 0.0
  %1559 = vst [vmem:[#allocation3 + $0x40] sm:$0xff] 0.0
  %1560 = vst.msk [vmem:[#allocation3 + $0x48] sm:$0xff] %vm245, 0.0
  %1561 = vst [vmem:[#allocation3 + $0x50] sm:$0xff] 0.0
  %1562 = vst [vmem:[#allocation3 + $0x58] sm:$0xff] 0.0
  %1563 = vst [vmem:[#allocation3 + $0x60] sm:$0xff] 0.0
  %1564 = vst [vmem:[#allocation3 + $0x68] sm:$0xff] 0.0
  %1565 = vst.msk [vmem:[#allocation3 + $0x70] sm:$0xff] %vm245, 0.0
  %v1566 = vunpack.c.l.bf16 %v33
  %v1567 = vunpack.c.h.bf16 %v33
  %v1568 = vunpack.c.l.bf16 %v34
  %v1569 = vunpack.c.h.bf16 %v34
  %v1570 = vunpack.c.l.bf16 %v35
  %v1571 = vunpack.c.h.bf16 %v35
  %v1572 = vunpack.c.l.bf16 %v36
  %v1573 = vunpack.c.h.bf16 %v36
  %v1574 = vunpack.c.l.bf16 %v37
  %v1575 = vunpack.c.h.bf16 %v37
  %v1576 = vunpack.c.l.bf16 %v38
  %v1577 = vunpack.c.h.bf16 %v38
  %1590 = vrot.lane.b32.xlu0 %v1566, 15
  %v1591 = vpop.permute.xlu0 %1590
  %1592 = vrot.lane.b32.xlu0 %v1567, 15
  %v1593 = vpop.permute.xlu0 %1592
  %1594 = vrot.lane.b32.xlu0 %v1568, 15
  %v1595 = vpop.permute.xlu0 %1594
  %1596 = vrot.lane.b32.xlu0 %v1569, 15
  %v1597 = vpop.permute.xlu0 %1596
  %1598 = vrot.lane.b32.xlu0 %v1570, 15
  %v1599 = vpop.permute.xlu0 %1598
  %1600 = vrot.lane.b32.xlu0 %v1571, 15
  %v1601 = vpop.permute.xlu0 %1600
  %1602 = vrot.lane.b32.xlu0 %v1572, 15
  %v1603 = vpop.permute.xlu0 %1602
  %1604 = vrot.lane.b32.xlu0 %v1573, 15
  %v1605 = vpop.permute.xlu0 %1604
  %1606 = vrot.lane.b32.xlu0 %v1574, 15
  %v1607 = vpop.permute.xlu0 %1606
  %1608 = vrot.lane.b32.xlu0 %v1575, 15
  %v1609 = vpop.permute.xlu0 %1608
  %1610 = vrot.lane.b32.xlu0 %v1576, 15
  %v1611 = vpop.permute.xlu0 %1610
  %1612 = vrot.lane.b32.xlu0 %v1577, 15
  %v1613 = vpop.permute.xlu0 %1612
  %v1614 = vsel %vm277, %v1591, %v1593
  %v1615 = vsel %vm277, %v1593, %v1595
  %v1616 = vsel %vm277, %v1595, %v1597
  %v1617 = vsel %vm277, %v1599, %v1601
  %v1618 = vsel %vm277, %v1601, %v1603
  %v1619 = vsel %vm277, %v1603, %v1605
  %v1620 = vsel %vm277, %v1607, %v1609
  %v1621 = vsel %vm277, %v1609, %v1611
  %v1622 = vsel %vm277, %v1611, %v1613
  %1638 = vst.msk [vmem:[#allocation3] sm:$0xff] %vm294, %v1591
  %1639 = vst [vmem:[#allocation3 + $0x8] sm:$0xff] %v1614
  %1640 = vst [vmem:[#allocation3 + $0x10] sm:$0xff] %v1615
  %1641 = vst [vmem:[#allocation3 + $0x18] sm:$0xff] %v1616
  %1642 = vst.msk [vmem:[#allocation3 + $0x20] sm:$0xff] %vm277, %v1597
  %1643 = vst.msk [vmem:[#allocation3 + $0x28] sm:$0xff] %vm294, %v1599
  %1644 = vst [vmem:[#allocation3 + $0x30] sm:$0xff] %v1617
  %1645 = vst [vmem:[#allocation3 + $0x38] sm:$0xff] %v1618
  %1646 = vst [vmem:[#allocation3 + $0x40] sm:$0xff] %v1619
  %1647 = vst.msk [vmem:[#allocation3 + $0x48] sm:$0xff] %vm277, %v1605
  %1648 = vst.msk [vmem:[#allocation3 + $0x50] sm:$0xff] %vm294, %v1607
  %1649 = vst [vmem:[#allocation3 + $0x58] sm:$0xff] %v1620
  %1650 = vst [vmem:[#allocation3 + $0x60] sm:$0xff] %v1621
  %1651 = vst [vmem:[#allocation3 + $0x68] sm:$0xff] %v1622
  %1652 = vst.msk [vmem:[#allocation3 + $0x70] sm:$0xff] %vm277, %v1613
  %v1653 = vld [vmem:[#allocation3] sm:$0xff]
  %v1654 = vld [vmem:[#allocation3 + $0x8] sm:$0xff]
  %v1655 = vld [vmem:[#allocation3 + $0x10] sm:$0xff]
  %v1656 = vld [vmem:[#allocation3 + $0x18] sm:$0xff]
  %v1657 = vld [vmem:[#allocation3 + $0x28] sm:$0xff]
  %v1658 = vld [vmem:[#allocation3 + $0x30] sm:$0xff]
  %v1659 = vld [vmem:[#allocation3 + $0x38] sm:$0xff]
  %v1660 = vld [vmem:[#allocation3 + $0x40] sm:$0xff]
  %v1661 = vld [vmem:[#allocation3 + $0x50] sm:$0xff]
  %v1662 = vld [vmem:[#allocation3 + $0x58] sm:$0xff]
  %v1663 = vld [vmem:[#allocation3 + $0x60] sm:$0xff]
  %v1664 = vld [vmem:[#allocation3 + $0x68] sm:$0xff]
  %v1665 = vmul.f32 %v1653, %v317
  %v1666 = vmul.f32 %v1654, %v318
  %v1667 = vmul.f32 %v1655, %v319
  %v1668 = vmul.f32 %v1656, %v320
  %v1669 = vmul.f32 %v1657, %v317
  %v1670 = vmul.f32 %v1658, %v318
  %v1671 = vmul.f32 %v1659, %v319
  %v1672 = vmul.f32 %v1660, %v320
  %v1673 = vmul.f32 %v1661, %v317
  %v1674 = vmul.f32 %v1662, %v318
  %v1675 = vmul.f32 %v1663, %v319
  %v1676 = vmul.f32 %v1664, %v320
  %v1677 = vld [vmem:[#allocation3 + $0x20] sm:$0xff]
  %v1678 = vld [vmem:[#allocation3 + $0x48] sm:$0xff]
  %v1679 = vld [vmem:[#allocation3 + $0x70] sm:$0xff]
  %v1680 = vmul.f32 %v1653, %v366
  %v1681 = vmul.f32 %v1654, %v374
  %v1682 = vmul.f32 %v1655, %v375
  %v1683 = vmul.f32 %v1656, %v376
  %v1684 = vmul.f32 %v1677, %v372
  %v1685 = vmul.f32 %v1657, %v366
  %v1686 = vmul.f32 %v1658, %v374
  %v1687 = vmul.f32 %v1659, %v375
  %v1688 = vmul.f32 %v1660, %v376
  %v1689 = vmul.f32 %v1678, %v372
  %v1690 = vmul.f32 %v1661, %v366
  %v1691 = vmul.f32 %v1662, %v374
  %v1692 = vmul.f32 %v1663, %v375
  %v1693 = vmul.f32 %v1664, %v376
  %v1694 = vmul.f32 %v1679, %v372
  %1710 = vrot.lane.b32.xlu0 %v1680, 127
  %v1711 = vpop.permute.xlu0 %1710
  %1712 = vrot.lane.b32.xlu0 %v1681, 127
  %v1713 = vpop.permute.xlu0 %1712
  %1714 = vrot.lane.b32.xlu0 %v1682, 127
  %v1715 = vpop.permute.xlu0 %1714
  %1716 = vrot.lane.b32.xlu0 %v1683, 127
  %v1717 = vpop.permute.xlu0 %1716
  %1718 = vrot.lane.b32.xlu0 %v1684, 127
  %v1719 = vpop.permute.xlu0 %1718
  %1720 = vrot.lane.b32.xlu0 %v1685, 127
  %v1721 = vpop.permute.xlu0 %1720
  %1722 = vrot.lane.b32.xlu0 %v1686, 127
  %v1723 = vpop.permute.xlu0 %1722
  %1724 = vrot.lane.b32.xlu0 %v1687, 127
  %v1725 = vpop.permute.xlu0 %1724
  %1726 = vrot.lane.b32.xlu0 %v1688, 127
  %v1727 = vpop.permute.xlu0 %1726
  %1728 = vrot.lane.b32.xlu0 %v1689, 127
  %v1729 = vpop.permute.xlu0 %1728
  %1730 = vrot.lane.b32.xlu0 %v1690, 127
  %v1731 = vpop.permute.xlu0 %1730
  %1732 = vrot.lane.b32.xlu0 %v1691, 127
  %v1733 = vpop.permute.xlu0 %1732
  %1734 = vrot.lane.b32.xlu0 %v1692, 127
  %v1735 = vpop.permute.xlu0 %1734
  %1736 = vrot.lane.b32.xlu0 %v1693, 127
  %v1737 = vpop.permute.xlu0 %1736
  %1738 = vrot.lane.b32.xlu0 %v1694, 127
  %v1739 = vpop.permute.xlu0 %1738
  %v1740 = vsel %vm440, %v1711, %v1713
  %v1741 = vsel %vm440, %v1713, %v1715
  %v1742 = vsel %vm440, %v1715, %v1717
  %v1743 = vsel %vm440, %v1717, %v1719
  %v1744 = vsel %vm440, %v1721, %v1723
  %v1745 = vsel %vm440, %v1723, %v1725
  %v1746 = vsel %vm440, %v1725, %v1727
  %v1747 = vsel %vm440, %v1727, %v1729
  %v1748 = vsel %vm440, %v1731, %v1733
  %v1749 = vsel %vm440, %v1733, %v1735
  %v1750 = vsel %vm440, %v1735, %v1737
  %v1751 = vsel %vm440, %v1737, %v1739
  %v1764 = vadd.f32 %v1665, %v1740
  %v1765 = vadd.f32 %v1666, %v1741
  %v1766 = vadd.f32 %v1667, %v1742
  %v1767 = vadd.f32 %v1668, %v1743
  %v1768 = vadd.f32 %v1669, %v1744
  %v1769 = vadd.f32 %v1670, %v1745
  %v1770 = vadd.f32 %v1671, %v1746
  %v1771 = vadd.f32 %v1672, %v1747
  %v1772 = vadd.f32 %v1673, %v1748
  %v1773 = vadd.f32 %v1674, %v1749
  %v1774 = vadd.f32 %v1675, %v1750
  %v1775 = vadd.f32 %v1676, %v1751
  %v1776 = vmul.f32 %v1653, %v474
  %v1777 = vmul.f32 %v1654, %v482
  %v1778 = vmul.f32 %v1655, %v483
  %v1779 = vmul.f32 %v1656, %v484
  %v1780 = vmul.f32 %v1677, %v480
  %v1781 = vmul.f32 %v1657, %v474
  %v1782 = vmul.f32 %v1658, %v482
  %v1783 = vmul.f32 %v1659, %v483
  %v1784 = vmul.f32 %v1660, %v484
  %v1785 = vmul.f32 %v1678, %v480
  %v1786 = vmul.f32 %v1661, %v474
  %v1787 = vmul.f32 %v1662, %v482
  %v1788 = vmul.f32 %v1663, %v483
  %v1789 = vmul.f32 %v1664, %v484
  %v1790 = vmul.f32 %v1679, %v480
  %1806 = vrot.lane.b32.xlu0 %v1776, 126
  %v1807 = vpop.permute.xlu0 %1806
  %1808 = vrot.lane.b32.xlu0 %v1777, 126
  %v1809 = vpop.permute.xlu0 %1808
  %1810 = vrot.lane.b32.xlu0 %v1778, 126
  %v1811 = vpop.permute.xlu0 %1810
  %1812 = vrot.lane.b32.xlu0 %v1779, 126
  %v1813 = vpop.permute.xlu0 %1812
  %1814 = vrot.lane.b32.xlu0 %v1780, 126
  %v1815 = vpop.permute.xlu0 %1814
  %1816 = vrot.lane.b32.xlu0 %v1781, 126
  %v1817 = vpop.permute.xlu0 %1816
  %1818 = vrot.lane.b32.xlu0 %v1782, 126
  %v1819 = vpop.permute.xlu0 %1818
  %1820 = vrot.lane.b32.xlu0 %v1783, 126
  %v1821 = vpop.permute.xlu0 %1820
  %1822 = vrot.lane.b32.xlu0 %v1784, 126
  %v1823 = vpop.permute.xlu0 %1822
  %1824 = vrot.lane.b32.xlu0 %v1785, 126
  %v1825 = vpop.permute.xlu0 %1824
  %1826 = vrot.lane.b32.xlu0 %v1786, 126
  %v1827 = vpop.permute.xlu0 %1826
  %1828 = vrot.lane.b32.xlu0 %v1787, 126
  %v1829 = vpop.permute.xlu0 %1828
  %1830 = vrot.lane.b32.xlu0 %v1788, 126
  %v1831 = vpop.permute.xlu0 %1830
  %1832 = vrot.lane.b32.xlu0 %v1789, 126
  %v1833 = vpop.permute.xlu0 %1832
  %1834 = vrot.lane.b32.xlu0 %v1790, 126
  %v1835 = vpop.permute.xlu0 %1834
  %v1836 = vsel %vm548, %v1807, %v1809
  %v1837 = vsel %vm548, %v1809, %v1811
  %v1838 = vsel %vm548, %v1811, %v1813
  %v1839 = vsel %vm548, %v1813, %v1815
  %v1840 = vsel %vm548, %v1817, %v1819
  %v1841 = vsel %vm548, %v1819, %v1821
  %v1842 = vsel %vm548, %v1821, %v1823
  %v1843 = vsel %vm548, %v1823, %v1825
  %v1844 = vsel %vm548, %v1827, %v1829
  %v1845 = vsel %vm548, %v1829, %v1831
  %v1846 = vsel %vm548, %v1831, %v1833
  %v1847 = vsel %vm548, %v1833, %v1835
  %v1860 = vadd.f32 %v1764, %v1836
  %v1861 = vadd.f32 %v1765, %v1837
  %v1862 = vadd.f32 %v1766, %v1838
  %v1863 = vadd.f32 %v1767, %v1839
  %v1864 = vadd.f32 %v1768, %v1840
  %v1865 = vadd.f32 %v1769, %v1841
  %v1866 = vadd.f32 %v1770, %v1842
  %v1867 = vadd.f32 %v1771, %v1843
  %v1868 = vadd.f32 %v1772, %v1844
  %v1869 = vadd.f32 %v1773, %v1845
  %v1870 = vadd.f32 %v1774, %v1846
  %v1871 = vadd.f32 %v1775, %v1847
  %v1872 = vmul.f32 %v1653, %v582
  %v1873 = vmul.f32 %v1654, %v590
  %v1874 = vmul.f32 %v1655, %v591
  %v1875 = vmul.f32 %v1656, %v592
  %v1876 = vmul.f32 %v1677, %v588
  %v1877 = vmul.f32 %v1657, %v582
  %v1878 = vmul.f32 %v1658, %v590
  %v1879 = vmul.f32 %v1659, %v591
  %v1880 = vmul.f32 %v1660, %v592
  %v1881 = vmul.f32 %v1678, %v588
  %v1882 = vmul.f32 %v1661, %v582
  %v1883 = vmul.f32 %v1662, %v590
  %v1884 = vmul.f32 %v1663, %v591
  %v1885 = vmul.f32 %v1664, %v592
  %v1886 = vmul.f32 %v1679, %v588
  %1902 = vrot.lane.b32.xlu0 %v1872, 114
  %v1903 = vpop.permute.xlu0 %1902
  %1904 = vrot.lane.b32.xlu0 %v1873, 114
  %v1905 = vpop.permute.xlu0 %1904
  %1906 = vrot.lane.b32.xlu0 %v1874, 114
  %v1907 = vpop.permute.xlu0 %1906
  %1908 = vrot.lane.b32.xlu0 %v1875, 114
  %v1909 = vpop.permute.xlu0 %1908
  %1910 = vrot.lane.b32.xlu0 %v1876, 114
  %v1911 = vpop.permute.xlu0 %1910
  %1912 = vrot.lane.b32.xlu0 %v1877, 114
  %v1913 = vpop.permute.xlu0 %1912
  %1914 = vrot.lane.b32.xlu0 %v1878, 114
  %v1915 = vpop.permute.xlu0 %1914
  %1916 = vrot.lane.b32.xlu0 %v1879, 114
  %v1917 = vpop.permute.xlu0 %1916
  %1918 = vrot.lane.b32.xlu0 %v1880, 114
  %v1919 = vpop.permute.xlu0 %1918
  %1920 = vrot.lane.b32.xlu0 %v1881, 114
  %v1921 = vpop.permute.xlu0 %1920
  %1922 = vrot.lane.b32.xlu0 %v1882, 114
  %v1923 = vpop.permute.xlu0 %1922
  %1924 = vrot.lane.b32.xlu0 %v1883, 114
  %v1925 = vpop.permute.xlu0 %1924
  %1926 = vrot.lane.b32.xlu0 %v1884, 114
  %v1927 = vpop.permute.xlu0 %1926
  %1928 = vrot.lane.b32.xlu0 %v1885, 114
  %v1929 = vpop.permute.xlu0 %1928
  %1930 = vrot.lane.b32.xlu0 %v1886, 114
  %v1931 = vpop.permute.xlu0 %1930
  %v1932 = vsel %vm656, %v1903, %v1905
  %v1933 = vsel %vm656, %v1905, %v1907
  %v1934 = vsel %vm656, %v1907, %v1909
  %v1935 = vsel %vm656, %v1909, %v1911
  %v1936 = vsel %vm656, %v1913, %v1915
  %v1937 = vsel %vm656, %v1915, %v1917
  %v1938 = vsel %vm656, %v1917, %v1919
  %v1939 = vsel %vm656, %v1919, %v1921
  %v1940 = vsel %vm656, %v1923, %v1925
  %v1941 = vsel %vm656, %v1925, %v1927
  %v1942 = vsel %vm656, %v1927, %v1929
  %v1943 = vsel %vm656, %v1929, %v1931
  %v1956 = vadd.f32 %v1860, %v1932
  %v1957 = vadd.f32 %v1861, %v1933
  %v1958 = vadd.f32 %v1862, %v1934
  %v1959 = vadd.f32 %v1863, %v1935
  %v1960 = vadd.f32 %v1864, %v1936
  %v1961 = vadd.f32 %v1865, %v1937
  %v1962 = vadd.f32 %v1866, %v1938
  %v1963 = vadd.f32 %v1867, %v1939
  %v1964 = vadd.f32 %v1868, %v1940
  %v1965 = vadd.f32 %v1869, %v1941
  %v1966 = vadd.f32 %v1870, %v1942
  %v1967 = vadd.f32 %v1871, %v1943
  %v1968 = vmul.f32 %v1653, %v690
  %v1969 = vmul.f32 %v1654, %v697
  %v1970 = vmul.f32 %v1655, %v698
  %v1971 = vmul.f32 %v1656, %v699
  %v1972 = vmul.f32 %v1677, %v696
  %v1973 = vmul.f32 %v1657, %v690
  %v1974 = vmul.f32 %v1658, %v697
  %v1975 = vmul.f32 %v1659, %v698
  %v1976 = vmul.f32 %v1660, %v699
  %v1977 = vmul.f32 %v1678, %v696
  %v1978 = vmul.f32 %v1661, %v690
  %v1979 = vmul.f32 %v1662, %v697
  %v1980 = vmul.f32 %v1663, %v698
  %v1981 = vmul.f32 %v1664, %v699
  %v1982 = vmul.f32 %v1679, %v696
  %1998 = vrot.lane.b32.xlu0 %v1968, 113
  %v1999 = vpop.permute.xlu0 %1998
  %2000 = vrot.lane.b32.xlu0 %v1969, 113
  %v2001 = vpop.permute.xlu0 %2000
  %2002 = vrot.lane.b32.xlu0 %v1970, 113
  %v2003 = vpop.permute.xlu0 %2002
  %2004 = vrot.lane.b32.xlu0 %v1971, 113
  %v2005 = vpop.permute.xlu0 %2004
  %2006 = vrot.lane.b32.xlu0 %v1972, 113
  %v2007 = vpop.permute.xlu0 %2006
  %2008 = vrot.lane.b32.xlu0 %v1973, 113
  %v2009 = vpop.permute.xlu0 %2008
  %2010 = vrot.lane.b32.xlu0 %v1974, 113
  %v2011 = vpop.permute.xlu0 %2010
  %2012 = vrot.lane.b32.xlu0 %v1975, 113
  %v2013 = vpop.permute.xlu0 %2012
  %2014 = vrot.lane.b32.xlu0 %v1976, 113
  %v2015 = vpop.permute.xlu0 %2014
  %2016 = vrot.lane.b32.xlu0 %v1977, 113
  %v2017 = vpop.permute.xlu0 %2016
  %2018 = vrot.lane.b32.xlu0 %v1978, 113
  %v2019 = vpop.permute.xlu0 %2018
  %2020 = vrot.lane.b32.xlu0 %v1979, 113
  %v2021 = vpop.permute.xlu0 %2020
  %2022 = vrot.lane.b32.xlu0 %v1980, 113
  %v2023 = vpop.permute.xlu0 %2022
  %2024 = vrot.lane.b32.xlu0 %v1981, 113
  %v2025 = vpop.permute.xlu0 %2024
  %2026 = vrot.lane.b32.xlu0 %v1982, 113
  %v2027 = vpop.permute.xlu0 %2026
  %v2028 = vsel %vm763, %v1999, %v2001
  %v2029 = vsel %vm763, %v2001, %v2003
  %v2030 = vsel %vm763, %v2003, %v2005
  %v2031 = vsel %vm763, %v2005, %v2007
  %v2032 = vsel %vm763, %v2009, %v2011
  %v2033 = vsel %vm763, %v2011, %v2013
  %v2034 = vsel %vm763, %v2013, %v2015
  %v2035 = vsel %vm763, %v2015, %v2017
  %v2036 = vsel %vm763, %v2019, %v2021
  %v2037 = vsel %vm763, %v2021, %v2023
  %v2038 = vsel %vm763, %v2023, %v2025
  %v2039 = vsel %vm763, %v2025, %v2027
  %v2052 = vadd.f32 %v1956, %v2028
  %v2053 = vadd.f32 %v1957, %v2029
  %v2054 = vadd.f32 %v1958, %v2030
  %v2055 = vadd.f32 %v1959, %v2031
  %v2056 = vadd.f32 %v1960, %v2032
  %v2057 = vadd.f32 %v1961, %v2033
  %v2058 = vadd.f32 %v1962, %v2034
  %v2059 = vadd.f32 %v1963, %v2035
  %v2060 = vadd.f32 %v1964, %v2036
  %v2061 = vadd.f32 %v1965, %v2037
  %v2062 = vadd.f32 %v1966, %v2038
  %v2063 = vadd.f32 %v1967, %v2039
  %v2064 = vmul.f32 %v1653, %v797
  %v2065 = vmul.f32 %v1654, %v805
  %v2066 = vmul.f32 %v1655, %v806
  %v2067 = vmul.f32 %v1656, %v807
  %v2068 = vmul.f32 %v1677, %v803
  %v2069 = vmul.f32 %v1657, %v797
  %v2070 = vmul.f32 %v1658, %v805
  %v2071 = vmul.f32 %v1659, %v806
  %v2072 = vmul.f32 %v1660, %v807
  %v2073 = vmul.f32 %v1678, %v803
  %v2074 = vmul.f32 %v1661, %v797
  %v2075 = vmul.f32 %v1662, %v805
  %v2076 = vmul.f32 %v1663, %v806
  %v2077 = vmul.f32 %v1664, %v807
  %v2078 = vmul.f32 %v1679, %v803
  %2094 = vrot.lane.b32.xlu0 %v2064, 112
  %v2095 = vpop.permute.xlu0 %2094
  %2096 = vrot.lane.b32.xlu0 %v2065, 112
  %v2097 = vpop.permute.xlu0 %2096
  %2098 = vrot.lane.b32.xlu0 %v2066, 112
  %v2099 = vpop.permute.xlu0 %2098
  %2100 = vrot.lane.b32.xlu0 %v2067, 112
  %v2101 = vpop.permute.xlu0 %2100
  %2102 = vrot.lane.b32.xlu0 %v2068, 112
  %v2103 = vpop.permute.xlu0 %2102
  %2104 = vrot.lane.b32.xlu0 %v2069, 112
  %v2105 = vpop.permute.xlu0 %2104
  %2106 = vrot.lane.b32.xlu0 %v2070, 112
  %v2107 = vpop.permute.xlu0 %2106
  %2108 = vrot.lane.b32.xlu0 %v2071, 112
  %v2109 = vpop.permute.xlu0 %2108
  %2110 = vrot.lane.b32.xlu0 %v2072, 112
  %v2111 = vpop.permute.xlu0 %2110
  %2112 = vrot.lane.b32.xlu0 %v2073, 112
  %v2113 = vpop.permute.xlu0 %2112
  %2114 = vrot.lane.b32.xlu0 %v2074, 112
  %v2115 = vpop.permute.xlu0 %2114
  %2116 = vrot.lane.b32.xlu0 %v2075, 112
  %v2117 = vpop.permute.xlu0 %2116
  %2118 = vrot.lane.b32.xlu0 %v2076, 112
  %v2119 = vpop.permute.xlu0 %2118
  %2120 = vrot.lane.b32.xlu0 %v2077, 112
  %v2121 = vpop.permute.xlu0 %2120
  %2122 = vrot.lane.b32.xlu0 %v2078, 112
  %v2123 = vpop.permute.xlu0 %2122
  %v2124 = vsel %vm871, %v2095, %v2097
  %v2125 = vsel %vm871, %v2097, %v2099
  %v2126 = vsel %vm871, %v2099, %v2101
  %v2127 = vsel %vm871, %v2101, %v2103
  %v2128 = vsel %vm871, %v2105, %v2107
  %v2129 = vsel %vm871, %v2107, %v2109
  %v2130 = vsel %vm871, %v2109, %v2111
  %v2131 = vsel %vm871, %v2111, %v2113
  %v2132 = vsel %vm871, %v2115, %v2117
  %v2133 = vsel %vm871, %v2117, %v2119
  %v2134 = vsel %vm871, %v2119, %v2121
  %v2135 = vsel %vm871, %v2121, %v2123
  %v2148 = vadd.f32 %v2052, %v2124
  %v2149 = vadd.f32 %v2053, %v2125
  %v2150 = vadd.f32 %v2054, %v2126
  %v2151 = vadd.f32 %v2055, %v2127
  %v2152 = vadd.f32 %v2056, %v2128
  %v2153 = vadd.f32 %v2057, %v2129
  %v2154 = vadd.f32 %v2058, %v2130
  %v2155 = vadd.f32 %v2059, %v2131
  %v2156 = vadd.f32 %v2060, %v2132
  %v2157 = vadd.f32 %v2061, %v2133
  %v2158 = vadd.f32 %v2062, %v2134
  %v2159 = vadd.f32 %v2063, %v2135
  %v2160 = vmul.f32 %v1653, %v905
  %v2161 = vmul.f32 %v1654, %v913
  %v2162 = vmul.f32 %v1655, %v914
  %v2163 = vmul.f32 %v1656, %v915
  %v2164 = vmul.f32 %v1677, %v911
  %v2165 = vmul.f32 %v1657, %v905
  %v2166 = vmul.f32 %v1658, %v913
  %v2167 = vmul.f32 %v1659, %v914
  %v2168 = vmul.f32 %v1660, %v915
  %v2169 = vmul.f32 %v1678, %v911
  %v2170 = vmul.f32 %v1661, %v905
  %v2171 = vmul.f32 %v1662, %v913
  %v2172 = vmul.f32 %v1663, %v914
  %v2173 = vmul.f32 %v1664, %v915
  %v2174 = vmul.f32 %v1679, %v911
  %2190 = vrot.lane.b32.xlu0 %v2160, 100
  %v2191 = vpop.permute.xlu0 %2190
  %2192 = vrot.lane.b32.xlu0 %v2161, 100
  %v2193 = vpop.permute.xlu0 %2192
  %2194 = vrot.lane.b32.xlu0 %v2162, 100
  %v2195 = vpop.permute.xlu0 %2194
  %2196 = vrot.lane.b32.xlu0 %v2163, 100
  %v2197 = vpop.permute.xlu0 %2196
  %2198 = vrot.lane.b32.xlu0 %v2164, 100
  %v2199 = vpop.permute.xlu0 %2198
  %2200 = vrot.lane.b32.xlu0 %v2165, 100
  %v2201 = vpop.permute.xlu0 %2200
  %2202 = vrot.lane.b32.xlu0 %v2166, 100
  %v2203 = vpop.permute.xlu0 %2202
  %2204 = vrot.lane.b32.xlu0 %v2167, 100
  %v2205 = vpop.permute.xlu0 %2204
  %2206 = vrot.lane.b32.xlu0 %v2168, 100
  %v2207 = vpop.permute.xlu0 %2206
  %2208 = vrot.lane.b32.xlu0 %v2169, 100
  %v2209 = vpop.permute.xlu0 %2208
  %2210 = vrot.lane.b32.xlu0 %v2170, 100
  %v2211 = vpop.permute.xlu0 %2210
  %2212 = vrot.lane.b32.xlu0 %v2171, 100
  %v2213 = vpop.permute.xlu0 %2212
  %2214 = vrot.lane.b32.xlu0 %v2172, 100
  %v2215 = vpop.permute.xlu0 %2214
  %2216 = vrot.lane.b32.xlu0 %v2173, 100
  %v2217 = vpop.permute.xlu0 %2216
  %2218 = vrot.lane.b32.xlu0 %v2174, 100
  %v2219 = vpop.permute.xlu0 %2218
  %v2220 = vsel %vm979, %v2191, %v2193
  %v2221 = vsel %vm979, %v2193, %v2195
  %v2222 = vsel %vm979, %v2195, %v2197
  %v2223 = vsel %vm979, %v2197, %v2199
  %v2224 = vsel %vm979, %v2201, %v2203
  %v2225 = vsel %vm979, %v2203, %v2205
  %v2226 = vsel %vm979, %v2205, %v2207
  %v2227 = vsel %vm979, %v2207, %v2209
  %v2228 = vsel %vm979, %v2211, %v2213
  %v2229 = vsel %vm979, %v2213, %v2215
  %v2230 = vsel %vm979, %v2215, %v2217
  %v2231 = vsel %vm979, %v2217, %v2219
  %v2244 = vadd.f32 %v2148, %v2220
  %v2245 = vadd.f32 %v2149, %v2221
  %v2246 = vadd.f32 %v2150, %v2222
  %v2247 = vadd.f32 %v2151, %v2223
  %v2248 = vadd.f32 %v2152, %v2224
  %v2249 = vadd.f32 %v2153, %v2225
  %v2250 = vadd.f32 %v2154, %v2226
  %v2251 = vadd.f32 %v2155, %v2227
  %v2252 = vadd.f32 %v2156, %v2228
  %v2253 = vadd.f32 %v2157, %v2229
  %v2254 = vadd.f32 %v2158, %v2230
  %v2255 = vadd.f32 %v2159, %v2231
  %v2256 = vmul.f32 %v1653, %v1013
  %v2257 = vmul.f32 %v1654, %v1021
  %v2258 = vmul.f32 %v1655, %v1022
  %v2259 = vmul.f32 %v1656, %v1023
  %v2260 = vmul.f32 %v1677, %v1019
  %v2261 = vmul.f32 %v1657, %v1013
  %v2262 = vmul.f32 %v1658, %v1021
  %v2263 = vmul.f32 %v1659, %v1022
  %v2264 = vmul.f32 %v1660, %v1023
  %v2265 = vmul.f32 %v1678, %v1019
  %v2266 = vmul.f32 %v1661, %v1013
  %v2267 = vmul.f32 %v1662, %v1021
  %v2268 = vmul.f32 %v1663, %v1022
  %v2269 = vmul.f32 %v1664, %v1023
  %v2270 = vmul.f32 %v1679, %v1019
  %2286 = vrot.lane.b32.xlu0 %v2256, 99
  %v2287 = vpop.permute.xlu0 %2286
  %2288 = vrot.lane.b32.xlu0 %v2257, 99
  %v2289 = vpop.permute.xlu0 %2288
  %2290 = vrot.lane.b32.xlu0 %v2258, 99
  %v2291 = vpop.permute.xlu0 %2290
  %2292 = vrot.lane.b32.xlu0 %v2259, 99
  %v2293 = vpop.permute.xlu0 %2292
  %2294 = vrot.lane.b32.xlu0 %v2260, 99
  %v2295 = vpop.permute.xlu0 %2294
  %2296 = vrot.lane.b32.xlu0 %v2261, 99
  %v2297 = vpop.permute.xlu0 %2296
  %2298 = vrot.lane.b32.xlu0 %v2262, 99
  %v2299 = vpop.permute.xlu0 %2298
  %2300 = vrot.lane.b32.xlu0 %v2263, 99
  %v2301 = vpop.permute.xlu0 %2300
  %2302 = vrot.lane.b32.xlu0 %v2264, 99
  %v2303 = vpop.permute.xlu0 %2302
  %2304 = vrot.lane.b32.xlu0 %v2265, 99
  %v2305 = vpop.permute.xlu0 %2304
  %2306 = vrot.lane.b32.xlu0 %v2266, 99
  %v2307 = vpop.permute.xlu0 %2306
  %2308 = vrot.lane.b32.xlu0 %v2267, 99
  %v2309 = vpop.permute.xlu0 %2308
  %2310 = vrot.lane.b32.xlu0 %v2268, 99
  %v2311 = vpop.permute.xlu0 %2310
  %2312 = vrot.lane.b32.xlu0 %v2269, 99
  %v2313 = vpop.permute.xlu0 %2312
  %2314 = vrot.lane.b32.xlu0 %v2270, 99
  %v2315 = vpop.permute.xlu0 %2314
  %v2316 = vsel %vm1087, %v2287, %v2289
  %v2317 = vsel %vm1087, %v2289, %v2291
  %v2318 = vsel %vm1087, %v2291, %v2293
  %v2319 = vsel %vm1087, %v2293, %v2295
  %v2320 = vsel %vm1087, %v2297, %v2299
  %v2321 = vsel %vm1087, %v2299, %v2301
  %v2322 = vsel %vm1087, %v2301, %v2303
  %v2323 = vsel %vm1087, %v2303, %v2305
  %v2324 = vsel %vm1087, %v2307, %v2309
  %v2325 = vsel %vm1087, %v2309, %v2311
  %v2326 = vsel %vm1087, %v2311, %v2313
  %v2327 = vsel %vm1087, %v2313, %v2315
  %v2340 = vadd.f32 %v2244, %v2316
  %v2341 = vadd.f32 %v2245, %v2317
  %v2342 = vadd.f32 %v2246, %v2318
  %v2343 = vadd.f32 %v2247, %v2319
  %v2344 = vadd.f32 %v2248, %v2320
  %v2345 = vadd.f32 %v2249, %v2321
  %v2346 = vadd.f32 %v2250, %v2322
  %v2347 = vadd.f32 %v2251, %v2323
  %v2348 = vadd.f32 %v2252, %v2324
  %v2349 = vadd.f32 %v2253, %v2325
  %v2350 = vadd.f32 %v2254, %v2326
  %v2351 = vadd.f32 %v2255, %v2327
  %v2352 = vmul.f32 %v1653, %v1121
  %v2353 = vmul.f32 %v1654, %v1128
  %v2354 = vmul.f32 %v1655, %v1129
  %v2355 = vmul.f32 %v1656, %v1130
  %v2356 = vmul.f32 %v1677, %v1127
  %v2357 = vmul.f32 %v1657, %v1121
  %v2358 = vmul.f32 %v1658, %v1128
  %v2359 = vmul.f32 %v1659, %v1129
  %v2360 = vmul.f32 %v1660, %v1130
  %v2361 = vmul.f32 %v1678, %v1127
  %v2362 = vmul.f32 %v1661, %v1121
  %v2363 = vmul.f32 %v1662, %v1128
  %v2364 = vmul.f32 %v1663, %v1129
  %v2365 = vmul.f32 %v1664, %v1130
  %v2366 = vmul.f32 %v1679, %v1127
  %2382 = vrot.lane.b32.xlu0 %v2352, 98
  %v2383 = vpop.permute.xlu0 %2382
  %2384 = vrot.lane.b32.xlu0 %v2353, 98
  %v2385 = vpop.permute.xlu0 %2384
  %2386 = vrot.lane.b32.xlu0 %v2354, 98
  %v2387 = vpop.permute.xlu0 %2386
  %2388 = vrot.lane.b32.xlu0 %v2355, 98
  %v2389 = vpop.permute.xlu0 %2388
  %2390 = vrot.lane.b32.xlu0 %v2356, 98
  %v2391 = vpop.permute.xlu0 %2390
  %2392 = vrot.lane.b32.xlu0 %v2357, 98
  %v2393 = vpop.permute.xlu0 %2392
  %2394 = vrot.lane.b32.xlu0 %v2358, 98
  %v2395 = vpop.permute.xlu0 %2394
  %2396 = vrot.lane.b32.xlu0 %v2359, 98
  %v2397 = vpop.permute.xlu0 %2396
  %2398 = vrot.lane.b32.xlu0 %v2360, 98
  %v2399 = vpop.permute.xlu0 %2398
  %2400 = vrot.lane.b32.xlu0 %v2361, 98
  %v2401 = vpop.permute.xlu0 %2400
  %2402 = vrot.lane.b32.xlu0 %v2362, 98
  %v2403 = vpop.permute.xlu0 %2402
  %2404 = vrot.lane.b32.xlu0 %v2363, 98
  %v2405 = vpop.permute.xlu0 %2404
  %2406 = vrot.lane.b32.xlu0 %v2364, 98
  %v2407 = vpop.permute.xlu0 %2406
  %2408 = vrot.lane.b32.xlu0 %v2365, 98
  %v2409 = vpop.permute.xlu0 %2408
  %2410 = vrot.lane.b32.xlu0 %v2366, 98
  %v2411 = vpop.permute.xlu0 %2410
  %v2412 = vsel %vm1194, %v2383, %v2385
  %v2413 = vsel %vm1194, %v2385, %v2387
  %v2414 = vsel %vm1194, %v2387, %v2389
  %v2415 = vsel %vm1194, %v2389, %v2391
  %v2416 = vsel %vm1194, %v2393, %v2395
  %v2417 = vsel %vm1194, %v2395, %v2397
  %v2418 = vsel %vm1194, %v2397, %v2399
  %v2419 = vsel %vm1194, %v2399, %v2401
  %v2420 = vsel %vm1194, %v2403, %v2405
  %v2421 = vsel %vm1194, %v2405, %v2407
  %v2422 = vsel %vm1194, %v2407, %v2409
  %v2423 = vsel %vm1194, %v2409, %v2411
  %v2436 = vadd.f32 %v2340, %v2412
  %v2437 = vadd.f32 %v2341, %v2413
  %v2438 = vadd.f32 %v2342, %v2414
  %v2439 = vadd.f32 %v2343, %v2415
  %v2440 = vadd.f32 %v2344, %v2416
  %v2441 = vadd.f32 %v2345, %v2417
  %v2442 = vadd.f32 %v2346, %v2418
  %v2443 = vadd.f32 %v2347, %v2419
  %v2444 = vadd.f32 %v2348, %v2420
  %v2445 = vadd.f32 %v2349, %v2421
  %v2446 = vadd.f32 %v2350, %v2422
  %v2447 = vadd.f32 %v2351, %v2423
  %v2448 = vmul.f32 %v2436, 0.11111111
  %v2449 = vmul.f32 %v2437, 0.11111111
  %v2450 = vmul.f32 %v2438, 0.11111111
  %v2451 = vmul.f32 %v2439, 0.11111111
  %v2452 = vmul.f32 %v2440, 0.11111111
  %v2453 = vmul.f32 %v2441, 0.11111111
  %v2454 = vmul.f32 %v2442, 0.11111111
  %v2455 = vmul.f32 %v2443, 0.11111111
  %v2456 = vmul.f32 %v2444, 0.11111111
  %v2457 = vmul.f32 %v2445, 0.11111111
  %v2458 = vmul.f32 %v2446, 0.11111111
  %v2459 = vmul.f32 %v2447, 0.11111111
  %v2460 = vpack.c.bf16 %v2452, %v2448
  %v2461 = vpack.c.bf16 %v2453, %v2449
  %v2462 = vpack.c.bf16 %v2454, %v2450
  %v2463 = vpack.c.bf16 %v2455, %v2451
  %v2464 = vpack.c.bf16 %v2456, %v2456
  %v2465 = vpack.c.bf16 %v2457, %v2457
  %v2466 = vpack.c.bf16 %v2458, %v2458
  %v2467 = vpack.c.bf16 %v2459, %v2459
  %2468 = vmatpush.bf16.msra.mxu0 %v1370
  %2469 = vmatpush.bf16.msra.mxu0 %v1369
  %2470 = vmatpush.bf16.msra.mxu0 %v1368
  %2471 = vmatpush.bf16.msra.mxu0 %v1367
  %2472 = vmatpush.bf16.msra.mxu0 %v1366
  %2473 = vmatpush.bf16.msra.mxu0 %v1365
  %2474 = vmatpush.bf16.msra.mxu0 %v1364
  %2475 = vmatpush.bf16.msra.mxu0 %v1363
  %2476 = vmatmul.bf16.gmra.mxu0 %v2460
  %v2477 = vpop.f32.mrf.mxu0
  %v2478 = vadd.f32 0.0, %v2477
  %v2479 = vpop.f32.mrf.mxu0
  %v2480 = vadd.f32 0.0, %v2479
  %2481 = vmatmul.bf16.gmra.mxu0 %v2464
  %v2482 = vpop.f32.mrf.mxu0
  %v2483 = vadd.f32 0.0, %v2482
  %v2484 = vpop.f32.mrf.mxu0
  %2485 = vdwg.mxu0
  %2486 = vmatpush.bf16.msra.mxu0 %v1378
  %2487 = vmatpush.bf16.msra.mxu0 %v1377
  %2488 = vmatpush.bf16.msra.mxu0 %v1376
  %2489 = vmatpush.bf16.msra.mxu0 %v1375
  %2490 = vmatpush.bf16.msra.mxu0 %v1374
  %2491 = vmatpush.bf16.msra.mxu0 %v1373
  %2492 = vmatpush.bf16.msra.mxu0 %v1372
  %2493 = vmatpush.bf16.msra.mxu0 %v1371
  %2494 = vmatmul.bf16.gmra.mxu0 %v2461
  %v2495 = vpop.f32.mrf.mxu0
  %v2496 = vadd.f32 %v2478, %v2495
  %v2497 = vpop.f32.mrf.mxu0
  %v2498 = vadd.f32 %v2480, %v2497
  %2499 = vmatmul.bf16.gmra.mxu0 %v2465
  %v2500 = vpop.f32.mrf.mxu0
  %v2501 = vadd.f32 %v2483, %v2500
  %v2502 = vpop.f32.mrf.mxu0
  %2503 = vdwg.mxu0
  %2504 = vmatpush.bf16.msra.mxu0 %v1386
  %2505 = vmatpush.bf16.msra.mxu0 %v1385
  %2506 = vmatpush.bf16.msra.mxu0 %v1384
  %2507 = vmatpush.bf16.msra.mxu0 %v1383
  %2508 = vmatpush.bf16.msra.mxu0 %v1382
  %2509 = vmatpush.bf16.msra.mxu0 %v1381
  %2510 = vmatpush.bf16.msra.mxu0 %v1380
  %2511 = vmatpush.bf16.msra.mxu0 %v1379
  %2512 = vmatmul.bf16.gmra.mxu0 %v2462
  %v2513 = vpop.f32.mrf.mxu0
  %v2514 = vadd.f32 %v2496, %v2513
  %v2515 = vpop.f32.mrf.mxu0
  %v2516 = vadd.f32 %v2498, %v2515
  %2517 = vmatmul.bf16.gmra.mxu0 %v2466
  %v2518 = vpop.f32.mrf.mxu0
  %v2519 = vadd.f32 %v2501, %v2518
  %v2520 = vpop.f32.mrf.mxu0
  %2521 = vdwg.mxu0
  %2522 = vmatpush.bf16.msra.mxu0 %v1394
  %2523 = vmatpush.bf16.msra.mxu0 %v1393
  %2524 = vmatpush.bf16.msra.mxu0 %v1392
  %2525 = vmatpush.bf16.msra.mxu0 %v1391
  %2526 = vmatpush.bf16.msra.mxu0 %v1390
  %2527 = vmatpush.bf16.msra.mxu0 %v1389
  %2528 = vmatpush.bf16.msra.mxu0 %v1388
  %2529 = vmatpush.bf16.msra.mxu0 %v1387
  %2530 = vmatmul.bf16.gmra.mxu0 %v2463
  %v2531 = vpop.f32.mrf.mxu0
  %v2532 = vadd.f32 %v2514, %v2531
  %v2533 = vpop.f32.mrf.mxu0
  %v2534 = vadd.f32 %v2516, %v2533
  %2535 = vmatmul.bf16.gmra.mxu0 %v2467
  %v2536 = vpop.f32.mrf.mxu0
  %v2537 = vadd.f32 %v2519, %v2536
  %v2538 = vpop.f32.mrf.mxu0
  %2539 = vdwg.mxu0
  %v2540 = vmax.f32 %v2532, 0.0
  %v2541 = vmax.f32 %v2534, 0.0
  %v2542 = vmax.f32 %v2537, 0.0
  %v2543 = vpack.c.bf16 %v2540, %v2540
  %v2544 = vpack.c.bf16 %v2541, %v2541
  %v2545 = vpack.c.bf16 %v2542, %v2542
  %2546 = vst [vmem:[%s9 + $0xc] sm:$0xf] %v2543
  %2547 = vst [vmem:[%s9 + $0x10] sm:$0xf] %v2544
  %2548 = vst [vmem:[%s9 + $0x14] sm:$0xf] %v2545
  // Predicated region
  $region38: #{_lambda_.8} parent=0 // pred_check
    _
  $region39: #{_lambda_.8} parent=0 // pred_check_branch
    %2550 = sbr.rel (0) target = $region41
  $region40: #{_lambda_.8} parent=0 // pred_region
    _
  $region41: #{_lambda_.8} parent=0 // pred_fallthru
    _
  // Predicated region
  $region42: #{_lambda_.8} parent=0 // pred_check
    _
  $region43: #{_lambda_.8} parent=0 // pred_check_branch
    %2552 = sbr.rel (0) target = $region45
  $region44: #{_lambda_.8} parent=0 // pred_region
    _
  $region45: #{_lambda_.8} parent=0 // pred_fallthru
    _

// kernel: _lambda_.9
$region0: #{_lambda_.9}
  #allocation0 [shape = 'u32[]', space=smem, size = 0x4, offset = 0x4, fixed_abs, tag = 'smem constant byte address 0x4 - core index']
  #allocation1 [shape = 'u32[72,128]{1,0:T(1,128)}', space=vmem, size = 0x9000, scoped, tag = 'internal scratch']
  #allocation2 [shape = 'f32[12,144]{1,0:T(8,128)}', space=vmem, size = 0x4000, scoped, tag = 'scratch operand']
  %s0 = inlined_call_operand.vmem [shape: bf16[48,128], index: 0, kind: input, shape index: {}]
  %s1 = inlined_call_operand.vmem [shape: bf16[12,48], index: 1, kind: input, shape index: {}]
  %s2 = inlined_call_operand.vmem [shape: f32[12,1], index: 2, kind: input, shape index: {}]
  %s3 = inlined_call_operand.vmem [shape: f32[12,9], index: 3, kind: input, shape index: {}]
  %s4 = inlined_call_operand.vmem [shape: f32[12,1], index: 4, kind: input, shape index: {}]
  %s5 = inlined_call_operand.vmem [shape: bf16[48,12], index: 5, kind: input, shape index: {}]
  %s6 = inlined_call_operand.vmem [shape: f32[48,1], index: 6, kind: input, shape index: {}]
  %s7 = inlined_call_operand.vmem [shape: f32[9,128], index: 7, kind: input, shape index: {}]
  %s8 = inlined_call_operand.vmem [shape: bf16[48,128], index: 8, kind: output, shape index: {}]
  %s9 = sld [smem:[#allocation0]]
  $region42: #{_lambda_.9} parent=0
    _
  %s11 = ssub.s32 1, %s9
  %s12 = scalar_select 0, %s11, %s9
  // Predicated region
  $region2: #{_lambda_.9} parent=0 // pred_check
    _
  $region3: #{_lambda_.9} parent=0 // pred_check_branch
    %14 = sbr.rel (0) target = $region5
  $region4: #{_lambda_.9} parent=0 // pred_region
    _
  $region5: #{_lambda_.9} parent=0 // pred_fallthru
    _
  // Predicated region
  $region6: #{_lambda_.9} parent=0 // pred_check
    _
  $region7: #{_lambda_.9} parent=0 // pred_check_branch
    %16 = sbr.rel (0) target = $region9
  $region8: #{_lambda_.9} parent=0 // pred_region
    _
  $region9: #{_lambda_.9} parent=0 // pred_fallthru
    _
  // Predicated region
  $region10: #{_lambda_.9} parent=0 // pred_check
    _
  $region11: #{_lambda_.9} parent=0 // pred_check_branch
    %18 = sbr.rel (0) target = $region13
  $region12: #{_lambda_.9} parent=0 // pred_region
    _
  $region13: #{_lambda_.9} parent=0 // pred_fallthru
    _
  // Predicated region
  $region14: #{_lambda_.9} parent=0 // pred_check
    _
  $region15: #{_lambda_.9} parent=0 // pred_check_branch
    %20 = sbr.rel (0) target = $region17
  $region16: #{_lambda_.9} parent=0 // pred_region
    _
  $region17: #{_lambda_.9} parent=0 // pred_fallthru
    _
  // Predicated region
  $region18: #{_lambda_.9} parent=0 // pred_check
    _
  $region19: #{_lambda_.9} parent=0 // pred_check_branch
    %22 = sbr.rel (0) target = $region21
  $region20: #{_lambda_.9} parent=0 // pred_region
    _
  $region21: #{_lambda_.9} parent=0 // pred_fallthru
    _
  // Predicated region
  $region22: #{_lambda_.9} parent=0 // pred_check
    _
  $region23: #{_lambda_.9} parent=0 // pred_check_branch
    %24 = sbr.rel (0) target = $region25
  $region24: #{_lambda_.9} parent=0 // pred_region
    _
  $region25: #{_lambda_.9} parent=0 // pred_fallthru
    _
  // Predicated region
  $region26: #{_lambda_.9} parent=0 // pred_check
    _
  $region27: #{_lambda_.9} parent=0 // pred_check_branch
    %26 = sbr.rel (0) target = $region29
  $region28: #{_lambda_.9} parent=0 // pred_region
    _
  $region29: #{_lambda_.9} parent=0 // pred_fallthru
    _
  // Predicated region
  $region30: #{_lambda_.9} parent=0 // pred_check
    _
  $region31: #{_lambda_.9} parent=0 // pred_check_branch
    %28 = sbr.rel (0) target = $region33
  $region32: #{_lambda_.9} parent=0 // pred_region
    _
  $region33: #{_lambda_.9} parent=0 // pred_fallthru
    _
  %v30 = vld [vmem:[%s0] sm:$0xf]
  %v31 = vld [vmem:[%s0 + $0x4] sm:$0xf]
  %v32 = vld [vmem:[%s0 + $0x8] sm:$0xf]
  %v33 = vld [vmem:[%s0 + $0xc] sm:$0xf]
  %v34 = vld [vmem:[%s0 + $0x10] sm:$0xf]
  %v35 = vld [vmem:[%s0 + $0x14] sm:$0xf]
  %v36 = vld [vmem:[%s1] sm:$0xf]
  %v37 = vld [vmem:[%s1 + $0x4] sm:$0x3]
  %v38 = vld [vmem:[%s2] sm:$0xff]
  %v39 = vld [vmem:[%s2 + $0x8] sm:$0xf]
  %41 = vset.pattern.permute.xlu0 0
  %42 = vperm.xlu0 %41, %v38
  %v43 = vpop.permute.xlu0 %42
  %46 = vset.pattern.permute.xlu0 0
  %47 = vperm.xlu0 %46, %v39
  %v48 = vpop.permute.xlu0 %47
  %v52 = vunpack.c.l.b16 %v36
  %v53 = vunpack.c.l.b16 %v37
  %v54 = vpack.c.b16 %v53, %v52
  %v61 = vunpack.c.l.b16 %v30
  %v62 = vunpack.c.l.b16 %v31
  %v63 = vunpack.c.l.b16 %v32
  %v64 = vunpack.c.l.b16 %v33
  %v65 = vunpack.c.l.b16 %v34
  %v66 = vunpack.c.l.b16 %v35
  %v67 = vpack.c.b16 %v62, %v61
  %v68 = vpack.c.b16 %v64, %v63
  %v69 = vpack.c.b16 %v66, %v65
  %vm73 = vcmask 392192
  %v75 = vsel %vm73, %v54, 0
  %77 = vmatpush.bf16.msra.mxu0 0
  %78 = vmatpush.bf16.msra.mxu0 0
  %79 = vmatpush.bf16.msra.mxu0 0
  %80 = vmatpush.bf16.msra.mxu0 0
  %81 = vmatpush.bf16.msra.mxu0 0
  %82 = vmatpush.bf16.msra.mxu0 %v69
  %83 = vmatpush.bf16.msra.mxu0 %v68
  %84 = vmatpush.bf16.msra.mxu0 %v67
  %85 = vmatmul.bf16.gmra.mxu0 %v75
  %v86 = vpop.f32.mrf.mxu0
  %v87 = vadd.f32 %v43, %v86
  %v88 = vpop.f32.mrf.mxu0
  %v89 = vadd.f32 %v48, %v88
  %90 = vdwg.mxu0
  %v91 = vmax.f32 %v87, 0.0
  %v92 = vmax.f32 %v89, 0.0
  %93 = vst [vmem:[#allocation2] sm:$0xff] 0.0
  %vm94 = vcmask 130048
  %95 = vst.msk [vmem:[#allocation2 + $0x8] sm:$0xff] %vm94, 0.0
  %96 = vst [vmem:[#allocation2 + $0x10] sm:$0xf] 0.0
  %vm97 = vcmask 125952
  %98 = vst.msk [vmem:[#allocation2 + $0x18] sm:$0xf] %vm97, 0.0
  %101 = vrot.lane.b32.xlu0 %v91, 8
  %v102 = vpop.permute.xlu0 %101
  %103 = vrot.lane.b32.xlu0 %v92, 8
  %v104 = vpop.permute.xlu0 %103
  %vm107 = vcmask 1047616
  %108 = vst.msk [vmem:[#allocation2] sm:$0xff] %vm107, %v102
  %vm109 = vcmask 64512
  %110 = vst.msk [vmem:[#allocation2 + $0x8] sm:$0xff] %vm109, %v102
  %vm111 = vcmask 1043520
  %112 = vst.msk [vmem:[#allocation2 + $0x10] sm:$0xf] %vm111, %v104
  %vm113 = vcmask 60416
  %114 = vst.msk [vmem:[#allocation2 + $0x18] sm:$0xf] %vm113, %v104
  %v115 = vld [vmem:[%s7] sm:$0xff]
  %v116 = vld [vmem:[%s7 + $0x8] sm:$0x1]
  %v117 = vld [vmem:[%s3] sm:$0xff]
  %v118 = vld [vmem:[%s3 + $0x8] sm:$0xf]
  %v119 = vld [vmem:[#allocation2] sm:$0xff]
  %v120 = vld [vmem:[#allocation2 + $0x10] sm:$0xf]
  %v121 = vperm.slane %v115, 0
  %v122 = vmul.f32 %v119, %v121
  %v123 = vmul.f32 %v120, %v121
  %125 = vset.pattern.permute.xlu0 0
  %126 = vperm.xlu0 %125, %v117
  %v127 = vpop.permute.xlu0 %126
  %130 = vset.pattern.permute.xlu0 0
  %131 = vperm.xlu0 %130, %v118
  %v132 = vpop.permute.xlu0 %131
  %v134 = vmul.f32 %v122, %v127
  %v135 = vmul.f32 %v123, %v132
  %v136 = vld [vmem:[#allocation2] sm:$0xff]
  %v137 = vld [vmem:[#allocation2 + $0x8] sm:$0xff]
  %v138 = vld [vmem:[#allocation2 + $0x10] sm:$0xf]
  %v139 = vld [vmem:[#allocation2 + $0x18] sm:$0xf]
  %v140 = vperm.slane %v115, 1
  %142 = vrot.lane.b32.xlu0 %v140, 1
  %v143 = vpop.permute.xlu0 %142
  %v145 = vmul.f32 %v136, %v143
  %v146 = vmul.f32 %v137, %v143
  %v147 = vmul.f32 %v138, %v143
  %v148 = vmul.f32 %v139, %v143
  %149 = vset.pattern.permute.xlu0 1
  %150 = vperm.xlu0 %149, %v117
  %v151 = vpop.permute.xlu0 %150
  %153 = vset.pattern.permute.xlu0 1
  %154 = vperm.xlu0 %153, %v118
  %v155 = vpop.permute.xlu0 %154
  %v157 = vmul.f32 %v145, %v151
  %v158 = vmul.f32 %v146, %v151
  %v159 = vmul.f32 %v147, %v155
  %v160 = vmul.f32 %v148, %v155
  %165 = vrot.lane.b32.xlu0 %v157, 127
  %v166 = vpop.permute.xlu0 %165
  %167 = vrot.lane.b32.xlu0 %v158, 127
  %v168 = vpop.permute.xlu0 %167
  %169 = vrot.lane.b32.xlu0 %v159, 127
  %v170 = vpop.permute.xlu0 %169
  %171 = vrot.lane.b32.xlu0 %v160, 127
  %v172 = vpop.permute.xlu0 %171
  %vm173 = vcmask 1039360
  %v174 = vsel %vm173, %v166, %v168
  %v175 = vsel %vm173, %v170, %v172
  %v178 = vadd.f32 %v134, %v174
  %v179 = vadd.f32 %v135, %v175
  %v180 = vperm.slane %v115, 2
  %182 = vrot.lane.b32.xlu0 %v180, 2
  %v183 = vpop.permute.xlu0 %182
  %v185 = vmul.f32 %v136, %v183
  %v186 = vmul.f32 %v137, %v183
  %v187 = vmul.f32 %v138, %v183
  %v188 = vmul.f32 %v139, %v183
  %189 = vset.pattern.permute.xlu0 2
  %190 = vperm.xlu0 %189, %v117
  %v191 = vpop.permute.xlu0 %190
  %193 = vset.pattern.permute.xlu0 2
  %194 = vperm.xlu0 %193, %v118
  %v195 = vpop.permute.xlu0 %194
  %v197 = vmul.f32 %v185, %v191
  %v198 = vmul.f32 %v186, %v191
  %v199 = vmul.f32 %v187, %v195
  %v200 = vmul.f32 %v188, %v195
  %205 = vrot.lane.b32.xlu0 %v197, 126
  %v206 = vpop.permute.xlu0 %205
  %207 = vrot.lane.b32.xlu0 %v198, 126
  %v208 = vpop.permute.xlu0 %207
  %209 = vrot.lane.b32.xlu0 %v199, 126
  %v210 = vpop.permute.xlu0 %209
  %211 = vrot.lane.b32.xlu0 %v200, 126
  %v212 = vpop.permute.xlu0 %211
  %vm213 = vcmask 1031168
  %v214 = vsel %vm213, %v206, %v208
  %v215 = vsel %vm213, %v210, %v212
  %v218 = vadd.f32 %v178, %v214
  %v219 = vadd.f32 %v179, %v215
  %v220 = vperm.slane %v115, 3
  %222 = vrot.lane.b32.xlu0 %v220, 7
  %v223 = vpop.permute.xlu0 %222
  %v225 = vmul.f32 %v136, %v223
  %v226 = vmul.f32 %v137, %v223
  %v227 = vmul.f32 %v138, %v223
  %v228 = vmul.f32 %v139, %v223
  %229 = vset.pattern.permute.xlu0 3
  %230 = vperm.xlu0 %229, %v117
  %v231 = vpop.permute.xlu0 %230
  %233 = vset.pattern.permute.xlu0 3
  %234 = vperm.xlu0 %233, %v118
  %v235 = vpop.permute.xlu0 %234
  %v237 = vmul.f32 %v225, %v231
  %v238 = vmul.f32 %v226, %v231
  %v239 = vmul.f32 %v227, %v235
  %v240 = vmul.f32 %v228, %v235
  %245 = vrot.lane.b32.xlu0 %v237, 121
  %v246 = vpop.permute.xlu0 %245
  %247 = vrot.lane.b32.xlu0 %v238, 121
  %v248 = vpop.permute.xlu0 %247
  %249 = vrot.lane.b32.xlu0 %v239, 121
  %v250 = vpop.permute.xlu0 %249
  %251 = vrot.lane.b32.xlu0 %v240, 121
  %v252 = vpop.permute.xlu0 %251
  %vm253 = vcmask 990208
  %v254 = vsel %vm253, %v246, %v248
  %v255 = vsel %vm253, %v250, %v252
  %v258 = vadd.f32 %v218, %v254
  %v259 = vadd.f32 %v219, %v255
  %v260 = vperm.slane %v115, 4
  %262 = vrot.lane.b32.xlu0 %v260, 8
  %v263 = vpop.permute.xlu0 %262
  %v265 = vmul.f32 %v136, %v263
  %v266 = vmul.f32 %v137, %v263
  %v267 = vmul.f32 %v138, %v263
  %v268 = vmul.f32 %v139, %v263
  %269 = vset.pattern.permute.xlu0 4
  %270 = vperm.xlu0 %269, %v117
  %v271 = vpop.permute.xlu0 %270
  %273 = vset.pattern.permute.xlu0 4
  %274 = vperm.xlu0 %273, %v118
  %v275 = vpop.permute.xlu0 %274
  %v277 = vmul.f32 %v265, %v271
  %v278 = vmul.f32 %v266, %v271
  %v279 = vmul.f32 %v267, %v275
  %v280 = vmul.f32 %v268, %v275
  %285 = vrot.lane.b32.xlu0 %v277, 120
  %v286 = vpop.permute.xlu0 %285
  %287 = vrot.lane.b32.xlu0 %v278, 120
  %v288 = vpop.permute.xlu0 %287
  %289 = vrot.lane.b32.xlu0 %v279, 120
  %v290 = vpop.permute.xlu0 %289
  %291 = vrot.lane.b32.xlu0 %v280, 120
  %v292 = vpop.permute.xlu0 %291
  %vm293 = vcmask 982016
  %v294 = vsel %vm293, %v286, %v288
  %v295 = vsel %vm293, %v290, %v292
  %v298 = vadd.f32 %v258, %v294
  %v299 = vadd.f32 %v259, %v295
  %v300 = vperm.slane %v115, 5
  %302 = vrot.lane.b32.xlu0 %v300, 9
  %v303 = vpop.permute.xlu0 %302
  %v305 = vmul.f32 %v136, %v303
  %v306 = vmul.f32 %v137, %v303
  %v307 = vmul.f32 %v138, %v303
  %v308 = vmul.f32 %v139, %v303
  %309 = vset.pattern.permute.xlu0 5
  %310 = vperm.xlu0 %309, %v117
  %v311 = vpop.permute.xlu0 %310
  %313 = vset.pattern.permute.xlu0 5
  %314 = vperm.xlu0 %313, %v118
  %v315 = vpop.permute.xlu0 %314
  %v317 = vmul.f32 %v305, %v311
  %v318 = vmul.f32 %v306, %v311
  %v319 = vmul.f32 %v307, %v315
  %v320 = vmul.f32 %v308, %v315
  %325 = vrot.lane.b32.xlu0 %v317, 119
  %v326 = vpop.permute.xlu0 %325
  %327 = vrot.lane.b32.xlu0 %v318, 119
  %v328 = vpop.permute.xlu0 %327
  %329 = vrot.lane.b32.xlu0 %v319, 119
  %v330 = vpop.permute.xlu0 %329
  %331 = vrot.lane.b32.xlu0 %v320, 119
  %v332 = vpop.permute.xlu0 %331
  %vm333 = vcmask 973824
  %v334 = vsel %vm333, %v326, %v328
  %v335 = vsel %vm333, %v330, %v332
  %v338 = vadd.f32 %v298, %v334
  %v339 = vadd.f32 %v299, %v335
  %v340 = vperm.slane %v115, 6
  %342 = vrot.lane.b32.xlu0 %v340, 14
  %v343 = vpop.permute.xlu0 %342
  %v345 = vmul.f32 %v136, %v343
  %v346 = vmul.f32 %v137, %v343
  %v347 = vmul.f32 %v138, %v343
  %v348 = vmul.f32 %v139, %v343
  %349 = vset.pattern.permute.xlu0 6
  %350 = vperm.xlu0 %349, %v117
  %v351 = vpop.permute.xlu0 %350
  %353 = vset.pattern.permute.xlu0 6
  %354 = vperm.xlu0 %353, %v118
  %v355 = vpop.permute.xlu0 %354
  %v357 = vmul.f32 %v345, %v351
  %v358 = vmul.f32 %v346, %v351
  %v359 = vmul.f32 %v347, %v355
  %v360 = vmul.f32 %v348, %v355
  %365 = vrot.lane.b32.xlu0 %v357, 114
  %v366 = vpop.permute.xlu0 %365
  %367 = vrot.lane.b32.xlu0 %v358, 114
  %v368 = vpop.permute.xlu0 %367
  %369 = vrot.lane.b32.xlu0 %v359, 114
  %v370 = vpop.permute.xlu0 %369
  %371 = vrot.lane.b32.xlu0 %v360, 114
  %v372 = vpop.permute.xlu0 %371
  %vm373 = vcmask 932864
  %v374 = vsel %vm373, %v366, %v368
  %v375 = vsel %vm373, %v370, %v372
  %v378 = vadd.f32 %v338, %v374
  %v379 = vadd.f32 %v339, %v375
  %v380 = vperm.slane %v115, 7
  %382 = vrot.lane.b32.xlu0 %v380, 15
  %v383 = vpop.permute.xlu0 %382
  %v385 = vmul.f32 %v136, %v383
  %v386 = vmul.f32 %v137, %v383
  %v387 = vmul.f32 %v138, %v383
  %v388 = vmul.f32 %v139, %v383
  %389 = vset.pattern.permute.xlu0 7
  %390 = vperm.xlu0 %389, %v117
  %v391 = vpop.permute.xlu0 %390
  %393 = vset.pattern.permute.xlu0 7
  %394 = vperm.xlu0 %393, %v118
  %v395 = vpop.permute.xlu0 %394
  %v397 = vmul.f32 %v385, %v391
  %v398 = vmul.f32 %v386, %v391
  %v399 = vmul.f32 %v387, %v395
  %v400 = vmul.f32 %v388, %v395
  %405 = vrot.lane.b32.xlu0 %v397, 113
  %v406 = vpop.permute.xlu0 %405
  %407 = vrot.lane.b32.xlu0 %v398, 113
  %v408 = vpop.permute.xlu0 %407
  %409 = vrot.lane.b32.xlu0 %v399, 113
  %v410 = vpop.permute.xlu0 %409
  %411 = vrot.lane.b32.xlu0 %v400, 113
  %v412 = vpop.permute.xlu0 %411
  %vm413 = vcmask 924672
  %v414 = vsel %vm413, %v406, %v408
  %v415 = vsel %vm413, %v410, %v412
  %v418 = vadd.f32 %v378, %v414
  %v419 = vadd.f32 %v379, %v415
  %v420 = vperm.slane %v116, 0
  %422 = vrot.lane.b32.xlu0 %v420, 16
  %v423 = vpop.permute.xlu0 %422
  %v425 = vmul.f32 %v136, %v423
  %v426 = vmul.f32 %v137, %v423
  %v427 = vmul.f32 %v138, %v423
  %v428 = vmul.f32 %v139, %v423
  %429 = vset.pattern.permute.xlu0 8
  %430 = vperm.xlu0 %429, %v117
  %v431 = vpop.permute.xlu0 %430
  %433 = vset.pattern.permute.xlu0 8
  %434 = vperm.xlu0 %433, %v118
  %v435 = vpop.permute.xlu0 %434
  %v437 = vmul.f32 %v425, %v431
  %v438 = vmul.f32 %v426, %v431
  %v439 = vmul.f32 %v427, %v435
  %v440 = vmul.f32 %v428, %v435
  %445 = vrot.lane.b32.xlu0 %v437, 112
  %v446 = vpop.permute.xlu0 %445
  %447 = vrot.lane.b32.xlu0 %v438, 112
  %v448 = vpop.permute.xlu0 %447
  %449 = vrot.lane.b32.xlu0 %v439, 112
  %v450 = vpop.permute.xlu0 %449
  %451 = vrot.lane.b32.xlu0 %v440, 112
  %v452 = vpop.permute.xlu0 %451
  %vm453 = vcmask 916480
  %v454 = vsel %vm453, %v446, %v448
  %v455 = vsel %vm453, %v450, %v452
  %v458 = vadd.f32 %v418, %v454
  %v459 = vadd.f32 %v419, %v455
  %v460 = vld [vmem:[%s4] sm:$0xff]
  %v461 = vld [vmem:[%s4 + $0x8] sm:$0xf]
  %463 = vset.pattern.permute.xlu0 0
  %464 = vperm.xlu0 %463, %v460
  %v465 = vpop.permute.xlu0 %464
  %468 = vset.pattern.permute.xlu0 0
  %469 = vperm.xlu0 %468, %v461
  %v470 = vpop.permute.xlu0 %469
  %v472 = vadd.f32 %v458, %v465
  %v473 = vadd.f32 %v459, %v470
  %v474 = vld [vmem:[%s5] sm:$0xf]
  %v475 = vld [vmem:[%s5 + $0x4] sm:$0xf]
  %v476 = vld [vmem:[%s5 + $0x8] sm:$0xf]
  %v477 = vld [vmem:[%s5 + $0xc] sm:$0xf]
  %v478 = vld [vmem:[%s5 + $0x10] sm:$0xf]
  %v479 = vld [vmem:[%s5 + $0x14] sm:$0xf]
  %v480 = vpack.c.bf16 %v473, %v472
  %v481 = vld [vmem:[%s6] sm:$0xff]
  %v482 = vld [vmem:[%s6 + $0x8] sm:$0xff]
  %v483 = vld [vmem:[%s6 + $0x10] sm:$0xff]
  %v484 = vld [vmem:[%s6 + $0x18] sm:$0xff]
  %v485 = vld [vmem:[%s6 + $0x20] sm:$0xff]
  %v486 = vld [vmem:[%s6 + $0x28] sm:$0xff]
  %488 = vset.pattern.permute.xlu0 0
  %489 = vperm.xlu0 %488, %v481
  %v490 = vpop.permute.xlu0 %489
  %493 = vset.pattern.permute.xlu0 0
  %494 = vperm.xlu0 %493, %v482
  %v495 = vpop.permute.xlu0 %494
  %498 = vset.pattern.permute.xlu0 0
  %499 = vperm.xlu0 %498, %v483
  %v500 = vpop.permute.xlu0 %499
  %503 = vset.pattern.permute.xlu0 0
  %504 = vperm.xlu0 %503, %v484
  %v505 = vpop.permute.xlu0 %504
  %508 = vset.pattern.permute.xlu0 0
  %509 = vperm.xlu0 %508, %v485
  %v510 = vpop.permute.xlu0 %509
  %513 = vset.pattern.permute.xlu0 0
  %514 = vperm.xlu0 %513, %v486
  %v515 = vpop.permute.xlu0 %514
  %v523 = vunpack.c.l.b16 %v474
  %v524 = vunpack.c.l.b16 %v475
  %v525 = vunpack.c.l.b16 %v476
  %v526 = vunpack.c.l.b16 %v477
  %v527 = vunpack.c.l.b16 %v478
  %v528 = vunpack.c.l.b16 %v479
  %v529 = vpack.c.b16 %v524, %v523
  %v530 = vpack.c.b16 %v526, %v525
  %v531 = vpack.c.b16 %v528, %v527
  %vm532 = vcmask 97280
  %v534 = vsel %vm532, %v529, 0
  %v537 = vsel %vm532, %v530, 0
  %v540 = vsel %vm532, %v531, 0
  %vm542 = vcmask 1045504
  %v544 = vsel %vm542, %v480, 0
  %546 = vmatpush.bf16.msra.mxu0 0
  %547 = vmatpush.bf16.msra.mxu0 0
  %548 = vmatpush.bf16.msra.mxu0 0
  %549 = vmatpush.bf16.msra.mxu0 0
  %550 = vmatpush.bf16.msra.mxu0 0
  %551 = vmatpush.bf16.msra.mxu0 0
  %552 = vmatpush.bf16.msra.mxu0 0
  %553 = vmatpush.bf16.msra.mxu0 %v544
  %554 = vmatmul.bf16.gmra.mxu0 %v534
  %v555 = vpop.f32.mrf.mxu0
  %v556 = vadd.f32 %v490, %v555
  %v557 = vpop.f32.mrf.mxu0
  %v558 = vadd.f32 %v495, %v557
  %559 = vmatmul.bf16.gmra.mxu0 %v537
  %v560 = vpop.f32.mrf.mxu0
  %v561 = vadd.f32 %v500, %v560
  %v562 = vpop.f32.mrf.mxu0
  %v563 = vadd.f32 %v505, %v562
  %564 = vmatmul.bf16.gmra.mxu0 %v540
  %v565 = vpop.f32.mrf.mxu0
  %v566 = vadd.f32 %v510, %v565
  %v567 = vpop.f32.mrf.mxu0
  %v568 = vadd.f32 %v515, %v567
  %569 = vdwg.mxu0
  %v570 = vunpack.c.l.bf16 %v30
  %v571 = vunpack.c.l.bf16 %v31
  %v572 = vunpack.c.l.bf16 %v32
  %v573 = vunpack.c.l.bf16 %v33
  %v574 = vunpack.c.l.bf16 %v34
  %v575 = vunpack.c.l.bf16 %v35
  %v576 = vadd.f32 %v556, %v570
  %v577 = vadd.f32 %v558, %v571
  %v578 = vadd.f32 %v561, %v572
  %v579 = vadd.f32 %v563, %v573
  %v580 = vadd.f32 %v566, %v574
  %v581 = vadd.f32 %v568, %v575
  %v582 = vmax.f32 %v576, 0.0
  %v583 = vmax.f32 %v577, 0.0
  %v584 = vmax.f32 %v578, 0.0
  %v585 = vmax.f32 %v579, 0.0
  %v586 = vmax.f32 %v580, 0.0
  %v587 = vmax.f32 %v581, 0.0
  %v588 = vpack.c.bf16 %v582, %v582
  %v589 = vpack.c.bf16 %v583, %v583
  %v590 = vpack.c.bf16 %v584, %v584
  %v591 = vpack.c.bf16 %v585, %v585
  %v592 = vpack.c.bf16 %v586, %v586
  %v593 = vpack.c.bf16 %v587, %v587
  %594 = vst [vmem:[%s8] sm:$0xf] %v588
  %595 = vst [vmem:[%s8 + $0x4] sm:$0xf] %v589
  %596 = vst [vmem:[%s8 + $0x8] sm:$0xf] %v590
  %597 = vst [vmem:[%s8 + $0xc] sm:$0xf] %v591
  %598 = vst [vmem:[%s8 + $0x10] sm:$0xf] %v592
  %599 = vst [vmem:[%s8 + $0x14] sm:$0xf] %v593
  // Predicated region
  $region34: #{_lambda_.9} parent=0 // pred_check
    _
  $region35: #{_lambda_.9} parent=0 // pred_check_branch
    %601 = sbr.rel (0) target = $region37
  $region36: #{_lambda_.9} parent=0 // pred_region
    _
  $region37: #{_lambda_.9} parent=0 // pred_fallthru
    _
  // Predicated region
  $region38: #{_lambda_.9} parent=0 // pred_check
    _
  $region39: #{_lambda_.9} parent=0 // pred_check_branch
    %603 = sbr.rel (0) target = $region41
  $region40: #{_lambda_.9} parent=0 // pred_region
    _
  $region41: #{_lambda_.9} parent=0 // pred_fallthru
    _

</llo_original>
